<compile_context>
chip_gen: v7x
topology: tpu7x:2x2x1
jax: 0.10.0
libtpu: 0.0.40
codegen_flags: <defaults>
</compile_context>

<pallas_src>
import functools

import jax
import jax.numpy as jnp
from jax.experimental import pallas as pl
from jax.experimental.pallas import tpu as pltpu


_VMEM_LIMIT = 32 * 1024 * 1024   # safe on v5e/v6e/v7x; well above worst-case ~13 MiB


# ------------------------------ small helpers ----------------------------------

def _round_up(x, m):
    return (x + m - 1) // m * m


def _pad2d(a, rows, cols):
    r, c = a.shape
    if r == rows and c == cols:
        return a
    return jnp.pad(a, ((0, rows - r), (0, cols - c)))


def _pick_tiles(m, k, c):
    """Tile sizes + padded extents for the im2col matmul kernels.
    K / Cout padded to lane multiples (128), M to 8.  Worst case
    (tm, tk, tn) = (1024, 1024, 512) double-buffered is ~12 MiB of VMEM."""
    kp = _round_up(k, 128)
    cp = _round_up(c, 128)
    tk = min(kp, 1024)
    tn = min(cp, 512)          # single Cout tile up to 512 -> no patch re-streaming
    tm = min(1024, _round_up(m, 8))
    mp = _round_up(m, tm)
    kp = _round_up(kp, tk)
    cp = _round_up(cp, tn)
    return tm, tk, tn, mp, kp, cp


# ------------------------------ Pallas kernels ----------------------------------

def _conv_bias_act_kernel(nk, apply_lrelu, x_ref, w_ref, b_ref, o_ref, acc_ref):
    """One (tm, tn) output tile: K-reduction matmul + fused bias (+ LeakyReLU)."""
    k = pl.program_id(2)

    @pl.when(k == 0)
    def _():
        acc_ref[...] = jnp.zeros_like(acc_ref)

    acc_ref[...] += jnp.dot(x_ref[...], w_ref[...],
                            preferred_element_type=jnp.float32)

    @pl.when(k == nk - 1)
    def _():
        y = acc_ref[...] + b_ref[...]
        if apply_lrelu:
            y = jnp.where(y >= 0.0, y, 0.2 * y)
        o_ref[...] = y.astype(o_ref.dtype)


def _conv_stats_kernel(nk, x_ref, w_ref, o_ref, sum_ref, ssq_ref, acc_ref):
    """Conv matmul (no bias) that emits per-(M tile, Cout tile) partial channel
    sums / sums-of-squares of the f32 accumulator.  No cross-grid-step state for
    the stats, so the M grid axis can be 'parallel' (v7x megacore)."""
    k = pl.program_id(2)

    @pl.when(k == 0)
    def _():
        acc_ref[...] = jnp.zeros_like(acc_ref)

    acc_ref[...] += jnp.dot(x_ref[...], w_ref[...],
                            preferred_element_type=jnp.float32)

    @pl.when(k == nk - 1)
    def _():
        y = acc_ref[...]
        o_ref[...] = y.astype(o_ref.dtype)
        s = jnp.sum(y, axis=0, keepdims=True)
        q = jnp.sum(y * y, axis=0, keepdims=True)
        # (8, tn) block for lane/sublane-friendly stores; row 0 is used downstream.
        sum_ref[...] = jnp.broadcast_to(s, sum_ref.shape)
        ssq_ref[...] = jnp.broadcast_to(q, ssq_ref.shape)


def _fused_s1_conv_kernel(wp_, oh, ow, apply_lrelu, compute_stats,
                          x_ref, w_ref, b_ref, *outs):
    """Fused stride-1 4x4 conv for one (image, Cout tile):
    16 shift-accumulate MXU matmuls on the flattened padded activation slab,
    fused bias (+ LeakyReLU) epilogue, optional masked per-channel BN stats."""
    if compute_stats:
        o_ref, sum_ref, ssq_ref, acc_ref = outs
    else:
        o_ref, acc_ref = outs
    mout = acc_ref.shape[0]

    acc_ref[...] = jnp.zeros_like(acc_ref)
    for t in range(16):                       # unrolled 4x4 taps
        i, j = divmod(t, 4)
        off = i * wp_ + j                     # static flat offset of this tap
        lhs = x_ref[pl.ds(off, mout), :]
        acc_ref[...] += jnp.dot(lhs, w_ref[t],
                                preferred_element_type=jnp.float32)

    acc = acc_ref[...]
    y = acc + b_ref[...]
    if apply_lrelu:
        y = jnp.where(y >= 0.0, y, 0.2 * y)
    o_ref[...] = y.astype(o_ref.dtype)

    if compute_stats:
        # Valid output positions: flat p = oh*Wp + ow with ow < OW and p < OH*Wp
        # (the last 3 columns of each row and trailing pad rows are over-compute).
        p = jax.lax.broadcasted_iota(jnp.int32, acc.shape, 0)
        valid = jnp.logical_and(p % wp_ < ow, p < oh * wp_)
        ym = jnp.where(valid, acc, 0.0)
        s = jnp.sum(ym, axis=0, keepdims=True)
        q = jnp.sum(ym * ym, axis=0, keepdims=True)
        sum_ref[...] = jnp.broadcast_to(s, sum_ref.shape)
        ssq_ref[...] = jnp.broadcast_to(q, ssq_ref.shape)


# ------------------------------ pallas_call wrappers -----------------------------

def _conv_matmul_bias_act(patches, w, bias, apply_lrelu, out_dtype):
    m, k = patches.shape
    c = w.shape[1]
    tm, tk, tn, mp, kp, cp = _pick_tiles(m, k, c)
    nk = kp // tk

    x_p = _pad2d(patches.astype(jnp.bfloat16), mp, kp)
    w_p = _pad2d(w.astype(jnp.bfloat16), kp, cp)
    b_p = _pad2d(bias.astype(jnp.float32), 1, cp)

    out = pl.pallas_call(
        functools.partial(_conv_bias_act_kernel, nk, apply_lrelu),
        out_shape=jax.ShapeDtypeStruct((mp, cp), out_dtype),
        grid_spec=pltpu.PrefetchScalarGridSpec(
            num_scalar_prefetch=0,
            grid=(cp // tn, mp // tm, nk),        # (j: Cout, i: M, k: K reduction)
            in_specs=[
                pl.BlockSpec((tm, tk), lambda j, i, k: (i, k)),
                pl.BlockSpec((tk, tn), lambda j, i, k: (k, j)),
                pl.BlockSpec((1, tn), lambda j, i, k: (0, j)),
            ],
            out_specs=pl.BlockSpec((tm, tn), lambda j, i, k: (i, j)),
            scratch_shapes=[pltpu.VMEM((tm, tn), jnp.float32)],
        ),
        compiler_params=pltpu.CompilerParams(
            dimension_semantics=("parallel", "parallel", "arbitrary"),
            vmem_limit_bytes=_VMEM_LIMIT),
    )(x_p, w_p, b_p)
    return out[:m, :c]


def _conv_matmul_stats(patches, w):
    """Returns (y[m, c] bf16, per-channel sum, per-channel sum-of-squares, count)."""
    m, k = patches.shape
    c = w.shape[1]
    tm, tk, tn, mp, kp, cp = _pick_tiles(m, k, c)
    nk = kp // tk
    ni = mp // tm

    x_p = _pad2d(patches.astype(jnp.bfloat16), mp, kp)
    w_p = _pad2d(w.astype(jnp.bfloat16), kp, cp)

    y_pad, psum, pssq = pl.pallas_call(
        functools.partial(_conv_stats_kernel, nk),
        out_shape=(
            jax.ShapeDtypeStruct((mp, cp), jnp.bfloat16),
            jax.ShapeDtypeStruct((ni, 8, cp), jnp.float32),
            jax.ShapeDtypeStruct((ni, 8, cp), jnp.float32),
        ),
        grid_spec=pltpu.PrefetchScalarGridSpec(
            num_scalar_prefetch=0,
            grid=(cp // tn, ni, nk),
            in_specs=[
                pl.BlockSpec((tm, tk), lambda j, i, k: (i, k)),
                pl.BlockSpec((tk, tn), lambda j, i, k: (k, j)),
            ],
            out_specs=(
                pl.BlockSpec((tm, tn), lambda j, i, k: (i, j)),
                pl.BlockSpec((None, 8, tn), lambda j, i, k: (i, 0, j)),
                pl.BlockSpec((None, 8, tn), lambda j, i, k: (i, 0, j)),
            ),
            scratch_shapes=[pltpu.VMEM((tm, tn), jnp.float32)],
        ),
        compiler_params=pltpu.CompilerParams(
            dimension_semantics=("parallel", "parallel", "arbitrary"),
            vmem_limit_bytes=_VMEM_LIMIT),
    )(x_p, w_p)

    # Padded patch rows produce exactly-zero conv outputs (no bias), so the partial
    # sums stay exact; divide by the real row count.
    csum = psum[:, 0, :c].sum(axis=0)
    cssq = pssq[:, 0, :c].sum(axis=0)
    return y_pad[:m, :c], csum, cssq, m


def _fused_s1_conv(x_nhwc, w_kc, bias, apply_lrelu, compute_stats, out_dtype):
    """Stride-1 4x4 conv (pad=1) without materializing im2col patches."""
    n, h, w, cin = x_nhwc.shape
    cout = w_kc.shape[1]
    hp, wp_ = h + 2, w + 2
    oh, ow = hp - 3, wp_ - 3
    mout = _round_up(oh * wp_, 8)                      # over-computed output rows
    min_rows = _round_up(mout + 3 * wp_ + 4, 8)        # covers max tap offset
    cinp = _round_up(cin, 128)
    coutp = _round_up(cout, 128)
    tn = min(coutp, 512)

    xp = jnp.pad(x_nhwc.astype(jnp.bfloat16),
                 ((0, 0), (1, 1), (1, 1), (0, cinp - cin)))
    x_flat = xp.reshape(n, hp * wp_, cinp)
    x_flat = jnp.pad(x_flat, ((0, 0), (0, min_rows - hp * wp_), (0, 0)))

    w_t = jnp.pad(w_kc.astype(jnp.bfloat16).reshape(16, cin, cout),
                  ((0, 0), (0, cinp - cin), (0, coutp - cout)))
    if bias is None:
        b_p = jnp.zeros((1, coutp), jnp.float32)
    else:
        b_p = _pad2d(bias.astype(jnp.float32), 1, coutp)

    y_spec = pl.BlockSpec((None, mout, tn), lambda b, j: (b, 0, j))
    s_spec = pl.BlockSpec((None, 8, tn), lambda b, j: (b, 0, j))
    if compute_stats:
        out_shape = (jax.ShapeDtypeStruct((n, mout, coutp), out_dtype),
                     jax.ShapeDtypeStruct((n, 8, coutp), jnp.float32),
                     jax.ShapeDtypeStruct((n, 8, coutp), jnp.float32))
        out_specs = (y_spec, s_spec, s_spec)
    else:
        out_shape = jax.ShapeDtypeStruct((n, mout, coutp), out_dtype)
        out_specs = y_spec

    res = pl.pallas_call(
        functools.partial(_fused_s1_conv_kernel, wp_, oh, ow,
                          apply_lrelu, compute_stats),
        out_shape=out_shape,
        grid_spec=pltpu.PrefetchScalarGridSpec(
            num_scalar_prefetch=0,
            grid=(n, coutp // tn),
            in_specs=[
                pl.BlockSpec((None, min_rows, cinp), lambda b, j: (b, 0, 0)),
                pl.BlockSpec((16, cinp, tn), lambda b, j: (0, 0, j)),
                pl.BlockSpec((1, tn), lambda b, j: (0, j)),
            ],
            out_specs=out_specs,
            scratch_shapes=[pltpu.VMEM((mout, tn), jnp.float32)],
        ),
        compiler_params=pltpu.CompilerParams(
            dimension_semantics=("parallel", "parallel"),
            vmem_limit_bytes=_VMEM_LIMIT),
    )(x_flat, w_t, b_p)

    if compute_stats:
        y_pad, psum, pssq = res
    else:
        y_pad = res

    y = y_pad[:, :oh * wp_, :cout].reshape(n, oh, wp_, cout)[:, :, :ow, :]
    if compute_stats:
        csum = psum[:, 0, :cout].sum(axis=0)
        cssq = pssq[:, 0, :cout].sum(axis=0)
        return y, csum, cssq, n * oh * ow
    return y


# ------------------------------ JAX glue ----------------------------------------

def im2col(x, kh, kw, stride, pad):
    """x: NHWC. Returns ([N*OH*OW, kh*kw*C], (N, OH, OW)). Feature order (kh, kw, cin).
    Only used for the stride-2 layers (1-3); stride-1 layers use the fused kernel."""
    x = jnp.pad(x, ((0, 0), (pad, pad), (pad, pad), (0, 0)))
    n, h, w, c = x.shape
    oh = (h - kh) // stride + 1
    ow = (w - kw) // stride + 1
    cols = []
    for i in range(kh):
        for j in range(kw):
            cols.append(x[:, i:i + stride * oh:stride, j:j + stride * ow:stride, :])
    p = jnp.concatenate(cols, axis=-1)  # [N, OH, OW, kh*kw*C]
    return p.reshape(n * oh * ow, kh * kw * c), (n, oh, ow)


def conv_s2_bias_lrelu(x_nhwc, w, bias):
    """Layer 1: stride-2 conv + bias + LeakyReLU (im2col matmul)."""
    p, (n, oh, ow) = im2col(x_nhwc.astype(jnp.bfloat16), 4, 4, 2, 1)
    y = _conv_matmul_bias_act(p, w, bias, apply_lrelu=True, out_dtype=jnp.bfloat16)
    return y.reshape(n, oh, ow, w.shape[1])


def conv_s2_stats(x_nhwc, w):
    """Layers 2-3: stride-2 conv (no bias) + one-pass per-channel stats."""
    p, (n, oh, ow) = im2col(x_nhwc.astype(jnp.bfloat16), 4, 4, 2, 1)
    y, csum, cssq, count = _conv_matmul_stats(p, w)
    return y.reshape(n, oh, ow, w.shape[1]), csum, cssq, count


def _bn_lrelu_jax(y_bf16, csum, cssq, count, gamma, beta, eps=1e-5):
    """BatchNorm (training-mode batch stats, biased variance) + LeakyReLU(0.2).
    Plain JAX so XLA fuses it into the next layer's data preparation."""
    mean = csum / count
    var = jnp.maximum(cssq / count - mean * mean, 0.0)
    scale = gamma.reshape(-1) * jax.lax.rsqrt(var + eps)
    shift = beta.reshape(-1) - mean * scale
    z = y_bf16.astype(jnp.float32) * scale + shift
    return jnp.where(z >= 0.0, z, 0.2 * z).astype(jnp.bfloat16)


def init_params(key, input_nc, ndf):
    """Deterministic synthetic weights. Conv weights generated in PyTorch
    [Cout,Cin,kh,kw] order and reshaped to the (kh,kw,cin)-major layout."""
    keys = jax.random.split(key, 7)

    def conv_w(k, cin, cout, kh=4, kw=4):
        w = jax.random.normal(k, (cout, cin, kh, kw), jnp.float32) * 0.02
        return jnp.transpose(w, (2, 3, 1, 0)).reshape(kh * kw * cin, cout)

    return {
        # layer 1: Conv(input_nc, ndf, 4, s2, p1, bias=True) + LeakyReLU
        "w1": conv_w(keys[0], input_nc, ndf),
        "b1": jax.random.normal(keys[1], (1, ndf), jnp.float32) * 0.02,
        # layer 2: Conv(ndf, 2ndf, 4, s2, p1, bias=False) + BN + LeakyReLU
        "w2": conv_w(keys[2], ndf, ndf * 2),
        "g2": jnp.ones((1, ndf * 2), jnp.float32), "be2": jnp.zeros((1, ndf * 2), jnp.float32),
        # layer 3: Conv(2ndf, 4ndf, 4, s2, p1, bias=False) + BN + LeakyReLU
        "w3": conv_w(keys[3], ndf * 2, ndf * 4),
        "g3": jnp.ones((1, ndf * 4), jnp.float32), "be3": jnp.zeros((1, ndf * 4), jnp.float32),
        # layer 4: Conv(4ndf, 8ndf, 4, s1, p1, bias=False) + BN + LeakyReLU
        "w4": conv_w(keys[4], ndf * 4, ndf * 8),
        "g4": jnp.ones((1, ndf * 8), jnp.float32), "be4": jnp.zeros((1, ndf * 8), jnp.float32),
        # layer 5: Conv(8ndf, 1, 4, s1, p1, bias=True)
        "w5": conv_w(keys[5], ndf * 8, 1),
        "b5": jax.random.normal(keys[6], (1, 1), jnp.float32) * 0.02,
    }


def discriminator_forward(x_nchw, params):
    x = jnp.transpose(x_nchw, (0, 2, 3, 1))  # NCHW -> NHWC

    # Layer 1: Conv(input_nc, ndf, 4, s2, p1, bias=True) + LeakyReLU(0.2)
    x = conv_s2_bias_lrelu(x, params["w1"], params["b1"])

    # Layers 2-3: stride-2 Conv (no bias) + BatchNorm(batch stats) + LeakyReLU(0.2)
    for t in ("2", "3"):
        y, csum, cssq, count = conv_s2_stats(x, params["w" + t])
        x = _bn_lrelu_jax(y, csum, cssq, count, params["g" + t], params["be" + t])

    # Layer 4: stride-1 Conv (fused in-kernel taps, no bias) + BN + LeakyReLU(0.2)
    y, csum, cssq, count = _fused_s1_conv(x, params["w4"], None,
                                          apply_lrelu=False, compute_stats=True,
                                          out_dtype=jnp.bfloat16)
    x = _bn_lrelu_jax(y, csum, cssq, count, params["g4"], params["be4"])

    # Layer 5: stride-1 Conv(8ndf, 1, bias=True), no activation (use_sigmoid=False)
    y = _fused_s1_conv(x, params["w5"], params["b5"],
                       apply_lrelu=False, compute_stats=False,
                       out_dtype=jnp.float32)
    return jnp.transpose(y, (0, 3, 1, 2))  # NHWC -> NCHW


# --------------------------- pure-JAX reference (same dtype path) ----------------

def reference_forward(x_nchw, params, input_nc, ndf, eps=1e-5):
    def conv(x, w_kc, cin, cout, stride):
        w = w_kc.reshape(4, 4, cin, cout).astype(jnp.bfloat16)
        return jax.lax.conv_general_dilated(
            x.astype(jnp.bfloat16), w, (stride, stride), [(1, 1), (1, 1)],
            dimension_numbers=("NHWC", "HWIO", "NHWC"),
            preferred_element_type=jnp.float32)

    def lrelu(v):
        return jnp.where(v >= 0.0, v, 0.2 * v)

    x = jnp.transpose(x_nchw, (0, 2, 3, 1))
    y = conv(x, params["w1"], input_nc, ndf, 2) + params["b1"].reshape(1, 1, 1, -1)
    x = lrelu(y).astype(jnp.bfloat16)
    for cin, cout, s, t in ((ndf, 2 * ndf, 2, "2"),
                            (2 * ndf, 4 * ndf, 2, "3"),
                            (4 * ndf, 8 * ndf, 1, "4")):
        y = conv(x, params["w" + t], cin, cout, s)                 # f32 accum
        flat = y.reshape(-1, cout)
        mean = jnp.mean(flat, axis=0)
        var = jnp.maximum(jnp.mean(flat * flat, axis=0) - mean * mean, 0.0)
        scale = params["g" + t].reshape(-1) * jax.lax.rsqrt(var + eps)
        shift = params["be" + t].reshape(-1) - mean * scale
        yb = y.astype(jnp.bfloat16).astype(jnp.float32)            # kernel stores bf16
        x = lrelu(yb * scale + shift).astype(jnp.bfloat16)
    y = conv(x, params["w5"], 8 * ndf, 1, 1) + params["b5"].reshape(1, 1, 1, -1)
    return jnp.transpose(y, (0, 3, 1, 2))


if __name__ == "__main__":
    key = jax.random.PRNGKey(0)
    kx, kp = jax.random.split(key)

    input_nc, ndf = 3, 8                    # small channels; PyTorch default ndf=64
    x = jax.random.normal(kx, (2, input_nc, 32, 32), jnp.float32)   # NCHW like PyTorch
    params = init_params(kp, input_nc, ndf)

    fwd = jax.jit(discriminator_forward)
    out = fwd(x, params)
    jax.block_until_ready(out)

    # 32 -> 16 -> 8 -> 4 -> 3 -> 2 spatial; single-channel patch map
    assert out.shape == (2, 1, 2, 2), out.shape
    assert out.dtype == jnp.float32
    assert bool(jnp.all(jnp.isfinite(out)))

    # Sanity check vs. a pure-JAX reference that follows the same bf16/f32 dtype path.
    ref = reference_forward(x, params, input_nc, ndf)
    err = float(jnp.max(jnp.abs(out - ref)))
    assert err < 5e-2, f"max |pallas - ref| = {err}"

    print("KERNEL_OK")
</pallas_src>

<mosaic_0001>
module attributes {stable_mosaic.version = 11 : i64} {
  func.func @_conv_bias_act_kernel(%arg0: i32, %arg1: i32, %arg2: i32, %arg3: memref<512x128xbf16, #tpu.memory_space<vmem>>, %arg4: memref<128x128xbf16, #tpu.memory_space<vmem>>, %arg5: memref<1x128xf32, #tpu.memory_space<vmem>>, %arg6: memref<512x128xbf16, #tpu.memory_space<vmem>>, %arg7: memref<512x128xf32, #tpu.memory_space<vmem>>) attributes {dimension_semantics = [#tpu.dimension_semantics<parallel>, #tpu.dimension_semantics<parallel>, #tpu.dimension_semantics<arbitrary>], iteration_bounds = array<i64: 1, 1, 1>, scalar_prefetch = 0 : i64, scratch_operands = 1 : i64, tpu.core_type = #tpu.core_type<tc>, window_params = [{transform_indices = @transform_0, window_bounds = array<i64: 512, 128>}, {transform_indices = @transform_1, window_bounds = array<i64: 128, 128>}, {transform_indices = @transform_2, window_bounds = array<i64: 1, 128>}, {transform_indices = @transform_3, window_bounds = array<i64: 512, 128>}]} {
    %c0_i32 = arith.constant 0 : i32
    %0 = arith.cmpi eq, %arg2, %c0_i32 : i32
    %1 = arith.extui %0 : i1 to i32
    %c0_i32_0 = arith.constant 0 : i32
    %2 = arith.cmpi ne, %1, %c0_i32_0 : i32
    scf.if %2 {
      %cst_10 = arith.constant 0.000000e+00 : f32
      %12 = vector.broadcast %cst_10 : f32 to vector<512x128xf32>
      %c0_11 = arith.constant 0 : index
      %c0_12 = arith.constant 0 : index
      %13 = vector.load %arg7[%c0_11, %c0_12] : memref<512x128xf32, #tpu.memory_space<vmem>>, vector<512x128xf32>
      tpu.vector_store %arg7[%c0_11, %c0_12], %12 {strides = array<i32>} : memref<512x128xf32, #tpu.memory_space<vmem>>, vector<512x128xf32>,
    } else {
    }
    %c0 = arith.constant 0 : index
    %c0_1 = arith.constant 0 : index
    %3 = vector.load %arg7[%c0, %c0_1] : memref<512x128xf32, #tpu.memory_space<vmem>>, vector<512x128xf32>
    %c0_2 = arith.constant 0 : index
    %c0_3 = arith.constant 0 : index
    %4 = vector.load %arg3[%c0_2, %c0_3] : memref<512x128xbf16, #tpu.memory_space<vmem>>, vector<512x128xbf16>
    %c0_4 = arith.constant 0 : index
    %c0_5 = arith.constant 0 : index
    %5 = vector.load %arg4[%c0_4, %c0_5] : memref<128x128xbf16, #tpu.memory_space<vmem>>, vector<128x128xbf16>
    %cst = arith.constant dense<0.000000e+00> : vector<512x128xf32>
    %6 = tpu.matmul %4, %5, %cst {dimension_numbers = #tpu.dot_dimension_numbers<[1], [0], [0], [1], [0, 0, 1, 1], [], []>} : vector<512x128xbf16>, vector<128x128xbf16>, vector<512x128xf32> -> vector<512x128xf32>
    %7 = arith.addf %3, %6 : vector<512x128xf32>
    %c0_6 = arith.constant 0 : index
    %c0_7 = arith.constant 0 : index
    %8 = vector.load %arg7[%c0_6, %c0_7] : memref<512x128xf32, #tpu.memory_space<vmem>>, vector<512x128xf32>
    tpu.vector_store %arg7[%c0_6, %c0_7], %7 {strides = array<i32>} : memref<512x128xf32, #tpu.memory_space<vmem>>, vector<512x128xf32>,
    %c0_i32_8 = arith.constant 0 : i32
    %9 = arith.cmpi eq, %arg2, %c0_i32_8 : i32
    %10 = arith.extui %9 : i1 to i32
    %c0_i32_9 = arith.constant 0 : i32
    %11 = arith.cmpi ne, %10, %c0_i32_9 : i32
    scf.if %11 {
      %c0_10 = arith.constant 0 : index
      %c0_11 = arith.constant 0 : index
      %12 = vector.load %arg7[%c0_10, %c0_11] : memref<512x128xf32, #tpu.memory_space<vmem>>, vector<512x128xf32>
      %c0_12 = arith.constant 0 : index
      %c0_13 = arith.constant 0 : index
      %13 = vector.load %arg5[%c0_12, %c0_13] : memref<1x128xf32, #tpu.memory_space<vmem>>, vector<1x128xf32>
      %14 = vector.broadcast %13 : vector<1x128xf32> to vector<512x128xf32>
      %15 = arith.addf %12, %14 : vector<512x128xf32>
      %cst_14 = arith.constant 0.000000e+00 : f32
      %16 = vector.broadcast %cst_14 : f32 to vector<512x128xf32>
      %17 = arith.cmpf oge, %15, %16 : vector<512x128xf32>
      %cst_15 = arith.constant 2.000000e-01 : f32
      %18 = vector.broadcast %cst_15 : f32 to vector<512x128xf32>
      %19 = arith.mulf %18, %15 : vector<512x128xf32>
      %20 = arith.select %17, %15, %19 : vector<512x128xi1>, vector<512x128xf32>
      %21 = arith.truncf %20 : vector<512x128xf32> to vector<512x128xbf16>
      %c0_16 = arith.constant 0 : index
      %c0_17 = arith.constant 0 : index
      %22 = vector.load %arg6[%c0_16, %c0_17] : memref<512x128xbf16, #tpu.memory_space<vmem>>, vector<512x128xbf16>
      tpu.vector_store %arg6[%c0_16, %c0_17], %21 {strides = array<i32>} : memref<512x128xbf16, #tpu.memory_space<vmem>>, vector<512x128xbf16>,
    } else {
    }
    return
  }
  func.func @transform_0(%arg0: i32, %arg1: i32, %arg2: i32) -> (i32, i32) {
    %c0_i32 = arith.constant 0 : i32
    return %arg1, %arg2 : i32, i32
  }
  func.func @transform_1(%arg0: i32, %arg1: i32, %arg2: i32) -> (i32, i32) {
    %c0_i32 = arith.constant 0 : i32
    return %arg2, %arg0 : i32, i32
  }
  func.func @transform_2(%arg0: i32, %arg1: i32, %arg2: i32) -> (i32, i32) {
    %c0_i32 = arith.constant 0 : i32
    %c0_i32_0 = arith.constant 0 : i32
    return %c0_i32, %arg0 : i32, i32
  }
  func.func @transform_3(%arg0: i32, %arg1: i32, %arg2: i32) -> (i32, i32) {
    %c0_i32 = arith.constant 0 : i32
    return %arg1, %arg0 : i32, i32
  }
}

module attributes {stable_mosaic.version = 11 : i64} {
  func.func @_conv_stats_kernel(%arg0: i32, %arg1: i32, %arg2: i32, %arg3: memref<128x128xbf16, #tpu.memory_space<vmem>>, %arg4: memref<128x128xbf16, #tpu.memory_space<vmem>>, %arg5: memref<128x128xbf16, #tpu.memory_space<vmem>>, %arg6: memref<1x8x128xf32, #tpu.memory_space<vmem>>, %arg7: memref<1x8x128xf32, #tpu.memory_space<vmem>>, %arg8: memref<128x128xf32, #tpu.memory_space<vmem>>) attributes {dimension_semantics = [#tpu.dimension_semantics<parallel>, #tpu.dimension_semantics<parallel>, #tpu.dimension_semantics<arbitrary>], iteration_bounds = array<i64: 1, 1, 1>, scalar_prefetch = 0 : i64, scratch_operands = 1 : i64, tpu.core_type = #tpu.core_type<tc>, window_params = [{transform_indices = @transform_0, window_bounds = array<i64: 128, 128>}, {transform_indices = @transform_1, window_bounds = array<i64: 128, 128>}, {transform_indices = @transform_2, window_bounds = array<i64: 128, 128>}, {transform_indices = @transform_3, window_bounds = array<i64: 1, 8, 128>}, {transform_indices = @transform_4, window_bounds = array<i64: 1, 8, 128>}]} {
    %c0_i32 = arith.constant 0 : i32
    %0 = arith.cmpi eq, %arg2, %c0_i32 : i32
    %1 = arith.extui %0 : i1 to i32
    %c0_i32_0 = arith.constant 0 : i32
    %2 = arith.cmpi ne, %1, %c0_i32_0 : i32
    scf.if %2 {
      %cst_10 = arith.constant 0.000000e+00 : f32
      %12 = vector.broadcast %cst_10 : f32 to vector<128x128xf32>
      %c0_11 = arith.constant 0 : index
      %c0_12 = arith.constant 0 : index
      %13 = vector.load %arg8[%c0_11, %c0_12] : memref<128x128xf32, #tpu.memory_space<vmem>>, vector<128x128xf32>
      tpu.vector_store %arg8[%c0_11, %c0_12], %12 {strides = array<i32>} : memref<128x128xf32, #tpu.memory_space<vmem>>, vector<128x128xf32>,
    } else {
    }
    %c0 = arith.constant 0 : index
    %c0_1 = arith.constant 0 : index
    %3 = vector.load %arg8[%c0, %c0_1] : memref<128x128xf32, #tpu.memory_space<vmem>>, vector<128x128xf32>
    %c0_2 = arith.constant 0 : index
    %c0_3 = arith.constant 0 : index
    %4 = vector.load %arg3[%c0_2, %c0_3] : memref<128x128xbf16, #tpu.memory_space<vmem>>, vector<128x128xbf16>
    %c0_4 = arith.constant 0 : index
    %c0_5 = arith.constant 0 : index
    %5 = vector.load %arg4[%c0_4, %c0_5] : memref<128x128xbf16, #tpu.memory_space<vmem>>, vector<128x128xbf16>
    %cst = arith.constant dense<0.000000e+00> : vector<128x128xf32>
    %6 = tpu.matmul %4, %5, %cst {dimension_numbers = #tpu.dot_dimension_numbers<[1], [0], [0], [1], [0, 0, 1, 1], [], []>} : vector<128x128xbf16>, vector<128x128xbf16>, vector<128x128xf32> -> vector<128x128xf32>
    %7 = arith.addf %3, %6 : vector<128x128xf32>
    %c0_6 = arith.constant 0 : index
    %c0_7 = arith.constant 0 : index
    %8 = vector.load %arg8[%c0_6, %c0_7] : memref<128x128xf32, #tpu.memory_space<vmem>>, vector<128x128xf32>
    tpu.vector_store %arg8[%c0_6, %c0_7], %7 {strides = array<i32>} : memref<128x128xf32, #tpu.memory_space<vmem>>, vector<128x128xf32>,
    %c0_i32_8 = arith.constant 0 : i32
    %9 = arith.cmpi eq, %arg2, %c0_i32_8 : i32
    %10 = arith.extui %9 : i1 to i32
    %c0_i32_9 = arith.constant 0 : i32
    %11 = arith.cmpi ne, %10, %c0_i32_9 : i32
    scf.if %11 {
      %c0_10 = arith.constant 0 : index
      %c0_11 = arith.constant 0 : index
      %12 = vector.load %arg8[%c0_10, %c0_11] : memref<128x128xf32, #tpu.memory_space<vmem>>, vector<128x128xf32>
      %13 = arith.truncf %12 : vector<128x128xf32> to vector<128x128xbf16>
      %c0_12 = arith.constant 0 : index
      %c0_13 = arith.constant 0 : index
      %14 = vector.load %arg5[%c0_12, %c0_13] : memref<128x128xbf16, #tpu.memory_space<vmem>>, vector<128x128xbf16>
      tpu.vector_store %arg5[%c0_12, %c0_13], %13 {strides = array<i32>} : memref<128x128xbf16, #tpu.memory_space<vmem>>, vector<128x128xbf16>,
      %cst_14 = arith.constant dense<0.000000e+00> : vector<128xf32>
      %15 = vector.multi_reduction <add>, %12, %cst_14 [0] : vector<128x128xf32> to vector<128xf32>
      %16 = vector.shape_cast %15 : vector<128xf32> to vector<1x128xf32>
      %17 = arith.mulf %12, %12 : vector<128x128xf32>
      %cst_15 = arith.constant dense<0.000000e+00> : vector<128xf32>
      %18 = vector.multi_reduction <add>, %17, %cst_15 [0] : vector<128x128xf32> to vector<128xf32>
      %19 = vector.shape_cast %18 : vector<128xf32> to vector<1x128xf32>
      %20 = vector.shape_cast %16 : vector<1x128xf32> to vector<1x128xf32>
      %21 = vector.broadcast %20 : vector<1x128xf32> to vector<8x128xf32>
      %c0_16 = arith.constant 0 : index
      %c0_17 = arith.constant 0 : index
      %c0_18 = arith.constant 0 : index
      %22 = vector.load %arg6[%c0_16, %c0_17, %c0_18] : memref<1x8x128xf32, #tpu.memory_space<vmem>>, vector<1x8x128xf32>
      %23 = vector.shape_cast %22 : vector<1x8x128xf32> to vector<8x128xf32>
      %24 = vector.shape_cast %21 : vector<8x128xf32> to vector<1x8x128xf32>
      tpu.vector_store %arg6[%c0_16, %c0_17, %c0_18], %24 {strides = array<i32>} : memref<1x8x128xf32, #tpu.memory_space<vmem>>, vector<1x8x128xf32>,
      %25 = vector.shape_cast %19 : vector<1x128xf32> to vector<1x128xf32>
      %26 = vector.broadcast %25 : vector<1x128xf32> to vector<8x128xf32>
      %c0_19 = arith.constant 0 : index
      %c0_20 = arith.constant 0 : index
      %c0_21 = arith.constant 0 : index
      %27 = vector.load %arg7[%c0_19, %c0_20, %c0_21] : memref<1x8x128xf32, #tpu.memory_space<vmem>>, vector<1x8x128xf32>
      %28 = vector.shape_cast %27 : vector<1x8x128xf32> to vector<8x128xf32>
      %29 = vector.shape_cast %26 : vector<8x128xf32> to vector<1x8x128xf32>
      tpu.vector_store %arg7[%c0_19, %c0_20, %c0_21], %29 {strides = array<i32>} : memref<1x8x128xf32, #tpu.memory_space<vmem>>, vector<1x8x128xf32>,
    } else {
    }
    return
  }
  func.func @transform_0(%arg0: i32, %arg1: i32, %arg2: i32) -> (i32, i32) {
    %c0_i32 = arith.constant 0 : i32
    return %arg1, %arg2 : i32, i32
  }
  func.func @transform_1(%arg0: i32, %arg1: i32, %arg2: i32) -> (i32, i32) {
    %c0_i32 = arith.constant 0 : i32
    return %arg2, %arg0 : i32, i32
  }
  func.func @transform_2(%arg0: i32, %arg1: i32, %arg2: i32) -> (i32, i32) {
    %c0_i32 = arith.constant 0 : i32
    return %arg1, %arg0 : i32, i32
  }
  func.func @transform_3(%arg0: i32, %arg1: i32, %arg2: i32) -> (i32, i32, i32) {
    %c0_i32 = arith.constant 0 : i32
    %c0_i32_0 = arith.constant 0 : i32
    return %arg1, %c0_i32, %arg0 : i32, i32, i32
  }
  func.func @transform_4(%arg0: i32, %arg1: i32, %arg2: i32) -> (i32, i32, i32) {
    %c0_i32 = arith.constant 0 : i32
    %c0_i32_0 = arith.constant 0 : i32
    return %arg1, %c0_i32, %arg0 : i32, i32, i32
  }
}

module attributes {stable_mosaic.version = 11 : i64} {
  func.func @_conv_stats_kernel(%arg0: i32, %arg1: i32, %arg2: i32, %arg3: memref<32x256xbf16, #tpu.memory_space<vmem>>, %arg4: memref<256x128xbf16, #tpu.memory_space<vmem>>, %arg5: memref<32x128xbf16, #tpu.memory_space<vmem>>, %arg6: memref<1x8x128xf32, #tpu.memory_space<vmem>>, %arg7: memref<1x8x128xf32, #tpu.memory_space<vmem>>, %arg8: memref<32x128xf32, #tpu.memory_space<vmem>>) attributes {dimension_semantics = [#tpu.dimension_semantics<parallel>, #tpu.dimension_semantics<parallel>, #tpu.dimension_semantics<arbitrary>], iteration_bounds = array<i64: 1, 1, 1>, scalar_prefetch = 0 : i64, scratch_operands = 1 : i64, tpu.core_type = #tpu.core_type<tc>, window_params = [{transform_indices = @transform_0, window_bounds = array<i64: 32, 256>}, {transform_indices = @transform_1, window_bounds = array<i64: 256, 128>}, {transform_indices = @transform_2, window_bounds = array<i64: 32, 128>}, {transform_indices = @transform_3, window_bounds = array<i64: 1, 8, 128>}, {transform_indices = @transform_4, window_bounds = array<i64: 1, 8, 128>}]} {
    %c0_i32 = arith.constant 0 : i32
    %0 = arith.cmpi eq, %arg2, %c0_i32 : i32
    %1 = arith.extui %0 : i1 to i32
    %c0_i32_0 = arith.constant 0 : i32
    %2 = arith.cmpi ne, %1, %c0_i32_0 : i32
    scf.if %2 {
      %cst_10 = arith.constant 0.000000e+00 : f32
      %12 = vector.broadcast %cst_10 : f32 to vector<32x128xf32>
      %c0_11 = arith.constant 0 : index
      %c0_12 = arith.constant 0 : index
      %13 = vector.load %arg8[%c0_11, %c0_12] : memref<32x128xf32, #tpu.memory_space<vmem>>, vector<32x128xf32>
      tpu.vector_store %arg8[%c0_11, %c0_12], %12 {strides = array<i32>} : memref<32x128xf32, #tpu.memory_space<vmem>>, vector<32x128xf32>,
    } else {
    }
    %c0 = arith.constant 0 : index
    %c0_1 = arith.constant 0 : index
    %3 = vector.load %arg8[%c0, %c0_1] : memref<32x128xf32, #tpu.memory_space<vmem>>, vector<32x128xf32>
    %c0_2 = arith.constant 0 : index
    %c0_3 = arith.constant 0 : index
    %4 = vector.load %arg3[%c0_2, %c0_3] : memref<32x256xbf16, #tpu.memory_space<vmem>>, vector<32x256xbf16>
    %c0_4 = arith.constant 0 : index
    %c0_5 = arith.constant 0 : index
    %5 = vector.load %arg4[%c0_4, %c0_5] : memref<256x128xbf16, #tpu.memory_space<vmem>>, vector<256x128xbf16>
    %cst = arith.constant dense<0.000000e+00> : vector<32x128xf32>
    %6 = tpu.matmul %4, %5, %cst {dimension_numbers = #tpu.dot_dimension_numbers<[1], [0], [0], [1], [0, 0, 1, 1], [], []>} : vector<32x256xbf16>, vector<256x128xbf16>, vector<32x128xf32> -> vector<32x128xf32>
    %7 = arith.addf %3, %6 : vector<32x128xf32>
    %c0_6 = arith.constant 0 : index
    %c0_7 = arith.constant 0 : index
    %8 = vector.load %arg8[%c0_6, %c0_7] : memref<32x128xf32, #tpu.memory_space<vmem>>, vector<32x128xf32>
    tpu.vector_store %arg8[%c0_6, %c0_7], %7 {strides = array<i32>} : memref<32x128xf32, #tpu.memory_space<vmem>>, vector<32x128xf32>,
    %c0_i32_8 = arith.constant 0 : i32
    %9 = arith.cmpi eq, %arg2, %c0_i32_8 : i32
    %10 = arith.extui %9 : i1 to i32
    %c0_i32_9 = arith.constant 0 : i32
    %11 = arith.cmpi ne, %10, %c0_i32_9 : i32
    scf.if %11 {
      %c0_10 = arith.constant 0 : index
      %c0_11 = arith.constant 0 : index
      %12 = vector.load %arg8[%c0_10, %c0_11] : memref<32x128xf32, #tpu.memory_space<vmem>>, vector<32x128xf32>
      %13 = arith.truncf %12 : vector<32x128xf32> to vector<32x128xbf16>
      %c0_12 = arith.constant 0 : index
      %c0_13 = arith.constant 0 : index
      %14 = vector.load %arg5[%c0_12, %c0_13] : memref<32x128xbf16, #tpu.memory_space<vmem>>, vector<32x128xbf16>
      tpu.vector_store %arg5[%c0_12, %c0_13], %13 {strides = array<i32>} : memref<32x128xbf16, #tpu.memory_space<vmem>>, vector<32x128xbf16>,
      %cst_14 = arith.constant dense<0.000000e+00> : vector<128xf32>
      %15 = vector.multi_reduction <add>, %12, %cst_14 [0] : vector<32x128xf32> to vector<128xf32>
      %16 = vector.shape_cast %15 : vector<128xf32> to vector<1x128xf32>
      %17 = arith.mulf %12, %12 : vector<32x128xf32>
      %cst_15 = arith.constant dense<0.000000e+00> : vector<128xf32>
      %18 = vector.multi_reduction <add>, %17, %cst_15 [0] : vector<32x128xf32> to vector<128xf32>
      %19 = vector.shape_cast %18 : vector<128xf32> to vector<1x128xf32>
      %20 = vector.shape_cast %16 : vector<1x128xf32> to vector<1x128xf32>
      %21 = vector.broadcast %20 : vector<1x128xf32> to vector<8x128xf32>
      %c0_16 = arith.constant 0 : index
      %c0_17 = arith.constant 0 : index
      %c0_18 = arith.constant 0 : index
      %22 = vector.load %arg6[%c0_16, %c0_17, %c0_18] : memref<1x8x128xf32, #tpu.memory_space<vmem>>, vector<1x8x128xf32>
      %23 = vector.shape_cast %22 : vector<1x8x128xf32> to vector<8x128xf32>
      %24 = vector.shape_cast %21 : vector<8x128xf32> to vector<1x8x128xf32>
      tpu.vector_store %arg6[%c0_16, %c0_17, %c0_18], %24 {strides = array<i32>} : memref<1x8x128xf32, #tpu.memory_space<vmem>>, vector<1x8x128xf32>,
      %25 = vector.shape_cast %19 : vector<1x128xf32> to vector<1x128xf32>
      %26 = vector.broadcast %25 : vector<1x128xf32> to vector<8x128xf32>
      %c0_19 = arith.constant 0 : index
      %c0_20 = arith.constant 0 : index
      %c0_21 = arith.constant 0 : index
      %27 = vector.load %arg7[%c0_19, %c0_20, %c0_21] : memref<1x8x128xf32, #tpu.memory_space<vmem>>, vector<1x8x128xf32>
      %28 = vector.shape_cast %27 : vector<1x8x128xf32> to vector<8x128xf32>
      %29 = vector.shape_cast %26 : vector<8x128xf32> to vector<1x8x128xf32>
      tpu.vector_store %arg7[%c0_19, %c0_20, %c0_21], %29 {strides = array<i32>} : memref<1x8x128xf32, #tpu.memory_space<vmem>>, vector<1x8x128xf32>,
    } else {
    }
    return
  }
  func.func @transform_0(%arg0: i32, %arg1: i32, %arg2: i32) -> (i32, i32) {
    %c0_i32 = arith.constant 0 : i32
    return %arg1, %arg2 : i32, i32
  }
  func.func @transform_1(%arg0: i32, %arg1: i32, %arg2: i32) -> (i32, i32) {
    %c0_i32 = arith.constant 0 : i32
    return %arg2, %arg0 : i32, i32
  }
  func.func @transform_2(%arg0: i32, %arg1: i32, %arg2: i32) -> (i32, i32) {
    %c0_i32 = arith.constant 0 : i32
    return %arg1, %arg0 : i32, i32
  }
  func.func @transform_3(%arg0: i32, %arg1: i32, %arg2: i32) -> (i32, i32, i32) {
    %c0_i32 = arith.constant 0 : i32
    %c0_i32_0 = arith.constant 0 : i32
    return %arg1, %c0_i32, %arg0 : i32, i32, i32
  }
  func.func @transform_4(%arg0: i32, %arg1: i32, %arg2: i32) -> (i32, i32, i32) {
    %c0_i32 = arith.constant 0 : i32
    %c0_i32_0 = arith.constant 0 : i32
    return %arg1, %c0_i32, %arg0 : i32, i32, i32
  }
}

module attributes {stable_mosaic.version = 11 : i64} {
  func.func @_fused_s1_conv_kernel(%arg0: i32, %arg1: i32, %arg2: memref<1x48x128xbf16, #tpu.memory_space<vmem>>, %arg3: memref<16x128x128xbf16, #tpu.memory_space<vmem>>, %arg4: memref<1x128xf32, #tpu.memory_space<vmem>>, %arg5: memref<1x24x128xbf16, #tpu.memory_space<vmem>>, %arg6: memref<1x8x128xf32, #tpu.memory_space<vmem>>, %arg7: memref<1x8x128xf32, #tpu.memory_space<vmem>>, %arg8: memref<24x128xf32, #tpu.memory_space<vmem>>) attributes {dimension_semantics = [#tpu.dimension_semantics<parallel>, #tpu.dimension_semantics<parallel>], iteration_bounds = array<i64: 2, 1>, scalar_prefetch = 0 : i64, scratch_operands = 1 : i64, tpu.core_type = #tpu.core_type<tc>, window_params = [{transform_indices = @transform_0, window_bounds = array<i64: 1, 48, 128>}, {transform_indices = @transform_1, window_bounds = array<i64: 16, 128, 128>}, {transform_indices = @transform_2, window_bounds = array<i64: 1, 128>}, {transform_indices = @transform_3, window_bounds = array<i64: 1, 24, 128>}, {transform_indices = @transform_4, window_bounds = array<i64: 1, 8, 128>}, {transform_indices = @transform_5, window_bounds = array<i64: 1, 8, 128>}]} {
    %cst = arith.constant 0.000000e+00 : f32
    %0 = vector.broadcast %cst : f32 to vector<24x128xf32>
    %c0 = arith.constant 0 : index
    %c0_0 = arith.constant 0 : index
    %1 = vector.load %arg8[%c0, %c0_0] : memref<24x128xf32, #tpu.memory_space<vmem>>, vector<24x128xf32>
    tpu.vector_store %arg8[%c0, %c0_0], %0 {strides = array<i32>} : memref<24x128xf32, #tpu.memory_space<vmem>>, vector<24x128xf32>,
    %c0_1 = arith.constant 0 : index
    %c0_2 = arith.constant 0 : index
    %c0_3 = arith.constant 0 : index
    %2 = vector.load %arg2[%c0_1, %c0_2, %c0_3] : memref<1x48x128xbf16, #tpu.memory_space<vmem>>, vector<1x24x128xbf16>
    %3 = vector.shape_cast %2 : vector<1x24x128xbf16> to vector<24x128xbf16>
    %c0_4 = arith.constant 0 : index
    %c0_5 = arith.constant 0 : index
    %4 = vector.load %arg8[%c0_4, %c0_5] : memref<24x128xf32, #tpu.memory_space<vmem>>, vector<24x128xf32>
    %c0_6 = arith.constant 0 : index
    %c0_7 = arith.constant 0 : index
    %c0_8 = arith.constant 0 : index
    %5 = vector.load %arg3[%c0_6, %c0_7, %c0_8] : memref<16x128x128xbf16, #tpu.memory_space<vmem>>, vector<1x128x128xbf16>
    %6 = vector.shape_cast %5 : vector<1x128x128xbf16> to vector<128x128xbf16>
    %cst_9 = arith.constant dense<0.000000e+00> : vector<24x128xf32>
    %7 = tpu.matmul %3, %6, %cst_9 {dimension_numbers = #tpu.dot_dimension_numbers<[1], [0], [0], [1], [0, 0, 1, 1], [], []>} : vector<24x128xbf16>, vector<128x128xbf16>, vector<24x128xf32> -> vector<24x128xf32>
    %8 = arith.addf %4, %7 : vector<24x128xf32>
    %c0_10 = arith.constant 0 : index
    %c0_11 = arith.constant 0 : index
    %9 = vector.load %arg8[%c0_10, %c0_11] : memref<24x128xf32, #tpu.memory_space<vmem>>, vector<24x128xf32>
    tpu.vector_store %arg8[%c0_10, %c0_11], %8 {strides = array<i32>} : memref<24x128xf32, #tpu.memory_space<vmem>>, vector<24x128xf32>,
    %c0_12 = arith.constant 0 : index
    %c1 = arith.constant 1 : index
    %c0_13 = arith.constant 0 : index
    %10 = vector.load %arg2[%c0_12, %c1, %c0_13] : memref<1x48x128xbf16, #tpu.memory_space<vmem>>, vector<1x24x128xbf16>
    %11 = vector.shape_cast %10 : vector<1x24x128xbf16> to vector<24x128xbf16>
    %c0_14 = arith.constant 0 : index
    %c0_15 = arith.constant 0 : index
    %12 = vector.load %arg8[%c0_14, %c0_15] : memref<24x128xf32, #tpu.memory_space<vmem>>, vector<24x128xf32>
    %c1_16 = arith.constant 1 : index
    %c0_17 = arith.constant 0 : index
    %c0_18 = arith.constant 0 : index
    %13 = vector.load %arg3[%c1_16, %c0_17, %c0_18] : memref<16x128x128xbf16, #tpu.memory_space<vmem>>, vector<1x128x128xbf16>
    %14 = vector.shape_cast %13 : vector<1x128x128xbf16> to vector<128x128xbf16>
    %cst_19 = arith.constant dense<0.000000e+00> : vector<24x128xf32>
    %15 = tpu.matmul %11, %14, %cst_19 {dimension_numbers = #tpu.dot_dimension_numbers<[1], [0], [0], [1], [0, 0, 1, 1], [], []>} : vector<24x128xbf16>, vector<128x128xbf16>, vector<24x128xf32> -> vector<24x128xf32>
    %16 = arith.addf %12, %15 : vector<24x128xf32>
    %c0_20 = arith.constant 0 : index
    %c0_21 = arith.constant 0 : index
    %17 = vector.load %arg8[%c0_20, %c0_21] : memref<24x128xf32, #tpu.memory_space<vmem>>, vector<24x128xf32>
    tpu.vector_store %arg8[%c0_20, %c0_21], %16 {strides = array<i32>} : memref<24x128xf32, #tpu.memory_space<vmem>>, vector<24x128xf32>,
    %c0_22 = arith.constant 0 : index
    %c2 = arith.constant 2 : index
    %c0_23 = arith.constant 0 : index
    %18 = vector.load %arg2[%c0_22, %c2, %c0_23] : memref<1x48x128xbf16, #tpu.memory_space<vmem>>, vector<1x24x128xbf16>
    %19 = vector.shape_cast %18 : vector<1x24x128xbf16> to vector<24x128xbf16>
    %c0_24 = arith.constant 0 : index
    %c0_25 = arith.constant 0 : index
    %20 = vector.load %arg8[%c0_24, %c0_25] : memref<24x128xf32, #tpu.memory_space<vmem>>, vector<24x128xf32>
    %c2_26 = arith.constant 2 : index
    %c0_27 = arith.constant 0 : index
    %c0_28 = arith.constant 0 : index
    %21 = vector.load %arg3[%c2_26, %c0_27, %c0_28] : memref<16x128x128xbf16, #tpu.memory_space<vmem>>, vector<1x128x128xbf16>
    %22 = vector.shape_cast %21 : vector<1x128x128xbf16> to vector<128x128xbf16>
    %cst_29 = arith.constant dense<0.000000e+00> : vector<24x128xf32>
    %23 = tpu.matmul %19, %22, %cst_29 {dimension_numbers = #tpu.dot_dimension_numbers<[1], [0], [0], [1], [0, 0, 1, 1], [], []>} : vector<24x128xbf16>, vector<128x128xbf16>, vector<24x128xf32> -> vector<24x128xf32>
    %24 = arith.addf %20, %23 : vector<24x128xf32>
    %c0_30 = arith.constant 0 : index
    %c0_31 = arith.constant 0 : index
    %25 = vector.load %arg8[%c0_30, %c0_31] : memref<24x128xf32, #tpu.memory_space<vmem>>, vector<24x128xf32>
    tpu.vector_store %arg8[%c0_30, %c0_31], %24 {strides = array<i32>} : memref<24x128xf32, #tpu.memory_space<vmem>>, vector<24x128xf32>,
    %c0_32 = arith.constant 0 : index
    %c3 = arith.constant 3 : index
    %c0_33 = arith.constant 0 : index
    %26 = vector.load %arg2[%c0_32, %c3, %c0_33] : memref<1x48x128xbf16, #tpu.memory_space<vmem>>, vector<1x24x128xbf16>
    %27 = vector.shape_cast %26 : vector<1x24x128xbf16> to vector<24x128xbf16>
    %c0_34 = arith.constant 0 : index
    %c0_35 = arith.constant 0 : index
    %28 = vector.load %arg8[%c0_34, %c0_35] : memref<24x128xf32, #tpu.memory_space<vmem>>, vector<24x128xf32>
    %c3_36 = arith.constant 3 : index
    %c0_37 = arith.constant 0 : index
    %c0_38 = arith.constant 0 : index
    %29 = vector.load %arg3[%c3_36, %c0_37, %c0_38] : memref<16x128x128xbf16, #tpu.memory_space<vmem>>, vector<1x128x128xbf16>
    %30 = vector.shape_cast %29 : vector<1x128x128xbf16> to vector<128x128xbf16>
    %cst_39 = arith.constant dense<0.000000e+00> : vector<24x128xf32>
    %31 = tpu.matmul %27, %30, %cst_39 {dimension_numbers = #tpu.dot_dimension_numbers<[1], [0], [0], [1], [0, 0, 1, 1], [], []>} : vector<24x128xbf16>, vector<128x128xbf16>, vector<24x128xf32> -> vector<24x128xf32>
    %32 = arith.addf %28, %31 : vector<24x128xf32>
    %c0_40 = arith.constant 0 : index
    %c0_41 = arith.constant 0 : index
    %33 = vector.load %arg8[%c0_40, %c0_41] : memref<24x128xf32, #tpu.memory_space<vmem>>, vector<24x128xf32>
    tpu.vector_store %arg8[%c0_40, %c0_41], %32 {strides = array<i32>} : memref<24x128xf32, #tpu.memory_space<vmem>>, vector<24x128xf32>,
    %c0_42 = arith.constant 0 : index
    %c6 = arith.constant 6 : index
    %c0_43 = arith.constant 0 : index
    %34 = vector.load %arg2[%c0_42, %c6, %c0_43] : memref<1x48x128xbf16, #tpu.memory_space<vmem>>, vector<1x24x128xbf16>
    %35 = vector.shape_cast %34 : vector<1x24x128xbf16> to vector<24x128xbf16>
    %c0_44 = arith.constant 0 : index
    %c0_45 = arith.constant 0 : index
    %36 = vector.load %arg8[%c0_44, %c0_45] : memref<24x128xf32, #tpu.memory_space<vmem>>, vector<24x128xf32>
    %c4 = arith.constant 4 : index
    %c0_46 = arith.constant 0 : index
    %c0_47 = arith.constant 0 : index
    %37 = vector.load %arg3[%c4, %c0_46, %c0_47] : memref<16x128x128xbf16, #tpu.memory_space<vmem>>, vector<1x128x128xbf16>
    %38 = vector.shape_cast %37 : vector<1x128x128xbf16> to vector<128x128xbf16>
    %cst_48 = arith.constant dense<0.000000e+00> : vector<24x128xf32>
    %39 = tpu.matmul %35, %38, %cst_48 {dimension_numbers = #tpu.dot_dimension_numbers<[1], [0], [0], [1], [0, 0, 1, 1], [], []>} : vector<24x128xbf16>, vector<128x128xbf16>, vector<24x128xf32> -> vector<24x128xf32>
    %40 = arith.addf %36, %39 : vector<24x128xf32>
    %c0_49 = arith.constant 0 : index
    %c0_50 = arith.constant 0 : index
    %41 = vector.load %arg8[%c0_49, %c0_50] : memref<24x128xf32, #tpu.memory_space<vmem>>, vector<24x128xf32>
    tpu.vector_store %arg8[%c0_49, %c0_50], %40 {strides = array<i32>} : memref<24x128xf32, #tpu.memory_space<vmem>>, vector<24x128xf32>,
    %c0_51 = arith.constant 0 : index
    %c7 = arith.constant 7 : index
    %c0_52 = arith.constant 0 : index
    %42 = vector.load %arg2[%c0_51, %c7, %c0_52] : memref<1x48x128xbf16, #tpu.memory_space<vmem>>, vector<1x24x128xbf16>
    %43 = vector.shape_cast %42 : vector<1x24x128xbf16> to vector<24x128xbf16>
    %c0_53 = arith.constant 0 : index
    %c0_54 = arith.constant 0 : index
    %44 = vector.load %arg8[%c0_53, %c0_54] : memref<24x128xf32, #tpu.memory_space<vmem>>, vector<24x128xf32>
    %c5 = arith.constant 5 : index
    %c0_55 = arith.constant 0 : index
    %c0_56 = arith.constant 0 : index
    %45 = vector.load %arg3[%c5, %c0_55, %c0_56] : memref<16x128x128xbf16, #tpu.memory_space<vmem>>, vector<1x128x128xbf16>
    %46 = vector.shape_cast %45 : vector<1x128x128xbf16> to vector<128x128xbf16>
    %cst_57 = arith.constant dense<0.000000e+00> : vector<24x128xf32>
    %47 = tpu.matmul %43, %46, %cst_57 {dimension_numbers = #tpu.dot_dimension_numbers<[1], [0], [0], [1], [0, 0, 1, 1], [], []>} : vector<24x128xbf16>, vector<128x128xbf16>, vector<24x128xf32> -> vector<24x128xf32>
    %48 = arith.addf %44, %47 : vector<24x128xf32>
    %c0_58 = arith.constant 0 : index
    %c0_59 = arith.constant 0 : index
    %49 = vector.load %arg8[%c0_58, %c0_59] : memref<24x128xf32, #tpu.memory_space<vmem>>, vector<24x128xf32>
    tpu.vector_store %arg8[%c0_58, %c0_59], %48 {strides = array<i32>} : memref<24x128xf32, #tpu.memory_space<vmem>>, vector<24x128xf32>,
    %c0_60 = arith.constant 0 : index
    %c8 = arith.constant 8 : index
    %c0_61 = arith.constant 0 : index
    %50 = vector.load %arg2[%c0_60, %c8, %c0_61] : memref<1x48x128xbf16, #tpu.memory_space<vmem>>, vector<1x24x128xbf16>
    %51 = vector.shape_cast %50 : vector<1x24x128xbf16> to vector<24x128xbf16>
    %c0_62 = arith.constant 0 : index
    %c0_63 = arith.constant 0 : index
    %52 = vector.load %arg8[%c0_62, %c0_63] : memref<24x128xf32, #tpu.memory_space<vmem>>, vector<24x128xf32>
    %c6_64 = arith.constant 6 : index
    %c0_65 = arith.constant 0 : index
    %c0_66 = arith.constant 0 : index
    %53 = vector.load %arg3[%c6_64, %c0_65, %c0_66] : memref<16x128x128xbf16, #tpu.memory_space<vmem>>, vector<1x128x128xbf16>
    %54 = vector.shape_cast %53 : vector<1x128x128xbf16> to vector<128x128xbf16>
    %cst_67 = arith.constant dense<0.000000e+00> : vector<24x128xf32>
    %55 = tpu.matmul %51, %54, %cst_67 {dimension_numbers = #tpu.dot_dimension_numbers<[1], [0], [0], [1], [0, 0, 1, 1], [], []>} : vector<24x128xbf16>, vector<128x128xbf16>, vector<24x128xf32> -> vector<24x128xf32>
    %56 = arith.addf %52, %55 : vector<24x128xf32>
    %c0_68 = arith.constant 0 : index
    %c0_69 = arith.constant 0 : index
    %57 = vector.load %arg8[%c0_68, %c0_69] : memref<24x128xf32, #tpu.memory_space<vmem>>, vector<24x128xf32>
    tpu.vector_store %arg8[%c0_68, %c0_69], %56 {strides = array<i32>} : memref<24x128xf32, #tpu.memory_space<vmem>>, vector<24x128xf32>,
    %c0_70 = arith.constant 0 : index
    %c9 = arith.constant 9 : index
    %c0_71 = arith.constant 0 : index
    %58 = vector.load %arg2[%c0_70, %c9, %c0_71] : memref<1x48x128xbf16, #tpu.memory_space<vmem>>, vector<1x24x128xbf16>
    %59 = vector.shape_cast %58 : vector<1x24x128xbf16> to vector<24x128xbf16>
    %c0_72 = arith.constant 0 : index
    %c0_73 = arith.constant 0 : index
    %60 = vector.load %arg8[%c0_72, %c0_73] : memref<24x128xf32, #tpu.memory_space<vmem>>, vector<24x128xf32>
    %c7_74 = arith.constant 7 : index
    %c0_75 = arith.constant 0 : index
    %c0_76 = arith.constant 0 : index
    %61 = vector.load %arg3[%c7_74, %c0_75, %c0_76] : memref<16x128x128xbf16, #tpu.memory_space<vmem>>, vector<1x128x128xbf16>
    %62 = vector.shape_cast %61 : vector<1x128x128xbf16> to vector<128x128xbf16>
    %cst_77 = arith.constant dense<0.000000e+00> : vector<24x128xf32>
    %63 = tpu.matmul %59, %62, %cst_77 {dimension_numbers = #tpu.dot_dimension_numbers<[1], [0], [0], [1], [0, 0, 1, 1], [], []>} : vector<24x128xbf16>, vector<128x128xbf16>, vector<24x128xf32> -> vector<24x128xf32>
    %64 = arith.addf %60, %63 : vector<24x128xf32>
    %c0_78 = arith.constant 0 : index
    %c0_79 = arith.constant 0 : index
    %65 = vector.load %arg8[%c0_78, %c0_79] : memref<24x128xf32, #tpu.memory_space<vmem>>, vector<24x128xf32>
    tpu.vector_store %arg8[%c0_78, %c0_79], %64 {strides = array<i32>} : memref<24x128xf32, #tpu.memory_space<vmem>>, vector<24x128xf32>,
    %c0_80 = arith.constant 0 : index
    %c12 = arith.constant 12 : index
    %c0_81 = arith.constant 0 : index
    %66 = vector.load %arg2[%c0_80, %c12, %c0_81] : memref<1x48x128xbf16, #tpu.memory_space<vmem>>, vector<1x24x128xbf16>
    %67 = vector.shape_cast %66 : vector<1x24x128xbf16> to vector<24x128xbf16>
    %c0_82 = arith.constant 0 : index
    %c0_83 = arith.constant 0 : index
    %68 = vector.load %arg8[%c0_82, %c0_83] : memref<24x128xf32, #tpu.memory_space<vmem>>, vector<24x128xf32>
    %c8_84 = arith.constant 8 : index
    %c0_85 = arith.constant 0 : index
    %c0_86 = arith.constant 0 : index
    %69 = vector.load %arg3[%c8_84, %c0_85, %c0_86] : memref<16x128x128xbf16, #tpu.memory_space<vmem>>, vector<1x128x128xbf16>
    %70 = vector.shape_cast %69 : vector<1x128x128xbf16> to vector<128x128xbf16>
    %cst_87 = arith.constant dense<0.000000e+00> : vector<24x128xf32>
    %71 = tpu.matmul %67, %70, %cst_87 {dimension_numbers = #tpu.dot_dimension_numbers<[1], [0], [0], [1], [0, 0, 1, 1], [], []>} : vector<24x128xbf16>, vector<128x128xbf16>, vector<24x128xf32> -> vector<24x128xf32>
    %72 = arith.addf %68, %71 : vector<24x128xf32>
    %c0_88 = arith.constant 0 : index
    %c0_89 = arith.constant 0 : index
    %73 = vector.load %arg8[%c0_88, %c0_89] : memref<24x128xf32, #tpu.memory_space<vmem>>, vector<24x128xf32>
    tpu.vector_store %arg8[%c0_88, %c0_89], %72 {strides = array<i32>} : memref<24x128xf32, #tpu.memory_space<vmem>>, vector<24x128xf32>,
    %c0_90 = arith.constant 0 : index
    %c13 = arith.constant 13 : index
    %c0_91 = arith.constant 0 : index
    %74 = vector.load %arg2[%c0_90, %c13, %c0_91] : memref<1x48x128xbf16, #tpu.memory_space<vmem>>, vector<1x24x128xbf16>
    %75 = vector.shape_cast %74 : vector<1x24x128xbf16> to vector<24x128xbf16>
    %c0_92 = arith.constant 0 : index
    %c0_93 = arith.constant 0 : index
    %76 = vector.load %arg8[%c0_92, %c0_93] : memref<24x128xf32, #tpu.memory_space<vmem>>, vector<24x128xf32>
    %c9_94 = arith.constant 9 : index
    %c0_95 = arith.constant 0 : index
    %c0_96 = arith.constant 0 : index
    %77 = vector.load %arg3[%c9_94, %c0_95, %c0_96] : memref<16x128x128xbf16, #tpu.memory_space<vmem>>, vector<1x128x128xbf16>
    %78 = vector.shape_cast %77 : vector<1x128x128xbf16> to vector<128x128xbf16>
    %cst_97 = arith.constant dense<0.000000e+00> : vector<24x128xf32>
    %79 = tpu.matmul %75, %78, %cst_97 {dimension_numbers = #tpu.dot_dimension_numbers<[1], [0], [0], [1], [0, 0, 1, 1], [], []>} : vector<24x128xbf16>, vector<128x128xbf16>, vector<24x128xf32> -> vector<24x128xf32>
    %80 = arith.addf %76, %79 : vector<24x128xf32>
    %c0_98 = arith.constant 0 : index
    %c0_99 = arith.constant 0 : index
    %81 = vector.load %arg8[%c0_98, %c0_99] : memref<24x128xf32, #tpu.memory_space<vmem>>, vector<24x128xf32>
    tpu.vector_store %arg8[%c0_98, %c0_99], %80 {strides = array<i32>} : memref<24x128xf32, #tpu.memory_space<vmem>>, vector<24x128xf32>,
    %c0_100 = arith.constant 0 : index
    %c14 = arith.constant 14 : index
    %c0_101 = arith.constant 0 : index
    %82 = vector.load %arg2[%c0_100, %c14, %c0_101] : memref<1x48x128xbf16, #tpu.memory_space<vmem>>, vector<1x24x128xbf16>
    %83 = vector.shape_cast %82 : vector<1x24x128xbf16> to vector<24x128xbf16>
    %c0_102 = arith.constant 0 : index
    %c0_103 = arith.constant 0 : index
    %84 = vector.load %arg8[%c0_102, %c0_103] : memref<24x128xf32, #tpu.memory_space<vmem>>, vector<24x128xf32>
    %c10 = arith.constant 10 : index
    %c0_104 = arith.constant 0 : index
    %c0_105 = arith.constant 0 : index
    %85 = vector.load %arg3[%c10, %c0_104, %c0_105] : memref<16x128x128xbf16, #tpu.memory_space<vmem>>, vector<1x128x128xbf16>
    %86 = vector.shape_cast %85 : vector<1x128x128xbf16> to vector<128x128xbf16>
    %cst_106 = arith.constant dense<0.000000e+00> : vector<24x128xf32>
    %87 = tpu.matmul %83, %86, %cst_106 {dimension_numbers = #tpu.dot_dimension_numbers<[1], [0], [0], [1], [0, 0, 1, 1], [], []>} : vector<24x128xbf16>, vector<128x128xbf16>, vector<24x128xf32> -> vector<24x128xf32>
    %88 = arith.addf %84, %87 : vector<24x128xf32>
    %c0_107 = arith.constant 0 : index
    %c0_108 = arith.constant 0 : index
    %89 = vector.load %arg8[%c0_107, %c0_108] : memref<24x128xf32, #tpu.memory_space<vmem>>, vector<24x128xf32>
    tpu.vector_store %arg8[%c0_107, %c0_108], %88 {strides = array<i32>} : memref<24x128xf32, #tpu.memory_space<vmem>>, vector<24x128xf32>,
    %c0_109 = arith.constant 0 : index
    %c15 = arith.constant 15 : index
    %c0_110 = arith.constant 0 : index
    %90 = vector.load %arg2[%c0_109, %c15, %c0_110] : memref<1x48x128xbf16, #tpu.memory_space<vmem>>, vector<1x24x128xbf16>
    %91 = vector.shape_cast %90 : vector<1x24x128xbf16> to vector<24x128xbf16>
    %c0_111 = arith.constant 0 : index
    %c0_112 = arith.constant 0 : index
    %92 = vector.load %arg8[%c0_111, %c0_112] : memref<24x128xf32, #tpu.memory_space<vmem>>, vector<24x128xf32>
    %c11 = arith.constant 11 : index
    %c0_113 = arith.constant 0 : index
    %c0_114 = arith.constant 0 : index
    %93 = vector.load %arg3[%c11, %c0_113, %c0_114] : memref<16x128x128xbf16, #tpu.memory_space<vmem>>, vector<1x128x128xbf16>
    %94 = vector.shape_cast %93 : vector<1x128x128xbf16> to vector<128x128xbf16>
    %cst_115 = arith.constant dense<0.000000e+00> : vector<24x128xf32>
    %95 = tpu.matmul %91, %94, %cst_115 {dimension_numbers = #tpu.dot_dimension_numbers<[1], [0], [0], [1], [0, 0, 1, 1], [], []>} : vector<24x128xbf16>, vector<128x128xbf16>, vector<24x128xf32> -> vector<24x128xf32>
    %96 = arith.addf %92, %95 : vector<24x128xf32>
    %c0_116 = arith.constant 0 : index
    %c0_117 = arith.constant 0 : index
    %97 = vector.load %arg8[%c0_116, %c0_117] : memref<24x128xf32, #tpu.memory_space<vmem>>, vector<24x128xf32>
    tpu.vector_store %arg8[%c0_116, %c0_117], %96 {strides = array<i32>} : memref<24x128xf32, #tpu.memory_space<vmem>>, vector<24x128xf32>,
    %c0_118 = arith.constant 0 : index
    %c18 = arith.constant 18 : index
    %c0_119 = arith.constant 0 : index
    %98 = vector.load %arg2[%c0_118, %c18, %c0_119] : memref<1x48x128xbf16, #tpu.memory_space<vmem>>, vector<1x24x128xbf16>
    %99 = vector.shape_cast %98 : vector<1x24x128xbf16> to vector<24x128xbf16>
    %c0_120 = arith.constant 0 : index
    %c0_121 = arith.constant 0 : index
    %100 = vector.load %arg8[%c0_120, %c0_121] : memref<24x128xf32, #tpu.memory_space<vmem>>, vector<24x128xf32>
    %c12_122 = arith.constant 12 : index
    %c0_123 = arith.constant 0 : index
    %c0_124 = arith.constant 0 : index
    %101 = vector.load %arg3[%c12_122, %c0_123, %c0_124] : memref<16x128x128xbf16, #tpu.memory_space<vmem>>, vector<1x128x128xbf16>
    %102 = vector.shape_cast %101 : vector<1x128x128xbf16> to vector<128x128xbf16>
    %cst_125 = arith.constant dense<0.000000e+00> : vector<24x128xf32>
    %103 = tpu.matmul %99, %102, %cst_125 {dimension_numbers = #tpu.dot_dimension_numbers<[1], [0], [0], [1], [0, 0, 1, 1], [], []>} : vector<24x128xbf16>, vector<128x128xbf16>, vector<24x128xf32> -> vector<24x128xf32>
    %104 = arith.addf %100, %103 : vector<24x128xf32>
    %c0_126 = arith.constant 0 : index
    %c0_127 = arith.constant 0 : index
    %105 = vector.load %arg8[%c0_126, %c0_127] : memref<24x128xf32, #tpu.memory_space<vmem>>, vector<24x128xf32>
    tpu.vector_store %arg8[%c0_126, %c0_127], %104 {strides = array<i32>} : memref<24x128xf32, #tpu.memory_space<vmem>>, vector<24x128xf32>,
    %c0_128 = arith.constant 0 : index
    %c19 = arith.constant 19 : index
    %c0_129 = arith.constant 0 : index
    %106 = vector.load %arg2[%c0_128, %c19, %c0_129] : memref<1x48x128xbf16, #tpu.memory_space<vmem>>, vector<1x24x128xbf16>
    %107 = vector.shape_cast %106 : vector<1x24x128xbf16> to vector<24x128xbf16>
    %c0_130 = arith.constant 0 : index
    %c0_131 = arith.constant 0 : index
    %108 = vector.load %arg8[%c0_130, %c0_131] : memref<24x128xf32, #tpu.memory_space<vmem>>, vector<24x128xf32>
    %c13_132 = arith.constant 13 : index
    %c0_133 = arith.constant 0 : index
    %c0_134 = arith.constant 0 : index
    %109 = vector.load %arg3[%c13_132, %c0_133, %c0_134] : memref<16x128x128xbf16, #tpu.memory_space<vmem>>, vector<1x128x128xbf16>
    %110 = vector.shape_cast %109 : vector<1x128x128xbf16> to vector<128x128xbf16>
    %cst_135 = arith.constant dense<0.000000e+00> : vector<24x128xf32>
    %111 = tpu.matmul %107, %110, %cst_135 {dimension_numbers = #tpu.dot_dimension_numbers<[1], [0], [0], [1], [0, 0, 1, 1], [], []>} : vector<24x128xbf16>, vector<128x128xbf16>, vector<24x128xf32> -> vector<24x128xf32>
    %112 = arith.addf %108, %111 : vector<24x128xf32>
    %c0_136 = arith.constant 0 : index
    %c0_137 = arith.constant 0 : index
    %113 = vector.load %arg8[%c0_136, %c0_137] : memref<24x128xf32, #tpu.memory_space<vmem>>, vector<24x128xf32>
    tpu.vector_store %arg8[%c0_136, %c0_137], %112 {strides = array<i32>} : memref<24x128xf32, #tpu.memory_space<vmem>>, vector<24x128xf32>,
    %c0_138 = arith.constant 0 : index
    %c20 = arith.constant 20 : index
    %c0_139 = arith.constant 0 : index
    %114 = vector.load %arg2[%c0_138, %c20, %c0_139] : memref<1x48x128xbf16, #tpu.memory_space<vmem>>, vector<1x24x128xbf16>
    %115 = vector.shape_cast %114 : vector<1x24x128xbf16> to vector<24x128xbf16>
    %c0_140 = arith.constant 0 : index
    %c0_141 = arith.constant 0 : index
    %116 = vector.load %arg8[%c0_140, %c0_141] : memref<24x128xf32, #tpu.memory_space<vmem>>, vector<24x128xf32>
    %c14_142 = arith.constant 14 : index
    %c0_143 = arith.constant 0 : index
    %c0_144 = arith.constant 0 : index
    %117 = vector.load %arg3[%c14_142, %c0_143, %c0_144] : memref<16x128x128xbf16, #tpu.memory_space<vmem>>, vector<1x128x128xbf16>
    %118 = vector.shape_cast %117 : vector<1x128x128xbf16> to vector<128x128xbf16>
    %cst_145 = arith.constant dense<0.000000e+00> : vector<24x128xf32>
    %119 = tpu.matmul %115, %118, %cst_145 {dimension_numbers = #tpu.dot_dimension_numbers<[1], [0], [0], [1], [0, 0, 1, 1], [], []>} : vector<24x128xbf16>, vector<128x128xbf16>, vector<24x128xf32> -> vector<24x128xf32>
    %120 = arith.addf %116, %119 : vector<24x128xf32>
    %c0_146 = arith.constant 0 : index
    %c0_147 = arith.constant 0 : index
    %121 = vector.load %arg8[%c0_146, %c0_147] : memref<24x128xf32, #tpu.memory_space<vmem>>, vector<24x128xf32>
    tpu.vector_store %arg8[%c0_146, %c0_147], %120 {strides = array<i32>} : memref<24x128xf32, #tpu.memory_space<vmem>>, vector<24x128xf32>,
    %c0_148 = arith.constant 0 : index
    %c21 = arith.constant 21 : index
    %c0_149 = arith.constant 0 : index
    %122 = vector.load %arg2[%c0_148, %c21, %c0_149] : memref<1x48x128xbf16, #tpu.memory_space<vmem>>, vector<1x24x128xbf16>
    %123 = vector.shape_cast %122 : vector<1x24x128xbf16> to vector<24x128xbf16>
    %c0_150 = arith.constant 0 : index
    %c0_151 = arith.constant 0 : index
    %124 = vector.load %arg8[%c0_150, %c0_151] : memref<24x128xf32, #tpu.memory_space<vmem>>, vector<24x128xf32>
    %c15_152 = arith.constant 15 : index
    %c0_153 = arith.constant 0 : index
    %c0_154 = arith.constant 0 : index
    %125 = vector.load %arg3[%c15_152, %c0_153, %c0_154] : memref<16x128x128xbf16, #tpu.memory_space<vmem>>, vector<1x128x128xbf16>
    %126 = vector.shape_cast %125 : vector<1x128x128xbf16> to vector<128x128xbf16>
    %cst_155 = arith.constant dense<0.000000e+00> : vector<24x128xf32>
    %127 = tpu.matmul %123, %126, %cst_155 {dimension_numbers = #tpu.dot_dimension_numbers<[1], [0], [0], [1], [0, 0, 1, 1], [], []>} : vector<24x128xbf16>, vector<128x128xbf16>, vector<24x128xf32> -> vector<24x128xf32>
    %128 = arith.addf %124, %127 : vector<24x128xf32>
    %c0_156 = arith.constant 0 : index
    %c0_157 = arith.constant 0 : index
    %129 = vector.load %arg8[%c0_156, %c0_157] : memref<24x128xf32, #tpu.memory_space<vmem>>, vector<24x128xf32>
    tpu.vector_store %arg8[%c0_156, %c0_157], %128 {strides = array<i32>} : memref<24x128xf32, #tpu.memory_space<vmem>>, vector<24x128xf32>,
    %c0_158 = arith.constant 0 : index
    %c0_159 = arith.constant 0 : index
    %130 = vector.load %arg8[%c0_158, %c0_159] : memref<24x128xf32, #tpu.memory_space<vmem>>, vector<24x128xf32>
    %c0_160 = arith.constant 0 : index
    %c0_161 = arith.constant 0 : index
    %131 = vector.load %arg4[%c0_160, %c0_161] : memref<1x128xf32, #tpu.memory_space<vmem>>, vector<1x128xf32>
    %132 = vector.broadcast %131 : vector<1x128xf32> to vector<24x128xf32>
    %133 = arith.addf %130, %132 : vector<24x128xf32>
    %134 = arith.truncf %133 : vector<24x128xf32> to vector<24x128xbf16>
    %c0_162 = arith.constant 0 : index
    %c0_163 = arith.constant 0 : index
    %c0_164 = arith.constant 0 : index
    %135 = vector.load %arg5[%c0_162, %c0_163, %c0_164] : memref<1x24x128xbf16, #tpu.memory_space<vmem>>, vector<1x24x128xbf16>
    %136 = vector.shape_cast %135 : vector<1x24x128xbf16> to vector<24x128xbf16>
    %137 = vector.shape_cast %134 : vector<24x128xbf16> to vector<1x24x128xbf16>
    tpu.vector_store %arg5[%c0_162, %c0_163, %c0_164], %137 {strides = array<i32>} : memref<1x24x128xbf16, #tpu.memory_space<vmem>>, vector<1x24x128xbf16>,
    %138 = tpu.iota {dimensions = array<i32: 0>} : vector<24x128xi32>
    %c6_i32 = arith.constant 6 : i32
    %c0_i32 = arith.constant 0 : i32
    %139 = arith.cmpi eq, %c6_i32, %c0_i32 : i32
    %c1_i32 = arith.constant 1 : i32
    %140 = arith.select %139, %c1_i32, %c6_i32 : i32
    %141 = vector.broadcast %140 : i32 to vector<24x128xi32>
    %142 = arith.remsi %138, %141 : vector<24x128xi32>
    %c0_i32_165 = arith.constant 0 : i32
    %143 = vector.broadcast %c0_i32_165 : i32 to vector<24x128xi32>
    %144 = arith.cmpi ne, %142, %143 : vector<24x128xi32>
    %c0_i32_166 = arith.constant 0 : i32
    %145 = vector.broadcast %c0_i32_166 : i32 to vector<24x128xi32>
    %146 = arith.cmpi slt, %142, %145 : vector<24x128xi32>
    %c0_i32_167 = arith.constant 0 : i32
    %147 = arith.cmpi slt, %140, %c0_i32_167 : i32
    %148 = vector.broadcast %147 : i1 to vector<24x128xi1>
    %149 = vector.broadcast %148 : vector<24x128xi1> to vector<24x128xi1>
    %150 = arith.xori %146, %149 : vector<24x128xi1>
    %151 = arith.andi %150, %144 : vector<24x128xi1>
    %152 = vector.broadcast %140 : i32 to vector<24x128xi32>
    %153 = arith.addi %142, %152 : vector<24x128xi32>
    %154 = arith.select %151, %153, %142 : vector<24x128xi1>, vector<24x128xi32>
    %c3_i32 = arith.constant 3 : i32
    %155 = vector.broadcast %c3_i32 : i32 to vector<24x128xi32>
    %156 = arith.cmpi slt, %154, %155 : vector<24x128xi32>
    %c18_i32 = arith.constant 18 : i32
    %157 = vector.broadcast %c18_i32 : i32 to vector<24x128xi32>
    %158 = arith.cmpi slt, %138, %157 : vector<24x128xi32>
    %159 = arith.andi %156, %158 : vector<24x128xi1>
    %cst_168 = arith.constant 0.000000e+00 : f32
    %160 = vector.broadcast %cst_168 : f32 to vector<24x128xf32>
    %161 = arith.select %159, %130, %160 : vector<24x128xi1>, vector<24x128xf32>
    %cst_169 = arith.constant dense<0.000000e+00> : vector<128xf32>
    %162 = vector.multi_reduction <add>, %161, %cst_169 [0] : vector<24x128xf32> to vector<128xf32>
    %163 = vector.shape_cast %162 : vector<128xf32> to vector<1x128xf32>
    %164 = arith.mulf %161, %161 : vector<24x128xf32>
    %cst_170 = arith.constant dense<0.000000e+00> : vector<128xf32>
    %165 = vector.multi_reduction <add>, %164, %cst_170 [0] : vector<24x128xf32> to vector<128xf32>
    %166 = vector.shape_cast %165 : vector<128xf32> to vector<1x128xf32>
    %167 = vector.shape_cast %163 : vector<1x128xf32> to vector<1x128xf32>
    %168 = vector.broadcast %167 : vector<1x128xf32> to vector<8x128xf32>
    %c0_171 = arith.constant 0 : index
    %c0_172 = arith.constant 0 : index
    %c0_173 = arith.constant 0 : index
    %169 = vector.load %arg6[%c0_171, %c0_172, %c0_173] : memref<1x8x128xf32, #tpu.memory_space<vmem>>, vector<1x8x128xf32>
    %170 = vector.shape_cast %169 : vector<1x8x128xf32> to vector<8x128xf32>
    %171 = vector.shape_cast %168 : vector<8x128xf32> to vector<1x8x128xf32>
    tpu.vector_store %arg6[%c0_171, %c0_172, %c0_173], %171 {strides = array<i32>} : memref<1x8x128xf32, #tpu.memory_space<vmem>>, vector<1x8x128xf32>,
    %172 = vector.shape_cast %166 : vector<1x128xf32> to vector<1x128xf32>
    %173 = vector.broadcast %172 : vector<1x128xf32> to vector<8x128xf32>
    %c0_174 = arith.constant 0 : index
    %c0_175 = arith.constant 0 : index
    %c0_176 = arith.constant 0 : index
    %174 = vector.load %arg7[%c0_174, %c0_175, %c0_176] : memref<1x8x128xf32, #tpu.memory_space<vmem>>, vector<1x8x128xf32>
    %175 = vector.shape_cast %174 : vector<1x8x128xf32> to vector<8x128xf32>
    %176 = vector.shape_cast %173 : vector<8x128xf32> to vector<1x8x128xf32>
    tpu.vector_store %arg7[%c0_174, %c0_175, %c0_176], %176 {strides = array<i32>} : memref<1x8x128xf32, #tpu.memory_space<vmem>>, vector<1x8x128xf32>,
    return
  }
  func.func @transform_0(%arg0: i32, %arg1: i32) -> (i32, i32, i32) {
    %c0_i32 = arith.constant 0 : i32
    %c0_i32_0 = arith.constant 0 : i32
    %c0_i32_1 = arith.constant 0 : i32
    return %arg0, %c0_i32, %c0_i32_0 : i32, i32, i32
  }
  func.func @transform_1(%arg0: i32, %arg1: i32) -> (i32, i32, i32) {
    %c0_i32 = arith.constant 0 : i32
    %c0_i32_0 = arith.constant 0 : i32
    %c0_i32_1 = arith.constant 0 : i32
    return %c0_i32, %c0_i32_0, %arg1 : i32, i32, i32
  }
  func.func @transform_2(%arg0: i32, %arg1: i32) -> (i32, i32) {
    %c0_i32 = arith.constant 0 : i32
    %c0_i32_0 = arith.constant 0 : i32
    return %c0_i32, %arg1 : i32, i32
  }
  func.func @transform_3(%arg0: i32, %arg1: i32) -> (i32, i32, i32) {
    %c0_i32 = arith.constant 0 : i32
    %c0_i32_0 = arith.constant 0 : i32
    return %arg0, %c0_i32, %arg1 : i32, i32, i32
  }
  func.func @transform_4(%arg0: i32, %arg1: i32) -> (i32, i32, i32) {
    %c0_i32 = arith.constant 0 : i32
    %c0_i32_0 = arith.constant 0 : i32
    return %arg0, %c0_i32, %arg1 : i32, i32, i32
  }
  func.func @transform_5(%arg0: i32, %arg1: i32) -> (i32, i32, i32) {
    %c0_i32 = arith.constant 0 : i32
    %c0_i32_0 = arith.constant 0 : i32
    return %arg0, %c0_i32, %arg1 : i32, i32, i32
  }
}

module attributes {stable_mosaic.version = 11 : i64} {
  func.func @_fused_s1_conv_kernel(%arg0: i32, %arg1: i32, %arg2: memref<1x40x128xbf16, #tpu.memory_space<vmem>>, %arg3: memref<16x128x128xbf16, #tpu.memory_space<vmem>>, %arg4: memref<1x128xf32, #tpu.memory_space<vmem>>, %arg5: memref<1x16x128xf32, #tpu.memory_space<vmem>>, %arg6: memref<16x128xf32, #tpu.memory_space<vmem>>) attributes {dimension_semantics = [#tpu.dimension_semantics<parallel>, #tpu.dimension_semantics<parallel>], iteration_bounds = array<i64: 2, 1>, scalar_prefetch = 0 : i64, scratch_operands = 1 : i64, tpu.core_type = #tpu.core_type<tc>, window_params = [{transform_indices = @transform_0, window_bounds = array<i64: 1, 40, 128>}, {transform_indices = @transform_1, window_bounds = array<i64: 16, 128, 128>}, {transform_indices = @transform_2, window_bounds = array<i64: 1, 128>}, {transform_indices = @transform_3, window_bounds = array<i64: 1, 16, 128>}]} {
    %cst = arith.constant 0.000000e+00 : f32
    %0 = vector.broadcast %cst : f32 to vector<16x128xf32>
    %c0 = arith.constant 0 : index
    %c0_0 = arith.constant 0 : index
    %1 = vector.load %arg6[%c0, %c0_0] : memref<16x128xf32, #tpu.memory_space<vmem>>, vector<16x128xf32>
    tpu.vector_store %arg6[%c0, %c0_0], %0 {strides = array<i32>} : memref<16x128xf32, #tpu.memory_space<vmem>>, vector<16x128xf32>,
    %c0_1 = arith.constant 0 : index
    %c0_2 = arith.constant 0 : index
    %c0_3 = arith.constant 0 : index
    %2 = vector.load %arg2[%c0_1, %c0_2, %c0_3] : memref<1x40x128xbf16, #tpu.memory_space<vmem>>, vector<1x16x128xbf16>
    %3 = vector.shape_cast %2 : vector<1x16x128xbf16> to vector<16x128xbf16>
    %c0_4 = arith.constant 0 : index
    %c0_5 = arith.constant 0 : index
    %4 = vector.load %arg6[%c0_4, %c0_5] : memref<16x128xf32, #tpu.memory_space<vmem>>, vector<16x128xf32>
    %c0_6 = arith.constant 0 : index
    %c0_7 = arith.constant 0 : index
    %c0_8 = arith.constant 0 : index
    %5 = vector.load %arg3[%c0_6, %c0_7, %c0_8] : memref<16x128x128xbf16, #tpu.memory_space<vmem>>, vector<1x128x128xbf16>
    %6 = vector.shape_cast %5 : vector<1x128x128xbf16> to vector<128x128xbf16>
    %cst_9 = arith.constant dense<0.000000e+00> : vector<16x128xf32>
    %7 = tpu.matmul %3, %6, %cst_9 {dimension_numbers = #tpu.dot_dimension_numbers<[1], [0], [0], [1], [0, 0, 1, 1], [], []>} : vector<16x128xbf16>, vector<128x128xbf16>, vector<16x128xf32> -> vector<16x128xf32>
    %8 = arith.addf %4, %7 : vector<16x128xf32>
    %c0_10 = arith.constant 0 : index
    %c0_11 = arith.constant 0 : index
    %9 = vector.load %arg6[%c0_10, %c0_11] : memref<16x128xf32, #tpu.memory_space<vmem>>, vector<16x128xf32>
    tpu.vector_store %arg6[%c0_10, %c0_11], %8 {strides = array<i32>} : memref<16x128xf32, #tpu.memory_space<vmem>>, vector<16x128xf32>,
    %c0_12 = arith.constant 0 : index
    %c1 = arith.constant 1 : index
    %c0_13 = arith.constant 0 : index
    %10 = vector.load %arg2[%c0_12, %c1, %c0_13] : memref<1x40x128xbf16, #tpu.memory_space<vmem>>, vector<1x16x128xbf16>
    %11 = vector.shape_cast %10 : vector<1x16x128xbf16> to vector<16x128xbf16>
    %c0_14 = arith.constant 0 : index
    %c0_15 = arith.constant 0 : index
    %12 = vector.load %arg6[%c0_14, %c0_15] : memref<16x128xf32, #tpu.memory_space<vmem>>, vector<16x128xf32>
    %c1_16 = arith.constant 1 : index
    %c0_17 = arith.constant 0 : index
    %c0_18 = arith.constant 0 : index
    %13 = vector.load %arg3[%c1_16, %c0_17, %c0_18] : memref<16x128x128xbf16, #tpu.memory_space<vmem>>, vector<1x128x128xbf16>
    %14 = vector.shape_cast %13 : vector<1x128x128xbf16> to vector<128x128xbf16>
    %cst_19 = arith.constant dense<0.000000e+00> : vector<16x128xf32>
    %15 = tpu.matmul %11, %14, %cst_19 {dimension_numbers = #tpu.dot_dimension_numbers<[1], [0], [0], [1], [0, 0, 1, 1], [], []>} : vector<16x128xbf16>, vector<128x128xbf16>, vector<16x128xf32> -> vector<16x128xf32>
    %16 = arith.addf %12, %15 : vector<16x128xf32>
    %c0_20 = arith.constant 0 : index
    %c0_21 = arith.constant 0 : index
    %17 = vector.load %arg6[%c0_20, %c0_21] : memref<16x128xf32, #tpu.memory_space<vmem>>, vector<16x128xf32>
    tpu.vector_store %arg6[%c0_20, %c0_21], %16 {strides = array<i32>} : memref<16x128xf32, #tpu.memory_space<vmem>>, vector<16x128xf32>,
    %c0_22 = arith.constant 0 : index
    %c2 = arith.constant 2 : index
    %c0_23 = arith.constant 0 : index
    %18 = vector.load %arg2[%c0_22, %c2, %c0_23] : memref<1x40x128xbf16, #tpu.memory_space<vmem>>, vector<1x16x128xbf16>
    %19 = vector.shape_cast %18 : vector<1x16x128xbf16> to vector<16x128xbf16>
    %c0_24 = arith.constant 0 : index
    %c0_25 = arith.constant 0 : index
    %20 = vector.load %arg6[%c0_24, %c0_25] : memref<16x128xf32, #tpu.memory_space<vmem>>, vector<16x128xf32>
    %c2_26 = arith.constant 2 : index
    %c0_27 = arith.constant 0 : index
    %c0_28 = arith.constant 0 : index
    %21 = vector.load %arg3[%c2_26, %c0_27, %c0_28] : memref<16x128x128xbf16, #tpu.memory_space<vmem>>, vector<1x128x128xbf16>
    %22 = vector.shape_cast %21 : vector<1x128x128xbf16> to vector<128x128xbf16>
    %cst_29 = arith.constant dense<0.000000e+00> : vector<16x128xf32>
    %23 = tpu.matmul %19, %22, %cst_29 {dimension_numbers = #tpu.dot_dimension_numbers<[1], [0], [0], [1], [0, 0, 1, 1], [], []>} : vector<16x128xbf16>, vector<128x128xbf16>, vector<16x128xf32> -> vector<16x128xf32>
    %24 = arith.addf %20, %23 : vector<16x128xf32>
    %c0_30 = arith.constant 0 : index
    %c0_31 = arith.constant 0 : index
    %25 = vector.load %arg6[%c0_30, %c0_31] : memref<16x128xf32, #tpu.memory_space<vmem>>, vector<16x128xf32>
    tpu.vector_store %arg6[%c0_30, %c0_31], %24 {strides = array<i32>} : memref<16x128xf32, #tpu.memory_space<vmem>>, vector<16x128xf32>,
    %c0_32 = arith.constant 0 : index
    %c3 = arith.constant 3 : index
    %c0_33 = arith.constant 0 : index
    %26 = vector.load %arg2[%c0_32, %c3, %c0_33] : memref<1x40x128xbf16, #tpu.memory_space<vmem>>, vector<1x16x128xbf16>
    %27 = vector.shape_cast %26 : vector<1x16x128xbf16> to vector<16x128xbf16>
    %c0_34 = arith.constant 0 : index
    %c0_35 = arith.constant 0 : index
    %28 = vector.load %arg6[%c0_34, %c0_35] : memref<16x128xf32, #tpu.memory_space<vmem>>, vector<16x128xf32>
    %c3_36 = arith.constant 3 : index
    %c0_37 = arith.constant 0 : index
    %c0_38 = arith.constant 0 : index
    %29 = vector.load %arg3[%c3_36, %c0_37, %c0_38] : memref<16x128x128xbf16, #tpu.memory_space<vmem>>, vector<1x128x128xbf16>
    %30 = vector.shape_cast %29 : vector<1x128x128xbf16> to vector<128x128xbf16>
    %cst_39 = arith.constant dense<0.000000e+00> : vector<16x128xf32>
    %31 = tpu.matmul %27, %30, %cst_39 {dimension_numbers = #tpu.dot_dimension_numbers<[1], [0], [0], [1], [0, 0, 1, 1], [], []>} : vector<16x128xbf16>, vector<128x128xbf16>, vector<16x128xf32> -> vector<16x128xf32>
    %32 = arith.addf %28, %31 : vector<16x128xf32>
    %c0_40 = arith.constant 0 : index
    %c0_41 = arith.constant 0 : index
    %33 = vector.load %arg6[%c0_40, %c0_41] : memref<16x128xf32, #tpu.memory_space<vmem>>, vector<16x128xf32>
    tpu.vector_store %arg6[%c0_40, %c0_41], %32 {strides = array<i32>} : memref<16x128xf32, #tpu.memory_space<vmem>>, vector<16x128xf32>,
    %c0_42 = arith.constant 0 : index
    %c5 = arith.constant 5 : index
    %c0_43 = arith.constant 0 : index
    %34 = vector.load %arg2[%c0_42, %c5, %c0_43] : memref<1x40x128xbf16, #tpu.memory_space<vmem>>, vector<1x16x128xbf16>
    %35 = vector.shape_cast %34 : vector<1x16x128xbf16> to vector<16x128xbf16>
    %c0_44 = arith.constant 0 : index
    %c0_45 = arith.constant 0 : index
    %36 = vector.load %arg6[%c0_44, %c0_45] : memref<16x128xf32, #tpu.memory_space<vmem>>, vector<16x128xf32>
    %c4 = arith.constant 4 : index
    %c0_46 = arith.constant 0 : index
    %c0_47 = arith.constant 0 : index
    %37 = vector.load %arg3[%c4, %c0_46, %c0_47] : memref<16x128x128xbf16, #tpu.memory_space<vmem>>, vector<1x128x128xbf16>
    %38 = vector.shape_cast %37 : vector<1x128x128xbf16> to vector<128x128xbf16>
    %cst_48 = arith.constant dense<0.000000e+00> : vector<16x128xf32>
    %39 = tpu.matmul %35, %38, %cst_48 {dimension_numbers = #tpu.dot_dimension_numbers<[1], [0], [0], [1], [0, 0, 1, 1], [], []>} : vector<16x128xbf16>, vector<128x128xbf16>, vector<16x128xf32> -> vector<16x128xf32>
    %40 = arith.addf %36, %39 : vector<16x128xf32>
    %c0_49 = arith.constant 0 : index
    %c0_50 = arith.constant 0 : index
    %41 = vector.load %arg6[%c0_49, %c0_50] : memref<16x128xf32, #tpu.memory_space<vmem>>, vector<16x128xf32>
    tpu.vector_store %arg6[%c0_49, %c0_50], %40 {strides = array<i32>} : memref<16x128xf32, #tpu.memory_space<vmem>>, vector<16x128xf32>,
    %c0_51 = arith.constant 0 : index
    %c6 = arith.constant 6 : index
    %c0_52 = arith.constant 0 : index
    %42 = vector.load %arg2[%c0_51, %c6, %c0_52] : memref<1x40x128xbf16, #tpu.memory_space<vmem>>, vector<1x16x128xbf16>
    %43 = vector.shape_cast %42 : vector<1x16x128xbf16> to vector<16x128xbf16>
    %c0_53 = arith.constant 0 : index
    %c0_54 = arith.constant 0 : index
    %44 = vector.load %arg6[%c0_53, %c0_54] : memref<16x128xf32, #tpu.memory_space<vmem>>, vector<16x128xf32>
    %c5_55 = arith.constant 5 : index
    %c0_56 = arith.constant 0 : index
    %c0_57 = arith.constant 0 : index
    %45 = vector.load %arg3[%c5_55, %c0_56, %c0_57] : memref<16x128x128xbf16, #tpu.memory_space<vmem>>, vector<1x128x128xbf16>
    %46 = vector.shape_cast %45 : vector<1x128x128xbf16> to vector<128x128xbf16>
    %cst_58 = arith.constant dense<0.000000e+00> : vector<16x128xf32>
    %47 = tpu.matmul %43, %46, %cst_58 {dimension_numbers = #tpu.dot_dimension_numbers<[1], [0], [0], [1], [0, 0, 1, 1], [], []>} : vector<16x128xbf16>, vector<128x128xbf16>, vector<16x128xf32> -> vector<16x128xf32>
    %48 = arith.addf %44, %47 : vector<16x128xf32>
    %c0_59 = arith.constant 0 : index
    %c0_60 = arith.constant 0 : index
    %49 = vector.load %arg6[%c0_59, %c0_60] : memref<16x128xf32, #tpu.memory_space<vmem>>, vector<16x128xf32>
    tpu.vector_store %arg6[%c0_59, %c0_60], %48 {strides = array<i32>} : memref<16x128xf32, #tpu.memory_space<vmem>>, vector<16x128xf32>,
    %c0_61 = arith.constant 0 : index
    %c7 = arith.constant 7 : index
    %c0_62 = arith.constant 0 : index
    %50 = vector.load %arg2[%c0_61, %c7, %c0_62] : memref<1x40x128xbf16, #tpu.memory_space<vmem>>, vector<1x16x128xbf16>
    %51 = vector.shape_cast %50 : vector<1x16x128xbf16> to vector<16x128xbf16>
    %c0_63 = arith.constant 0 : index
    %c0_64 = arith.constant 0 : index
    %52 = vector.load %arg6[%c0_63, %c0_64] : memref<16x128xf32, #tpu.memory_space<vmem>>, vector<16x128xf32>
    %c6_65 = arith.constant 6 : index
    %c0_66 = arith.constant 0 : index
    %c0_67 = arith.constant 0 : index
    %53 = vector.load %arg3[%c6_65, %c0_66, %c0_67] : memref<16x128x128xbf16, #tpu.memory_space<vmem>>, vector<1x128x128xbf16>
    %54 = vector.shape_cast %53 : vector<1x128x128xbf16> to vector<128x128xbf16>
    %cst_68 = arith.constant dense<0.000000e+00> : vector<16x128xf32>
    %55 = tpu.matmul %51, %54, %cst_68 {dimension_numbers = #tpu.dot_dimension_numbers<[1], [0], [0], [1], [0, 0, 1, 1], [], []>} : vector<16x128xbf16>, vector<128x128xbf16>, vector<16x128xf32> -> vector<16x128xf32>
    %56 = arith.addf %52, %55 : vector<16x128xf32>
    %c0_69 = arith.constant 0 : index
    %c0_70 = arith.constant 0 : index
    %57 = vector.load %arg6[%c0_69, %c0_70] : memref<16x128xf32, #tpu.memory_space<vmem>>, vector<16x128xf32>
    tpu.vector_store %arg6[%c0_69, %c0_70], %56 {strides = array<i32>} : memref<16x128xf32, #tpu.memory_space<vmem>>, vector<16x128xf32>,
    %c0_71 = arith.constant 0 : index
    %c8 = arith.constant 8 : index
    %c0_72 = arith.constant 0 : index
    %58 = vector.load %arg2[%c0_71, %c8, %c0_72] : memref<1x40x128xbf16, #tpu.memory_space<vmem>>, vector<1x16x128xbf16>
    %59 = vector.shape_cast %58 : vector<1x16x128xbf16> to vector<16x128xbf16>
    %c0_73 = arith.constant 0 : index
    %c0_74 = arith.constant 0 : index
    %60 = vector.load %arg6[%c0_73, %c0_74] : memref<16x128xf32, #tpu.memory_space<vmem>>, vector<16x128xf32>
    %c7_75 = arith.constant 7 : index
    %c0_76 = arith.constant 0 : index
    %c0_77 = arith.constant 0 : index
    %61 = vector.load %arg3[%c7_75, %c0_76, %c0_77] : memref<16x128x128xbf16, #tpu.memory_space<vmem>>, vector<1x128x128xbf16>
    %62 = vector.shape_cast %61 : vector<1x128x128xbf16> to vector<128x128xbf16>
    %cst_78 = arith.constant dense<0.000000e+00> : vector<16x128xf32>
    %63 = tpu.matmul %59, %62, %cst_78 {dimension_numbers = #tpu.dot_dimension_numbers<[1], [0], [0], [1], [0, 0, 1, 1], [], []>} : vector<16x128xbf16>, vector<128x128xbf16>, vector<16x128xf32> -> vector<16x128xf32>
    %64 = arith.addf %60, %63 : vector<16x128xf32>
    %c0_79 = arith.constant 0 : index
    %c0_80 = arith.constant 0 : index
    %65 = vector.load %arg6[%c0_79, %c0_80] : memref<16x128xf32, #tpu.memory_space<vmem>>, vector<16x128xf32>
    tpu.vector_store %arg6[%c0_79, %c0_80], %64 {strides = array<i32>} : memref<16x128xf32, #tpu.memory_space<vmem>>, vector<16x128xf32>,
    %c0_81 = arith.constant 0 : index
    %c10 = arith.constant 10 : index
    %c0_82 = arith.constant 0 : index
    %66 = vector.load %arg2[%c0_81, %c10, %c0_82] : memref<1x40x128xbf16, #tpu.memory_space<vmem>>, vector<1x16x128xbf16>
    %67 = vector.shape_cast %66 : vector<1x16x128xbf16> to vector<16x128xbf16>
    %c0_83 = arith.constant 0 : index
    %c0_84 = arith.constant 0 : index
    %68 = vector.load %arg6[%c0_83, %c0_84] : memref<16x128xf32, #tpu.memory_space<vmem>>, vector<16x128xf32>
    %c8_85 = arith.constant 8 : index
    %c0_86 = arith.constant 0 : index
    %c0_87 = arith.constant 0 : index
    %69 = vector.load %arg3[%c8_85, %c0_86, %c0_87] : memref<16x128x128xbf16, #tpu.memory_space<vmem>>, vector<1x128x128xbf16>
    %70 = vector.shape_cast %69 : vector<1x128x128xbf16> to vector<128x128xbf16>
    %cst_88 = arith.constant dense<0.000000e+00> : vector<16x128xf32>
    %71 = tpu.matmul %67, %70, %cst_88 {dimension_numbers = #tpu.dot_dimension_numbers<[1], [0], [0], [1], [0, 0, 1, 1], [], []>} : vector<16x128xbf16>, vector<128x128xbf16>, vector<16x128xf32> -> vector<16x128xf32>
    %72 = arith.addf %68, %71 : vector<16x128xf32>
    %c0_89 = arith.constant 0 : index
    %c0_90 = arith.constant 0 : index
    %73 = vector.load %arg6[%c0_89, %c0_90] : memref<16x128xf32, #tpu.memory_space<vmem>>, vector<16x128xf32>
    tpu.vector_store %arg6[%c0_89, %c0_90], %72 {strides = array<i32>} : memref<16x128xf32, #tpu.memory_space<vmem>>, vector<16x128xf32>,
    %c0_91 = arith.constant 0 : index
    %c11 = arith.constant 11 : index
    %c0_92 = arith.constant 0 : index
    %74 = vector.load %arg2[%c0_91, %c11, %c0_92] : memref<1x40x128xbf16, #tpu.memory_space<vmem>>, vector<1x16x128xbf16>
    %75 = vector.shape_cast %74 : vector<1x16x128xbf16> to vector<16x128xbf16>
    %c0_93 = arith.constant 0 : index
    %c0_94 = arith.constant 0 : index
    %76 = vector.load %arg6[%c0_93, %c0_94] : memref<16x128xf32, #tpu.memory_space<vmem>>, vector<16x128xf32>
    %c9 = arith.constant 9 : index
    %c0_95 = arith.constant 0 : index
    %c0_96 = arith.constant 0 : index
    %77 = vector.load %arg3[%c9, %c0_95, %c0_96] : memref<16x128x128xbf16, #tpu.memory_space<vmem>>, vector<1x128x128xbf16>
    %78 = vector.shape_cast %77 : vector<1x128x128xbf16> to vector<128x128xbf16>
    %cst_97 = arith.constant dense<0.000000e+00> : vector<16x128xf32>
    %79 = tpu.matmul %75, %78, %cst_97 {dimension_numbers = #tpu.dot_dimension_numbers<[1], [0], [0], [1], [0, 0, 1, 1], [], []>} : vector<16x128xbf16>, vector<128x128xbf16>, vector<16x128xf32> -> vector<16x128xf32>
    %80 = arith.addf %76, %79 : vector<16x128xf32>
    %c0_98 = arith.constant 0 : index
    %c0_99 = arith.constant 0 : index
    %81 = vector.load %arg6[%c0_98, %c0_99] : memref<16x128xf32, #tpu.memory_space<vmem>>, vector<16x128xf32>
    tpu.vector_store %arg6[%c0_98, %c0_99], %80 {strides = array<i32>} : memref<16x128xf32, #tpu.memory_space<vmem>>, vector<16x128xf32>,
    %c0_100 = arith.constant 0 : index
    %c12 = arith.constant 12 : index
    %c0_101 = arith.constant 0 : index
    %82 = vector.load %arg2[%c0_100, %c12, %c0_101] : memref<1x40x128xbf16, #tpu.memory_space<vmem>>, vector<1x16x128xbf16>
    %83 = vector.shape_cast %82 : vector<1x16x128xbf16> to vector<16x128xbf16>
    %c0_102 = arith.constant 0 : index
    %c0_103 = arith.constant 0 : index
    %84 = vector.load %arg6[%c0_102, %c0_103] : memref<16x128xf32, #tpu.memory_space<vmem>>, vector<16x128xf32>
    %c10_104 = arith.constant 10 : index
    %c0_105 = arith.constant 0 : index
    %c0_106 = arith.constant 0 : index
    %85 = vector.load %arg3[%c10_104, %c0_105, %c0_106] : memref<16x128x128xbf16, #tpu.memory_space<vmem>>, vector<1x128x128xbf16>
    %86 = vector.shape_cast %85 : vector<1x128x128xbf16> to vector<128x128xbf16>
    %cst_107 = arith.constant dense<0.000000e+00> : vector<16x128xf32>
    %87 = tpu.matmul %83, %86, %cst_107 {dimension_numbers = #tpu.dot_dimension_numbers<[1], [0], [0], [1], [0, 0, 1, 1], [], []>} : vector<16x128xbf16>, vector<128x128xbf16>, vector<16x128xf32> -> vector<16x128xf32>
    %88 = arith.addf %84, %87 : vector<16x128xf32>
    %c0_108 = arith.constant 0 : index
    %c0_109 = arith.constant 0 : index
    %89 = vector.load %arg6[%c0_108, %c0_109] : memref<16x128xf32, #tpu.memory_space<vmem>>, vector<16x128xf32>
    tpu.vector_store %arg6[%c0_108, %c0_109], %88 {strides = array<i32>} : memref<16x128xf32, #tpu.memory_space<vmem>>, vector<16x128xf32>,
    %c0_110 = arith.constant 0 : index
    %c13 = arith.constant 13 : index
    %c0_111 = arith.constant 0 : index
    %90 = vector.load %arg2[%c0_110, %c13, %c0_111] : memref<1x40x128xbf16, #tpu.memory_space<vmem>>, vector<1x16x128xbf16>
    %91 = vector.shape_cast %90 : vector<1x16x128xbf16> to vector<16x128xbf16>
    %c0_112 = arith.constant 0 : index
    %c0_113 = arith.constant 0 : index
    %92 = vector.load %arg6[%c0_112, %c0_113] : memref<16x128xf32, #tpu.memory_space<vmem>>, vector<16x128xf32>
    %c11_114 = arith.constant 11 : index
    %c0_115 = arith.constant 0 : index
    %c0_116 = arith.constant 0 : index
    %93 = vector.load %arg3[%c11_114, %c0_115, %c0_116] : memref<16x128x128xbf16, #tpu.memory_space<vmem>>, vector<1x128x128xbf16>
    %94 = vector.shape_cast %93 : vector<1x128x128xbf16> to vector<128x128xbf16>
    %cst_117 = arith.constant dense<0.000000e+00> : vector<16x128xf32>
    %95 = tpu.matmul %91, %94, %cst_117 {dimension_numbers = #tpu.dot_dimension_numbers<[1], [0], [0], [1], [0, 0, 1, 1], [], []>} : vector<16x128xbf16>, vector<128x128xbf16>, vector<16x128xf32> -> vector<16x128xf32>
    %96 = arith.addf %92, %95 : vector<16x128xf32>
    %c0_118 = arith.constant 0 : index
    %c0_119 = arith.constant 0 : index
    %97 = vector.load %arg6[%c0_118, %c0_119] : memref<16x128xf32, #tpu.memory_space<vmem>>, vector<16x128xf32>
    tpu.vector_store %arg6[%c0_118, %c0_119], %96 {strides = array<i32>} : memref<16x128xf32, #tpu.memory_space<vmem>>, vector<16x128xf32>,
    %c0_120 = arith.constant 0 : index
    %c15 = arith.constant 15 : index
    %c0_121 = arith.constant 0 : index
    %98 = vector.load %arg2[%c0_120, %c15, %c0_121] : memref<1x40x128xbf16, #tpu.memory_space<vmem>>, vector<1x16x128xbf16>
    %99 = vector.shape_cast %98 : vector<1x16x128xbf16> to vector<16x128xbf16>
    %c0_122 = arith.constant 0 : index
    %c0_123 = arith.constant 0 : index
    %100 = vector.load %arg6[%c0_122, %c0_123] : memref<16x128xf32, #tpu.memory_space<vmem>>, vector<16x128xf32>
    %c12_124 = arith.constant 12 : index
    %c0_125 = arith.constant 0 : index
    %c0_126 = arith.constant 0 : index
    %101 = vector.load %arg3[%c12_124, %c0_125, %c0_126] : memref<16x128x128xbf16, #tpu.memory_space<vmem>>, vector<1x128x128xbf16>
    %102 = vector.shape_cast %101 : vector<1x128x128xbf16> to vector<128x128xbf16>
    %cst_127 = arith.constant dense<0.000000e+00> : vector<16x128xf32>
    %103 = tpu.matmul %99, %102, %cst_127 {dimension_numbers = #tpu.dot_dimension_numbers<[1], [0], [0], [1], [0, 0, 1, 1], [], []>} : vector<16x128xbf16>, vector<128x128xbf16>, vector<16x128xf32> -> vector<16x128xf32>
    %104 = arith.addf %100, %103 : vector<16x128xf32>
    %c0_128 = arith.constant 0 : index
    %c0_129 = arith.constant 0 : index
    %105 = vector.load %arg6[%c0_128, %c0_129] : memref<16x128xf32, #tpu.memory_space<vmem>>, vector<16x128xf32>
    tpu.vector_store %arg6[%c0_128, %c0_129], %104 {strides = array<i32>} : memref<16x128xf32, #tpu.memory_space<vmem>>, vector<16x128xf32>,
    %c0_130 = arith.constant 0 : index
    %c16 = arith.constant 16 : index
    %c0_131 = arith.constant 0 : index
    %106 = vector.load %arg2[%c0_130, %c16, %c0_131] : memref<1x40x128xbf16, #tpu.memory_space<vmem>>, vector<1x16x128xbf16>
    %107 = vector.shape_cast %106 : vector<1x16x128xbf16> to vector<16x128xbf16>
    %c0_132 = arith.constant 0 : index
    %c0_133 = arith.constant 0 : index
    %108 = vector.load %arg6[%c0_132, %c0_133] : memref<16x128xf32, #tpu.memory_space<vmem>>, vector<16x128xf32>
    %c13_134 = arith.constant 13 : index
    %c0_135 = arith.constant 0 : index
    %c0_136 = arith.constant 0 : index
    %109 = vector.load %arg3[%c13_134, %c0_135, %c0_136] : memref<16x128x128xbf16, #tpu.memory_space<vmem>>, vector<1x128x128xbf16>
    %110 = vector.shape_cast %109 : vector<1x128x128xbf16> to vector<128x128xbf16>
    %cst_137 = arith.constant dense<0.000000e+00> : vector<16x128xf32>
    %111 = tpu.matmul %107, %110, %cst_137 {dimension_numbers = #tpu.dot_dimension_numbers<[1], [0], [0], [1], [0, 0, 1, 1], [], []>} : vector<16x128xbf16>, vector<128x128xbf16>, vector<16x128xf32> -> vector<16x128xf32>
    %112 = arith.addf %108, %111 : vector<16x128xf32>
    %c0_138 = arith.constant 0 : index
    %c0_139 = arith.constant 0 : index
    %113 = vector.load %arg6[%c0_138, %c0_139] : memref<16x128xf32, #tpu.memory_space<vmem>>, vector<16x128xf32>
    tpu.vector_store %arg6[%c0_138, %c0_139], %112 {strides = array<i32>} : memref<16x128xf32, #tpu.memory_space<vmem>>, vector<16x128xf32>,
    %c0_140 = arith.constant 0 : index
    %c17 = arith.constant 17 : index
    %c0_141 = arith.constant 0 : index
    %114 = vector.load %arg2[%c0_140, %c17, %c0_141] : memref<1x40x128xbf16, #tpu.memory_space<vmem>>, vector<1x16x128xbf16>
    %115 = vector.shape_cast %114 : vector<1x16x128xbf16> to vector<16x128xbf16>
    %c0_142 = arith.constant 0 : index
    %c0_143 = arith.constant 0 : index
    %116 = vector.load %arg6[%c0_142, %c0_143] : memref<16x128xf32, #tpu.memory_space<vmem>>, vector<16x128xf32>
    %c14 = arith.constant 14 : index
    %c0_144 = arith.constant 0 : index
    %c0_145 = arith.constant 0 : index
    %117 = vector.load %arg3[%c14, %c0_144, %c0_145] : memref<16x128x128xbf16, #tpu.memory_space<vmem>>, vector<1x128x128xbf16>
    %118 = vector.shape_cast %117 : vector<1x128x128xbf16> to vector<128x128xbf16>
    %cst_146 = arith.constant dense<0.000000e+00> : vector<16x128xf32>
    %119 = tpu.matmul %115, %118, %cst_146 {dimension_numbers = #tpu.dot_dimension_numbers<[1], [0], [0], [1], [0, 0, 1, 1], [], []>} : vector<16x128xbf16>, vector<128x128xbf16>, vector<16x128xf32> -> vector<16x128xf32>
    %120 = arith.addf %116, %119 : vector<16x128xf32>
    %c0_147 = arith.constant 0 : index
    %c0_148 = arith.constant 0 : index
    %121 = vector.load %arg6[%c0_147, %c0_148] : memref<16x128xf32, #tpu.memory_space<vmem>>, vector<16x128xf32>
    tpu.vector_store %arg6[%c0_147, %c0_148], %120 {strides = array<i32>} : memref<16x128xf32, #tpu.memory_space<vmem>>, vector<16x128xf32>,
    %c0_149 = arith.constant 0 : index
    %c18 = arith.constant 18 : index
    %c0_150 = arith.constant 0 : index
    %122 = vector.load %arg2[%c0_149, %c18, %c0_150] : memref<1x40x128xbf16, #tpu.memory_space<vmem>>, vector<1x16x128xbf16>
    %123 = vector.shape_cast %122 : vector<1x16x128xbf16> to vector<16x128xbf16>
    %c0_151 = arith.constant 0 : index
    %c0_152 = arith.constant 0 : index
    %124 = vector.load %arg6[%c0_151, %c0_152] : memref<16x128xf32, #tpu.memory_space<vmem>>, vector<16x128xf32>
    %c15_153 = arith.constant 15 : index
    %c0_154 = arith.constant 0 : index
    %c0_155 = arith.constant 0 : index
    %125 = vector.load %arg3[%c15_153, %c0_154, %c0_155] : memref<16x128x128xbf16, #tpu.memory_space<vmem>>, vector<1x128x128xbf16>
    %126 = vector.shape_cast %125 : vector<1x128x128xbf16> to vector<128x128xbf16>
    %cst_156 = arith.constant dense<0.000000e+00> : vector<16x128xf32>
    %127 = tpu.matmul %123, %126, %cst_156 {dimension_numbers = #tpu.dot_dimension_numbers<[1], [0], [0], [1], [0, 0, 1, 1], [], []>} : vector<16x128xbf16>, vector<128x128xbf16>, vector<16x128xf32> -> vector<16x128xf32>
    %128 = arith.addf %124, %127 : vector<16x128xf32>
    %c0_157 = arith.constant 0 : index
    %c0_158 = arith.constant 0 : index
    %129 = vector.load %arg6[%c0_157, %c0_158] : memref<16x128xf32, #tpu.memory_space<vmem>>, vector<16x128xf32>
    tpu.vector_store %arg6[%c0_157, %c0_158], %128 {strides = array<i32>} : memref<16x128xf32, #tpu.memory_space<vmem>>, vector<16x128xf32>,
    %c0_159 = arith.constant 0 : index
    %c0_160 = arith.constant 0 : index
    %130 = vector.load %arg6[%c0_159, %c0_160] : memref<16x128xf32, #tpu.memory_space<vmem>>, vector<16x128xf32>
    %c0_161 = arith.constant 0 : index
    %c0_162 = arith.constant 0 : index
    %131 = vector.load %arg4[%c0_161, %c0_162] : memref<1x128xf32, #tpu.memory_space<vmem>>, vector<1x128xf32>
    %132 = vector.broadcast %131 : vector<1x128xf32> to vector<16x128xf32>
    %133 = arith.addf %130, %132 : vector<16x128xf32>
    %c0_163 = arith.constant 0 : index
    %c0_164 = arith.constant 0 : index
    %c0_165 = arith.constant 0 : index
    %134 = vector.load %arg5[%c0_163, %c0_164, %c0_165] : memref<1x16x128xf32, #tpu.memory_space<vmem>>, vector<1x16x128xf32>
    %135 = vector.shape_cast %134 : vector<1x16x128xf32> to vector<16x128xf32>
    %136 = vector.shape_cast %133 : vector<16x128xf32> to vector<1x16x128xf32>
    tpu.vector_store %arg5[%c0_163, %c0_164, %c0_165], %136 {strides = array<i32>} : memref<1x16x128xf32, #tpu.memory_space<vmem>>, vector<1x16x128xf32>,
    return
  }
  func.func @transform_0(%arg0: i32, %arg1: i32) -> (i32, i32, i32) {
    %c0_i32 = arith.constant 0 : i32
    %c0_i32_0 = arith.constant 0 : i32
    %c0_i32_1 = arith.constant 0 : i32
    return %arg0, %c0_i32, %c0_i32_0 : i32, i32, i32
  }
  func.func @transform_1(%arg0: i32, %arg1: i32) -> (i32, i32, i32) {
    %c0_i32 = arith.constant 0 : i32
    %c0_i32_0 = arith.constant 0 : i32
    %c0_i32_1 = arith.constant 0 : i32
    return %c0_i32, %c0_i32_0, %arg1 : i32, i32, i32
  }
  func.func @transform_2(%arg0: i32, %arg1: i32) -> (i32, i32) {
    %c0_i32 = arith.constant 0 : i32
    %c0_i32_0 = arith.constant 0 : i32
    return %c0_i32, %arg1 : i32, i32
  }
  func.func @transform_3(%arg0: i32, %arg1: i32) -> (i32, i32, i32) {
    %c0_i32 = arith.constant 0 : i32
    %c0_i32_0 = arith.constant 0 : i32
    return %arg0, %c0_i32, %arg1 : i32, i32, i32
  }
}

</mosaic_0001>

<llo_original>
// kernel: discriminator_forward.5
$region0: #{discriminator_forward.5}
  #allocation0 [shape = 'u32[]', space=smem, size = 0x4, offset = 0x4, fixed_abs, tag = 'smem constant byte address 0x4 - core index']
  #allocation1 [shape = 'u32[144,128]{1,0:T(1,128)}', space=vmem, size = 0x12000, scoped, tag = 'internal scratch']
  #allocation2 [shape = 'f32[512,128]{1,0:T(8,128)}', space=vmem, size = 0x40000, scoped, tag = 'scratch operand']
  %s0 = inlined_call_operand.vmem [shape: bf16[512,128], index: 0, kind: input, shape index: {}]
  %s1 = inlined_call_operand.vmem [shape: bf16[128,128], index: 1, kind: input, shape index: {}]
  %s2 = inlined_call_operand.vmem [shape: f32[1,128], index: 2, kind: input, shape index: {}]
  %s3 = inlined_call_operand.vmem [shape: bf16[512,128], index: 3, kind: output, shape index: {}]
  %s4 = sld [smem:[#allocation0]]
  $region30: #{discriminator_forward.5} parent=0
    _
  %s6 = ssub.s32 1, %s4
  %s7 = scalar_select 0, %s6, %s4
  // Predicated region
  $region2: #{discriminator_forward.5} parent=0 // pred_check
    _
  $region3: #{discriminator_forward.5} parent=0 // pred_check_branch
    %9 = sbr.rel (0) target = $region5
  $region4: #{discriminator_forward.5} parent=0 // pred_region
    _
  $region5: #{discriminator_forward.5} parent=0 // pred_fallthru
    _
  // Predicated region
  $region6: #{discriminator_forward.5} parent=0 // pred_check
    _
  $region7: #{discriminator_forward.5} parent=0 // pred_check_branch
    %11 = sbr.rel (0) target = $region9
  $region8: #{discriminator_forward.5} parent=0 // pred_region
    _
  $region9: #{discriminator_forward.5} parent=0 // pred_fallthru
    _
  // Predicated region
  $region10: #{discriminator_forward.5} parent=0 // pred_check
    _
  $region11: #{discriminator_forward.5} parent=0 // pred_check_branch
    %13 = sbr.rel (0) target = $region13
  $region12: #{discriminator_forward.5} parent=0 // pred_region
    _
  $region13: #{discriminator_forward.5} parent=0 // pred_fallthru
    _
  %p15 = scmp.eq.s32.totalorder 0, 0
  // Predicated region
  $region14: #{discriminator_forward.5} parent=0 // pred_check
    %p16 = pneg %p15
  $region15: #{discriminator_forward.5} parent=0 // pred_check_branch
    %18 = sbr.rel (%p16) target = $region17
  $region16: #{discriminator_forward.5} parent=0 // pred_region
    %19 = vst [vmem:[#allocation2] sm:$0xff] 0.0
    %20 = vst [vmem:[#allocation2 + $0x8] sm:$0xff] 0.0
    %21 = vst [vmem:[#allocation2 + $0x10] sm:$0xff] 0.0
    %22 = vst [vmem:[#allocation2 + $0x18] sm:$0xff] 0.0
    %23 = vst [vmem:[#allocation2 + $0x20] sm:$0xff] 0.0
    %24 = vst [vmem:[#allocation2 + $0x28] sm:$0xff] 0.0
    %25 = vst [vmem:[#allocation2 + $0x30] sm:$0xff] 0.0
    %26 = vst [vmem:[#allocation2 + $0x38] sm:$0xff] 0.0
    %27 = vst [vmem:[#allocation2 + $0x40] sm:$0xff] 0.0
    %28 = vst [vmem:[#allocation2 + $0x48] sm:$0xff] 0.0
    %29 = vst [vmem:[#allocation2 + $0x50] sm:$0xff] 0.0
    %30 = vst [vmem:[#allocation2 + $0x58] sm:$0xff] 0.0
    %31 = vst [vmem:[#allocation2 + $0x60] sm:$0xff] 0.0
    %32 = vst [vmem:[#allocation2 + $0x68] sm:$0xff] 0.0
    %33 = vst [vmem:[#allocation2 + $0x70] sm:$0xff] 0.0
    %34 = vst [vmem:[#allocation2 + $0x78] sm:$0xff] 0.0
    %35 = vst [vmem:[#allocation2 + $0x80] sm:$0xff] 0.0
    %36 = vst [vmem:[#allocation2 + $0x88] sm:$0xff] 0.0
    %37 = vst [vmem:[#allocation2 + $0x90] sm:$0xff] 0.0
    %38 = vst [vmem:[#allocation2 + $0x98] sm:$0xff] 0.0
    %39 = vst [vmem:[#allocation2 + $0xa0] sm:$0xff] 0.0
    %40 = vst [vmem:[#allocation2 + $0xa8] sm:$0xff] 0.0
    %41 = vst [vmem:[#allocation2 + $0xb0] sm:$0xff] 0.0
    %42 = vst [vmem:[#allocation2 + $0xb8] sm:$0xff] 0.0
    %43 = vst [vmem:[#allocation2 + $0xc0] sm:$0xff] 0.0
    %44 = vst [vmem:[#allocation2 + $0xc8] sm:$0xff] 0.0
    %45 = vst [vmem:[#allocation2 + $0xd0] sm:$0xff] 0.0
    %46 = vst [vmem:[#allocation2 + $0xd8] sm:$0xff] 0.0
    %47 = vst [vmem:[#allocation2 + $0xe0] sm:$0xff] 0.0
    %48 = vst [vmem:[#allocation2 + $0xe8] sm:$0xff] 0.0
    %49 = vst [vmem:[#allocation2 + $0xf0] sm:$0xff] 0.0
    %50 = vst [vmem:[#allocation2 + $0xf8] sm:$0xff] 0.0
    %51 = vst [vmem:[#allocation2 + $0x100] sm:$0xff] 0.0
    %52 = vst [vmem:[#allocation2 + $0x108] sm:$0xff] 0.0
    %53 = vst [vmem:[#allocation2 + $0x110] sm:$0xff] 0.0
    %54 = vst [vmem:[#allocation2 + $0x118] sm:$0xff] 0.0
    %55 = vst [vmem:[#allocation2 + $0x120] sm:$0xff] 0.0
    %56 = vst [vmem:[#allocation2 + $0x128] sm:$0xff] 0.0
    %57 = vst [vmem:[#allocation2 + $0x130] sm:$0xff] 0.0
    %58 = vst [vmem:[#allocation2 + $0x138] sm:$0xff] 0.0
    %59 = vst [vmem:[#allocation2 + $0x140] sm:$0xff] 0.0
    %60 = vst [vmem:[#allocation2 + $0x148] sm:$0xff] 0.0
    %61 = vst [vmem:[#allocation2 + $0x150] sm:$0xff] 0.0
    %62 = vst [vmem:[#allocation2 + $0x158] sm:$0xff] 0.0
    %63 = vst [vmem:[#allocation2 + $0x160] sm:$0xff] 0.0
    %64 = vst [vmem:[#allocation2 + $0x168] sm:$0xff] 0.0
    %65 = vst [vmem:[#allocation2 + $0x170] sm:$0xff] 0.0
    %66 = vst [vmem:[#allocation2 + $0x178] sm:$0xff] 0.0
    %67 = vst [vmem:[#allocation2 + $0x180] sm:$0xff] 0.0
    %68 = vst [vmem:[#allocation2 + $0x188] sm:$0xff] 0.0
    %69 = vst [vmem:[#allocation2 + $0x190] sm:$0xff] 0.0
    %70 = vst [vmem:[#allocation2 + $0x198] sm:$0xff] 0.0
    %71 = vst [vmem:[#allocation2 + $0x1a0] sm:$0xff] 0.0
    %72 = vst [vmem:[#allocation2 + $0x1a8] sm:$0xff] 0.0
    %73 = vst [vmem:[#allocation2 + $0x1b0] sm:$0xff] 0.0
    %74 = vst [vmem:[#allocation2 + $0x1b8] sm:$0xff] 0.0
    %75 = vst [vmem:[#allocation2 + $0x1c0] sm:$0xff] 0.0
    %76 = vst [vmem:[#allocation2 + $0x1c8] sm:$0xff] 0.0
    %77 = vst [vmem:[#allocation2 + $0x1d0] sm:$0xff] 0.0
    %78 = vst [vmem:[#allocation2 + $0x1d8] sm:$0xff] 0.0
    %79 = vst [vmem:[#allocation2 + $0x1e0] sm:$0xff] 0.0
    %80 = vst [vmem:[#allocation2 + $0x1e8] sm:$0xff] 0.0
    %81 = vst [vmem:[#allocation2 + $0x1f0] sm:$0xff] 0.0
    %82 = vst [vmem:[#allocation2 + $0x1f8] sm:$0xff] 0.0
  $region17: #{discriminator_forward.5} parent=0 // pred_fallthru
    _
  %v83 = vld [vmem:[#allocation2] sm:$0xff]
  %v84 = vld [vmem:[#allocation2 + $0x8] sm:$0xff]
  %v85 = vld [vmem:[#allocation2 + $0x10] sm:$0xff]
  %v86 = vld [vmem:[#allocation2 + $0x18] sm:$0xff]
  %v87 = vld [vmem:[#allocation2 + $0x20] sm:$0xff]
  %v88 = vld [vmem:[#allocation2 + $0x28] sm:$0xff]
  %v89 = vld [vmem:[#allocation2 + $0x30] sm:$0xff]
  %v90 = vld [vmem:[#allocation2 + $0x38] sm:$0xff]
  %v91 = vld [vmem:[#allocation2 + $0x40] sm:$0xff]
  %v92 = vld [vmem:[#allocation2 + $0x48] sm:$0xff]
  %v93 = vld [vmem:[#allocation2 + $0x50] sm:$0xff]
  %v94 = vld [vmem:[#allocation2 + $0x58] sm:$0xff]
  %v95 = vld [vmem:[#allocation2 + $0x60] sm:$0xff]
  %v96 = vld [vmem:[#allocation2 + $0x68] sm:$0xff]
  %v97 = vld [vmem:[#allocation2 + $0x70] sm:$0xff]
  %v98 = vld [vmem:[#allocation2 + $0x78] sm:$0xff]
  %v99 = vld [vmem:[#allocation2 + $0x80] sm:$0xff]
  %v100 = vld [vmem:[#allocation2 + $0x88] sm:$0xff]
  %v101 = vld [vmem:[#allocation2 + $0x90] sm:$0xff]
  %v102 = vld [vmem:[#allocation2 + $0x98] sm:$0xff]
  %v103 = vld [vmem:[#allocation2 + $0xa0] sm:$0xff]
  %v104 = vld [vmem:[#allocation2 + $0xa8] sm:$0xff]
  %v105 = vld [vmem:[#allocation2 + $0xb0] sm:$0xff]
  %v106 = vld [vmem:[#allocation2 + $0xb8] sm:$0xff]
  %v107 = vld [vmem:[#allocation2 + $0xc0] sm:$0xff]
  %v108 = vld [vmem:[#allocation2 + $0xc8] sm:$0xff]
  %v109 = vld [vmem:[#allocation2 + $0xd0] sm:$0xff]
  %v110 = vld [vmem:[#allocation2 + $0xd8] sm:$0xff]
  %v111 = vld [vmem:[#allocation2 + $0xe0] sm:$0xff]
  %v112 = vld [vmem:[#allocation2 + $0xe8] sm:$0xff]
  %v113 = vld [vmem:[#allocation2 + $0xf0] sm:$0xff]
  %v114 = vld [vmem:[#allocation2 + $0xf8] sm:$0xff]
  %v115 = vld [vmem:[#allocation2 + $0x100] sm:$0xff]
  %v116 = vld [vmem:[#allocation2 + $0x108] sm:$0xff]
  %v117 = vld [vmem:[#allocation2 + $0x110] sm:$0xff]
  %v118 = vld [vmem:[#allocation2 + $0x118] sm:$0xff]
  %v119 = vld [vmem:[#allocation2 + $0x120] sm:$0xff]
  %v120 = vld [vmem:[#allocation2 + $0x128] sm:$0xff]
  %v121 = vld [vmem:[#allocation2 + $0x130] sm:$0xff]
  %v122 = vld [vmem:[#allocation2 + $0x138] sm:$0xff]
  %v123 = vld [vmem:[#allocation2 + $0x140] sm:$0xff]
  %v124 = vld [vmem:[#allocation2 + $0x148] sm:$0xff]
  %v125 = vld [vmem:[#allocation2 + $0x150] sm:$0xff]
  %v126 = vld [vmem:[#allocation2 + $0x158] sm:$0xff]
  %v127 = vld [vmem:[#allocation2 + $0x160] sm:$0xff]
  %v128 = vld [vmem:[#allocation2 + $0x168] sm:$0xff]
  %v129 = vld [vmem:[#allocation2 + $0x170] sm:$0xff]
  %v130 = vld [vmem:[#allocation2 + $0x178] sm:$0xff]
  %v131 = vld [vmem:[#allocation2 + $0x180] sm:$0xff]
  %v132 = vld [vmem:[#allocation2 + $0x188] sm:$0xff]
  %v133 = vld [vmem:[#allocation2 + $0x190] sm:$0xff]
  %v134 = vld [vmem:[#allocation2 + $0x198] sm:$0xff]
  %v135 = vld [vmem:[#allocation2 + $0x1a0] sm:$0xff]
  %v136 = vld [vmem:[#allocation2 + $0x1a8] sm:$0xff]
  %v137 = vld [vmem:[#allocation2 + $0x1b0] sm:$0xff]
  %v138 = vld [vmem:[#allocation2 + $0x1b8] sm:$0xff]
  %v139 = vld [vmem:[#allocation2 + $0x1c0] sm:$0xff]
  %v140 = vld [vmem:[#allocation2 + $0x1c8] sm:$0xff]
  %v141 = vld [vmem:[#allocation2 + $0x1d0] sm:$0xff]
  %v142 = vld [vmem:[#allocation2 + $0x1d8] sm:$0xff]
  %v143 = vld [vmem:[#allocation2 + $0x1e0] sm:$0xff]
  %v144 = vld [vmem:[#allocation2 + $0x1e8] sm:$0xff]
  %v145 = vld [vmem:[#allocation2 + $0x1f0] sm:$0xff]
  %v146 = vld [vmem:[#allocation2 + $0x1f8] sm:$0xff]
  %v147 = vld [vmem:[%s0] sm:$0xf]
  %v148 = vld [vmem:[%s0 + $0x4] sm:$0xf]
  %v149 = vld [vmem:[%s0 + $0x8] sm:$0xf]
  %v150 = vld [vmem:[%s0 + $0xc] sm:$0xf]
  %v151 = vld [vmem:[%s0 + $0x10] sm:$0xf]
  %v152 = vld [vmem:[%s0 + $0x14] sm:$0xf]
  %v153 = vld [vmem:[%s0 + $0x18] sm:$0xf]
  %v154 = vld [vmem:[%s0 + $0x1c] sm:$0xf]
  %v155 = vld [vmem:[%s0 + $0x20] sm:$0xf]
  %v156 = vld [vmem:[%s0 + $0x24] sm:$0xf]
  %v157 = vld [vmem:[%s0 + $0x28] sm:$0xf]
  %v158 = vld [vmem:[%s0 + $0x2c] sm:$0xf]
  %v159 = vld [vmem:[%s0 + $0x30] sm:$0xf]
  %v160 = vld [vmem:[%s0 + $0x34] sm:$0xf]
  %v161 = vld [vmem:[%s0 + $0x38] sm:$0xf]
  %v162 = vld [vmem:[%s0 + $0x3c] sm:$0xf]
  %v163 = vld [vmem:[%s0 + $0x40] sm:$0xf]
  %v164 = vld [vmem:[%s0 + $0x44] sm:$0xf]
  %v165 = vld [vmem:[%s0 + $0x48] sm:$0xf]
  %v166 = vld [vmem:[%s0 + $0x4c] sm:$0xf]
  %v167 = vld [vmem:[%s0 + $0x50] sm:$0xf]
  %v168 = vld [vmem:[%s0 + $0x54] sm:$0xf]
  %v169 = vld [vmem:[%s0 + $0x58] sm:$0xf]
  %v170 = vld [vmem:[%s0 + $0x5c] sm:$0xf]
  %v171 = vld [vmem:[%s0 + $0x60] sm:$0xf]
  %v172 = vld [vmem:[%s0 + $0x64] sm:$0xf]
  %v173 = vld [vmem:[%s0 + $0x68] sm:$0xf]
  %v174 = vld [vmem:[%s0 + $0x6c] sm:$0xf]
  %v175 = vld [vmem:[%s0 + $0x70] sm:$0xf]
  %v176 = vld [vmem:[%s0 + $0x74] sm:$0xf]
  %v177 = vld [vmem:[%s0 + $0x78] sm:$0xf]
  %v178 = vld [vmem:[%s0 + $0x7c] sm:$0xf]
  %v179 = vld [vmem:[%s0 + $0x80] sm:$0xf]
  %v180 = vld [vmem:[%s0 + $0x84] sm:$0xf]
  %v181 = vld [vmem:[%s0 + $0x88] sm:$0xf]
  %v182 = vld [vmem:[%s0 + $0x8c] sm:$0xf]
  %v183 = vld [vmem:[%s0 + $0x90] sm:$0xf]
  %v184 = vld [vmem:[%s0 + $0x94] sm:$0xf]
  %v185 = vld [vmem:[%s0 + $0x98] sm:$0xf]
  %v186 = vld [vmem:[%s0 + $0x9c] sm:$0xf]
  %v187 = vld [vmem:[%s0 + $0xa0] sm:$0xf]
  %v188 = vld [vmem:[%s0 + $0xa4] sm:$0xf]
  %v189 = vld [vmem:[%s0 + $0xa8] sm:$0xf]
  %v190 = vld [vmem:[%s0 + $0xac] sm:$0xf]
  %v191 = vld [vmem:[%s0 + $0xb0] sm:$0xf]
  %v192 = vld [vmem:[%s0 + $0xb4] sm:$0xf]
  %v193 = vld [vmem:[%s0 + $0xb8] sm:$0xf]
  %v194 = vld [vmem:[%s0 + $0xbc] sm:$0xf]
  %v195 = vld [vmem:[%s0 + $0xc0] sm:$0xf]
  %v196 = vld [vmem:[%s0 + $0xc4] sm:$0xf]
  %v197 = vld [vmem:[%s0 + $0xc8] sm:$0xf]
  %v198 = vld [vmem:[%s0 + $0xcc] sm:$0xf]
  %v199 = vld [vmem:[%s0 + $0xd0] sm:$0xf]
  %v200 = vld [vmem:[%s0 + $0xd4] sm:$0xf]
  %v201 = vld [vmem:[%s0 + $0xd8] sm:$0xf]
  %v202 = vld [vmem:[%s0 + $0xdc] sm:$0xf]
  %v203 = vld [vmem:[%s0 + $0xe0] sm:$0xf]
  %v204 = vld [vmem:[%s0 + $0xe4] sm:$0xf]
  %v205 = vld [vmem:[%s0 + $0xe8] sm:$0xf]
  %v206 = vld [vmem:[%s0 + $0xec] sm:$0xf]
  %v207 = vld [vmem:[%s0 + $0xf0] sm:$0xf]
  %v208 = vld [vmem:[%s0 + $0xf4] sm:$0xf]
  %v209 = vld [vmem:[%s0 + $0xf8] sm:$0xf]
  %v210 = vld [vmem:[%s0 + $0xfc] sm:$0xf]
  %v211 = vld [vmem:[%s1] sm:$0xf]
  %v212 = vld [vmem:[%s1 + $0x4] sm:$0xf]
  %v213 = vld [vmem:[%s1 + $0x8] sm:$0xf]
  %v214 = vld [vmem:[%s1 + $0xc] sm:$0xf]
  %v215 = vld [vmem:[%s1 + $0x10] sm:$0xf]
  %v216 = vld [vmem:[%s1 + $0x14] sm:$0xf]
  %v217 = vld [vmem:[%s1 + $0x18] sm:$0xf]
  %v218 = vld [vmem:[%s1 + $0x1c] sm:$0xf]
  %v219 = vld [vmem:[%s1 + $0x20] sm:$0xf]
  %v220 = vld [vmem:[%s1 + $0x24] sm:$0xf]
  %v221 = vld [vmem:[%s1 + $0x28] sm:$0xf]
  %v222 = vld [vmem:[%s1 + $0x2c] sm:$0xf]
  %v223 = vld [vmem:[%s1 + $0x30] sm:$0xf]
  %v224 = vld [vmem:[%s1 + $0x34] sm:$0xf]
  %v225 = vld [vmem:[%s1 + $0x38] sm:$0xf]
  %v226 = vld [vmem:[%s1 + $0x3c] sm:$0xf]
  %v291 = vunpack.c.l.b16 %v147
  %v292 = vunpack.c.l.b16 %v148
  %v293 = vunpack.c.l.b16 %v149
  %v294 = vunpack.c.l.b16 %v150
  %v295 = vunpack.c.l.b16 %v151
  %v296 = vunpack.c.l.b16 %v152
  %v297 = vunpack.c.l.b16 %v153
  %v298 = vunpack.c.l.b16 %v154
  %v299 = vunpack.c.l.b16 %v155
  %v300 = vunpack.c.l.b16 %v156
  %v301 = vunpack.c.l.b16 %v157
  %v302 = vunpack.c.l.b16 %v158
  %v303 = vunpack.c.l.b16 %v159
  %v304 = vunpack.c.l.b16 %v160
  %v305 = vunpack.c.l.b16 %v161
  %v306 = vunpack.c.l.b16 %v162
  %v307 = vunpack.c.l.b16 %v163
  %v308 = vunpack.c.l.b16 %v164
  %v309 = vunpack.c.l.b16 %v165
  %v310 = vunpack.c.l.b16 %v166
  %v311 = vunpack.c.l.b16 %v167
  %v312 = vunpack.c.l.b16 %v168
  %v313 = vunpack.c.l.b16 %v169
  %v314 = vunpack.c.l.b16 %v170
  %v315 = vunpack.c.l.b16 %v171
  %v316 = vunpack.c.l.b16 %v172
  %v317 = vunpack.c.l.b16 %v173
  %v318 = vunpack.c.l.b16 %v174
  %v319 = vunpack.c.l.b16 %v175
  %v320 = vunpack.c.l.b16 %v176
  %v321 = vunpack.c.l.b16 %v177
  %v322 = vunpack.c.l.b16 %v178
  %v323 = vunpack.c.l.b16 %v179
  %v324 = vunpack.c.l.b16 %v180
  %v325 = vunpack.c.l.b16 %v181
  %v326 = vunpack.c.l.b16 %v182
  %v327 = vunpack.c.l.b16 %v183
  %v328 = vunpack.c.l.b16 %v184
  %v329 = vunpack.c.l.b16 %v185
  %v330 = vunpack.c.l.b16 %v186
  %v331 = vunpack.c.l.b16 %v187
  %v332 = vunpack.c.l.b16 %v188
  %v333 = vunpack.c.l.b16 %v189
  %v334 = vunpack.c.l.b16 %v190
  %v335 = vunpack.c.l.b16 %v191
  %v336 = vunpack.c.l.b16 %v192
  %v337 = vunpack.c.l.b16 %v193
  %v338 = vunpack.c.l.b16 %v194
  %v339 = vunpack.c.l.b16 %v195
  %v340 = vunpack.c.l.b16 %v196
  %v341 = vunpack.c.l.b16 %v197
  %v342 = vunpack.c.l.b16 %v198
  %v343 = vunpack.c.l.b16 %v199
  %v344 = vunpack.c.l.b16 %v200
  %v345 = vunpack.c.l.b16 %v201
  %v346 = vunpack.c.l.b16 %v202
  %v347 = vunpack.c.l.b16 %v203
  %v348 = vunpack.c.l.b16 %v204
  %v349 = vunpack.c.l.b16 %v205
  %v350 = vunpack.c.l.b16 %v206
  %v351 = vunpack.c.l.b16 %v207
  %v352 = vunpack.c.l.b16 %v208
  %v353 = vunpack.c.l.b16 %v209
  %v354 = vunpack.c.l.b16 %v210
  %v355 = vpack.c.b16 %v292, %v291
  %v356 = vpack.c.b16 %v294, %v293
  %v357 = vpack.c.b16 %v296, %v295
  %v358 = vpack.c.b16 %v298, %v297
  %v359 = vpack.c.b16 %v300, %v299
  %v360 = vpack.c.b16 %v302, %v301
  %v361 = vpack.c.b16 %v304, %v303
  %v362 = vpack.c.b16 %v306, %v305
  %v363 = vpack.c.b16 %v308, %v307
  %v364 = vpack.c.b16 %v310, %v309
  %v365 = vpack.c.b16 %v312, %v311
  %v366 = vpack.c.b16 %v314, %v313
  %v367 = vpack.c.b16 %v316, %v315
  %v368 = vpack.c.b16 %v318, %v317
  %v369 = vpack.c.b16 %v320, %v319
  %v370 = vpack.c.b16 %v322, %v321
  %v371 = vpack.c.b16 %v324, %v323
  %v372 = vpack.c.b16 %v326, %v325
  %v373 = vpack.c.b16 %v328, %v327
  %v374 = vpack.c.b16 %v330, %v329
  %v375 = vpack.c.b16 %v332, %v331
  %v376 = vpack.c.b16 %v334, %v333
  %v377 = vpack.c.b16 %v336, %v335
  %v378 = vpack.c.b16 %v338, %v337
  %v379 = vpack.c.b16 %v340, %v339
  %v380 = vpack.c.b16 %v342, %v341
  %v381 = vpack.c.b16 %v344, %v343
  %v382 = vpack.c.b16 %v346, %v345
  %v383 = vpack.c.b16 %v348, %v347
  %v384 = vpack.c.b16 %v350, %v349
  %v385 = vpack.c.b16 %v352, %v351
  %v386 = vpack.c.b16 %v354, %v353
  %v435 = vunpack.c.l.b16 %v211
  %v436 = vunpack.c.l.b16 %v212
  %v437 = vunpack.c.l.b16 %v213
  %v438 = vunpack.c.l.b16 %v214
  %v439 = vunpack.c.l.b16 %v215
  %v440 = vunpack.c.l.b16 %v216
  %v441 = vunpack.c.l.b16 %v217
  %v442 = vunpack.c.l.b16 %v218
  %v443 = vunpack.c.l.b16 %v219
  %v444 = vunpack.c.l.b16 %v220
  %v445 = vunpack.c.l.b16 %v221
  %v446 = vunpack.c.l.b16 %v222
  %v447 = vunpack.c.l.b16 %v223
  %v448 = vunpack.c.l.b16 %v224
  %v449 = vunpack.c.l.b16 %v225
  %v450 = vunpack.c.l.b16 %v226
  %v451 = vpack.c.b16 %v436, %v435
  %v452 = vpack.c.b16 %v438, %v437
  %v453 = vpack.c.b16 %v440, %v439
  %v454 = vpack.c.b16 %v442, %v441
  %v455 = vpack.c.b16 %v444, %v443
  %v456 = vpack.c.b16 %v446, %v445
  %v457 = vpack.c.b16 %v448, %v447
  %v458 = vpack.c.b16 %v450, %v449
  %467 = vmatprep.subr.bf16.mxu0 0
  %468 = vmatpush1.bf16.msra.mxu0 %v451
  %469 = vmatprep.subr.bf16.mxu0 0
  %470 = vmatpush1.bf16.msra.mxu0 %v452
  %471 = vmatprep.subr.bf16.mxu0 0
  %472 = vmatpush1.bf16.msra.mxu0 %v453
  %473 = vmatprep.subr.bf16.mxu0 0
  %474 = vmatpush1.bf16.msra.mxu0 %v454
  %475 = vmatprep.subr.bf16.mxu0 0
  %476 = vmatpush1.bf16.msra.mxu0 %v455
  %477 = vmatprep.subr.bf16.mxu0 0
  %478 = vmatpush1.bf16.msra.mxu0 %v456
  %479 = vmatprep.subr.bf16.mxu0 0
  %480 = vmatpush1.bf16.msra.mxu0 %v457
  %481 = vmatprep.subr.bf16.mxu0 0
  %482 = vmatpush1.bf16.msra.mxu0 %v458
  %483 = vmatprep.subr.bf16.mxu0 0
  %484 = vmatpush1.bf16.msra.mxu0 0
  %485 = vmatprep.subr.bf16.mxu0 0
  %486 = vmatpush1.bf16.msra.mxu0 0
  %487 = vmatprep.subr.bf16.mxu0 0
  %488 = vmatpush1.bf16.msra.mxu0 0
  %489 = vmatprep.subr.bf16.mxu0 0
  %490 = vmatpush1.bf16.msra.mxu0 0
  %491 = vmatprep.subr.bf16.mxu0 0
  %492 = vmatpush1.bf16.msra.mxu0 0
  %493 = vmatprep.subr.bf16.mxu0 0
  %494 = vmatpush1.bf16.msra.mxu0 0
  %495 = vmatprep.subr.bf16.mxu0 0
  %496 = vmatpush1.bf16.msra.mxu0 0
  %497 = vmatprep.subr.bf16.mxu0 0
  %498 = vmatpush1.bf16.msra.mxu0 0
  %499 = vmatprep.mubr.bf16.mxu0 0
  %500 = vmatmul.mubr.bf16.gmra.mrb[0].mxu0 %v355
  %v501 = vpop.f32.mrb[0].mxu0
  %v502 = vadd.f32 0.0, %v501
  %v503 = vpop.f32.mrb[0].mxu0
  %v504 = vpop.f32.mrb[0].mxu0
  %v505 = vadd.f32 0.0, %v504
  %v506 = vpop.f32.mrb[0].mxu0
  %507 = vmatprep.mubr.bf16.mxu0 0
  %508 = vmatmul.mubr.bf16.gmra.mrb[0].mxu0 %v356
  %v509 = vpop.f32.mrb[0].mxu0
  %v510 = vadd.f32 0.0, %v509
  %v511 = vpop.f32.mrb[0].mxu0
  %v512 = vpop.f32.mrb[0].mxu0
  %v513 = vadd.f32 0.0, %v512
  %v514 = vpop.f32.mrb[0].mxu0
  %515 = vmatprep.mubr.bf16.mxu0 0
  %516 = vmatmul.mubr.bf16.gmra.mrb[0].mxu0 %v357
  %v517 = vpop.f32.mrb[0].mxu0
  %v518 = vadd.f32 0.0, %v517
  %v519 = vpop.f32.mrb[0].mxu0
  %v520 = vpop.f32.mrb[0].mxu0
  %v521 = vadd.f32 0.0, %v520
  %v522 = vpop.f32.mrb[0].mxu0
  %523 = vmatprep.mubr.bf16.mxu0 0
  %524 = vmatmul.mubr.bf16.gmra.mrb[0].mxu0 %v358
  %v525 = vpop.f32.mrb[0].mxu0
  %v526 = vadd.f32 0.0, %v525
  %v527 = vpop.f32.mrb[0].mxu0
  %v528 = vpop.f32.mrb[0].mxu0
  %v529 = vadd.f32 0.0, %v528
  %v530 = vpop.f32.mrb[0].mxu0
  %531 = vmatprep.mubr.bf16.mxu0 0
  %532 = vmatmul.mubr.bf16.gmra.mrb[0].mxu0 %v359
  %v533 = vpop.f32.mrb[0].mxu0
  %v534 = vadd.f32 0.0, %v533
  %v535 = vpop.f32.mrb[0].mxu0
  %v536 = vpop.f32.mrb[0].mxu0
  %v537 = vadd.f32 0.0, %v536
  %v538 = vpop.f32.mrb[0].mxu0
  %539 = vmatprep.mubr.bf16.mxu0 0
  %540 = vmatmul.mubr.bf16.gmra.mrb[0].mxu0 %v360
  %v541 = vpop.f32.mrb[0].mxu0
  %v542 = vadd.f32 0.0, %v541
  %v543 = vpop.f32.mrb[0].mxu0
  %v544 = vpop.f32.mrb[0].mxu0
  %v545 = vadd.f32 0.0, %v544
  %v546 = vpop.f32.mrb[0].mxu0
  %547 = vmatprep.mubr.bf16.mxu0 0
  %548 = vmatmul.mubr.bf16.gmra.mrb[0].mxu0 %v361
  %v549 = vpop.f32.mrb[0].mxu0
  %v550 = vadd.f32 0.0, %v549
  %v551 = vpop.f32.mrb[0].mxu0
  %v552 = vpop.f32.mrb[0].mxu0
  %v553 = vadd.f32 0.0, %v552
  %v554 = vpop.f32.mrb[0].mxu0
  %555 = vmatprep.mubr.bf16.mxu0 0
  %556 = vmatmul.mubr.bf16.gmra.mrb[0].mxu0 %v362
  %v557 = vpop.f32.mrb[0].mxu0
  %v558 = vadd.f32 0.0, %v557
  %v559 = vpop.f32.mrb[0].mxu0
  %v560 = vpop.f32.mrb[0].mxu0
  %v561 = vadd.f32 0.0, %v560
  %v562 = vpop.f32.mrb[0].mxu0
  %563 = vmatprep.mubr.bf16.mxu0 0
  %564 = vmatmul.mubr.bf16.gmra.mrb[0].mxu0 %v363
  %v565 = vpop.f32.mrb[0].mxu0
  %v566 = vadd.f32 0.0, %v565
  %v567 = vpop.f32.mrb[0].mxu0
  %v568 = vpop.f32.mrb[0].mxu0
  %v569 = vadd.f32 0.0, %v568
  %v570 = vpop.f32.mrb[0].mxu0
  %571 = vmatprep.mubr.bf16.mxu0 0
  %572 = vmatmul.mubr.bf16.gmra.mrb[0].mxu0 %v364
  %v573 = vpop.f32.mrb[0].mxu0
  %v574 = vadd.f32 0.0, %v573
  %v575 = vpop.f32.mrb[0].mxu0
  %v576 = vpop.f32.mrb[0].mxu0
  %v577 = vadd.f32 0.0, %v576
  %v578 = vpop.f32.mrb[0].mxu0
  %579 = vmatprep.mubr.bf16.mxu0 0
  %580 = vmatmul.mubr.bf16.gmra.mrb[0].mxu0 %v365
  %v581 = vpop.f32.mrb[0].mxu0
  %v582 = vadd.f32 0.0, %v581
  %v583 = vpop.f32.mrb[0].mxu0
  %v584 = vpop.f32.mrb[0].mxu0
  %v585 = vadd.f32 0.0, %v584
  %v586 = vpop.f32.mrb[0].mxu0
  %587 = vmatprep.mubr.bf16.mxu0 0
  %588 = vmatmul.mubr.bf16.gmra.mrb[0].mxu0 %v366
  %v589 = vpop.f32.mrb[0].mxu0
  %v590 = vadd.f32 0.0, %v589
  %v591 = vpop.f32.mrb[0].mxu0
  %v592 = vpop.f32.mrb[0].mxu0
  %v593 = vadd.f32 0.0, %v592
  %v594 = vpop.f32.mrb[0].mxu0
  %595 = vmatprep.mubr.bf16.mxu0 0
  %596 = vmatmul.mubr.bf16.gmra.mrb[0].mxu0 %v367
  %v597 = vpop.f32.mrb[0].mxu0
  %v598 = vadd.f32 0.0, %v597
  %v599 = vpop.f32.mrb[0].mxu0
  %v600 = vpop.f32.mrb[0].mxu0
  %v601 = vadd.f32 0.0, %v600
  %v602 = vpop.f32.mrb[0].mxu0
  %603 = vmatprep.mubr.bf16.mxu0 0
  %604 = vmatmul.mubr.bf16.gmra.mrb[0].mxu0 %v368
  %v605 = vpop.f32.mrb[0].mxu0
  %v606 = vadd.f32 0.0, %v605
  %v607 = vpop.f32.mrb[0].mxu0
  %v608 = vpop.f32.mrb[0].mxu0
  %v609 = vadd.f32 0.0, %v608
  %v610 = vpop.f32.mrb[0].mxu0
  %611 = vmatprep.mubr.bf16.mxu0 0
  %612 = vmatmul.mubr.bf16.gmra.mrb[0].mxu0 %v369
  %v613 = vpop.f32.mrb[0].mxu0
  %v614 = vadd.f32 0.0, %v613
  %v615 = vpop.f32.mrb[0].mxu0
  %v616 = vpop.f32.mrb[0].mxu0
  %v617 = vadd.f32 0.0, %v616
  %v618 = vpop.f32.mrb[0].mxu0
  %619 = vmatprep.mubr.bf16.mxu0 0
  %620 = vmatmul.mubr.bf16.gmra.mrb[0].mxu0 %v370
  %v621 = vpop.f32.mrb[0].mxu0
  %v622 = vadd.f32 0.0, %v621
  %v623 = vpop.f32.mrb[0].mxu0
  %v624 = vpop.f32.mrb[0].mxu0
  %v625 = vadd.f32 0.0, %v624
  %v626 = vpop.f32.mrb[0].mxu0
  %627 = vmatprep.mubr.bf16.mxu0 0
  %628 = vmatmul.mubr.bf16.gmra.mrb[0].mxu0 %v371
  %v629 = vpop.f32.mrb[0].mxu0
  %v630 = vadd.f32 0.0, %v629
  %v631 = vpop.f32.mrb[0].mxu0
  %v632 = vpop.f32.mrb[0].mxu0
  %v633 = vadd.f32 0.0, %v632
  %v634 = vpop.f32.mrb[0].mxu0
  %635 = vmatprep.mubr.bf16.mxu0 0
  %636 = vmatmul.mubr.bf16.gmra.mrb[0].mxu0 %v372
  %v637 = vpop.f32.mrb[0].mxu0
  %v638 = vadd.f32 0.0, %v637
  %v639 = vpop.f32.mrb[0].mxu0
  %v640 = vpop.f32.mrb[0].mxu0
  %v641 = vadd.f32 0.0, %v640
  %v642 = vpop.f32.mrb[0].mxu0
  %643 = vmatprep.mubr.bf16.mxu0 0
  %644 = vmatmul.mubr.bf16.gmra.mrb[0].mxu0 %v373
  %v645 = vpop.f32.mrb[0].mxu0
  %v646 = vadd.f32 0.0, %v645
  %v647 = vpop.f32.mrb[0].mxu0
  %v648 = vpop.f32.mrb[0].mxu0
  %v649 = vadd.f32 0.0, %v648
  %v650 = vpop.f32.mrb[0].mxu0
  %651 = vmatprep.mubr.bf16.mxu0 0
  %652 = vmatmul.mubr.bf16.gmra.mrb[0].mxu0 %v374
  %v653 = vpop.f32.mrb[0].mxu0
  %v654 = vadd.f32 0.0, %v653
  %v655 = vpop.f32.mrb[0].mxu0
  %v656 = vpop.f32.mrb[0].mxu0
  %v657 = vadd.f32 0.0, %v656
  %v658 = vpop.f32.mrb[0].mxu0
  %659 = vmatprep.mubr.bf16.mxu0 0
  %660 = vmatmul.mubr.bf16.gmra.mrb[0].mxu0 %v375
  %v661 = vpop.f32.mrb[0].mxu0
  %v662 = vadd.f32 0.0, %v661
  %v663 = vpop.f32.mrb[0].mxu0
  %v664 = vpop.f32.mrb[0].mxu0
  %v665 = vadd.f32 0.0, %v664
  %v666 = vpop.f32.mrb[0].mxu0
  %667 = vmatprep.mubr.bf16.mxu0 0
  %668 = vmatmul.mubr.bf16.gmra.mrb[0].mxu0 %v376
  %v669 = vpop.f32.mrb[0].mxu0
  %v670 = vadd.f32 0.0, %v669
  %v671 = vpop.f32.mrb[0].mxu0
  %v672 = vpop.f32.mrb[0].mxu0
  %v673 = vadd.f32 0.0, %v672
  %v674 = vpop.f32.mrb[0].mxu0
  %675 = vmatprep.mubr.bf16.mxu0 0
  %676 = vmatmul.mubr.bf16.gmra.mrb[0].mxu0 %v377
  %v677 = vpop.f32.mrb[0].mxu0
  %v678 = vadd.f32 0.0, %v677
  %v679 = vpop.f32.mrb[0].mxu0
  %v680 = vpop.f32.mrb[0].mxu0
  %v681 = vadd.f32 0.0, %v680
  %v682 = vpop.f32.mrb[0].mxu0
  %683 = vmatprep.mubr.bf16.mxu0 0
  %684 = vmatmul.mubr.bf16.gmra.mrb[0].mxu0 %v378
  %v685 = vpop.f32.mrb[0].mxu0
  %v686 = vadd.f32 0.0, %v685
  %v687 = vpop.f32.mrb[0].mxu0
  %v688 = vpop.f32.mrb[0].mxu0
  %v689 = vadd.f32 0.0, %v688
  %v690 = vpop.f32.mrb[0].mxu0
  %691 = vmatprep.mubr.bf16.mxu0 0
  %692 = vmatmul.mubr.bf16.gmra.mrb[0].mxu0 %v379
  %v693 = vpop.f32.mrb[0].mxu0
  %v694 = vadd.f32 0.0, %v693
  %v695 = vpop.f32.mrb[0].mxu0
  %v696 = vpop.f32.mrb[0].mxu0
  %v697 = vadd.f32 0.0, %v696
  %v698 = vpop.f32.mrb[0].mxu0
  %699 = vmatprep.mubr.bf16.mxu0 0
  %700 = vmatmul.mubr.bf16.gmra.mrb[0].mxu0 %v380
  %v701 = vpop.f32.mrb[0].mxu0
  %v702 = vadd.f32 0.0, %v701
  %v703 = vpop.f32.mrb[0].mxu0
  %v704 = vpop.f32.mrb[0].mxu0
  %v705 = vadd.f32 0.0, %v704
  %v706 = vpop.f32.mrb[0].mxu0
  %707 = vmatprep.mubr.bf16.mxu0 0
  %708 = vmatmul.mubr.bf16.gmra.mrb[0].mxu0 %v381
  %v709 = vpop.f32.mrb[0].mxu0
  %v710 = vadd.f32 0.0, %v709
  %v711 = vpop.f32.mrb[0].mxu0
  %v712 = vpop.f32.mrb[0].mxu0
  %v713 = vadd.f32 0.0, %v712
  %v714 = vpop.f32.mrb[0].mxu0
  %715 = vmatprep.mubr.bf16.mxu0 0
  %716 = vmatmul.mubr.bf16.gmra.mrb[0].mxu0 %v382
  %v717 = vpop.f32.mrb[0].mxu0
  %v718 = vadd.f32 0.0, %v717
  %v719 = vpop.f32.mrb[0].mxu0
  %v720 = vpop.f32.mrb[0].mxu0
  %v721 = vadd.f32 0.0, %v720
  %v722 = vpop.f32.mrb[0].mxu0
  %723 = vmatprep.mubr.bf16.mxu0 0
  %724 = vmatmul.mubr.bf16.gmra.mrb[0].mxu0 %v383
  %v725 = vpop.f32.mrb[0].mxu0
  %v726 = vadd.f32 0.0, %v725
  %v727 = vpop.f32.mrb[0].mxu0
  %v728 = vpop.f32.mrb[0].mxu0
  %v729 = vadd.f32 0.0, %v728
  %v730 = vpop.f32.mrb[0].mxu0
  %731 = vmatprep.mubr.bf16.mxu0 0
  %732 = vmatmul.mubr.bf16.gmra.mrb[0].mxu0 %v384
  %v733 = vpop.f32.mrb[0].mxu0
  %v734 = vadd.f32 0.0, %v733
  %v735 = vpop.f32.mrb[0].mxu0
  %v736 = vpop.f32.mrb[0].mxu0
  %v737 = vadd.f32 0.0, %v736
  %v738 = vpop.f32.mrb[0].mxu0
  %739 = vmatprep.mubr.bf16.mxu0 0
  %740 = vmatmul.mubr.bf16.gmra.mrb[0].mxu0 %v385
  %v741 = vpop.f32.mrb[0].mxu0
  %v742 = vadd.f32 0.0, %v741
  %v743 = vpop.f32.mrb[0].mxu0
  %v744 = vpop.f32.mrb[0].mxu0
  %v745 = vadd.f32 0.0, %v744
  %v746 = vpop.f32.mrb[0].mxu0
  %747 = vmatprep.mubr.bf16.mxu0 0
  %748 = vmatmul.mubr.bf16.gmra.mrb[0].mxu0 %v386
  %v749 = vpop.f32.mrb[0].mxu0
  %v750 = vadd.f32 0.0, %v749
  %v751 = vpop.f32.mrb[0].mxu0
  %v752 = vpop.f32.mrb[0].mxu0
  %v753 = vadd.f32 0.0, %v752
  %v754 = vpop.f32.mrb[0].mxu0
  %755 = vdwg.mxu0
  %v756 = vadd.f32 %v83, %v502
  %v757 = vadd.f32 %v84, %v505
  %v758 = vadd.f32 %v85, %v510
  %v759 = vadd.f32 %v86, %v513
  %v760 = vadd.f32 %v87, %v518
  %v761 = vadd.f32 %v88, %v521
  %v762 = vadd.f32 %v89, %v526
  %v763 = vadd.f32 %v90, %v529
  %v764 = vadd.f32 %v91, %v534
  %v765 = vadd.f32 %v92, %v537
  %v766 = vadd.f32 %v93, %v542
  %v767 = vadd.f32 %v94, %v545
  %v768 = vadd.f32 %v95, %v550
  %v769 = vadd.f32 %v96, %v553
  %v770 = vadd.f32 %v97, %v558
  %v771 = vadd.f32 %v98, %v561
  %v772 = vadd.f32 %v99, %v566
  %v773 = vadd.f32 %v100, %v569
  %v774 = vadd.f32 %v101, %v574
  %v775 = vadd.f32 %v102, %v577
  %v776 = vadd.f32 %v103, %v582
  %v777 = vadd.f32 %v104, %v585
  %v778 = vadd.f32 %v105, %v590
  %v779 = vadd.f32 %v106, %v593
  %v780 = vadd.f32 %v107, %v598
  %v781 = vadd.f32 %v108, %v601
  %v782 = vadd.f32 %v109, %v606
  %v783 = vadd.f32 %v110, %v609
  %v784 = vadd.f32 %v111, %v614
  %v785 = vadd.f32 %v112, %v617
  %v786 = vadd.f32 %v113, %v622
  %v787 = vadd.f32 %v114, %v625
  %v788 = vadd.f32 %v115, %v630
  %v789 = vadd.f32 %v116, %v633
  %v790 = vadd.f32 %v117, %v638
  %v791 = vadd.f32 %v118, %v641
  %v792 = vadd.f32 %v119, %v646
  %v793 = vadd.f32 %v120, %v649
  %v794 = vadd.f32 %v121, %v654
  %v795 = vadd.f32 %v122, %v657
  %v796 = vadd.f32 %v123, %v662
  %v797 = vadd.f32 %v124, %v665
  %v798 = vadd.f32 %v125, %v670
  %v799 = vadd.f32 %v126, %v673
  %v800 = vadd.f32 %v127, %v678
  %v801 = vadd.f32 %v128, %v681
  %v802 = vadd.f32 %v129, %v686
  %v803 = vadd.f32 %v130, %v689
  %v804 = vadd.f32 %v131, %v694
  %v805 = vadd.f32 %v132, %v697
  %v806 = vadd.f32 %v133, %v702
  %v807 = vadd.f32 %v134, %v705
  %v808 = vadd.f32 %v135, %v710
  %v809 = vadd.f32 %v136, %v713
  %v810 = vadd.f32 %v137, %v718
  %v811 = vadd.f32 %v138, %v721
  %v812 = vadd.f32 %v139, %v726
  %v813 = vadd.f32 %v140, %v729
  %v814 = vadd.f32 %v141, %v734
  %v815 = vadd.f32 %v142, %v737
  %v816 = vadd.f32 %v143, %v742
  %v817 = vadd.f32 %v144, %v745
  %v818 = vadd.f32 %v145, %v750
  %v819 = vadd.f32 %v146, %v753
  %820 = vst [vmem:[#allocation2] sm:$0xff] %v756
  %821 = vst [vmem:[#allocation2 + $0x8] sm:$0xff] %v757
  %822 = vst [vmem:[#allocation2 + $0x10] sm:$0xff] %v758
  %823 = vst [vmem:[#allocation2 + $0x18] sm:$0xff] %v759
  %824 = vst [vmem:[#allocation2 + $0x20] sm:$0xff] %v760
  %825 = vst [vmem:[#allocation2 + $0x28] sm:$0xff] %v761
  %826 = vst [vmem:[#allocation2 + $0x30] sm:$0xff] %v762
  %827 = vst [vmem:[#allocation2 + $0x38] sm:$0xff] %v763
  %828 = vst [vmem:[#allocation2 + $0x40] sm:$0xff] %v764
  %829 = vst [vmem:[#allocation2 + $0x48] sm:$0xff] %v765
  %830 = vst [vmem:[#allocation2 + $0x50] sm:$0xff] %v766
  %831 = vst [vmem:[#allocation2 + $0x58] sm:$0xff] %v767
  %832 = vst [vmem:[#allocation2 + $0x60] sm:$0xff] %v768
  %833 = vst [vmem:[#allocation2 + $0x68] sm:$0xff] %v769
  %834 = vst [vmem:[#allocation2 + $0x70] sm:$0xff] %v770
  %835 = vst [vmem:[#allocation2 + $0x78] sm:$0xff] %v771
  %836 = vst [vmem:[#allocation2 + $0x80] sm:$0xff] %v772
  %837 = vst [vmem:[#allocation2 + $0x88] sm:$0xff] %v773
  %838 = vst [vmem:[#allocation2 + $0x90] sm:$0xff] %v774
  %839 = vst [vmem:[#allocation2 + $0x98] sm:$0xff] %v775
  %840 = vst [vmem:[#allocation2 + $0xa0] sm:$0xff] %v776
  %841 = vst [vmem:[#allocation2 + $0xa8] sm:$0xff] %v777
  %842 = vst [vmem:[#allocation2 + $0xb0] sm:$0xff] %v778
  %843 = vst [vmem:[#allocation2 + $0xb8] sm:$0xff] %v779
  %844 = vst [vmem:[#allocation2 + $0xc0] sm:$0xff] %v780
  %845 = vst [vmem:[#allocation2 + $0xc8] sm:$0xff] %v781
  %846 = vst [vmem:[#allocation2 + $0xd0] sm:$0xff] %v782
  %847 = vst [vmem:[#allocation2 + $0xd8] sm:$0xff] %v783
  %848 = vst [vmem:[#allocation2 + $0xe0] sm:$0xff] %v784
  %849 = vst [vmem:[#allocation2 + $0xe8] sm:$0xff] %v785
  %850 = vst [vmem:[#allocation2 + $0xf0] sm:$0xff] %v786
  %851 = vst [vmem:[#allocation2 + $0xf8] sm:$0xff] %v787
  %852 = vst [vmem:[#allocation2 + $0x100] sm:$0xff] %v788
  %853 = vst [vmem:[#allocation2 + $0x108] sm:$0xff] %v789
  %854 = vst [vmem:[#allocation2 + $0x110] sm:$0xff] %v790
  %855 = vst [vmem:[#allocation2 + $0x118] sm:$0xff] %v791
  %856 = vst [vmem:[#allocation2 + $0x120] sm:$0xff] %v792
  %857 = vst [vmem:[#allocation2 + $0x128] sm:$0xff] %v793
  %858 = vst [vmem:[#allocation2 + $0x130] sm:$0xff] %v794
  %859 = vst [vmem:[#allocation2 + $0x138] sm:$0xff] %v795
  %860 = vst [vmem:[#allocation2 + $0x140] sm:$0xff] %v796
  %861 = vst [vmem:[#allocation2 + $0x148] sm:$0xff] %v797
  %862 = vst [vmem:[#allocation2 + $0x150] sm:$0xff] %v798
  %863 = vst [vmem:[#allocation2 + $0x158] sm:$0xff] %v799
  %864 = vst [vmem:[#allocation2 + $0x160] sm:$0xff] %v800
  %865 = vst [vmem:[#allocation2 + $0x168] sm:$0xff] %v801
  %866 = vst [vmem:[#allocation2 + $0x170] sm:$0xff] %v802
  %867 = vst [vmem:[#allocation2 + $0x178] sm:$0xff] %v803
  %868 = vst [vmem:[#allocation2 + $0x180] sm:$0xff] %v804
  %869 = vst [vmem:[#allocation2 + $0x188] sm:$0xff] %v805
  %870 = vst [vmem:[#allocation2 + $0x190] sm:$0xff] %v806
  %871 = vst [vmem:[#allocation2 + $0x198] sm:$0xff] %v807
  %872 = vst [vmem:[#allocation2 + $0x1a0] sm:$0xff] %v808
  %873 = vst [vmem:[#allocation2 + $0x1a8] sm:$0xff] %v809
  %874 = vst [vmem:[#allocation2 + $0x1b0] sm:$0xff] %v810
  %875 = vst [vmem:[#allocation2 + $0x1b8] sm:$0xff] %v811
  %876 = vst [vmem:[#allocation2 + $0x1c0] sm:$0xff] %v812
  %877 = vst [vmem:[#allocation2 + $0x1c8] sm:$0xff] %v813
  %878 = vst [vmem:[#allocation2 + $0x1d0] sm:$0xff] %v814
  %879 = vst [vmem:[#allocation2 + $0x1d8] sm:$0xff] %v815
  %880 = vst [vmem:[#allocation2 + $0x1e0] sm:$0xff] %v816
  %881 = vst [vmem:[#allocation2 + $0x1e8] sm:$0xff] %v817
  %882 = vst [vmem:[#allocation2 + $0x1f0] sm:$0xff] %v818
  %883 = vst [vmem:[#allocation2 + $0x1f8] sm:$0xff] %v819
  // Predicated region
  $region18: #{discriminator_forward.5} parent=0 // pred_check
    %p884 = pneg %p15
  $region19: #{discriminator_forward.5} parent=0 // pred_check_branch
    %886 = sbr.rel (%p884) target = $region21
  $region20: #{discriminator_forward.5} parent=0 // pred_region
    %v887 = vld [vmem:[#allocation2] sm:$0xff]
    %v888 = vld [vmem:[#allocation2 + $0x8] sm:$0xff]
    %v889 = vld [vmem:[#allocation2 + $0x10] sm:$0xff]
    %v890 = vld [vmem:[#allocation2 + $0x18] sm:$0xff]
    %v891 = vld [vmem:[#allocation2 + $0x20] sm:$0xff]
    %v892 = vld [vmem:[#allocation2 + $0x28] sm:$0xff]
    %v893 = vld [vmem:[#allocation2 + $0x30] sm:$0xff]
    %v894 = vld [vmem:[#allocation2 + $0x38] sm:$0xff]
    %v895 = vld [vmem:[#allocation2 + $0x40] sm:$0xff]
    %v896 = vld [vmem:[#allocation2 + $0x48] sm:$0xff]
    %v897 = vld [vmem:[#allocation2 + $0x50] sm:$0xff]
    %v898 = vld [vmem:[#allocation2 + $0x58] sm:$0xff]
    %v899 = vld [vmem:[#allocation2 + $0x60] sm:$0xff]
    %v900 = vld [vmem:[#allocation2 + $0x68] sm:$0xff]
    %v901 = vld [vmem:[#allocation2 + $0x70] sm:$0xff]
    %v902 = vld [vmem:[#allocation2 + $0x78] sm:$0xff]
    %v903 = vld [vmem:[#allocation2 + $0x80] sm:$0xff]
    %v904 = vld [vmem:[#allocation2 + $0x88] sm:$0xff]
    %v905 = vld [vmem:[#allocation2 + $0x90] sm:$0xff]
    %v906 = vld [vmem:[#allocation2 + $0x98] sm:$0xff]
    %v907 = vld [vmem:[#allocation2 + $0xa0] sm:$0xff]
    %v908 = vld [vmem:[#allocation2 + $0xa8] sm:$0xff]
    %v909 = vld [vmem:[#allocation2 + $0xb0] sm:$0xff]
    %v910 = vld [vmem:[#allocation2 + $0xb8] sm:$0xff]
    %v911 = vld [vmem:[#allocation2 + $0xc0] sm:$0xff]
    %v912 = vld [vmem:[#allocation2 + $0xc8] sm:$0xff]
    %v913 = vld [vmem:[#allocation2 + $0xd0] sm:$0xff]
    %v914 = vld [vmem:[#allocation2 + $0xd8] sm:$0xff]
    %v915 = vld [vmem:[#allocation2 + $0xe0] sm:$0xff]
    %v916 = vld [vmem:[#allocation2 + $0xe8] sm:$0xff]
    %v917 = vld [vmem:[#allocation2 + $0xf0] sm:$0xff]
    %v918 = vld [vmem:[#allocation2 + $0xf8] sm:$0xff]
    %v919 = vld [vmem:[#allocation2 + $0x100] sm:$0xff]
    %v920 = vld [vmem:[#allocation2 + $0x108] sm:$0xff]
    %v921 = vld [vmem:[#allocation2 + $0x110] sm:$0xff]
    %v922 = vld [vmem:[#allocation2 + $0x118] sm:$0xff]
    %v923 = vld [vmem:[#allocation2 + $0x120] sm:$0xff]
    %v924 = vld [vmem:[#allocation2 + $0x128] sm:$0xff]
    %v925 = vld [vmem:[#allocation2 + $0x130] sm:$0xff]
    %v926 = vld [vmem:[#allocation2 + $0x138] sm:$0xff]
    %v927 = vld [vmem:[#allocation2 + $0x140] sm:$0xff]
    %v928 = vld [vmem:[#allocation2 + $0x148] sm:$0xff]
    %v929 = vld [vmem:[#allocation2 + $0x150] sm:$0xff]
    %v930 = vld [vmem:[#allocation2 + $0x158] sm:$0xff]
    %v931 = vld [vmem:[#allocation2 + $0x160] sm:$0xff]
    %v932 = vld [vmem:[#allocation2 + $0x168] sm:$0xff]
    %v933 = vld [vmem:[#allocation2 + $0x170] sm:$0xff]
    %v934 = vld [vmem:[#allocation2 + $0x178] sm:$0xff]
    %v935 = vld [vmem:[#allocation2 + $0x180] sm:$0xff]
    %v936 = vld [vmem:[#allocation2 + $0x188] sm:$0xff]
    %v937 = vld [vmem:[#allocation2 + $0x190] sm:$0xff]
    %v938 = vld [vmem:[#allocation2 + $0x198] sm:$0xff]
    %v939 = vld [vmem:[#allocation2 + $0x1a0] sm:$0xff]
    %v940 = vld [vmem:[#allocation2 + $0x1a8] sm:$0xff]
    %v941 = vld [vmem:[#allocation2 + $0x1b0] sm:$0xff]
    %v942 = vld [vmem:[#allocation2 + $0x1b8] sm:$0xff]
    %v943 = vld [vmem:[#allocation2 + $0x1c0] sm:$0xff]
    %v944 = vld [vmem:[#allocation2 + $0x1c8] sm:$0xff]
    %v945 = vld [vmem:[#allocation2 + $0x1d0] sm:$0xff]
    %v946 = vld [vmem:[#allocation2 + $0x1d8] sm:$0xff]
    %v947 = vld [vmem:[#allocation2 + $0x1e0] sm:$0xff]
    %v948 = vld [vmem:[#allocation2 + $0x1e8] sm:$0xff]
    %v949 = vld [vmem:[#allocation2 + $0x1f0] sm:$0xff]
    %v950 = vld [vmem:[#allocation2 + $0x1f8] sm:$0xff]
    %v951 = vld [vmem:[%s2] sm:$0x1]
    %v953 = vlaneseq
    %v954 = vshrl.u32 %v953, 7
    %v955 = vsub.s32 0, %v954
    %v956 = vrot.slane %v951, %v955
    %v958 = vadd.f32 %v887, %v956
    %v959 = vadd.f32 %v888, %v956
    %v960 = vadd.f32 %v889, %v956
    %v961 = vadd.f32 %v890, %v956
    %v962 = vadd.f32 %v891, %v956
    %v963 = vadd.f32 %v892, %v956
    %v964 = vadd.f32 %v893, %v956
    %v965 = vadd.f32 %v894, %v956
    %v966 = vadd.f32 %v895, %v956
    %v967 = vadd.f32 %v896, %v956
    %v968 = vadd.f32 %v897, %v956
    %v969 = vadd.f32 %v898, %v956
    %v970 = vadd.f32 %v899, %v956
    %v971 = vadd.f32 %v900, %v956
    %v972 = vadd.f32 %v901, %v956
    %v973 = vadd.f32 %v902, %v956
    %v974 = vadd.f32 %v903, %v956
    %v975 = vadd.f32 %v904, %v956
    %v976 = vadd.f32 %v905, %v956
    %v977 = vadd.f32 %v906, %v956
    %v978 = vadd.f32 %v907, %v956
    %v979 = vadd.f32 %v908, %v956
    %v980 = vadd.f32 %v909, %v956
    %v981 = vadd.f32 %v910, %v956
    %v982 = vadd.f32 %v911, %v956
    %v983 = vadd.f32 %v912, %v956
    %v984 = vadd.f32 %v913, %v956
    %v985 = vadd.f32 %v914, %v956
    %v986 = vadd.f32 %v915, %v956
    %v987 = vadd.f32 %v916, %v956
    %v988 = vadd.f32 %v917, %v956
    %v989 = vadd.f32 %v918, %v956
    %v990 = vadd.f32 %v919, %v956
    %v991 = vadd.f32 %v920, %v956
    %v992 = vadd.f32 %v921, %v956
    %v993 = vadd.f32 %v922, %v956
    %v994 = vadd.f32 %v923, %v956
    %v995 = vadd.f32 %v924, %v956
    %v996 = vadd.f32 %v925, %v956
    %v997 = vadd.f32 %v926, %v956
    %v998 = vadd.f32 %v927, %v956
    %v999 = vadd.f32 %v928, %v956
    %v1000 = vadd.f32 %v929, %v956
    %v1001 = vadd.f32 %v930, %v956
    %v1002 = vadd.f32 %v931, %v956
    %v1003 = vadd.f32 %v932, %v956
    %v1004 = vadd.f32 %v933, %v956
    %v1005 = vadd.f32 %v934, %v956
    %v1006 = vadd.f32 %v935, %v956
    %v1007 = vadd.f32 %v936, %v956
    %v1008 = vadd.f32 %v937, %v956
    %v1009 = vadd.f32 %v938, %v956
    %v1010 = vadd.f32 %v939, %v956
    %v1011 = vadd.f32 %v940, %v956
    %v1012 = vadd.f32 %v941, %v956
    %v1013 = vadd.f32 %v942, %v956
    %v1014 = vadd.f32 %v943, %v956
    %v1015 = vadd.f32 %v944, %v956
    %v1016 = vadd.f32 %v945, %v956
    %v1017 = vadd.f32 %v946, %v956
    %v1018 = vadd.f32 %v947, %v956
    %v1019 = vadd.f32 %v948, %v956
    %v1020 = vadd.f32 %v949, %v956
    %v1021 = vadd.f32 %v950, %v956
    %vm1022 = vcmp.ge.f32.partialorder %v958, 0.0
    %vm1023 = vcmp.ge.f32.partialorder %v959, 0.0
    %vm1024 = vcmp.ge.f32.partialorder %v960, 0.0
    %vm1025 = vcmp.ge.f32.partialorder %v961, 0.0
    %vm1026 = vcmp.ge.f32.partialorder %v962, 0.0
    %vm1027 = vcmp.ge.f32.partialorder %v963, 0.0
    %vm1028 = vcmp.ge.f32.partialorder %v964, 0.0
    %vm1029 = vcmp.ge.f32.partialorder %v965, 0.0
    %vm1030 = vcmp.ge.f32.partialorder %v966, 0.0
    %vm1031 = vcmp.ge.f32.partialorder %v967, 0.0
    %vm1032 = vcmp.ge.f32.partialorder %v968, 0.0
    %vm1033 = vcmp.ge.f32.partialorder %v969, 0.0
    %vm1034 = vcmp.ge.f32.partialorder %v970, 0.0
    %vm1035 = vcmp.ge.f32.partialorder %v971, 0.0
    %vm1036 = vcmp.ge.f32.partialorder %v972, 0.0
    %vm1037 = vcmp.ge.f32.partialorder %v973, 0.0
    %vm1038 = vcmp.ge.f32.partialorder %v974, 0.0
    %vm1039 = vcmp.ge.f32.partialorder %v975, 0.0
    %vm1040 = vcmp.ge.f32.partialorder %v976, 0.0
    %vm1041 = vcmp.ge.f32.partialorder %v977, 0.0
    %vm1042 = vcmp.ge.f32.partialorder %v978, 0.0
    %vm1043 = vcmp.ge.f32.partialorder %v979, 0.0
    %vm1044 = vcmp.ge.f32.partialorder %v980, 0.0
    %vm1045 = vcmp.ge.f32.partialorder %v981, 0.0
    %vm1046 = vcmp.ge.f32.partialorder %v982, 0.0
    %vm1047 = vcmp.ge.f32.partialorder %v983, 0.0
    %vm1048 = vcmp.ge.f32.partialorder %v984, 0.0
    %vm1049 = vcmp.ge.f32.partialorder %v985, 0.0
    %vm1050 = vcmp.ge.f32.partialorder %v986, 0.0
    %vm1051 = vcmp.ge.f32.partialorder %v987, 0.0
    %vm1052 = vcmp.ge.f32.partialorder %v988, 0.0
    %vm1053 = vcmp.ge.f32.partialorder %v989, 0.0
    %vm1054 = vcmp.ge.f32.partialorder %v990, 0.0
    %vm1055 = vcmp.ge.f32.partialorder %v991, 0.0
    %vm1056 = vcmp.ge.f32.partialorder %v992, 0.0
    %vm1057 = vcmp.ge.f32.partialorder %v993, 0.0
    %vm1058 = vcmp.ge.f32.partialorder %v994, 0.0
    %vm1059 = vcmp.ge.f32.partialorder %v995, 0.0
    %vm1060 = vcmp.ge.f32.partialorder %v996, 0.0
    %vm1061 = vcmp.ge.f32.partialorder %v997, 0.0
    %vm1062 = vcmp.ge.f32.partialorder %v998, 0.0
    %vm1063 = vcmp.ge.f32.partialorder %v999, 0.0
    %vm1064 = vcmp.ge.f32.partialorder %v1000, 0.0
    %vm1065 = vcmp.ge.f32.partialorder %v1001, 0.0
    %vm1066 = vcmp.ge.f32.partialorder %v1002, 0.0
    %vm1067 = vcmp.ge.f32.partialorder %v1003, 0.0
    %vm1068 = vcmp.ge.f32.partialorder %v1004, 0.0
    %vm1069 = vcmp.ge.f32.partialorder %v1005, 0.0
    %vm1070 = vcmp.ge.f32.partialorder %v1006, 0.0
    %vm1071 = vcmp.ge.f32.partialorder %v1007, 0.0
    %vm1072 = vcmp.ge.f32.partialorder %v1008, 0.0
    %vm1073 = vcmp.ge.f32.partialorder %v1009, 0.0
    %vm1074 = vcmp.ge.f32.partialorder %v1010, 0.0
    %vm1075 = vcmp.ge.f32.partialorder %v1011, 0.0
    %vm1076 = vcmp.ge.f32.partialorder %v1012, 0.0
    %vm1077 = vcmp.ge.f32.partialorder %v1013, 0.0
    %vm1078 = vcmp.ge.f32.partialorder %v1014, 0.0
    %vm1079 = vcmp.ge.f32.partialorder %v1015, 0.0
    %vm1080 = vcmp.ge.f32.partialorder %v1016, 0.0
    %vm1081 = vcmp.ge.f32.partialorder %v1017, 0.0
    %vm1082 = vcmp.ge.f32.partialorder %v1018, 0.0
    %vm1083 = vcmp.ge.f32.partialorder %v1019, 0.0
    %vm1084 = vcmp.ge.f32.partialorder %v1020, 0.0
    %vm1085 = vcmp.ge.f32.partialorder %v1021, 0.0
    %v1086 = vmul.f32 %v958, 0.2
    %v1087 = vmul.f32 %v959, 0.2
    %v1088 = vmul.f32 %v960, 0.2
    %v1089 = vmul.f32 %v961, 0.2
    %v1090 = vmul.f32 %v962, 0.2
    %v1091 = vmul.f32 %v963, 0.2
    %v1092 = vmul.f32 %v964, 0.2
    %v1093 = vmul.f32 %v965, 0.2
    %v1094 = vmul.f32 %v966, 0.2
    %v1095 = vmul.f32 %v967, 0.2
    %v1096 = vmul.f32 %v968, 0.2
    %v1097 = vmul.f32 %v969, 0.2
    %v1098 = vmul.f32 %v970, 0.2
    %v1099 = vmul.f32 %v971, 0.2
    %v1100 = vmul.f32 %v972, 0.2
    %v1101 = vmul.f32 %v973, 0.2
    %v1102 = vmul.f32 %v974, 0.2
    %v1103 = vmul.f32 %v975, 0.2
    %v1104 = vmul.f32 %v976, 0.2
    %v1105 = vmul.f32 %v977, 0.2
    %v1106 = vmul.f32 %v978, 0.2
    %v1107 = vmul.f32 %v979, 0.2
    %v1108 = vmul.f32 %v980, 0.2
    %v1109 = vmul.f32 %v981, 0.2
    %v1110 = vmul.f32 %v982, 0.2
    %v1111 = vmul.f32 %v983, 0.2
    %v1112 = vmul.f32 %v984, 0.2
    %v1113 = vmul.f32 %v985, 0.2
    %v1114 = vmul.f32 %v986, 0.2
    %v1115 = vmul.f32 %v987, 0.2
    %v1116 = vmul.f32 %v988, 0.2
    %v1117 = vmul.f32 %v989, 0.2
    %v1118 = vmul.f32 %v990, 0.2
    %v1119 = vmul.f32 %v991, 0.2
    %v1120 = vmul.f32 %v992, 0.2
    %v1121 = vmul.f32 %v993, 0.2
    %v1122 = vmul.f32 %v994, 0.2
    %v1123 = vmul.f32 %v995, 0.2
    %v1124 = vmul.f32 %v996, 0.2
    %v1125 = vmul.f32 %v997, 0.2
    %v1126 = vmul.f32 %v998, 0.2
    %v1127 = vmul.f32 %v999, 0.2
    %v1128 = vmul.f32 %v1000, 0.2
    %v1129 = vmul.f32 %v1001, 0.2
    %v1130 = vmul.f32 %v1002, 0.2
    %v1131 = vmul.f32 %v1003, 0.2
    %v1132 = vmul.f32 %v1004, 0.2
    %v1133 = vmul.f32 %v1005, 0.2
    %v1134 = vmul.f32 %v1006, 0.2
    %v1135 = vmul.f32 %v1007, 0.2
    %v1136 = vmul.f32 %v1008, 0.2
    %v1137 = vmul.f32 %v1009, 0.2
    %v1138 = vmul.f32 %v1010, 0.2
    %v1139 = vmul.f32 %v1011, 0.2
    %v1140 = vmul.f32 %v1012, 0.2
    %v1141 = vmul.f32 %v1013, 0.2
    %v1142 = vmul.f32 %v1014, 0.2
    %v1143 = vmul.f32 %v1015, 0.2
    %v1144 = vmul.f32 %v1016, 0.2
    %v1145 = vmul.f32 %v1017, 0.2
    %v1146 = vmul.f32 %v1018, 0.2
    %v1147 = vmul.f32 %v1019, 0.2
    %v1148 = vmul.f32 %v1020, 0.2
    %v1149 = vmul.f32 %v1021, 0.2
    %v1150 = vsel %vm1022, %v958, %v1086
    %v1151 = vsel %vm1023, %v959, %v1087
    %v1152 = vsel %vm1024, %v960, %v1088
    %v1153 = vsel %vm1025, %v961, %v1089
    %v1154 = vsel %vm1026, %v962, %v1090
    %v1155 = vsel %vm1027, %v963, %v1091
    %v1156 = vsel %vm1028, %v964, %v1092
    %v1157 = vsel %vm1029, %v965, %v1093
    %v1158 = vsel %vm1030, %v966, %v1094
    %v1159 = vsel %vm1031, %v967, %v1095
    %v1160 = vsel %vm1032, %v968, %v1096
    %v1161 = vsel %vm1033, %v969, %v1097
    %v1162 = vsel %vm1034, %v970, %v1098
    %v1163 = vsel %vm1035, %v971, %v1099
    %v1164 = vsel %vm1036, %v972, %v1100
    %v1165 = vsel %vm1037, %v973, %v1101
    %v1166 = vsel %vm1038, %v974, %v1102
    %v1167 = vsel %vm1039, %v975, %v1103
    %v1168 = vsel %vm1040, %v976, %v1104
    %v1169 = vsel %vm1041, %v977, %v1105
    %v1170 = vsel %vm1042, %v978, %v1106
    %v1171 = vsel %vm1043, %v979, %v1107
    %v1172 = vsel %vm1044, %v980, %v1108
    %v1173 = vsel %vm1045, %v981, %v1109
    %v1174 = vsel %vm1046, %v982, %v1110
    %v1175 = vsel %vm1047, %v983, %v1111
    %v1176 = vsel %vm1048, %v984, %v1112
    %v1177 = vsel %vm1049, %v985, %v1113
    %v1178 = vsel %vm1050, %v986, %v1114
    %v1179 = vsel %vm1051, %v987, %v1115
    %v1180 = vsel %vm1052, %v988, %v1116
    %v1181 = vsel %vm1053, %v989, %v1117
    %v1182 = vsel %vm1054, %v990, %v1118
    %v1183 = vsel %vm1055, %v991, %v1119
    %v1184 = vsel %vm1056, %v992, %v1120
    %v1185 = vsel %vm1057, %v993, %v1121
    %v1186 = vsel %vm1058, %v994, %v1122
    %v1187 = vsel %vm1059, %v995, %v1123
    %v1188 = vsel %vm1060, %v996, %v1124
    %v1189 = vsel %vm1061, %v997, %v1125
    %v1190 = vsel %vm1062, %v998, %v1126
    %v1191 = vsel %vm1063, %v999, %v1127
    %v1192 = vsel %vm1064, %v1000, %v1128
    %v1193 = vsel %vm1065, %v1001, %v1129
    %v1194 = vsel %vm1066, %v1002, %v1130
    %v1195 = vsel %vm1067, %v1003, %v1131
    %v1196 = vsel %vm1068, %v1004, %v1132
    %v1197 = vsel %vm1069, %v1005, %v1133
    %v1198 = vsel %vm1070, %v1006, %v1134
    %v1199 = vsel %vm1071, %v1007, %v1135
    %v1200 = vsel %vm1072, %v1008, %v1136
    %v1201 = vsel %vm1073, %v1009, %v1137
    %v1202 = vsel %vm1074, %v1010, %v1138
    %v1203 = vsel %vm1075, %v1011, %v1139
    %v1204 = vsel %vm1076, %v1012, %v1140
    %v1205 = vsel %vm1077, %v1013, %v1141
    %v1206 = vsel %vm1078, %v1014, %v1142
    %v1207 = vsel %vm1079, %v1015, %v1143
    %v1208 = vsel %vm1080, %v1016, %v1144
    %v1209 = vsel %vm1081, %v1017, %v1145
    %v1210 = vsel %vm1082, %v1018, %v1146
    %v1211 = vsel %vm1083, %v1019, %v1147
    %v1212 = vsel %vm1084, %v1020, %v1148
    %v1213 = vsel %vm1085, %v1021, %v1149
    %v1214 = vpack.c.bf16 %v1151, %v1150
    %v1215 = vpack.c.bf16 %v1153, %v1152
    %v1216 = vpack.c.bf16 %v1155, %v1154
    %v1217 = vpack.c.bf16 %v1157, %v1156
    %v1218 = vpack.c.bf16 %v1159, %v1158
    %v1219 = vpack.c.bf16 %v1161, %v1160
    %v1220 = vpack.c.bf16 %v1163, %v1162
    %v1221 = vpack.c.bf16 %v1165, %v1164
    %v1222 = vpack.c.bf16 %v1167, %v1166
    %v1223 = vpack.c.bf16 %v1169, %v1168
    %v1224 = vpack.c.bf16 %v1171, %v1170
    %v1225 = vpack.c.bf16 %v1173, %v1172
    %v1226 = vpack.c.bf16 %v1175, %v1174
    %v1227 = vpack.c.bf16 %v1177, %v1176
    %v1228 = vpack.c.bf16 %v1179, %v1178
    %v1229 = vpack.c.bf16 %v1181, %v1180
    %v1230 = vpack.c.bf16 %v1183, %v1182
    %v1231 = vpack.c.bf16 %v1185, %v1184
    %v1232 = vpack.c.bf16 %v1187, %v1186
    %v1233 = vpack.c.bf16 %v1189, %v1188
    %v1234 = vpack.c.bf16 %v1191, %v1190
    %v1235 = vpack.c.bf16 %v1193, %v1192
    %v1236 = vpack.c.bf16 %v1195, %v1194
    %v1237 = vpack.c.bf16 %v1197, %v1196
    %v1238 = vpack.c.bf16 %v1199, %v1198
    %v1239 = vpack.c.bf16 %v1201, %v1200
    %v1240 = vpack.c.bf16 %v1203, %v1202
    %v1241 = vpack.c.bf16 %v1205, %v1204
    %v1242 = vpack.c.bf16 %v1207, %v1206
    %v1243 = vpack.c.bf16 %v1209, %v1208
    %v1244 = vpack.c.bf16 %v1211, %v1210
    %v1245 = vpack.c.bf16 %v1213, %v1212
    %v1278 = vunpack.c.l.b16 %v1214
    %v1279 = vunpack.c.h.b16 %v1214
    %v1280 = vunpack.c.l.b16 %v1215
    %v1281 = vunpack.c.h.b16 %v1215
    %v1282 = vunpack.c.l.b16 %v1216
    %v1283 = vunpack.c.h.b16 %v1216
    %v1284 = vunpack.c.l.b16 %v1217
    %v1285 = vunpack.c.h.b16 %v1217
    %v1286 = vunpack.c.l.b16 %v1218
    %v1287 = vunpack.c.h.b16 %v1218
    %v1288 = vunpack.c.l.b16 %v1219
    %v1289 = vunpack.c.h.b16 %v1219
    %v1290 = vunpack.c.l.b16 %v1220
    %v1291 = vunpack.c.h.b16 %v1220
    %v1292 = vunpack.c.l.b16 %v1221
    %v1293 = vunpack.c.h.b16 %v1221
    %v1294 = vunpack.c.l.b16 %v1222
    %v1295 = vunpack.c.h.b16 %v1222
    %v1296 = vunpack.c.l.b16 %v1223
    %v1297 = vunpack.c.h.b16 %v1223
    %v1298 = vunpack.c.l.b16 %v1224
    %v1299 = vunpack.c.h.b16 %v1224
    %v1300 = vunpack.c.l.b16 %v1225
    %v1301 = vunpack.c.h.b16 %v1225
    %v1302 = vunpack.c.l.b16 %v1226
    %v1303 = vunpack.c.h.b16 %v1226
    %v1304 = vunpack.c.l.b16 %v1227
    %v1305 = vunpack.c.h.b16 %v1227
    %v1306 = vunpack.c.l.b16 %v1228
    %v1307 = vunpack.c.h.b16 %v1228
    %v1308 = vunpack.c.l.b16 %v1229
    %v1309 = vunpack.c.h.b16 %v1229
    %v1310 = vunpack.c.l.b16 %v1230
    %v1311 = vunpack.c.h.b16 %v1230
    %v1312 = vunpack.c.l.b16 %v1231
    %v1313 = vunpack.c.h.b16 %v1231
    %v1314 = vunpack.c.l.b16 %v1232
    %v1315 = vunpack.c.h.b16 %v1232
    %v1316 = vunpack.c.l.b16 %v1233
    %v1317 = vunpack.c.h.b16 %v1233
    %v1318 = vunpack.c.l.b16 %v1234
    %v1319 = vunpack.c.h.b16 %v1234
    %v1320 = vunpack.c.l.b16 %v1235
    %v1321 = vunpack.c.h.b16 %v1235
    %v1322 = vunpack.c.l.b16 %v1236
    %v1323 = vunpack.c.h.b16 %v1236
    %v1324 = vunpack.c.l.b16 %v1237
    %v1325 = vunpack.c.h.b16 %v1237
    %v1326 = vunpack.c.l.b16 %v1238
    %v1327 = vunpack.c.h.b16 %v1238
    %v1328 = vunpack.c.l.b16 %v1239
    %v1329 = vunpack.c.h.b16 %v1239
    %v1330 = vunpack.c.l.b16 %v1240
    %v1331 = vunpack.c.h.b16 %v1240
    %v1332 = vunpack.c.l.b16 %v1241
    %v1333 = vunpack.c.h.b16 %v1241
    %v1334 = vunpack.c.l.b16 %v1242
    %v1335 = vunpack.c.h.b16 %v1242
    %v1336 = vunpack.c.l.b16 %v1243
    %v1337 = vunpack.c.h.b16 %v1243
    %v1338 = vunpack.c.l.b16 %v1244
    %v1339 = vunpack.c.h.b16 %v1244
    %v1340 = vunpack.c.l.b16 %v1245
    %v1341 = vunpack.c.h.b16 %v1245
    %v1342 = vpack.c.b16 %v1278, %v1278
    %v1343 = vpack.c.b16 %v1279, %v1279
    %v1344 = vpack.c.b16 %v1280, %v1280
    %v1345 = vpack.c.b16 %v1281, %v1281
    %v1346 = vpack.c.b16 %v1282, %v1282
    %v1347 = vpack.c.b16 %v1283, %v1283
    %v1348 = vpack.c.b16 %v1284, %v1284
    %v1349 = vpack.c.b16 %v1285, %v1285
    %v1350 = vpack.c.b16 %v1286, %v1286
    %v1351 = vpack.c.b16 %v1287, %v1287
    %v1352 = vpack.c.b16 %v1288, %v1288
    %v1353 = vpack.c.b16 %v1289, %v1289
    %v1354 = vpack.c.b16 %v1290, %v1290
    %v1355 = vpack.c.b16 %v1291, %v1291
    %v1356 = vpack.c.b16 %v1292, %v1292
    %v1357 = vpack.c.b16 %v1293, %v1293
    %v1358 = vpack.c.b16 %v1294, %v1294
    %v1359 = vpack.c.b16 %v1295, %v1295
    %v1360 = vpack.c.b16 %v1296, %v1296
    %v1361 = vpack.c.b16 %v1297, %v1297
    %v1362 = vpack.c.b16 %v1298, %v1298
    %v1363 = vpack.c.b16 %v1299, %v1299
    %v1364 = vpack.c.b16 %v1300, %v1300
    %v1365 = vpack.c.b16 %v1301, %v1301
    %v1366 = vpack.c.b16 %v1302, %v1302
    %v1367 = vpack.c.b16 %v1303, %v1303
    %v1368 = vpack.c.b16 %v1304, %v1304
    %v1369 = vpack.c.b16 %v1305, %v1305
    %v1370 = vpack.c.b16 %v1306, %v1306
    %v1371 = vpack.c.b16 %v1307, %v1307
    %v1372 = vpack.c.b16 %v1308, %v1308
    %v1373 = vpack.c.b16 %v1309, %v1309
    %v1374 = vpack.c.b16 %v1310, %v1310
    %v1375 = vpack.c.b16 %v1311, %v1311
    %v1376 = vpack.c.b16 %v1312, %v1312
    %v1377 = vpack.c.b16 %v1313, %v1313
    %v1378 = vpack.c.b16 %v1314, %v1314
    %v1379 = vpack.c.b16 %v1315, %v1315
    %v1380 = vpack.c.b16 %v1316, %v1316
    %v1381 = vpack.c.b16 %v1317, %v1317
    %v1382 = vpack.c.b16 %v1318, %v1318
    %v1383 = vpack.c.b16 %v1319, %v1319
    %v1384 = vpack.c.b16 %v1320, %v1320
    %v1385 = vpack.c.b16 %v1321, %v1321
    %v1386 = vpack.c.b16 %v1322, %v1322
    %v1387 = vpack.c.b16 %v1323, %v1323
    %v1388 = vpack.c.b16 %v1324, %v1324
    %v1389 = vpack.c.b16 %v1325, %v1325
    %v1390 = vpack.c.b16 %v1326, %v1326
    %v1391 = vpack.c.b16 %v1327, %v1327
    %v1392 = vpack.c.b16 %v1328, %v1328
    %v1393 = vpack.c.b16 %v1329, %v1329
    %v1394 = vpack.c.b16 %v1330, %v1330
    %v1395 = vpack.c.b16 %v1331, %v1331
    %v1396 = vpack.c.b16 %v1332, %v1332
    %v1397 = vpack.c.b16 %v1333, %v1333
    %v1398 = vpack.c.b16 %v1334, %v1334
    %v1399 = vpack.c.b16 %v1335, %v1335
    %v1400 = vpack.c.b16 %v1336, %v1336
    %v1401 = vpack.c.b16 %v1337, %v1337
    %v1402 = vpack.c.b16 %v1338, %v1338
    %v1403 = vpack.c.b16 %v1339, %v1339
    %v1404 = vpack.c.b16 %v1340, %v1340
    %v1405 = vpack.c.b16 %v1341, %v1341
    %1470 = vst [vmem:[%s3] sm:$0xf] %v1342
    %1471 = vst [vmem:[%s3 + $0x4] sm:$0xf] %v1343
    %1472 = vst [vmem:[%s3 + $0x8] sm:$0xf] %v1344
    %1473 = vst [vmem:[%s3 + $0xc] sm:$0xf] %v1345
    %1474 = vst [vmem:[%s3 + $0x10] sm:$0xf] %v1346
    %1475 = vst [vmem:[%s3 + $0x14] sm:$0xf] %v1347
    %1476 = vst [vmem:[%s3 + $0x18] sm:$0xf] %v1348
    %1477 = vst [vmem:[%s3 + $0x1c] sm:$0xf] %v1349
    %1478 = vst [vmem:[%s3 + $0x20] sm:$0xf] %v1350
    %1479 = vst [vmem:[%s3 + $0x24] sm:$0xf] %v1351
    %1480 = vst [vmem:[%s3 + $0x28] sm:$0xf] %v1352
    %1481 = vst [vmem:[%s3 + $0x2c] sm:$0xf] %v1353
    %1482 = vst [vmem:[%s3 + $0x30] sm:$0xf] %v1354
    %1483 = vst [vmem:[%s3 + $0x34] sm:$0xf] %v1355
    %1484 = vst [vmem:[%s3 + $0x38] sm:$0xf] %v1356
    %1485 = vst [vmem:[%s3 + $0x3c] sm:$0xf] %v1357
    %1486 = vst [vmem:[%s3 + $0x40] sm:$0xf] %v1358
    %1487 = vst [vmem:[%s3 + $0x44] sm:$0xf] %v1359
    %1488 = vst [vmem:[%s3 + $0x48] sm:$0xf] %v1360
    %1489 = vst [vmem:[%s3 + $0x4c] sm:$0xf] %v1361
    %1490 = vst [vmem:[%s3 + $0x50] sm:$0xf] %v1362
    %1491 = vst [vmem:[%s3 + $0x54] sm:$0xf] %v1363
    %1492 = vst [vmem:[%s3 + $0x58] sm:$0xf] %v1364
    %1493 = vst [vmem:[%s3 + $0x5c] sm:$0xf] %v1365
    %1494 = vst [vmem:[%s3 + $0x60] sm:$0xf] %v1366
    %1495 = vst [vmem:[%s3 + $0x64] sm:$0xf] %v1367
    %1496 = vst [vmem:[%s3 + $0x68] sm:$0xf] %v1368
    %1497 = vst [vmem:[%s3 + $0x6c] sm:$0xf] %v1369
    %1498 = vst [vmem:[%s3 + $0x70] sm:$0xf] %v1370
    %1499 = vst [vmem:[%s3 + $0x74] sm:$0xf] %v1371
    %1500 = vst [vmem:[%s3 + $0x78] sm:$0xf] %v1372
    %1501 = vst [vmem:[%s3 + $0x7c] sm:$0xf] %v1373
    %1502 = vst [vmem:[%s3 + $0x80] sm:$0xf] %v1374
    %1503 = vst [vmem:[%s3 + $0x84] sm:$0xf] %v1375
    %1504 = vst [vmem:[%s3 + $0x88] sm:$0xf] %v1376
    %1505 = vst [vmem:[%s3 + $0x8c] sm:$0xf] %v1377
    %1506 = vst [vmem:[%s3 + $0x90] sm:$0xf] %v1378
    %1507 = vst [vmem:[%s3 + $0x94] sm:$0xf] %v1379
    %1508 = vst [vmem:[%s3 + $0x98] sm:$0xf] %v1380
    %1509 = vst [vmem:[%s3 + $0x9c] sm:$0xf] %v1381
    %1510 = vst [vmem:[%s3 + $0xa0] sm:$0xf] %v1382
    %1511 = vst [vmem:[%s3 + $0xa4] sm:$0xf] %v1383
    %1512 = vst [vmem:[%s3 + $0xa8] sm:$0xf] %v1384
    %1513 = vst [vmem:[%s3 + $0xac] sm:$0xf] %v1385
    %1514 = vst [vmem:[%s3 + $0xb0] sm:$0xf] %v1386
    %1515 = vst [vmem:[%s3 + $0xb4] sm:$0xf] %v1387
    %1516 = vst [vmem:[%s3 + $0xb8] sm:$0xf] %v1388
    %1517 = vst [vmem:[%s3 + $0xbc] sm:$0xf] %v1389
    %1518 = vst [vmem:[%s3 + $0xc0] sm:$0xf] %v1390
    %1519 = vst [vmem:[%s3 + $0xc4] sm:$0xf] %v1391
    %1520 = vst [vmem:[%s3 + $0xc8] sm:$0xf] %v1392
    %1521 = vst [vmem:[%s3 + $0xcc] sm:$0xf] %v1393
    %1522 = vst [vmem:[%s3 + $0xd0] sm:$0xf] %v1394
    %1523 = vst [vmem:[%s3 + $0xd4] sm:$0xf] %v1395
    %1524 = vst [vmem:[%s3 + $0xd8] sm:$0xf] %v1396
    %1525 = vst [vmem:[%s3 + $0xdc] sm:$0xf] %v1397
    %1526 = vst [vmem:[%s3 + $0xe0] sm:$0xf] %v1398
    %1527 = vst [vmem:[%s3 + $0xe4] sm:$0xf] %v1399
    %1528 = vst [vmem:[%s3 + $0xe8] sm:$0xf] %v1400
    %1529 = vst [vmem:[%s3 + $0xec] sm:$0xf] %v1401
    %1530 = vst [vmem:[%s3 + $0xf0] sm:$0xf] %v1402
    %1531 = vst [vmem:[%s3 + $0xf4] sm:$0xf] %v1403
    %1532 = vst [vmem:[%s3 + $0xf8] sm:$0xf] %v1404
    %1533 = vst [vmem:[%s3 + $0xfc] sm:$0xf] %v1405
  $region21: #{discriminator_forward.5} parent=0 // pred_fallthru
    _
  // Predicated region
  $region22: #{discriminator_forward.5} parent=0 // pred_check
    _
  $region23: #{discriminator_forward.5} parent=0 // pred_check_branch
    %1535 = sbr.rel (0) target = $region25
  $region24: #{discriminator_forward.5} parent=0 // pred_region
    _
  $region25: #{discriminator_forward.5} parent=0 // pred_fallthru
    _
  // Predicated region
  $region26: #{discriminator_forward.5} parent=0 // pred_check
    _
  $region27: #{discriminator_forward.5} parent=0 // pred_check_branch
    %1537 = sbr.rel (0) target = $region29
  $region28: #{discriminator_forward.5} parent=0 // pred_region
    _
  $region29: #{discriminator_forward.5} parent=0 // pred_fallthru
    _

// kernel: discriminator_forward.6
$region0: #{discriminator_forward.6}
  #allocation0 [shape = 'u32[]', space=smem, size = 0x4, offset = 0x4, fixed_abs, tag = 'smem constant byte address 0x4 - core index']
  #allocation1 [shape = 'u32[144,128]{1,0:T(1,128)}', space=vmem, size = 0x12000, scoped, tag = 'internal scratch']
  #allocation2 [shape = 'f32[128,128]{1,0:T(8,128)}', space=vmem, size = 0x10000, scoped, tag = 'scratch operand']
  %s0 = inlined_call_operand.vmem [shape: bf16[128,128], index: 0, kind: input, shape index: {}]
  %s1 = inlined_call_operand.vmem [shape: bf16[128,128], index: 1, kind: input, shape index: {}]
  %s2 = inlined_call_operand.vmem [shape: bf16[128,128], index: 2, kind: output, shape index: {0}]
  %s3 = inlined_call_operand.vmem [shape: f32[1,8,128], index: 3, kind: output, shape index: {1}]
  %s4 = inlined_call_operand.vmem [shape: f32[1,8,128], index: 4, kind: output, shape index: {2}]
  %5 = xla_tuple %s2, %s3, %s4
  %s6 = sld [smem:[#allocation0]]
  $region42: #{discriminator_forward.6} parent=0
    _
  %s8 = ssub.s32 1, %s6
  %s9 = scalar_select 0, %s8, %s6
  // Predicated region
  $region2: #{discriminator_forward.6} parent=0 // pred_check
    _
  $region3: #{discriminator_forward.6} parent=0 // pred_check_branch
    %11 = sbr.rel (0) target = $region5
  $region4: #{discriminator_forward.6} parent=0 // pred_region
    _
  $region5: #{discriminator_forward.6} parent=0 // pred_fallthru
    _
  // Predicated region
  $region6: #{discriminator_forward.6} parent=0 // pred_check
    _
  $region7: #{discriminator_forward.6} parent=0 // pred_check_branch
    %13 = sbr.rel (0) target = $region9
  $region8: #{discriminator_forward.6} parent=0 // pred_region
    _
  $region9: #{discriminator_forward.6} parent=0 // pred_fallthru
    _
  %p15 = scmp.eq.s32.totalorder 0, 0
  // Predicated region
  $region10: #{discriminator_forward.6} parent=0 // pred_check
    %p16 = pneg %p15
  $region11: #{discriminator_forward.6} parent=0 // pred_check_branch
    %18 = sbr.rel (%p16) target = $region13
  $region12: #{discriminator_forward.6} parent=0 // pred_region
    %19 = vst [vmem:[#allocation2] sm:$0xff] 0.0
    %20 = vst [vmem:[#allocation2 + $0x8] sm:$0xff] 0.0
    %21 = vst [vmem:[#allocation2 + $0x10] sm:$0xff] 0.0
    %22 = vst [vmem:[#allocation2 + $0x18] sm:$0xff] 0.0
    %23 = vst [vmem:[#allocation2 + $0x20] sm:$0xff] 0.0
    %24 = vst [vmem:[#allocation2 + $0x28] sm:$0xff] 0.0
    %25 = vst [vmem:[#allocation2 + $0x30] sm:$0xff] 0.0
    %26 = vst [vmem:[#allocation2 + $0x38] sm:$0xff] 0.0
    %27 = vst [vmem:[#allocation2 + $0x40] sm:$0xff] 0.0
    %28 = vst [vmem:[#allocation2 + $0x48] sm:$0xff] 0.0
    %29 = vst [vmem:[#allocation2 + $0x50] sm:$0xff] 0.0
    %30 = vst [vmem:[#allocation2 + $0x58] sm:$0xff] 0.0
    %31 = vst [vmem:[#allocation2 + $0x60] sm:$0xff] 0.0
    %32 = vst [vmem:[#allocation2 + $0x68] sm:$0xff] 0.0
    %33 = vst [vmem:[#allocation2 + $0x70] sm:$0xff] 0.0
    %34 = vst [vmem:[#allocation2 + $0x78] sm:$0xff] 0.0
  $region13: #{discriminator_forward.6} parent=0 // pred_fallthru
    _
  %v35 = vld [vmem:[#allocation2] sm:$0xff]
  %v36 = vld [vmem:[#allocation2 + $0x8] sm:$0xff]
  %v37 = vld [vmem:[#allocation2 + $0x10] sm:$0xff]
  %v38 = vld [vmem:[#allocation2 + $0x18] sm:$0xff]
  %v39 = vld [vmem:[#allocation2 + $0x20] sm:$0xff]
  %v40 = vld [vmem:[#allocation2 + $0x28] sm:$0xff]
  %v41 = vld [vmem:[#allocation2 + $0x30] sm:$0xff]
  %v42 = vld [vmem:[#allocation2 + $0x38] sm:$0xff]
  %v43 = vld [vmem:[#allocation2 + $0x40] sm:$0xff]
  %v44 = vld [vmem:[#allocation2 + $0x48] sm:$0xff]
  %v45 = vld [vmem:[#allocation2 + $0x50] sm:$0xff]
  %v46 = vld [vmem:[#allocation2 + $0x58] sm:$0xff]
  %v47 = vld [vmem:[#allocation2 + $0x60] sm:$0xff]
  %v48 = vld [vmem:[#allocation2 + $0x68] sm:$0xff]
  %v49 = vld [vmem:[#allocation2 + $0x70] sm:$0xff]
  %v50 = vld [vmem:[#allocation2 + $0x78] sm:$0xff]
  %v51 = vld [vmem:[%s0] sm:$0xf]
  %v52 = vld [vmem:[%s0 + $0x4] sm:$0xf]
  %v53 = vld [vmem:[%s0 + $0x8] sm:$0xf]
  %v54 = vld [vmem:[%s0 + $0xc] sm:$0xf]
  %v55 = vld [vmem:[%s0 + $0x10] sm:$0xf]
  %v56 = vld [vmem:[%s0 + $0x14] sm:$0xf]
  %v57 = vld [vmem:[%s0 + $0x18] sm:$0xf]
  %v58 = vld [vmem:[%s0 + $0x1c] sm:$0xf]
  %v59 = vld [vmem:[%s0 + $0x20] sm:$0xf]
  %v60 = vld [vmem:[%s0 + $0x24] sm:$0xf]
  %v61 = vld [vmem:[%s0 + $0x28] sm:$0xf]
  %v62 = vld [vmem:[%s0 + $0x2c] sm:$0xf]
  %v63 = vld [vmem:[%s0 + $0x30] sm:$0xf]
  %v64 = vld [vmem:[%s0 + $0x34] sm:$0xf]
  %v65 = vld [vmem:[%s0 + $0x38] sm:$0xf]
  %v66 = vld [vmem:[%s0 + $0x3c] sm:$0xf]
  %v67 = vld [vmem:[%s1] sm:$0xf]
  %v68 = vld [vmem:[%s1 + $0x4] sm:$0xf]
  %v69 = vld [vmem:[%s1 + $0x8] sm:$0xf]
  %v70 = vld [vmem:[%s1 + $0xc] sm:$0xf]
  %v71 = vld [vmem:[%s1 + $0x10] sm:$0xf]
  %v72 = vld [vmem:[%s1 + $0x14] sm:$0xf]
  %v73 = vld [vmem:[%s1 + $0x18] sm:$0xf]
  %v74 = vld [vmem:[%s1 + $0x1c] sm:$0xf]
  %v75 = vld [vmem:[%s1 + $0x20] sm:$0xf]
  %v76 = vld [vmem:[%s1 + $0x24] sm:$0xf]
  %v77 = vld [vmem:[%s1 + $0x28] sm:$0xf]
  %v78 = vld [vmem:[%s1 + $0x2c] sm:$0xf]
  %v79 = vld [vmem:[%s1 + $0x30] sm:$0xf]
  %v80 = vld [vmem:[%s1 + $0x34] sm:$0xf]
  %v81 = vld [vmem:[%s1 + $0x38] sm:$0xf]
  %v82 = vld [vmem:[%s1 + $0x3c] sm:$0xf]
  %v99 = vunpack.c.l.b16 %v51
  %v100 = vunpack.c.l.b16 %v52
  %v101 = vunpack.c.l.b16 %v53
  %v102 = vunpack.c.l.b16 %v54
  %v103 = vunpack.c.l.b16 %v55
  %v104 = vunpack.c.l.b16 %v56
  %v105 = vunpack.c.l.b16 %v57
  %v106 = vunpack.c.l.b16 %v58
  %v107 = vunpack.c.l.b16 %v59
  %v108 = vunpack.c.l.b16 %v60
  %v109 = vunpack.c.l.b16 %v61
  %v110 = vunpack.c.l.b16 %v62
  %v111 = vunpack.c.l.b16 %v63
  %v112 = vunpack.c.l.b16 %v64
  %v113 = vunpack.c.l.b16 %v65
  %v114 = vunpack.c.l.b16 %v66
  %v115 = vpack.c.b16 %v100, %v99
  %v116 = vpack.c.b16 %v102, %v101
  %v117 = vpack.c.b16 %v104, %v103
  %v118 = vpack.c.b16 %v106, %v105
  %v119 = vpack.c.b16 %v108, %v107
  %v120 = vpack.c.b16 %v110, %v109
  %v121 = vpack.c.b16 %v112, %v111
  %v122 = vpack.c.b16 %v114, %v113
  %v147 = vunpack.c.l.b16 %v67
  %v148 = vunpack.c.l.b16 %v68
  %v149 = vunpack.c.l.b16 %v69
  %v150 = vunpack.c.l.b16 %v70
  %v151 = vunpack.c.l.b16 %v71
  %v152 = vunpack.c.l.b16 %v72
  %v153 = vunpack.c.l.b16 %v73
  %v154 = vunpack.c.l.b16 %v74
  %v155 = vunpack.c.l.b16 %v75
  %v156 = vunpack.c.l.b16 %v76
  %v157 = vunpack.c.l.b16 %v77
  %v158 = vunpack.c.l.b16 %v78
  %v159 = vunpack.c.l.b16 %v79
  %v160 = vunpack.c.l.b16 %v80
  %v161 = vunpack.c.l.b16 %v81
  %v162 = vunpack.c.l.b16 %v82
  %v163 = vpack.c.b16 %v148, %v147
  %v164 = vpack.c.b16 %v150, %v149
  %v165 = vpack.c.b16 %v152, %v151
  %v166 = vpack.c.b16 %v154, %v153
  %v167 = vpack.c.b16 %v156, %v155
  %v168 = vpack.c.b16 %v158, %v157
  %v169 = vpack.c.b16 %v160, %v159
  %v170 = vpack.c.b16 %v162, %v161
  %179 = vmatprep.subr.bf16.mxu0 0
  %180 = vmatpush1.bf16.msra.mxu0 %v163
  %181 = vmatprep.subr.bf16.mxu0 0
  %182 = vmatpush1.bf16.msra.mxu0 %v164
  %183 = vmatprep.subr.bf16.mxu0 0
  %184 = vmatpush1.bf16.msra.mxu0 %v165
  %185 = vmatprep.subr.bf16.mxu0 0
  %186 = vmatpush1.bf16.msra.mxu0 %v166
  %187 = vmatprep.subr.bf16.mxu0 0
  %188 = vmatpush1.bf16.msra.mxu0 %v167
  %189 = vmatprep.subr.bf16.mxu0 0
  %190 = vmatpush1.bf16.msra.mxu0 %v168
  %191 = vmatprep.subr.bf16.mxu0 0
  %192 = vmatpush1.bf16.msra.mxu0 %v169
  %193 = vmatprep.subr.bf16.mxu0 0
  %194 = vmatpush1.bf16.msra.mxu0 %v170
  %195 = vmatprep.subr.bf16.mxu0 0
  %196 = vmatpush1.bf16.msra.mxu0 0
  %197 = vmatprep.subr.bf16.mxu0 0
  %198 = vmatpush1.bf16.msra.mxu0 0
  %199 = vmatprep.subr.bf16.mxu0 0
  %200 = vmatpush1.bf16.msra.mxu0 0
  %201 = vmatprep.subr.bf16.mxu0 0
  %202 = vmatpush1.bf16.msra.mxu0 0
  %203 = vmatprep.subr.bf16.mxu0 0
  %204 = vmatpush1.bf16.msra.mxu0 0
  %205 = vmatprep.subr.bf16.mxu0 0
  %206 = vmatpush1.bf16.msra.mxu0 0
  %207 = vmatprep.subr.bf16.mxu0 0
  %208 = vmatpush1.bf16.msra.mxu0 0
  %209 = vmatprep.subr.bf16.mxu0 0
  %210 = vmatpush1.bf16.msra.mxu0 0
  %211 = vmatprep.mubr.bf16.mxu0 0
  %212 = vmatmul.mubr.bf16.gmra.mrb[0].mxu0 %v115
  %v213 = vpop.f32.mrb[0].mxu0
  %v214 = vadd.f32 0.0, %v213
  %v215 = vpop.f32.mrb[0].mxu0
  %v216 = vpop.f32.mrb[0].mxu0
  %v217 = vadd.f32 0.0, %v216
  %v218 = vpop.f32.mrb[0].mxu0
  %219 = vmatprep.mubr.bf16.mxu0 0
  %220 = vmatmul.mubr.bf16.gmra.mrb[0].mxu0 %v116
  %v221 = vpop.f32.mrb[0].mxu0
  %v222 = vadd.f32 0.0, %v221
  %v223 = vpop.f32.mrb[0].mxu0
  %v224 = vpop.f32.mrb[0].mxu0
  %v225 = vadd.f32 0.0, %v224
  %v226 = vpop.f32.mrb[0].mxu0
  %227 = vmatprep.mubr.bf16.mxu0 0
  %228 = vmatmul.mubr.bf16.gmra.mrb[0].mxu0 %v117
  %v229 = vpop.f32.mrb[0].mxu0
  %v230 = vadd.f32 0.0, %v229
  %v231 = vpop.f32.mrb[0].mxu0
  %v232 = vpop.f32.mrb[0].mxu0
  %v233 = vadd.f32 0.0, %v232
  %v234 = vpop.f32.mrb[0].mxu0
  %235 = vmatprep.mubr.bf16.mxu0 0
  %236 = vmatmul.mubr.bf16.gmra.mrb[0].mxu0 %v118
  %v237 = vpop.f32.mrb[0].mxu0
  %v238 = vadd.f32 0.0, %v237
  %v239 = vpop.f32.mrb[0].mxu0
  %v240 = vpop.f32.mrb[0].mxu0
  %v241 = vadd.f32 0.0, %v240
  %v242 = vpop.f32.mrb[0].mxu0
  %243 = vmatprep.mubr.bf16.mxu0 0
  %244 = vmatmul.mubr.bf16.gmra.mrb[0].mxu0 %v119
  %v245 = vpop.f32.mrb[0].mxu0
  %v246 = vadd.f32 0.0, %v245
  %v247 = vpop.f32.mrb[0].mxu0
  %v248 = vpop.f32.mrb[0].mxu0
  %v249 = vadd.f32 0.0, %v248
  %v250 = vpop.f32.mrb[0].mxu0
  %251 = vmatprep.mubr.bf16.mxu0 0
  %252 = vmatmul.mubr.bf16.gmra.mrb[0].mxu0 %v120
  %v253 = vpop.f32.mrb[0].mxu0
  %v254 = vadd.f32 0.0, %v253
  %v255 = vpop.f32.mrb[0].mxu0
  %v256 = vpop.f32.mrb[0].mxu0
  %v257 = vadd.f32 0.0, %v256
  %v258 = vpop.f32.mrb[0].mxu0
  %259 = vmatprep.mubr.bf16.mxu0 0
  %260 = vmatmul.mubr.bf16.gmra.mrb[0].mxu0 %v121
  %v261 = vpop.f32.mrb[0].mxu0
  %v262 = vadd.f32 0.0, %v261
  %v263 = vpop.f32.mrb[0].mxu0
  %v264 = vpop.f32.mrb[0].mxu0
  %v265 = vadd.f32 0.0, %v264
  %v266 = vpop.f32.mrb[0].mxu0
  %267 = vmatprep.mubr.bf16.mxu0 0
  %268 = vmatmul.mubr.bf16.gmra.mrb[0].mxu0 %v122
  %v269 = vpop.f32.mrb[0].mxu0
  %v270 = vadd.f32 0.0, %v269
  %v271 = vpop.f32.mrb[0].mxu0
  %v272 = vpop.f32.mrb[0].mxu0
  %v273 = vadd.f32 0.0, %v272
  %v274 = vpop.f32.mrb[0].mxu0
  %275 = vdwg.mxu0
  %v276 = vadd.f32 %v35, %v214
  %v277 = vadd.f32 %v36, %v217
  %v278 = vadd.f32 %v37, %v222
  %v279 = vadd.f32 %v38, %v225
  %v280 = vadd.f32 %v39, %v230
  %v281 = vadd.f32 %v40, %v233
  %v282 = vadd.f32 %v41, %v238
  %v283 = vadd.f32 %v42, %v241
  %v284 = vadd.f32 %v43, %v246
  %v285 = vadd.f32 %v44, %v249
  %v286 = vadd.f32 %v45, %v254
  %v287 = vadd.f32 %v46, %v257
  %v288 = vadd.f32 %v47, %v262
  %v289 = vadd.f32 %v48, %v265
  %v290 = vadd.f32 %v49, %v270
  %v291 = vadd.f32 %v50, %v273
  %292 = vst [vmem:[#allocation2] sm:$0xff] %v276
  %293 = vst [vmem:[#allocation2 + $0x8] sm:$0xff] %v277
  %294 = vst [vmem:[#allocation2 + $0x10] sm:$0xff] %v278
  %295 = vst [vmem:[#allocation2 + $0x18] sm:$0xff] %v279
  %296 = vst [vmem:[#allocation2 + $0x20] sm:$0xff] %v280
  %297 = vst [vmem:[#allocation2 + $0x28] sm:$0xff] %v281
  %298 = vst [vmem:[#allocation2 + $0x30] sm:$0xff] %v282
  %299 = vst [vmem:[#allocation2 + $0x38] sm:$0xff] %v283
  %300 = vst [vmem:[#allocation2 + $0x40] sm:$0xff] %v284
  %301 = vst [vmem:[#allocation2 + $0x48] sm:$0xff] %v285
  %302 = vst [vmem:[#allocation2 + $0x50] sm:$0xff] %v286
  %303 = vst [vmem:[#allocation2 + $0x58] sm:$0xff] %v287
  %304 = vst [vmem:[#allocation2 + $0x60] sm:$0xff] %v288
  %305 = vst [vmem:[#allocation2 + $0x68] sm:$0xff] %v289
  %306 = vst [vmem:[#allocation2 + $0x70] sm:$0xff] %v290
  %307 = vst [vmem:[#allocation2 + $0x78] sm:$0xff] %v291
  // Predicated region
  $region14: #{discriminator_forward.6} parent=0 // pred_check
    %p308 = pneg %p15
  $region15: #{discriminator_forward.6} parent=0 // pred_check_branch
    %310 = sbr.rel (%p308) target = $region17
  $region16: #{discriminator_forward.6} parent=0 // pred_region
    %v311 = vld [vmem:[#allocation2] sm:$0xff]
    %v312 = vld [vmem:[#allocation2 + $0x8] sm:$0xff]
    %v313 = vld [vmem:[#allocation2 + $0x10] sm:$0xff]
    %v314 = vld [vmem:[#allocation2 + $0x18] sm:$0xff]
    %v315 = vld [vmem:[#allocation2 + $0x20] sm:$0xff]
    %v316 = vld [vmem:[#allocation2 + $0x28] sm:$0xff]
    %v317 = vld [vmem:[#allocation2 + $0x30] sm:$0xff]
    %v318 = vld [vmem:[#allocation2 + $0x38] sm:$0xff]
    %v319 = vld [vmem:[#allocation2 + $0x40] sm:$0xff]
    %v320 = vld [vmem:[#allocation2 + $0x48] sm:$0xff]
    %v321 = vld [vmem:[#allocation2 + $0x50] sm:$0xff]
    %v322 = vld [vmem:[#allocation2 + $0x58] sm:$0xff]
    %v323 = vld [vmem:[#allocation2 + $0x60] sm:$0xff]
    %v324 = vld [vmem:[#allocation2 + $0x68] sm:$0xff]
    %v325 = vld [vmem:[#allocation2 + $0x70] sm:$0xff]
    %v326 = vld [vmem:[#allocation2 + $0x78] sm:$0xff]
    %v327 = vpack.c.bf16 %v312, %v311
    %v328 = vpack.c.bf16 %v314, %v313
    %v329 = vpack.c.bf16 %v316, %v315
    %v330 = vpack.c.bf16 %v318, %v317
    %v331 = vpack.c.bf16 %v320, %v319
    %v332 = vpack.c.bf16 %v322, %v321
    %v333 = vpack.c.bf16 %v324, %v323
    %v334 = vpack.c.bf16 %v326, %v325
    %v343 = vunpack.c.l.b16 %v327
    %v344 = vunpack.c.h.b16 %v327
    %v345 = vunpack.c.l.b16 %v328
    %v346 = vunpack.c.h.b16 %v328
    %v347 = vunpack.c.l.b16 %v329
    %v348 = vunpack.c.h.b16 %v329
    %v349 = vunpack.c.l.b16 %v330
    %v350 = vunpack.c.h.b16 %v330
    %v351 = vunpack.c.l.b16 %v331
    %v352 = vunpack.c.h.b16 %v331
    %v353 = vunpack.c.l.b16 %v332
    %v354 = vunpack.c.h.b16 %v332
    %v355 = vunpack.c.l.b16 %v333
    %v356 = vunpack.c.h.b16 %v333
    %v357 = vunpack.c.l.b16 %v334
    %v358 = vunpack.c.h.b16 %v334
    %v359 = vpack.c.b16 %v343, %v343
    %v360 = vpack.c.b16 %v344, %v344
    %v361 = vpack.c.b16 %v345, %v345
    %v362 = vpack.c.b16 %v346, %v346
    %v363 = vpack.c.b16 %v347, %v347
    %v364 = vpack.c.b16 %v348, %v348
    %v365 = vpack.c.b16 %v349, %v349
    %v366 = vpack.c.b16 %v350, %v350
    %v367 = vpack.c.b16 %v351, %v351
    %v368 = vpack.c.b16 %v352, %v352
    %v369 = vpack.c.b16 %v353, %v353
    %v370 = vpack.c.b16 %v354, %v354
    %v371 = vpack.c.b16 %v355, %v355
    %v372 = vpack.c.b16 %v356, %v356
    %v373 = vpack.c.b16 %v357, %v357
    %v374 = vpack.c.b16 %v358, %v358
    %391 = vst [vmem:[%s2] sm:$0xf] %v359
    %392 = vst [vmem:[%s2 + $0x4] sm:$0xf] %v360
    %393 = vst [vmem:[%s2 + $0x8] sm:$0xf] %v361
    %394 = vst [vmem:[%s2 + $0xc] sm:$0xf] %v362
    %395 = vst [vmem:[%s2 + $0x10] sm:$0xf] %v363
    %396 = vst [vmem:[%s2 + $0x14] sm:$0xf] %v364
    %397 = vst [vmem:[%s2 + $0x18] sm:$0xf] %v365
    %398 = vst [vmem:[%s2 + $0x1c] sm:$0xf] %v366
    %399 = vst [vmem:[%s2 + $0x20] sm:$0xf] %v367
    %400 = vst [vmem:[%s2 + $0x24] sm:$0xf] %v368
    %401 = vst [vmem:[%s2 + $0x28] sm:$0xf] %v369
    %402 = vst [vmem:[%s2 + $0x2c] sm:$0xf] %v370
    %403 = vst [vmem:[%s2 + $0x30] sm:$0xf] %v371
    %404 = vst [vmem:[%s2 + $0x34] sm:$0xf] %v372
    %405 = vst [vmem:[%s2 + $0x38] sm:$0xf] %v373
    %406 = vst [vmem:[%s2 + $0x3c] sm:$0xf] %v374
    %v407 = vadd.f32 %v311, %v312
    %v408 = vadd.f32 %v407, %v313
    %v409 = vadd.f32 %v408, %v314
    %v410 = vadd.f32 %v409, %v315
    %v411 = vadd.f32 %v410, %v316
    %v412 = vadd.f32 %v411, %v317
    %v413 = vadd.f32 %v412, %v318
    %v414 = vadd.f32 %v413, %v319
    %v415 = vadd.f32 %v414, %v320
    %v416 = vadd.f32 %v415, %v321
    %v417 = vadd.f32 %v416, %v322
    %v418 = vadd.f32 %v417, %v323
    %v419 = vadd.f32 %v418, %v324
    %v420 = vadd.f32 %v419, %v325
    %v421 = vadd.f32 %v420, %v326
    %v422 = vrot.slane %v421, 4
    %v423 = vadd.f32 %v421, %v422
    %v424 = vrot.slane %v423, 2
    %v425 = vadd.f32 %v423, %v424
    %v426 = vrot.slane %v425, 1
    %v427 = vadd.f32 %v425, %v426
    %v428 = vmul.f32 %v311, %v311
    %v429 = vmul.f32 %v312, %v312
    %v430 = vmul.f32 %v313, %v313
    %v431 = vmul.f32 %v314, %v314
    %v432 = vmul.f32 %v315, %v315
    %v433 = vmul.f32 %v316, %v316
    %v434 = vmul.f32 %v317, %v317
    %v435 = vmul.f32 %v318, %v318
    %v436 = vmul.f32 %v319, %v319
    %v437 = vmul.f32 %v320, %v320
    %v438 = vmul.f32 %v321, %v321
    %v439 = vmul.f32 %v322, %v322
    %v440 = vmul.f32 %v323, %v323
    %v441 = vmul.f32 %v324, %v324
    %v442 = vmul.f32 %v325, %v325
    %v443 = vmul.f32 %v326, %v326
    %v444 = vadd.f32 %v428, %v429
    %v445 = vadd.f32 %v444, %v430
    %v446 = vadd.f32 %v445, %v431
    %v447 = vadd.f32 %v446, %v432
    %v448 = vadd.f32 %v447, %v433
    %v449 = vadd.f32 %v448, %v434
    %v450 = vadd.f32 %v449, %v435
    %v451 = vadd.f32 %v450, %v436
    %v452 = vadd.f32 %v451, %v437
    %v453 = vadd.f32 %v452, %v438
    %v454 = vadd.f32 %v453, %v439
    %v455 = vadd.f32 %v454, %v440
    %v456 = vadd.f32 %v455, %v441
    %v457 = vadd.f32 %v456, %v442
    %v458 = vadd.f32 %v457, %v443
    %v459 = vrot.slane %v458, 4
    %v460 = vadd.f32 %v458, %v459
    %v461 = vrot.slane %v460, 2
    %v462 = vadd.f32 %v460, %v461
    %v463 = vrot.slane %v462, 1
    %v464 = vadd.f32 %v462, %v463
    %465 = vst [vmem:[%s3] sm:$0xff] %v427
    %466 = vst [vmem:[%s4] sm:$0xff] %v464
  $region17: #{discriminator_forward.6} parent=0 // pred_fallthru
    _
  // Predicated region
  $region18: #{discriminator_forward.6} parent=0 // pred_check
    _
  $region19: #{discriminator_forward.6} parent=0 // pred_check_branch
    %468 = sbr.rel (0) target = $region21
  $region20: #{discriminator_forward.6} parent=0 // pred_region
    _
  $region21: #{discriminator_forward.6} parent=0 // pred_fallthru
    _
  // Predicated region
  $region22: #{discriminator_forward.6} parent=0 // pred_check
    _
  $region23: #{discriminator_forward.6} parent=0 // pred_check_branch
    %470 = sbr.rel (0) target = $region25
  $region24: #{discriminator_forward.6} parent=0 // pred_region
    _
  $region25: #{discriminator_forward.6} parent=0 // pred_fallthru
    _
  // Predicated region
  $region26: #{discriminator_forward.6} parent=0 // pred_check
    _
  $region27: #{discriminator_forward.6} parent=0 // pred_check_branch
    %472 = sbr.rel (0) target = $region29
  $region28: #{discriminator_forward.6} parent=0 // pred_region
    _
  $region29: #{discriminator_forward.6} parent=0 // pred_fallthru
    _
  // Predicated region
  $region30: #{discriminator_forward.6} parent=0 // pred_check
    _
  $region31: #{discriminator_forward.6} parent=0 // pred_check_branch
    %474 = sbr.rel (0) target = $region33
  $region32: #{discriminator_forward.6} parent=0 // pred_region
    _
  $region33: #{discriminator_forward.6} parent=0 // pred_fallthru
    _
  // Predicated region
  $region34: #{discriminator_forward.6} parent=0 // pred_check
    _
  $region35: #{discriminator_forward.6} parent=0 // pred_check_branch
    %476 = sbr.rel (0) target = $region37
  $region36: #{discriminator_forward.6} parent=0 // pred_region
    _
  $region37: #{discriminator_forward.6} parent=0 // pred_fallthru
    _
  // Predicated region
  $region38: #{discriminator_forward.6} parent=0 // pred_check
    _
  $region39: #{discriminator_forward.6} parent=0 // pred_check_branch
    %478 = sbr.rel (0) target = $region41
  $region40: #{discriminator_forward.6} parent=0 // pred_region
    _
  $region41: #{discriminator_forward.6} parent=0 // pred_fallthru
    _

// kernel: discriminator_forward.7
$region0: #{discriminator_forward.7}
  #allocation0 [shape = 'u32[]', space=smem, size = 0x4, offset = 0x4, fixed_abs, tag = 'smem constant byte address 0x4 - core index']
  #allocation1 [shape = 'u32[144,128]{1,0:T(1,128)}', space=vmem, size = 0x12000, scoped, tag = 'internal scratch']
  #allocation2 [shape = 'f32[32,128]{1,0:T(8,128)}', space=vmem, size = 0x4000, scoped, tag = 'scratch operand']
  %s0 = inlined_call_operand.vmem [shape: bf16[32,256], index: 0, kind: input, shape index: {}]
  %s1 = inlined_call_operand.vmem [shape: bf16[256,128], index: 1, kind: input, shape index: {}]
  %s2 = inlined_call_operand.vmem [shape: bf16[32,128], index: 2, kind: output, shape index: {0}]
  %s3 = inlined_call_operand.vmem [shape: f32[1,8,128], index: 3, kind: output, shape index: {1}]
  %s4 = inlined_call_operand.vmem [shape: f32[1,8,128], index: 4, kind: output, shape index: {2}]
  %5 = xla_tuple %s2, %s3, %s4
  %s6 = sld [smem:[#allocation0]]
  $region42: #{discriminator_forward.7} parent=0
    _
  %s8 = ssub.s32 1, %s6
  %s9 = scalar_select 0, %s8, %s6
  // Predicated region
  $region2: #{discriminator_forward.7} parent=0 // pred_check
    _
  $region3: #{discriminator_forward.7} parent=0 // pred_check_branch
    %11 = sbr.rel (0) target = $region5
  $region4: #{discriminator_forward.7} parent=0 // pred_region
    _
  $region5: #{discriminator_forward.7} parent=0 // pred_fallthru
    _
  // Predicated region
  $region6: #{discriminator_forward.7} parent=0 // pred_check
    _
  $region7: #{discriminator_forward.7} parent=0 // pred_check_branch
    %13 = sbr.rel (0) target = $region9
  $region8: #{discriminator_forward.7} parent=0 // pred_region
    _
  $region9: #{discriminator_forward.7} parent=0 // pred_fallthru
    _
  %p15 = scmp.eq.s32.totalorder 0, 0
  // Predicated region
  $region10: #{discriminator_forward.7} parent=0 // pred_check
    %p16 = pneg %p15
  $region11: #{discriminator_forward.7} parent=0 // pred_check_branch
    %18 = sbr.rel (%p16) target = $region13
  $region12: #{discriminator_forward.7} parent=0 // pred_region
    %19 = vst [vmem:[#allocation2] sm:$0xff] 0.0
    %20 = vst [vmem:[#allocation2 + $0x8] sm:$0xff] 0.0
    %21 = vst [vmem:[#allocation2 + $0x10] sm:$0xff] 0.0
    %22 = vst [vmem:[#allocation2 + $0x18] sm:$0xff] 0.0
  $region13: #{discriminator_forward.7} parent=0 // pred_fallthru
    _
  %v23 = vld [vmem:[#allocation2] sm:$0xff]
  %v24 = vld [vmem:[#allocation2 + $0x8] sm:$0xff]
  %v25 = vld [vmem:[#allocation2 + $0x10] sm:$0xff]
  %v26 = vld [vmem:[#allocation2 + $0x18] sm:$0xff]
  %v27 = vld [vmem:[%s0] sm:$0xff]
  %v28 = vld [vmem:[%s0 + $0x8] sm:$0xff]
  %v29 = vld [vmem:[%s0 + $0x10] sm:$0xff]
  %v30 = vld [vmem:[%s0 + $0x18] sm:$0xff]
  %v31 = vld [vmem:[%s1] sm:$0xf]
  %v32 = vld [vmem:[%s1 + $0x4] sm:$0xf]
  %v33 = vld [vmem:[%s1 + $0x8] sm:$0xf]
  %v34 = vld [vmem:[%s1 + $0xc] sm:$0xf]
  %v35 = vld [vmem:[%s1 + $0x10] sm:$0xf]
  %v36 = vld [vmem:[%s1 + $0x14] sm:$0xf]
  %v37 = vld [vmem:[%s1 + $0x18] sm:$0xf]
  %v38 = vld [vmem:[%s1 + $0x1c] sm:$0xf]
  %v39 = vld [vmem:[%s1 + $0x20] sm:$0xf]
  %v40 = vld [vmem:[%s1 + $0x24] sm:$0xf]
  %v41 = vld [vmem:[%s1 + $0x28] sm:$0xf]
  %v42 = vld [vmem:[%s1 + $0x2c] sm:$0xf]
  %v43 = vld [vmem:[%s1 + $0x30] sm:$0xf]
  %v44 = vld [vmem:[%s1 + $0x34] sm:$0xf]
  %v45 = vld [vmem:[%s1 + $0x38] sm:$0xf]
  %v46 = vld [vmem:[%s1 + $0x3c] sm:$0xf]
  %v47 = vld [vmem:[%s1 + $0x40] sm:$0xf]
  %v48 = vld [vmem:[%s1 + $0x44] sm:$0xf]
  %v49 = vld [vmem:[%s1 + $0x48] sm:$0xf]
  %v50 = vld [vmem:[%s1 + $0x4c] sm:$0xf]
  %v51 = vld [vmem:[%s1 + $0x50] sm:$0xf]
  %v52 = vld [vmem:[%s1 + $0x54] sm:$0xf]
  %v53 = vld [vmem:[%s1 + $0x58] sm:$0xf]
  %v54 = vld [vmem:[%s1 + $0x5c] sm:$0xf]
  %v55 = vld [vmem:[%s1 + $0x60] sm:$0xf]
  %v56 = vld [vmem:[%s1 + $0x64] sm:$0xf]
  %v57 = vld [vmem:[%s1 + $0x68] sm:$0xf]
  %v58 = vld [vmem:[%s1 + $0x6c] sm:$0xf]
  %v59 = vld [vmem:[%s1 + $0x70] sm:$0xf]
  %v60 = vld [vmem:[%s1 + $0x74] sm:$0xf]
  %v61 = vld [vmem:[%s1 + $0x78] sm:$0xf]
  %v62 = vld [vmem:[%s1 + $0x7c] sm:$0xf]
  %v67 = vunpack.c.l.b16 %v27
  %v68 = vunpack.c.h.b16 %v27
  %v69 = vunpack.c.l.b16 %v28
  %v70 = vunpack.c.h.b16 %v28
  %v71 = vunpack.c.l.b16 %v29
  %v72 = vunpack.c.h.b16 %v29
  %v73 = vunpack.c.l.b16 %v30
  %v74 = vunpack.c.h.b16 %v30
  %v75 = vpack.c.b16 %v69, %v67
  %v76 = vpack.c.b16 %v70, %v68
  %v77 = vpack.c.b16 %v73, %v71
  %v78 = vpack.c.b16 %v74, %v72
  %v115 = vunpack.c.l.b16 %v31
  %v116 = vunpack.c.l.b16 %v32
  %v117 = vunpack.c.l.b16 %v33
  %v118 = vunpack.c.l.b16 %v34
  %v119 = vunpack.c.l.b16 %v35
  %v120 = vunpack.c.l.b16 %v36
  %v121 = vunpack.c.l.b16 %v37
  %v122 = vunpack.c.l.b16 %v38
  %v123 = vunpack.c.l.b16 %v39
  %v124 = vunpack.c.l.b16 %v40
  %v125 = vunpack.c.l.b16 %v41
  %v126 = vunpack.c.l.b16 %v42
  %v127 = vunpack.c.l.b16 %v43
  %v128 = vunpack.c.l.b16 %v44
  %v129 = vunpack.c.l.b16 %v45
  %v130 = vunpack.c.l.b16 %v46
  %v131 = vunpack.c.l.b16 %v47
  %v132 = vunpack.c.l.b16 %v48
  %v133 = vunpack.c.l.b16 %v49
  %v134 = vunpack.c.l.b16 %v50
  %v135 = vunpack.c.l.b16 %v51
  %v136 = vunpack.c.l.b16 %v52
  %v137 = vunpack.c.l.b16 %v53
  %v138 = vunpack.c.l.b16 %v54
  %v139 = vunpack.c.l.b16 %v55
  %v140 = vunpack.c.l.b16 %v56
  %v141 = vunpack.c.l.b16 %v57
  %v142 = vunpack.c.l.b16 %v58
  %v143 = vunpack.c.l.b16 %v59
  %v144 = vunpack.c.l.b16 %v60
  %v145 = vunpack.c.l.b16 %v61
  %v146 = vunpack.c.l.b16 %v62
  %v147 = vpack.c.b16 %v116, %v115
  %v148 = vpack.c.b16 %v118, %v117
  %v149 = vpack.c.b16 %v120, %v119
  %v150 = vpack.c.b16 %v122, %v121
  %v151 = vpack.c.b16 %v124, %v123
  %v152 = vpack.c.b16 %v126, %v125
  %v153 = vpack.c.b16 %v128, %v127
  %v154 = vpack.c.b16 %v130, %v129
  %v155 = vpack.c.b16 %v132, %v131
  %v156 = vpack.c.b16 %v134, %v133
  %v157 = vpack.c.b16 %v136, %v135
  %v158 = vpack.c.b16 %v138, %v137
  %v159 = vpack.c.b16 %v140, %v139
  %v160 = vpack.c.b16 %v142, %v141
  %v161 = vpack.c.b16 %v144, %v143
  %v162 = vpack.c.b16 %v146, %v145
  %179 = vmatprep.subr.bf16.mxu0 0
  %180 = vmatpush1.bf16.msra.mxu0 %v147
  %181 = vmatprep.subr.bf16.mxu0 0
  %182 = vmatpush1.bf16.msra.mxu0 %v148
  %183 = vmatprep.subr.bf16.mxu0 0
  %184 = vmatpush1.bf16.msra.mxu0 %v149
  %185 = vmatprep.subr.bf16.mxu0 0
  %186 = vmatpush1.bf16.msra.mxu0 %v150
  %187 = vmatprep.subr.bf16.mxu0 0
  %188 = vmatpush1.bf16.msra.mxu0 %v151
  %189 = vmatprep.subr.bf16.mxu0 0
  %190 = vmatpush1.bf16.msra.mxu0 %v152
  %191 = vmatprep.subr.bf16.mxu0 0
  %192 = vmatpush1.bf16.msra.mxu0 %v153
  %193 = vmatprep.subr.bf16.mxu0 0
  %194 = vmatpush1.bf16.msra.mxu0 %v154
  %195 = vmatprep.subr.bf16.mxu0 0
  %196 = vmatpush1.bf16.msra.mxu0 %v155
  %197 = vmatprep.subr.bf16.mxu0 0
  %198 = vmatpush1.bf16.msra.mxu0 %v156
  %199 = vmatprep.subr.bf16.mxu0 0
  %200 = vmatpush1.bf16.msra.mxu0 %v157
  %201 = vmatprep.subr.bf16.mxu0 0
  %202 = vmatpush1.bf16.msra.mxu0 %v158
  %203 = vmatprep.subr.bf16.mxu0 0
  %204 = vmatpush1.bf16.msra.mxu0 %v159
  %205 = vmatprep.subr.bf16.mxu0 0
  %206 = vmatpush1.bf16.msra.mxu0 %v160
  %207 = vmatprep.subr.bf16.mxu0 0
  %208 = vmatpush1.bf16.msra.mxu0 %v161
  %209 = vmatprep.subr.bf16.mxu0 0
  %210 = vmatpush1.bf16.msra.mxu0 %v162
  %211 = vmatprep.mubr.bf16.mxu0 %v76
  %212 = vmatmul.mubr.bf16.gmra.mrb[0].mxu0 %v75
  %v213 = vpop.f32.mrb[0].mxu0
  %v214 = vadd.f32 0.0, %v213
  %v215 = vpop.f32.mrb[0].mxu0
  %v216 = vpop.f32.mrb[0].mxu0
  %v217 = vadd.f32 0.0, %v216
  %v218 = vpop.f32.mrb[0].mxu0
  %219 = vmatprep.mubr.bf16.mxu0 %v78
  %220 = vmatmul.mubr.bf16.gmra.mrb[0].mxu0 %v77
  %v221 = vpop.f32.mrb[0].mxu0
  %v222 = vadd.f32 0.0, %v221
  %v223 = vpop.f32.mrb[0].mxu0
  %v224 = vpop.f32.mrb[0].mxu0
  %v225 = vadd.f32 0.0, %v224
  %v226 = vpop.f32.mrb[0].mxu0
  %227 = vdwg.mxu0
  %v228 = vadd.f32 %v23, %v214
  %v229 = vadd.f32 %v24, %v217
  %v230 = vadd.f32 %v25, %v222
  %v231 = vadd.f32 %v26, %v225
  %232 = vst [vmem:[#allocation2] sm:$0xff] %v228
  %233 = vst [vmem:[#allocation2 + $0x8] sm:$0xff] %v229
  %234 = vst [vmem:[#allocation2 + $0x10] sm:$0xff] %v230
  %235 = vst [vmem:[#allocation2 + $0x18] sm:$0xff] %v231
  // Predicated region
  $region14: #{discriminator_forward.7} parent=0 // pred_check
    %p236 = pneg %p15
  $region15: #{discriminator_forward.7} parent=0 // pred_check_branch
    %238 = sbr.rel (%p236) target = $region17
  $region16: #{discriminator_forward.7} parent=0 // pred_region
    %v239 = vld [vmem:[#allocation2] sm:$0xff]
    %v240 = vld [vmem:[#allocation2 + $0x8] sm:$0xff]
    %v241 = vld [vmem:[#allocation2 + $0x10] sm:$0xff]
    %v242 = vld [vmem:[#allocation2 + $0x18] sm:$0xff]
    %v243 = vpack.c.bf16 %v240, %v239
    %v244 = vpack.c.bf16 %v242, %v241
    %v247 = vunpack.c.l.b16 %v243
    %v248 = vunpack.c.h.b16 %v243
    %v249 = vunpack.c.l.b16 %v244
    %v250 = vunpack.c.h.b16 %v244
    %v251 = vpack.c.b16 %v247, %v247
    %v252 = vpack.c.b16 %v248, %v248
    %v253 = vpack.c.b16 %v249, %v249
    %v254 = vpack.c.b16 %v250, %v250
    %259 = vst [vmem:[%s2] sm:$0xf] %v251
    %260 = vst [vmem:[%s2 + $0x4] sm:$0xf] %v252
    %261 = vst [vmem:[%s2 + $0x8] sm:$0xf] %v253
    %262 = vst [vmem:[%s2 + $0xc] sm:$0xf] %v254
    %v263 = vadd.f32 %v239, %v240
    %v264 = vadd.f32 %v263, %v241
    %v265 = vadd.f32 %v264, %v242
    %v266 = vrot.slane %v265, 4
    %v267 = vadd.f32 %v265, %v266
    %v268 = vrot.slane %v267, 2
    %v269 = vadd.f32 %v267, %v268
    %v270 = vrot.slane %v269, 1
    %v271 = vadd.f32 %v269, %v270
    %v272 = vmul.f32 %v239, %v239
    %v273 = vmul.f32 %v240, %v240
    %v274 = vmul.f32 %v241, %v241
    %v275 = vmul.f32 %v242, %v242
    %v276 = vadd.f32 %v272, %v273
    %v277 = vadd.f32 %v276, %v274
    %v278 = vadd.f32 %v277, %v275
    %v279 = vrot.slane %v278, 4
    %v280 = vadd.f32 %v278, %v279
    %v281 = vrot.slane %v280, 2
    %v282 = vadd.f32 %v280, %v281
    %v283 = vrot.slane %v282, 1
    %v284 = vadd.f32 %v282, %v283
    %285 = vst [vmem:[%s3] sm:$0xff] %v271
    %286 = vst [vmem:[%s4] sm:$0xff] %v284
  $region17: #{discriminator_forward.7} parent=0 // pred_fallthru
    _
  // Predicated region
  $region18: #{discriminator_forward.7} parent=0 // pred_check
    _
  $region19: #{discriminator_forward.7} parent=0 // pred_check_branch
    %288 = sbr.rel (0) target = $region21
  $region20: #{discriminator_forward.7} parent=0 // pred_region
    _
  $region21: #{discriminator_forward.7} parent=0 // pred_fallthru
    _
  // Predicated region
  $region22: #{discriminator_forward.7} parent=0 // pred_check
    _
  $region23: #{discriminator_forward.7} parent=0 // pred_check_branch
    %290 = sbr.rel (0) target = $region25
  $region24: #{discriminator_forward.7} parent=0 // pred_region
    _
  $region25: #{discriminator_forward.7} parent=0 // pred_fallthru
    _
  // Predicated region
  $region26: #{discriminator_forward.7} parent=0 // pred_check
    _
  $region27: #{discriminator_forward.7} parent=0 // pred_check_branch
    %292 = sbr.rel (0) target = $region29
  $region28: #{discriminator_forward.7} parent=0 // pred_region
    _
  $region29: #{discriminator_forward.7} parent=0 // pred_fallthru
    _
  // Predicated region
  $region30: #{discriminator_forward.7} parent=0 // pred_check
    _
  $region31: #{discriminator_forward.7} parent=0 // pred_check_branch
    %294 = sbr.rel (0) target = $region33
  $region32: #{discriminator_forward.7} parent=0 // pred_region
    _
  $region33: #{discriminator_forward.7} parent=0 // pred_fallthru
    _
  // Predicated region
  $region34: #{discriminator_forward.7} parent=0 // pred_check
    _
  $region35: #{discriminator_forward.7} parent=0 // pred_check_branch
    %296 = sbr.rel (0) target = $region37
  $region36: #{discriminator_forward.7} parent=0 // pred_region
    _
  $region37: #{discriminator_forward.7} parent=0 // pred_fallthru
    _
  // Predicated region
  $region38: #{discriminator_forward.7} parent=0 // pred_check
    _
  $region39: #{discriminator_forward.7} parent=0 // pred_check_branch
    %298 = sbr.rel (0) target = $region41
  $region40: #{discriminator_forward.7} parent=0 // pred_region
    _
  $region41: #{discriminator_forward.7} parent=0 // pred_fallthru
    _

// kernel: discriminator_forward.8
$region0: #{discriminator_forward.8}
  #allocation0 [shape = 'u32[]', space=smem, size = 0x4, offset = 0x4, fixed_abs, tag = 'smem constant byte address 0x4 - core index']
  #allocation1 [shape = 'u32[144,128]{1,0:T(1,128)}', space=vmem, size = 0x12000, scoped, tag = 'internal scratch']
  #allocation2 [shape = 'f32[24,128]{1,0:T(8,128)}', space=vmem, size = 0x3000, scoped, tag = 'scratch operand']
  %s0 = inlined_call_operand.vmem [shape: bf16[2,48,128], index: 0, kind: input, shape index: {}]
  %s1 = inlined_call_operand.vmem [shape: bf16[16,128,128], index: 1, kind: input, shape index: {}]
  %s2 = inlined_call_operand.vmem [shape: f32[1,128], index: 2, kind: input, shape index: {}]
  %s3 = inlined_call_operand.vmem [shape: bf16[2,24,128], index: 3, kind: output, shape index: {0}]
  %s4 = inlined_call_operand.vmem [shape: f32[2,8,128], index: 4, kind: output, shape index: {1}]
  %s5 = inlined_call_operand.vmem [shape: f32[2,8,128], index: 5, kind: output, shape index: {2}]
  %6 = xla_tuple %s3, %s4, %s5
  %s7 = sld [smem:[#allocation0]]
  $region61: #{discriminator_forward.8} parent=0
    _
  %s9 = ssub.s32 1, %s7
  %s10 = scalar_select 0, %s9, %s7
  loop: start=0, step=1, limit=4
  $region2: #{discriminator_forward.8} parent=0 // loop_pre_header
    _
  $region3: #{discriminator_forward.8} parent=0 // loop_header
    %s12 = sphi 0, %s16
    %p13 = scmp.ge.s32.totalorder %s12, 4
    %s19 = sphi 0, %s31
    %s20 = sphi 0, %s27
    %s21 = sphi 0, %s19
    %s22 = sphi 0, %s20
    %s23 = sphi 0, %s21
    %s24 = sphi 0, %s22
    %s34 = sphi 0, %s36
    %s37 = sphi 0, %s34
    %s38 = sphi 0, %s37
    %s54 = sphi 0, %s38
    %s60 = sphi 0, %s62
    %s63 = sphi 0, %s60
    %s64 = sphi 0, %s63
    %s80 = sphi 0, %s64
    %s86 = sphi 0, %s88
    %s89 = sphi 0, %s86
    %s90 = sphi 0, %s89
    %s106 = sphi 0, %s90
    %s114 = sphi 0, %s116
    %s117 = sphi 0, %s114
    %s118 = sphi 0, %s117
    %s134 = sphi 0, %s118
    %s142 = sphi 0, %s144
    %s145 = sphi 0, %s142
    %s146 = sphi 0, %s145
    %s162 = sphi 0, %s146
    %s170 = sphi 0, %s172
    %s173 = sphi 0, %s170
    %s174 = sphi 0, %s173
    %s190 = sphi 0, %s174
  $region4: #{discriminator_forward.8} parent=0 // loop_header_branch
    %15 = sbr.rel (%p13) target = $region8
  $region5: #{discriminator_forward.8} parent=0 // loop_body
    %s17 = ssub.s32 %s12, 1
    %s18 = ssub.s32 %s12, 2
    %s25 = sadd.s32 1, %s20
    %p26 = scmp.ge.s32.totalorder %s25, 1
    %s27 = scalar_select %p26, 0, %s25
    %s28 = sadd.s32 1, %s19
    %s29 = scalar_select %p26, %s28, %s19
    %p30 = scmp.ge.s32.totalorder %s29, 2
    %s31 = scalar_select %p30, 0, %s29
    %s32 = ssub.s32 %s19, %s31
    %p33 = scmp.eq.s32.totalorder %s32, 0
    %s35 = sadd.s32 %s34, 1
    %s36 = scalar_select %p33, %s34, %s35
    %p39 = pneg %p33
    %p40 = scmp.eq.s32.totalorder %s12, 1
    %p41 = por %p39, %p40
    %p42 = scmp.ne.s32.totalorder %s34, %s37
    %p43 = scmp.eq.s32.totalorder %s12, 0
    %p44 = por %p42, %p43
    %p45 = scmp.ne.s32.totalorder %s34, %s37
    %p46 = scmp.eq.s32.totalorder %s17, 1
    %p47 = por %p45, %p46
    %p48 = scmp.ne.s32.totalorder %s37, %s38
    %p49 = scmp.eq.s32.totalorder %s17, 0
    %p50 = por %p48, %p49
    %p51 = scmp.ne.s32.totalorder %s37, %s38
    %p52 = scmp.eq.s32.totalorder %s18, 1
    %p53 = por %p51, %p52
    %p55 = scmp.ne.s32.totalorder %s38, %s54
    %p56 = scmp.eq.s32.totalorder %s18, 0
    %p57 = por %p55, %p56
    %s58 = ssub.s32 %s20, %s27
    %p59 = scmp.eq.s32.totalorder %s58, 0
    %s61 = sadd.s32 %s60, 1
    %s62 = scalar_select %p59, %s60, %s61
    %p65 = pneg %p59
    %p66 = scmp.eq.s32.totalorder %s12, 1
    %p67 = por %p65, %p66
    %p68 = scmp.ne.s32.totalorder %s60, %s63
    %p69 = scmp.eq.s32.totalorder %s12, 0
    %p70 = por %p68, %p69
    %p71 = scmp.ne.s32.totalorder %s60, %s63
    %p72 = scmp.eq.s32.totalorder %s17, 1
    %p73 = por %p71, %p72
    %p74 = scmp.ne.s32.totalorder %s63, %s64
    %p75 = scmp.eq.s32.totalorder %s17, 0
    %p76 = por %p74, %p75
    %p77 = scmp.ne.s32.totalorder %s63, %s64
    %p78 = scmp.eq.s32.totalorder %s18, 1
    %p79 = por %p77, %p78
    %p81 = scmp.ne.s32.totalorder %s64, %s80
    %p82 = scmp.eq.s32.totalorder %s18, 0
    %p83 = por %p81, %p82
    %s84 = ssub.s32 %s20, %s27
    %p85 = scmp.eq.s32.totalorder %s84, 0
    %s87 = sadd.s32 %s86, 1
    %s88 = scalar_select %p85, %s86, %s87
    %p91 = pneg %p85
    %p92 = scmp.eq.s32.totalorder %s12, 1
    %p93 = por %p91, %p92
    %p94 = scmp.ne.s32.totalorder %s86, %s89
    %p95 = scmp.eq.s32.totalorder %s12, 0
    %p96 = por %p94, %p95
    %p97 = scmp.ne.s32.totalorder %s86, %s89
    %p98 = scmp.eq.s32.totalorder %s17, 1
    %p99 = por %p97, %p98
    %p100 = scmp.ne.s32.totalorder %s89, %s90
    %p101 = scmp.eq.s32.totalorder %s17, 0
    %p102 = por %p100, %p101
    %p103 = scmp.ne.s32.totalorder %s89, %s90
    %p104 = scmp.eq.s32.totalorder %s18, 1
    %p105 = por %p103, %p104
    %p107 = scmp.ne.s32.totalorder %s90, %s106
    %p108 = scmp.eq.s32.totalorder %s18, 0
    %p109 = por %p107, %p108
    %s110 = ssub.s32 %s19, %s31
    %s111 = ssub.s32 %s20, %s27
    %s112 = sor.u32 %s110, %s111
    %p113 = scmp.eq.s32.totalorder %s112, 0
    %s115 = sadd.s32 %s114, 1
    %s116 = scalar_select %p113, %s114, %s115
    %p119 = pneg %p113
    %p120 = scmp.eq.s32.totalorder %s12, 1
    %p121 = por %p119, %p120
    %p122 = scmp.ne.s32.totalorder %s114, %s117
    %p123 = scmp.eq.s32.totalorder %s12, 0
    %p124 = por %p122, %p123
    %p125 = scmp.ne.s32.totalorder %s114, %s117
    %p126 = scmp.eq.s32.totalorder %s17, 1
    %p127 = por %p125, %p126
    %p128 = scmp.ne.s32.totalorder %s117, %s118
    %p129 = scmp.eq.s32.totalorder %s17, 0
    %p130 = por %p128, %p129
    %p131 = scmp.ne.s32.totalorder %s117, %s118
    %p132 = scmp.eq.s32.totalorder %s18, 1
    %p133 = por %p131, %p132
    %p135 = scmp.ne.s32.totalorder %s118, %s134
    %p136 = scmp.eq.s32.totalorder %s18, 0
    %p137 = por %p135, %p136
    %s138 = ssub.s32 %s19, %s31
    %s139 = ssub.s32 %s20, %s27
    %s140 = sor.u32 %s138, %s139
    %p141 = scmp.eq.s32.totalorder %s140, 0
    %s143 = sadd.s32 %s142, 1
    %s144 = scalar_select %p141, %s142, %s143
    %p147 = pneg %p141
    %p148 = scmp.eq.s32.totalorder %s12, 1
    %p149 = por %p147, %p148
    %p150 = scmp.ne.s32.totalorder %s142, %s145
    %p151 = scmp.eq.s32.totalorder %s12, 0
    %p152 = por %p150, %p151
    %p153 = scmp.ne.s32.totalorder %s142, %s145
    %p154 = scmp.eq.s32.totalorder %s17, 1
    %p155 = por %p153, %p154
    %p156 = scmp.ne.s32.totalorder %s145, %s146
    %p157 = scmp.eq.s32.totalorder %s17, 0
    %p158 = por %p156, %p157
    %p159 = scmp.ne.s32.totalorder %s145, %s146
    %p160 = scmp.eq.s32.totalorder %s18, 1
    %p161 = por %p159, %p160
    %p163 = scmp.ne.s32.totalorder %s146, %s162
    %p164 = scmp.eq.s32.totalorder %s18, 0
    %p165 = por %p163, %p164
    %s166 = ssub.s32 %s19, %s31
    %s167 = ssub.s32 %s20, %s27
    %s168 = sor.u32 %s166, %s167
    %p169 = scmp.eq.s32.totalorder %s168, 0
    %s171 = sadd.s32 %s170, 1
    %s172 = scalar_select %p169, %s170, %s171
    %p175 = pneg %p169
    %p176 = scmp.eq.s32.totalorder %s12, 1
    %p177 = por %p175, %p176
    %p178 = scmp.ne.s32.totalorder %s170, %s173
    %p179 = scmp.eq.s32.totalorder %s12, 0
    %p180 = por %p178, %p179
    %p181 = scmp.ne.s32.totalorder %s170, %s173
    %p182 = scmp.eq.s32.totalorder %s17, 1
    %p183 = por %p181, %p182
    %p184 = scmp.ne.s32.totalorder %s173, %s174
    %p185 = scmp.eq.s32.totalorder %s17, 0
    %p186 = por %p184, %p185
    %p187 = scmp.ne.s32.totalorder %s173, %s174
    %p188 = scmp.eq.s32.totalorder %s18, 1
    %p189 = por %p187, %p188
    %p191 = scmp.ne.s32.totalorder %s174, %s190
    %p192 = scmp.eq.s32.totalorder %s18, 0
    %p193 = por %p191, %p192
    %p194 = scmp.le.s32.totalorder 1, %s12
    %p195 = scmp.lt.s32.totalorder %s12, 3
    %p196 = pnand %p194, %p195
    %p197 = pneg %p196
    // Predicated region
    $region9: #{discriminator_forward.8} parent=5 // pred_check
      _
    $region10: #{discriminator_forward.8} parent=5 // pred_check_branch
      %199 = sbr.rel (%p196) target = $region12
    $region11: #{discriminator_forward.8} parent=5 // pred_region
      %s200 = ssub.s32 %s12, 1
      // Predicated region
      $region13: #{discriminator_forward.8} parent=11 // pred_check
        %p201 = pneg %p76
      $region14: #{discriminator_forward.8} parent=11 // pred_check_branch
        %203 = sbr.rel (%p201) target = $region16
      $region15: #{discriminator_forward.8} parent=11 // pred_region
        %p204 = scmp.lt.s32.totalorder %s22, 0
        %s205 = scalar_select %p204, %s22, 0
        %s206 = smul.addr %s205, 4
        %s207 = scalar_lea.vmem %s1, %s206
      $region16: #{discriminator_forward.8} parent=11 // pred_fallthru
        _
      // Predicated region
      $region17: #{discriminator_forward.8} parent=11 // pred_check
        %p208 = pneg %p102
      $region18: #{discriminator_forward.8} parent=11 // pred_check_branch
        %210 = sbr.rel (%p208) target = $region20
      $region19: #{discriminator_forward.8} parent=11 // pred_region
        %p211 = scmp.lt.s32.totalorder %s22, 0
        %s212 = scalar_select %p211, %s22, 0
        %s213 = scalar_lea.vmem %s2, %s212
      $region20: #{discriminator_forward.8} parent=11 // pred_fallthru
        _
    $region12: #{discriminator_forward.8} parent=5 // pred_fallthru
      _
    %p214 = scmp.lt.s32.totalorder %s12, 2
    // Predicated region
    $region21: #{discriminator_forward.8} parent=5 // pred_check
      %p215 = pneg %p214
    $region22: #{discriminator_forward.8} parent=5 // pred_check_branch
      %217 = sbr.rel (%p215) target = $region24
    $region23: #{discriminator_forward.8} parent=5 // pred_region
      // Predicated region
      $region25: #{discriminator_forward.8} parent=23 // pred_check
        %p218 = pneg %p44
      $region26: #{discriminator_forward.8} parent=23 // pred_check_branch
        %220 = sbr.rel (%p218) target = $region28
      $region27: #{discriminator_forward.8} parent=23 // pred_region
        %p221 = scmp.lt.s32.totalorder %s19, 1
        %s222 = scalar_select %p221, %s19, 1
        %s223 = smul.addr %s222, 6
        %s224 = smul.addr %s223, 4
        %s225 = scalar_lea.vmem %s0, %s224
      $region28: #{discriminator_forward.8} parent=23 // pred_fallthru
        _
    $region24: #{discriminator_forward.8} parent=5 // pred_fallthru
      _
    %p226 = scmp.le.s32.totalorder 1, %s12
    %p227 = scmp.lt.s32.totalorder %s12, 3
    %p228 = pnand %p226, %p227
    %p229 = pneg %p228
    // Predicated region
    $region29: #{discriminator_forward.8} parent=5 // pred_check
      _
    $region30: #{discriminator_forward.8} parent=5 // pred_check_branch
      %231 = sbr.rel (%p228) target = $region32
    $region31: #{discriminator_forward.8} parent=5 // pred_region
      %s232 = ssub.s32 %s12, 1
      %p233 = scmp.lt.s32.totalorder %s21, 1
      %s234 = scalar_select %p233, %s21, 1
      %s235 = smul.addr %s234, 6
      %s236 = smul.addr %s235, 4
      %s237 = scalar_lea.vmem %s0, %s236
      %p238 = pneg %p50
      %p239 = pneg %p47
      %p240 = scmp.lt.s32.totalorder %s22, 0
      %s241 = scalar_select %p240, %s22, 0
      %s242 = smul.addr %s241, 4
      %s243 = scalar_lea.vmem %s1, %s242
      %p244 = pneg %p76
      %p245 = pneg %p73
      %p246 = scmp.lt.s32.totalorder %s22, 0
      %s247 = scalar_select %p246, %s22, 0
      %s248 = scalar_lea.vmem %s2, %s247
      %p249 = pneg %p102
      %p250 = pneg %p99
      %p251 = pneg %p130
      %p252 = pneg %p127
      %p253 = scmp.lt.s32.totalorder %s21, 1
      %s254 = scalar_select %p253, %s21, 1
      %p255 = scmp.lt.s32.totalorder %s22, 0
      %s256 = scalar_select %p255, %s22, 0
      %s257 = smul.addr %s254, 3
      %s258 = sadd.s32 %s256, %s257
      %s259 = smul.addr %s258, 4
      %s260 = scalar_lea.vmem %s3, %s259
      %p261 = pneg %p158
      %p262 = pneg %p155
      %p263 = scmp.lt.s32.totalorder %s21, 1
      %s264 = scalar_select %p263, %s21, 1
      %p265 = scmp.lt.s32.totalorder %s22, 0
      %s266 = scalar_select %p265, %s22, 0
      %s267 = sadd.s32 %s266, %s264
      %s268 = smul.addr %s267, 8
      %s269 = scalar_lea.vmem %s4, %s268
      %p270 = pneg %p186
      %p271 = pneg %p183
      %p272 = scmp.lt.s32.totalorder %s21, 1
      %s273 = scalar_select %p272, %s21, 1
      %p274 = scmp.lt.s32.totalorder %s22, 0
      %s275 = scalar_select %p274, %s22, 0
      %s276 = sadd.s32 %s275, %s273
      %s277 = smul.addr %s276, 8
      %s278 = scalar_lea.vmem %s5, %s277
      %p279 = scmp.lt.s32.totalorder %s21, 1
      %s280 = scalar_select %p279, %s21, 1
      %s281 = smul.addr %s280, 6
      %s282 = smul.addr %s281, 4
      %s283 = scalar_lea.vmem %s0, %s282
      %p284 = scmp.lt.s32.totalorder %s22, 0
      %s285 = scalar_select %p284, %s22, 0
      %s286 = smul.addr %s285, 4
      %s287 = scalar_lea.vmem %s1, %s286
      %p288 = scmp.lt.s32.totalorder %s22, 0
      %s289 = scalar_select %p288, %s22, 0
      %s290 = scalar_lea.vmem %s2, %s289
      %p291 = scmp.lt.s32.totalorder %s21, 1
      %s292 = scalar_select %p291, %s21, 1
      %p293 = scmp.lt.s32.totalorder %s22, 0
      %s294 = scalar_select %p293, %s22, 0
      %s295 = smul.addr %s292, 3
      %s296 = sadd.s32 %s294, %s295
      %s297 = smul.addr %s296, 4
      %s298 = scalar_lea.vmem %s3, %s297
      %p299 = scmp.lt.s32.totalorder %s21, 1
      %s300 = scalar_select %p299, %s21, 1
      %p301 = scmp.lt.s32.totalorder %s22, 0
      %s302 = scalar_select %p301, %s22, 0
      %s303 = sadd.s32 %s302, %s300
      %s304 = smul.addr %s303, 8
      %s305 = scalar_lea.vmem %s4, %s304
      %p306 = scmp.lt.s32.totalorder %s21, 1
      %s307 = scalar_select %p306, %s21, 1
      %p308 = scmp.lt.s32.totalorder %s22, 0
      %s309 = scalar_select %p308, %s22, 0
      %s310 = sadd.s32 %s309, %s307
      %s311 = smul.addr %s310, 8
      %s312 = scalar_lea.vmem %s5, %s311
      %314 = vst [vmem:[#allocation2] sm:$0xff] 0.0
      %315 = vst [vmem:[#allocation2 + $0x8] sm:$0xff] 0.0
      %316 = vst [vmem:[#allocation2 + $0x10] sm:$0xff] 0.0
      %v317 = vld [vmem:[%s283] sm:$0xf]
      %v318 = vld [vmem:[%s283 + $0x4] sm:$0xf]
      %v319 = vld [vmem:[%s283 + $0x8] sm:$0xf]
      %v320 = vld [vmem:[#allocation2] sm:$0xff]
      %v321 = vld [vmem:[#allocation2 + $0x8] sm:$0xff]
      %v322 = vld [vmem:[#allocation2 + $0x10] sm:$0xff]
      %v323 = vld [vmem:[%s287] sm:$0xf]
      %v324 = vld [vmem:[%s287 + $0x4] sm:$0xf]
      %v325 = vld [vmem:[%s287 + $0x8] sm:$0xf]
      %v326 = vld [vmem:[%s287 + $0xc] sm:$0xf]
      %v327 = vld [vmem:[%s287 + $0x10] sm:$0xf]
      %v328 = vld [vmem:[%s287 + $0x14] sm:$0xf]
      %v329 = vld [vmem:[%s287 + $0x18] sm:$0xf]
      %v330 = vld [vmem:[%s287 + $0x1c] sm:$0xf]
      %v331 = vld [vmem:[%s287 + $0x20] sm:$0xf]
      %v332 = vld [vmem:[%s287 + $0x24] sm:$0xf]
      %v333 = vld [vmem:[%s287 + $0x28] sm:$0xf]
      %v334 = vld [vmem:[%s287 + $0x2c] sm:$0xf]
      %v335 = vld [vmem:[%s287 + $0x30] sm:$0xf]
      %v336 = vld [vmem:[%s287 + $0x34] sm:$0xf]
      %v337 = vld [vmem:[%s287 + $0x38] sm:$0xf]
      %v338 = vld [vmem:[%s287 + $0x3c] sm:$0xf]
      %v342 = vunpack.c.l.b16 %v317
      %v343 = vunpack.c.l.b16 %v318
      %v344 = vunpack.c.l.b16 %v319
      %v345 = vpack.c.b16 %v343, %v342
      %v346 = vpack.c.b16 %v344, %v344
      %v365 = vunpack.c.l.b16 %v323
      %v366 = vunpack.c.l.b16 %v324
      %v367 = vunpack.c.l.b16 %v325
      %v368 = vunpack.c.l.b16 %v326
      %v369 = vunpack.c.l.b16 %v327
      %v370 = vunpack.c.l.b16 %v328
      %v371 = vunpack.c.l.b16 %v329
      %v372 = vunpack.c.l.b16 %v330
      %v373 = vunpack.c.l.b16 %v331
      %v374 = vunpack.c.l.b16 %v332
      %v375 = vunpack.c.l.b16 %v333
      %v376 = vunpack.c.l.b16 %v334
      %v377 = vunpack.c.l.b16 %v335
      %v378 = vunpack.c.l.b16 %v336
      %v379 = vunpack.c.l.b16 %v337
      %v380 = vunpack.c.l.b16 %v338
      %v381 = vpack.c.b16 %v366, %v365
      %v382 = vpack.c.b16 %v368, %v367
      %v383 = vpack.c.b16 %v370, %v369
      %v384 = vpack.c.b16 %v372, %v371
      %v385 = vpack.c.b16 %v374, %v373
      %v386 = vpack.c.b16 %v376, %v375
      %v387 = vpack.c.b16 %v378, %v377
      %v388 = vpack.c.b16 %v380, %v379
      %397 = vmatprep.subr.bf16.mxu0 0
      %398 = vmatpush1.bf16.msra.mxu0 %v381
      %399 = vmatprep.subr.bf16.mxu0 0
      %400 = vmatpush1.bf16.msra.mxu0 %v382
      %401 = vmatprep.subr.bf16.mxu0 0
      %402 = vmatpush1.bf16.msra.mxu0 %v383
      %403 = vmatprep.subr.bf16.mxu0 0
      %404 = vmatpush1.bf16.msra.mxu0 %v384
      %405 = vmatprep.subr.bf16.mxu0 0
      %406 = vmatpush1.bf16.msra.mxu0 %v385
      %407 = vmatprep.subr.bf16.mxu0 0
      %408 = vmatpush1.bf16.msra.mxu0 %v386
      %409 = vmatprep.subr.bf16.mxu0 0
      %410 = vmatpush1.bf16.msra.mxu0 %v387
      %411 = vmatprep.subr.bf16.mxu0 0
      %412 = vmatpush1.bf16.msra.mxu0 %v388
      %413 = vmatprep.subr.bf16.mxu0 0
      %414 = vmatpush1.bf16.msra.mxu0 0
      %415 = vmatprep.subr.bf16.mxu0 0
      %416 = vmatpush1.bf16.msra.mxu0 0
      %417 = vmatprep.subr.bf16.mxu0 0
      %418 = vmatpush1.bf16.msra.mxu0 0
      %419 = vmatprep.subr.bf16.mxu0 0
      %420 = vmatpush1.bf16.msra.mxu0 0
      %421 = vmatprep.subr.bf16.mxu0 0
      %422 = vmatpush1.bf16.msra.mxu0 0
      %423 = vmatprep.subr.bf16.mxu0 0
      %424 = vmatpush1.bf16.msra.mxu0 0
      %425 = vmatprep.subr.bf16.mxu0 0
      %426 = vmatpush1.bf16.msra.mxu0 0
      %427 = vmatprep.subr.bf16.mxu0 0
      %428 = vmatpush1.bf16.msra.mxu0 0
      %429 = vmatprep.mubr.bf16.mxu0 0
      %430 = vmatmul.mubr.bf16.gmra.mrb[0].mxu0 %v345
      %v431 = vpop.f32.mrb[0].mxu0
      %v432 = vadd.f32 0.0, %v431
      %v433 = vpop.f32.mrb[0].mxu0
      %v434 = vpop.f32.mrb[0].mxu0
      %v435 = vadd.f32 0.0, %v434
      %v436 = vpop.f32.mrb[0].mxu0
      %437 = vmatprep.mubr.bf16.mxu0 0
      %438 = vmatmul.mubr.bf16.gmra.mrb[0].mxu0 %v346
      %v439 = vpop.f32.mrb[0].mxu0
      %v440 = vadd.f32 0.0, %v439
      %v441 = vpop.f32.mrb[0].mxu0
      %v442 = vpop.f32.mrb[0].mxu0
      %v443 = vpop.f32.mrb[0].mxu0
      %444 = vdwg.mxu0
      %v445 = vadd.f32 %v320, %v432
      %v446 = vadd.f32 %v321, %v435
      %v447 = vadd.f32 %v322, %v440
      %448 = vst [vmem:[#allocation2] sm:$0xff] %v445
      %449 = vst [vmem:[#allocation2 + $0x8] sm:$0xff] %v446
      %450 = vst [vmem:[#allocation2 + $0x10] sm:$0xff] %v447
      %v451 = vld [vmem:[%s283] sm:$0xf]
      %v452 = vld [vmem:[%s283 + $0x4] sm:$0xf]
      %v453 = vld [vmem:[%s283 + $0x8] sm:$0xf]
      %v454 = vld [vmem:[%s283 + $0xc] sm:$0x1]
      %v455 = vld [vmem:[#allocation2] sm:$0xff]
      %v456 = vld [vmem:[#allocation2 + $0x8] sm:$0xff]
      %v457 = vld [vmem:[#allocation2 + $0x10] sm:$0xff]
      %s458 = scalar_lea.vmem %s287, 64
      %v459 = vld [vmem:[%s458] sm:$0xf]
      %v460 = vld [vmem:[%s458 + $0x4] sm:$0xf]
      %v461 = vld [vmem:[%s458 + $0x8] sm:$0xf]
      %v462 = vld [vmem:[%s458 + $0xc] sm:$0xf]
      %v463 = vld [vmem:[%s458 + $0x10] sm:$0xf]
      %v464 = vld [vmem:[%s458 + $0x14] sm:$0xf]
      %v465 = vld [vmem:[%s458 + $0x18] sm:$0xf]
      %v466 = vld [vmem:[%s458 + $0x1c] sm:$0xf]
      %v467 = vld [vmem:[%s458 + $0x20] sm:$0xf]
      %v468 = vld [vmem:[%s458 + $0x24] sm:$0xf]
      %v469 = vld [vmem:[%s458 + $0x28] sm:$0xf]
      %v470 = vld [vmem:[%s458 + $0x2c] sm:$0xf]
      %v471 = vld [vmem:[%s458 + $0x30] sm:$0xf]
      %v472 = vld [vmem:[%s458 + $0x34] sm:$0xf]
      %v473 = vld [vmem:[%s458 + $0x38] sm:$0xf]
      %v474 = vld [vmem:[%s458 + $0x3c] sm:$0xf]
      %v479 = vunpack.c.l.b16 %v451
      %v480 = vunpack.c.l.b16 %v452
      %v481 = vunpack.c.l.b16 %v453
      %v482 = vunpack.c.l.b16 %v454
      %v483 = vpack.c.b16 %v480, %v479
      %v484 = vpack.c.b16 %v482, %v481
      %vm485 = vsmask.f32 7424
      %v487 = vshrl.u32 %v483, 16
      %v489 = vshll.u32 %v483, 16
      %v491 = vrot.slane %v489, 1
      %v492 = vor.u32 %v487, %v491
      %v494 = vshll.u32 %v484, 16
      %v496 = vrot.slane %v494, 1
      %v497 = vsel %vm485, %v492, %v496
      %v498 = vshrl.u32 %v484, 16
      %v500 = vor.u32 %v498, %v496
      %v519 = vunpack.c.l.b16 %v459
      %v520 = vunpack.c.l.b16 %v460
      %v521 = vunpack.c.l.b16 %v461
      %v522 = vunpack.c.l.b16 %v462
      %v523 = vunpack.c.l.b16 %v463
      %v524 = vunpack.c.l.b16 %v464
      %v525 = vunpack.c.l.b16 %v465
      %v526 = vunpack.c.l.b16 %v466
      %v527 = vunpack.c.l.b16 %v467
      %v528 = vunpack.c.l.b16 %v468
      %v529 = vunpack.c.l.b16 %v469
      %v530 = vunpack.c.l.b16 %v470
      %v531 = vunpack.c.l.b16 %v471
      %v532 = vunpack.c.l.b16 %v472
      %v533 = vunpack.c.l.b16 %v473
      %v534 = vunpack.c.l.b16 %v474
      %v535 = vpack.c.b16 %v520, %v519
      %v536 = vpack.c.b16 %v522, %v521
      %v537 = vpack.c.b16 %v524, %v523
      %v538 = vpack.c.b16 %v526, %v525
      %v539 = vpack.c.b16 %v528, %v527
      %v540 = vpack.c.b16 %v530, %v529
      %v541 = vpack.c.b16 %v532, %v531
      %v542 = vpack.c.b16 %v534, %v533
      %551 = vmatprep.subr.bf16.mxu0 0
      %552 = vmatpush1.bf16.msra.mxu0 %v535
      %553 = vmatprep.subr.bf16.mxu0 0
      %554 = vmatpush1.bf16.msra.mxu0 %v536
      %555 = vmatprep.subr.bf16.mxu0 0
      %556 = vmatpush1.bf16.msra.mxu0 %v537
      %557 = vmatprep.subr.bf16.mxu0 0
      %558 = vmatpush1.bf16.msra.mxu0 %v538
      %559 = vmatprep.subr.bf16.mxu0 0
      %560 = vmatpush1.bf16.msra.mxu0 %v539
      %561 = vmatprep.subr.bf16.mxu0 0
      %562 = vmatpush1.bf16.msra.mxu0 %v540
      %563 = vmatprep.subr.bf16.mxu0 0
      %564 = vmatpush1.bf16.msra.mxu0 %v541
      %565 = vmatprep.subr.bf16.mxu0 0
      %566 = vmatpush1.bf16.msra.mxu0 %v542
      %567 = vmatprep.subr.bf16.mxu0 0
      %568 = vmatpush1.bf16.msra.mxu0 0
      %569 = vmatprep.subr.bf16.mxu0 0
      %570 = vmatpush1.bf16.msra.mxu0 0
      %571 = vmatprep.subr.bf16.mxu0 0
      %572 = vmatpush1.bf16.msra.mxu0 0
      %573 = vmatprep.subr.bf16.mxu0 0
      %574 = vmatpush1.bf16.msra.mxu0 0
      %575 = vmatprep.subr.bf16.mxu0 0
      %576 = vmatpush1.bf16.msra.mxu0 0
      %577 = vmatprep.subr.bf16.mxu0 0
      %578 = vmatpush1.bf16.msra.mxu0 0
      %579 = vmatprep.subr.bf16.mxu0 0
      %580 = vmatpush1.bf16.msra.mxu0 0
      %581 = vmatprep.subr.bf16.mxu0 0
      %582 = vmatpush1.bf16.msra.mxu0 0
      %583 = vmatprep.mubr.bf16.mxu0 0
      %584 = vmatmul.mubr.bf16.gmra.mrb[0].mxu0 %v497
      %v585 = vpop.f32.mrb[0].mxu0
      %v586 = vadd.f32 0.0, %v585
      %v587 = vpop.f32.mrb[0].mxu0
      %v588 = vpop.f32.mrb[0].mxu0
      %v589 = vadd.f32 0.0, %v588
      %v590 = vpop.f32.mrb[0].mxu0
      %591 = vmatprep.mubr.bf16.mxu0 0
      %592 = vmatmul.mubr.bf16.gmra.mrb[0].mxu0 %v500
      %v593 = vpop.f32.mrb[0].mxu0
      %v594 = vadd.f32 0.0, %v593
      %v595 = vpop.f32.mrb[0].mxu0
      %v596 = vpop.f32.mrb[0].mxu0
      %v597 = vpop.f32.mrb[0].mxu0
      %598 = vdwg.mxu0
      %v599 = vadd.f32 %v455, %v586
      %v600 = vadd.f32 %v456, %v589
      %v601 = vadd.f32 %v457, %v594
      %602 = vst [vmem:[#allocation2] sm:$0xff] %v599
      %603 = vst [vmem:[#allocation2 + $0x8] sm:$0xff] %v600
      %604 = vst [vmem:[#allocation2 + $0x10] sm:$0xff] %v601
      %v605 = vld [vmem:[%s283] sm:$0xe]
      %v606 = vld [vmem:[%s283 + $0x4] sm:$0xf]
      %v607 = vld [vmem:[%s283 + $0x8] sm:$0xf]
      %v608 = vld [vmem:[%s283 + $0xc] sm:$0x1]
      %v609 = vld [vmem:[#allocation2] sm:$0xff]
      %v610 = vld [vmem:[#allocation2 + $0x8] sm:$0xff]
      %v611 = vld [vmem:[#allocation2 + $0x10] sm:$0xff]
      %s612 = scalar_lea.vmem %s287, 128
      %v613 = vld [vmem:[%s612] sm:$0xf]
      %v614 = vld [vmem:[%s612 + $0x4] sm:$0xf]
      %v615 = vld [vmem:[%s612 + $0x8] sm:$0xf]
      %v616 = vld [vmem:[%s612 + $0xc] sm:$0xf]
      %v617 = vld [vmem:[%s612 + $0x10] sm:$0xf]
      %v618 = vld [vmem:[%s612 + $0x14] sm:$0xf]
      %v619 = vld [vmem:[%s612 + $0x18] sm:$0xf]
      %v620 = vld [vmem:[%s612 + $0x1c] sm:$0xf]
      %v621 = vld [vmem:[%s612 + $0x20] sm:$0xf]
      %v622 = vld [vmem:[%s612 + $0x24] sm:$0xf]
      %v623 = vld [vmem:[%s612 + $0x28] sm:$0xf]
      %v624 = vld [vmem:[%s612 + $0x2c] sm:$0xf]
      %v625 = vld [vmem:[%s612 + $0x30] sm:$0xf]
      %v626 = vld [vmem:[%s612 + $0x34] sm:$0xf]
      %v627 = vld [vmem:[%s612 + $0x38] sm:$0xf]
      %v628 = vld [vmem:[%s612 + $0x3c] sm:$0xf]
      %v633 = vunpack.c.l.b16 %v605
      %v634 = vunpack.c.l.b16 %v606
      %v635 = vunpack.c.l.b16 %v607
      %v636 = vunpack.c.l.b16 %v608
      %v637 = vpack.c.b16 %v634, %v633
      %v638 = vpack.c.b16 %v636, %v635
      %vm639 = vcmask 1046528
      %v640 = vrot.slane %v637, 1
      %v641 = vrot.slane %v638, 1
      %v642 = vsel %vm639, %v640, %v641
      %v661 = vunpack.c.l.b16 %v613
      %v662 = vunpack.c.l.b16 %v614
      %v663 = vunpack.c.l.b16 %v615
      %v664 = vunpack.c.l.b16 %v616
      %v665 = vunpack.c.l.b16 %v617
      %v666 = vunpack.c.l.b16 %v618
      %v667 = vunpack.c.l.b16 %v619
      %v668 = vunpack.c.l.b16 %v620
      %v669 = vunpack.c.l.b16 %v621
      %v670 = vunpack.c.l.b16 %v622
      %v671 = vunpack.c.l.b16 %v623
      %v672 = vunpack.c.l.b16 %v624
      %v673 = vunpack.c.l.b16 %v625
      %v674 = vunpack.c.l.b16 %v626
      %v675 = vunpack.c.l.b16 %v627
      %v676 = vunpack.c.l.b16 %v628
      %v677 = vpack.c.b16 %v662, %v661
      %v678 = vpack.c.b16 %v664, %v663
      %v679 = vpack.c.b16 %v666, %v665
      %v680 = vpack.c.b16 %v668, %v667
      %v681 = vpack.c.b16 %v670, %v669
      %v682 = vpack.c.b16 %v672, %v671
      %v683 = vpack.c.b16 %v674, %v673
      %v684 = vpack.c.b16 %v676, %v675
      %693 = vmatprep.subr.bf16.mxu0 0
      %694 = vmatpush1.bf16.msra.mxu0 %v677
      %695 = vmatprep.subr.bf16.mxu0 0
      %696 = vmatpush1.bf16.msra.mxu0 %v678
      %697 = vmatprep.subr.bf16.mxu0 0
      %698 = vmatpush1.bf16.msra.mxu0 %v679
      %699 = vmatprep.subr.bf16.mxu0 0
      %700 = vmatpush1.bf16.msra.mxu0 %v680
      %701 = vmatprep.subr.bf16.mxu0 0
      %702 = vmatpush1.bf16.msra.mxu0 %v681
      %703 = vmatprep.subr.bf16.mxu0 0
      %704 = vmatpush1.bf16.msra.mxu0 %v682
      %705 = vmatprep.subr.bf16.mxu0 0
      %706 = vmatpush1.bf16.msra.mxu0 %v683
      %707 = vmatprep.subr.bf16.mxu0 0
      %708 = vmatpush1.bf16.msra.mxu0 %v684
      %709 = vmatprep.subr.bf16.mxu0 0
      %710 = vmatpush1.bf16.msra.mxu0 0
      %711 = vmatprep.subr.bf16.mxu0 0
      %712 = vmatpush1.bf16.msra.mxu0 0
      %713 = vmatprep.subr.bf16.mxu0 0
      %714 = vmatpush1.bf16.msra.mxu0 0
      %715 = vmatprep.subr.bf16.mxu0 0
      %716 = vmatpush1.bf16.msra.mxu0 0
      %717 = vmatprep.subr.bf16.mxu0 0
      %718 = vmatpush1.bf16.msra.mxu0 0
      %719 = vmatprep.subr.bf16.mxu0 0
      %720 = vmatpush1.bf16.msra.mxu0 0
      %721 = vmatprep.subr.bf16.mxu0 0
      %722 = vmatpush1.bf16.msra.mxu0 0
      %723 = vmatprep.subr.bf16.mxu0 0
      %724 = vmatpush1.bf16.msra.mxu0 0
      %725 = vmatprep.mubr.bf16.mxu0 0
      %726 = vmatmul.mubr.bf16.gmra.mrb[0].mxu0 %v642
      %v727 = vpop.f32.mrb[0].mxu0
      %v728 = vadd.f32 0.0, %v727
      %v729 = vpop.f32.mrb[0].mxu0
      %v730 = vpop.f32.mrb[0].mxu0
      %v731 = vadd.f32 0.0, %v730
      %v732 = vpop.f32.mrb[0].mxu0
      %733 = vmatprep.mubr.bf16.mxu0 0
      %734 = vmatmul.mubr.bf16.gmra.mrb[0].mxu0 %v641
      %v735 = vpop.f32.mrb[0].mxu0
      %v736 = vadd.f32 0.0, %v735
      %v737 = vpop.f32.mrb[0].mxu0
      %v738 = vpop.f32.mrb[0].mxu0
      %v739 = vpop.f32.mrb[0].mxu0
      %740 = vdwg.mxu0
      %v741 = vadd.f32 %v609, %v728
      %v742 = vadd.f32 %v610, %v731
      %v743 = vadd.f32 %v611, %v736
      %744 = vst [vmem:[#allocation2] sm:$0xff] %v741
      %745 = vst [vmem:[#allocation2 + $0x8] sm:$0xff] %v742
      %746 = vst [vmem:[#allocation2 + $0x10] sm:$0xff] %v743
      %v747 = vld [vmem:[%s283] sm:$0xe]
      %v748 = vld [vmem:[%s283 + $0x4] sm:$0xf]
      %v749 = vld [vmem:[%s283 + $0x8] sm:$0xf]
      %v750 = vld [vmem:[%s283 + $0xc] sm:$0x3]
      %v751 = vld [vmem:[#allocation2] sm:$0xff]
      %v752 = vld [vmem:[#allocation2 + $0x8] sm:$0xff]
      %v753 = vld [vmem:[#allocation2 + $0x10] sm:$0xff]
      %s754 = scalar_lea.vmem %s287, 192
      %v755 = vld [vmem:[%s754] sm:$0xf]
      %v756 = vld [vmem:[%s754 + $0x4] sm:$0xf]
      %v757 = vld [vmem:[%s754 + $0x8] sm:$0xf]
      %v758 = vld [vmem:[%s754 + $0xc] sm:$0xf]
      %v759 = vld [vmem:[%s754 + $0x10] sm:$0xf]
      %v760 = vld [vmem:[%s754 + $0x14] sm:$0xf]
      %v761 = vld [vmem:[%s754 + $0x18] sm:$0xf]
      %v762 = vld [vmem:[%s754 + $0x1c] sm:$0xf]
      %v763 = vld [vmem:[%s754 + $0x20] sm:$0xf]
      %v764 = vld [vmem:[%s754 + $0x24] sm:$0xf]
      %v765 = vld [vmem:[%s754 + $0x28] sm:$0xf]
      %v766 = vld [vmem:[%s754 + $0x2c] sm:$0xf]
      %v767 = vld [vmem:[%s754 + $0x30] sm:$0xf]
      %v768 = vld [vmem:[%s754 + $0x34] sm:$0xf]
      %v769 = vld [vmem:[%s754 + $0x38] sm:$0xf]
      %v770 = vld [vmem:[%s754 + $0x3c] sm:$0xf]
      %v775 = vunpack.c.l.b16 %v747
      %v776 = vunpack.c.l.b16 %v748
      %v777 = vunpack.c.l.b16 %v749
      %v778 = vunpack.c.l.b16 %v750
      %v779 = vpack.c.b16 %v776, %v775
      %v780 = vpack.c.b16 %v778, %v777
      %vm781 = vsmask.f32 6400
      %v783 = vshrl.u32 %v779, 16
      %v785 = vrot.slane %v783, 1
      %v786 = vshll.u32 %v779, 16
      %v788 = vrot.slane %v786, 2
      %v789 = vor.u32 %v785, %v788
      %v791 = vshrl.u32 %v780, 16
      %v793 = vrot.slane %v791, 1
      %v794 = vshll.u32 %v780, 16
      %v796 = vrot.slane %v794, 2
      %v797 = vor.u32 %v793, %v796
      %v798 = vsel %vm781, %v789, %v797
      %v817 = vunpack.c.l.b16 %v755
      %v818 = vunpack.c.l.b16 %v756
      %v819 = vunpack.c.l.b16 %v757
      %v820 = vunpack.c.l.b16 %v758
      %v821 = vunpack.c.l.b16 %v759
      %v822 = vunpack.c.l.b16 %v760
      %v823 = vunpack.c.l.b16 %v761
      %v824 = vunpack.c.l.b16 %v762
      %v825 = vunpack.c.l.b16 %v763
      %v826 = vunpack.c.l.b16 %v764
      %v827 = vunpack.c.l.b16 %v765
      %v828 = vunpack.c.l.b16 %v766
      %v829 = vunpack.c.l.b16 %v767
      %v830 = vunpack.c.l.b16 %v768
      %v831 = vunpack.c.l.b16 %v769
      %v832 = vunpack.c.l.b16 %v770
      %v833 = vpack.c.b16 %v818, %v817
      %v834 = vpack.c.b16 %v820, %v819
      %v835 = vpack.c.b16 %v822, %v821
      %v836 = vpack.c.b16 %v824, %v823
      %v837 = vpack.c.b16 %v826, %v825
      %v838 = vpack.c.b16 %v828, %v827
      %v839 = vpack.c.b16 %v830, %v829
      %v840 = vpack.c.b16 %v832, %v831
      %849 = vmatprep.subr.bf16.mxu0 0
      %850 = vmatpush1.bf16.msra.mxu0 %v833
      %851 = vmatprep.subr.bf16.mxu0 0
      %852 = vmatpush1.bf16.msra.mxu0 %v834
      %853 = vmatprep.subr.bf16.mxu0 0
      %854 = vmatpush1.bf16.msra.mxu0 %v835
      %855 = vmatprep.subr.bf16.mxu0 0
      %856 = vmatpush1.bf16.msra.mxu0 %v836
      %857 = vmatprep.subr.bf16.mxu0 0
      %858 = vmatpush1.bf16.msra.mxu0 %v837
      %859 = vmatprep.subr.bf16.mxu0 0
      %860 = vmatpush1.bf16.msra.mxu0 %v838
      %861 = vmatprep.subr.bf16.mxu0 0
      %862 = vmatpush1.bf16.msra.mxu0 %v839
      %863 = vmatprep.subr.bf16.mxu0 0
      %864 = vmatpush1.bf16.msra.mxu0 %v840
      %865 = vmatprep.subr.bf16.mxu0 0
      %866 = vmatpush1.bf16.msra.mxu0 0
      %867 = vmatprep.subr.bf16.mxu0 0
      %868 = vmatpush1.bf16.msra.mxu0 0
      %869 = vmatprep.subr.bf16.mxu0 0
      %870 = vmatpush1.bf16.msra.mxu0 0
      %871 = vmatprep.subr.bf16.mxu0 0
      %872 = vmatpush1.bf16.msra.mxu0 0
      %873 = vmatprep.subr.bf16.mxu0 0
      %874 = vmatpush1.bf16.msra.mxu0 0
      %875 = vmatprep.subr.bf16.mxu0 0
      %876 = vmatpush1.bf16.msra.mxu0 0
      %877 = vmatprep.subr.bf16.mxu0 0
      %878 = vmatpush1.bf16.msra.mxu0 0
      %879 = vmatprep.subr.bf16.mxu0 0
      %880 = vmatpush1.bf16.msra.mxu0 0
      %881 = vmatprep.mubr.bf16.mxu0 0
      %882 = vmatmul.mubr.bf16.gmra.mrb[0].mxu0 %v798
      %v883 = vpop.f32.mrb[0].mxu0
      %v884 = vadd.f32 0.0, %v883
      %v885 = vpop.f32.mrb[0].mxu0
      %v886 = vpop.f32.mrb[0].mxu0
      %v887 = vadd.f32 0.0, %v886
      %v888 = vpop.f32.mrb[0].mxu0
      %889 = vmatprep.mubr.bf16.mxu0 0
      %890 = vmatmul.mubr.bf16.gmra.mrb[0].mxu0 %v797
      %v891 = vpop.f32.mrb[0].mxu0
      %v892 = vadd.f32 0.0, %v891
      %v893 = vpop.f32.mrb[0].mxu0
      %v894 = vpop.f32.mrb[0].mxu0
      %v895 = vpop.f32.mrb[0].mxu0
      %896 = vdwg.mxu0
      %v897 = vadd.f32 %v751, %v884
      %v898 = vadd.f32 %v752, %v887
      %v899 = vadd.f32 %v753, %v892
      %900 = vst [vmem:[#allocation2] sm:$0xff] %v897
      %901 = vst [vmem:[#allocation2 + $0x8] sm:$0xff] %v898
      %902 = vst [vmem:[#allocation2 + $0x10] sm:$0xff] %v899
      %v903 = vld [vmem:[%s283] sm:$0x8]
      %v904 = vld [vmem:[%s283 + $0x4] sm:$0xf]
      %v905 = vld [vmem:[%s283 + $0x8] sm:$0xf]
      %v906 = vld [vmem:[%s283 + $0xc] sm:$0x7]
      %v907 = vld [vmem:[#allocation2] sm:$0xff]
      %v908 = vld [vmem:[#allocation2 + $0x8] sm:$0xff]
      %v909 = vld [vmem:[#allocation2 + $0x10] sm:$0xff]
      %s910 = scalar_lea.vmem %s287, 256
      %v911 = vld [vmem:[%s910] sm:$0xf]
      %v912 = vld [vmem:[%s910 + $0x4] sm:$0xf]
      %v913 = vld [vmem:[%s910 + $0x8] sm:$0xf]
      %v914 = vld [vmem:[%s910 + $0xc] sm:$0xf]
      %v915 = vld [vmem:[%s910 + $0x10] sm:$0xf]
      %v916 = vld [vmem:[%s910 + $0x14] sm:$0xf]
      %v917 = vld [vmem:[%s910 + $0x18] sm:$0xf]
      %v918 = vld [vmem:[%s910 + $0x1c] sm:$0xf]
      %v919 = vld [vmem:[%s910 + $0x20] sm:$0xf]
      %v920 = vld [vmem:[%s910 + $0x24] sm:$0xf]
      %v921 = vld [vmem:[%s910 + $0x28] sm:$0xf]
      %v922 = vld [vmem:[%s910 + $0x2c] sm:$0xf]
      %v923 = vld [vmem:[%s910 + $0x30] sm:$0xf]
      %v924 = vld [vmem:[%s910 + $0x34] sm:$0xf]
      %v925 = vld [vmem:[%s910 + $0x38] sm:$0xf]
      %v926 = vld [vmem:[%s910 + $0x3c] sm:$0xf]
      %v931 = vunpack.c.l.b16 %v903
      %v932 = vunpack.c.l.b16 %v904
      %v933 = vunpack.c.l.b16 %v905
      %v934 = vunpack.c.l.b16 %v906
      %v935 = vpack.c.b16 %v932, %v931
      %v936 = vpack.c.b16 %v934, %v933
      %vm937 = vcmask 1044480
      %v938 = vrot.slane %v935, 3
      %v939 = vrot.slane %v936, 3
      %v940 = vsel %vm937, %v938, %v939
      %v959 = vunpack.c.l.b16 %v911
      %v960 = vunpack.c.l.b16 %v912
      %v961 = vunpack.c.l.b16 %v913
      %v962 = vunpack.c.l.b16 %v914
      %v963 = vunpack.c.l.b16 %v915
      %v964 = vunpack.c.l.b16 %v916
      %v965 = vunpack.c.l.b16 %v917
      %v966 = vunpack.c.l.b16 %v918
      %v967 = vunpack.c.l.b16 %v919
      %v968 = vunpack.c.l.b16 %v920
      %v969 = vunpack.c.l.b16 %v921
      %v970 = vunpack.c.l.b16 %v922
      %v971 = vunpack.c.l.b16 %v923
      %v972 = vunpack.c.l.b16 %v924
      %v973 = vunpack.c.l.b16 %v925
      %v974 = vunpack.c.l.b16 %v926
      %v975 = vpack.c.b16 %v960, %v959
      %v976 = vpack.c.b16 %v962, %v961
      %v977 = vpack.c.b16 %v964, %v963
      %v978 = vpack.c.b16 %v966, %v965
      %v979 = vpack.c.b16 %v968, %v967
      %v980 = vpack.c.b16 %v970, %v969
      %v981 = vpack.c.b16 %v972, %v971
      %v982 = vpack.c.b16 %v974, %v973
      %991 = vmatprep.subr.bf16.mxu0 0
      %992 = vmatpush1.bf16.msra.mxu0 %v975
      %993 = vmatprep.subr.bf16.mxu0 0
      %994 = vmatpush1.bf16.msra.mxu0 %v976
      %995 = vmatprep.subr.bf16.mxu0 0
      %996 = vmatpush1.bf16.msra.mxu0 %v977
      %997 = vmatprep.subr.bf16.mxu0 0
      %998 = vmatpush1.bf16.msra.mxu0 %v978
      %999 = vmatprep.subr.bf16.mxu0 0
      %1000 = vmatpush1.bf16.msra.mxu0 %v979
      %1001 = vmatprep.subr.bf16.mxu0 0
      %1002 = vmatpush1.bf16.msra.mxu0 %v980
      %1003 = vmatprep.subr.bf16.mxu0 0
      %1004 = vmatpush1.bf16.msra.mxu0 %v981
      %1005 = vmatprep.subr.bf16.mxu0 0
      %1006 = vmatpush1.bf16.msra.mxu0 %v982
      %1007 = vmatprep.subr.bf16.mxu0 0
      %1008 = vmatpush1.bf16.msra.mxu0 0
      %1009 = vmatprep.subr.bf16.mxu0 0
      %1010 = vmatpush1.bf16.msra.mxu0 0
      %1011 = vmatprep.subr.bf16.mxu0 0
      %1012 = vmatpush1.bf16.msra.mxu0 0
      %1013 = vmatprep.subr.bf16.mxu0 0
      %1014 = vmatpush1.bf16.msra.mxu0 0
      %1015 = vmatprep.subr.bf16.mxu0 0
      %1016 = vmatpush1.bf16.msra.mxu0 0
      %1017 = vmatprep.subr.bf16.mxu0 0
      %1018 = vmatpush1.bf16.msra.mxu0 0
      %1019 = vmatprep.subr.bf16.mxu0 0
      %1020 = vmatpush1.bf16.msra.mxu0 0
      %1021 = vmatprep.subr.bf16.mxu0 0
      %1022 = vmatpush1.bf16.msra.mxu0 0
      %1023 = vmatprep.mubr.bf16.mxu0 0
      %1024 = vmatmul.mubr.bf16.gmra.mrb[0].mxu0 %v940
      %v1025 = vpop.f32.mrb[0].mxu0
      %v1026 = vadd.f32 0.0, %v1025
      %v1027 = vpop.f32.mrb[0].mxu0
      %v1028 = vpop.f32.mrb[0].mxu0
      %v1029 = vadd.f32 0.0, %v1028
      %v1030 = vpop.f32.mrb[0].mxu0
      %1031 = vmatprep.mubr.bf16.mxu0 0
      %1032 = vmatmul.mubr.bf16.gmra.mrb[0].mxu0 %v939
      %v1033 = vpop.f32.mrb[0].mxu0
      %v1034 = vadd.f32 0.0, %v1033
      %v1035 = vpop.f32.mrb[0].mxu0
      %v1036 = vpop.f32.mrb[0].mxu0
      %v1037 = vpop.f32.mrb[0].mxu0
      %1038 = vdwg.mxu0
      %v1039 = vadd.f32 %v907, %v1026
      %v1040 = vadd.f32 %v908, %v1029
      %v1041 = vadd.f32 %v909, %v1034
      %1042 = vst [vmem:[#allocation2] sm:$0xff] %v1039
      %1043 = vst [vmem:[#allocation2 + $0x8] sm:$0xff] %v1040
      %1044 = vst [vmem:[#allocation2 + $0x10] sm:$0xff] %v1041
      %v1045 = vld [vmem:[%s283] sm:$0x8]
      %v1046 = vld [vmem:[%s283 + $0x4] sm:$0xf]
      %v1047 = vld [vmem:[%s283 + $0x8] sm:$0xf]
      %v1048 = vld [vmem:[%s283 + $0xc] sm:$0xf]
      %v1049 = vld [vmem:[#allocation2] sm:$0xff]
      %v1050 = vld [vmem:[#allocation2 + $0x8] sm:$0xff]
      %v1051 = vld [vmem:[#allocation2 + $0x10] sm:$0xff]
      %s1052 = scalar_lea.vmem %s287, 320
      %v1053 = vld [vmem:[%s1052] sm:$0xf]
      %v1054 = vld [vmem:[%s1052 + $0x4] sm:$0xf]
      %v1055 = vld [vmem:[%s1052 + $0x8] sm:$0xf]
      %v1056 = vld [vmem:[%s1052 + $0xc] sm:$0xf]
      %v1057 = vld [vmem:[%s1052 + $0x10] sm:$0xf]
      %v1058 = vld [vmem:[%s1052 + $0x14] sm:$0xf]
      %v1059 = vld [vmem:[%s1052 + $0x18] sm:$0xf]
      %v1060 = vld [vmem:[%s1052 + $0x1c] sm:$0xf]
      %v1061 = vld [vmem:[%s1052 + $0x20] sm:$0xf]
      %v1062 = vld [vmem:[%s1052 + $0x24] sm:$0xf]
      %v1063 = vld [vmem:[%s1052 + $0x28] sm:$0xf]
      %v1064 = vld [vmem:[%s1052 + $0x2c] sm:$0xf]
      %v1065 = vld [vmem:[%s1052 + $0x30] sm:$0xf]
      %v1066 = vld [vmem:[%s1052 + $0x34] sm:$0xf]
      %v1067 = vld [vmem:[%s1052 + $0x38] sm:$0xf]
      %v1068 = vld [vmem:[%s1052 + $0x3c] sm:$0xf]
      %v1073 = vunpack.c.l.b16 %v1045
      %v1074 = vunpack.c.l.b16 %v1046
      %v1075 = vunpack.c.l.b16 %v1047
      %v1076 = vunpack.c.l.b16 %v1048
      %v1077 = vpack.c.b16 %v1074, %v1073
      %v1078 = vpack.c.b16 %v1076, %v1075
      %vm1079 = vsmask.f32 4352
      %v1081 = vshrl.u32 %v1077, 16
      %v1083 = vrot.slane %v1081, 3
      %v1084 = vshll.u32 %v1077, 16
      %v1086 = vrot.slane %v1084, 4
      %v1087 = vor.u32 %v1083, %v1086
      %v1089 = vshrl.u32 %v1078, 16
      %v1091 = vrot.slane %v1089, 3
      %v1092 = vshll.u32 %v1078, 16
      %v1094 = vrot.slane %v1092, 4
      %v1095 = vor.u32 %v1091, %v1094
      %v1096 = vsel %vm1079, %v1087, %v1095
      %v1115 = vunpack.c.l.b16 %v1053
      %v1116 = vunpack.c.l.b16 %v1054
      %v1117 = vunpack.c.l.b16 %v1055
      %v1118 = vunpack.c.l.b16 %v1056
      %v1119 = vunpack.c.l.b16 %v1057
      %v1120 = vunpack.c.l.b16 %v1058
      %v1121 = vunpack.c.l.b16 %v1059
      %v1122 = vunpack.c.l.b16 %v1060
      %v1123 = vunpack.c.l.b16 %v1061
      %v1124 = vunpack.c.l.b16 %v1062
      %v1125 = vunpack.c.l.b16 %v1063
      %v1126 = vunpack.c.l.b16 %v1064
      %v1127 = vunpack.c.l.b16 %v1065
      %v1128 = vunpack.c.l.b16 %v1066
      %v1129 = vunpack.c.l.b16 %v1067
      %v1130 = vunpack.c.l.b16 %v1068
      %v1131 = vpack.c.b16 %v1116, %v1115
      %v1132 = vpack.c.b16 %v1118, %v1117
      %v1133 = vpack.c.b16 %v1120, %v1119
      %v1134 = vpack.c.b16 %v1122, %v1121
      %v1135 = vpack.c.b16 %v1124, %v1123
      %v1136 = vpack.c.b16 %v1126, %v1125
      %v1137 = vpack.c.b16 %v1128, %v1127
      %v1138 = vpack.c.b16 %v1130, %v1129
      %1147 = vmatprep.subr.bf16.mxu0 0
      %1148 = vmatpush1.bf16.msra.mxu0 %v1131
      %1149 = vmatprep.subr.bf16.mxu0 0
      %1150 = vmatpush1.bf16.msra.mxu0 %v1132
      %1151 = vmatprep.subr.bf16.mxu0 0
      %1152 = vmatpush1.bf16.msra.mxu0 %v1133
      %1153 = vmatprep.subr.bf16.mxu0 0
      %1154 = vmatpush1.bf16.msra.mxu0 %v1134
      %1155 = vmatprep.subr.bf16.mxu0 0
      %1156 = vmatpush1.bf16.msra.mxu0 %v1135
      %1157 = vmatprep.subr.bf16.mxu0 0
      %1158 = vmatpush1.bf16.msra.mxu0 %v1136
      %1159 = vmatprep.subr.bf16.mxu0 0
      %1160 = vmatpush1.bf16.msra.mxu0 %v1137
      %1161 = vmatprep.subr.bf16.mxu0 0
      %1162 = vmatpush1.bf16.msra.mxu0 %v1138
      %1163 = vmatprep.subr.bf16.mxu0 0
      %1164 = vmatpush1.bf16.msra.mxu0 0
      %1165 = vmatprep.subr.bf16.mxu0 0
      %1166 = vmatpush1.bf16.msra.mxu0 0
      %1167 = vmatprep.subr.bf16.mxu0 0
      %1168 = vmatpush1.bf16.msra.mxu0 0
      %1169 = vmatprep.subr.bf16.mxu0 0
      %1170 = vmatpush1.bf16.msra.mxu0 0
      %1171 = vmatprep.subr.bf16.mxu0 0
      %1172 = vmatpush1.bf16.msra.mxu0 0
      %1173 = vmatprep.subr.bf16.mxu0 0
      %1174 = vmatpush1.bf16.msra.mxu0 0
      %1175 = vmatprep.subr.bf16.mxu0 0
      %1176 = vmatpush1.bf16.msra.mxu0 0
      %1177 = vmatprep.subr.bf16.mxu0 0
      %1178 = vmatpush1.bf16.msra.mxu0 0
      %1179 = vmatprep.mubr.bf16.mxu0 0
      %1180 = vmatmul.mubr.bf16.gmra.mrb[0].mxu0 %v1096
      %v1181 = vpop.f32.mrb[0].mxu0
      %v1182 = vadd.f32 0.0, %v1181
      %v1183 = vpop.f32.mrb[0].mxu0
      %v1184 = vpop.f32.mrb[0].mxu0
      %v1185 = vadd.f32 0.0, %v1184
      %v1186 = vpop.f32.mrb[0].mxu0
      %1187 = vmatprep.mubr.bf16.mxu0 0
      %1188 = vmatmul.mubr.bf16.gmra.mrb[0].mxu0 %v1095
      %v1189 = vpop.f32.mrb[0].mxu0
      %v1190 = vadd.f32 0.0, %v1189
      %v1191 = vpop.f32.mrb[0].mxu0
      %v1192 = vpop.f32.mrb[0].mxu0
      %v1193 = vpop.f32.mrb[0].mxu0
      %1194 = vdwg.mxu0
      %v1195 = vadd.f32 %v1049, %v1182
      %v1196 = vadd.f32 %v1050, %v1185
      %v1197 = vadd.f32 %v1051, %v1190
      %1198 = vst [vmem:[#allocation2] sm:$0xff] %v1195
      %1199 = vst [vmem:[#allocation2 + $0x8] sm:$0xff] %v1196
      %1200 = vst [vmem:[#allocation2 + $0x10] sm:$0xff] %v1197
      %v1201 = vld [vmem:[%s283 + $0x4] sm:$0xf]
      %v1202 = vld [vmem:[%s283 + $0x8] sm:$0xf]
      %v1203 = vld [vmem:[%s283 + $0xc] sm:$0xf]
      %v1204 = vld [vmem:[#allocation2] sm:$0xff]
      %v1205 = vld [vmem:[#allocation2 + $0x8] sm:$0xff]
      %v1206 = vld [vmem:[#allocation2 + $0x10] sm:$0xff]
      %s1207 = scalar_lea.vmem %s287, 384
      %v1208 = vld [vmem:[%s1207] sm:$0xf]
      %v1209 = vld [vmem:[%s1207 + $0x4] sm:$0xf]
      %v1210 = vld [vmem:[%s1207 + $0x8] sm:$0xf]
      %v1211 = vld [vmem:[%s1207 + $0xc] sm:$0xf]
      %v1212 = vld [vmem:[%s1207 + $0x10] sm:$0xf]
      %v1213 = vld [vmem:[%s1207 + $0x14] sm:$0xf]
      %v1214 = vld [vmem:[%s1207 + $0x18] sm:$0xf]
      %v1215 = vld [vmem:[%s1207 + $0x1c] sm:$0xf]
      %v1216 = vld [vmem:[%s1207 + $0x20] sm:$0xf]
      %v1217 = vld [vmem:[%s1207 + $0x24] sm:$0xf]
      %v1218 = vld [vmem:[%s1207 + $0x28] sm:$0xf]
      %v1219 = vld [vmem:[%s1207 + $0x2c] sm:$0xf]
      %v1220 = vld [vmem:[%s1207 + $0x30] sm:$0xf]
      %v1221 = vld [vmem:[%s1207 + $0x34] sm:$0xf]
      %v1222 = vld [vmem:[%s1207 + $0x38] sm:$0xf]
      %v1223 = vld [vmem:[%s1207 + $0x3c] sm:$0xf]
      %v1227 = vunpack.c.l.b16 %v1201
      %v1228 = vunpack.c.l.b16 %v1202
      %v1229 = vunpack.c.l.b16 %v1203
      %v1230 = vpack.c.b16 %v1228, %v1227
      %v1231 = vpack.c.b16 %v1229, %v1229
      %v1250 = vunpack.c.l.b16 %v1208
      %v1251 = vunpack.c.l.b16 %v1209
      %v1252 = vunpack.c.l.b16 %v1210
      %v1253 = vunpack.c.l.b16 %v1211
      %v1254 = vunpack.c.l.b16 %v1212
      %v1255 = vunpack.c.l.b16 %v1213
      %v1256 = vunpack.c.l.b16 %v1214
      %v1257 = vunpack.c.l.b16 %v1215
      %v1258 = vunpack.c.l.b16 %v1216
      %v1259 = vunpack.c.l.b16 %v1217
      %v1260 = vunpack.c.l.b16 %v1218
      %v1261 = vunpack.c.l.b16 %v1219
      %v1262 = vunpack.c.l.b16 %v1220
      %v1263 = vunpack.c.l.b16 %v1221
      %v1264 = vunpack.c.l.b16 %v1222
      %v1265 = vunpack.c.l.b16 %v1223
      %v1266 = vpack.c.b16 %v1251, %v1250
      %v1267 = vpack.c.b16 %v1253, %v1252
      %v1268 = vpack.c.b16 %v1255, %v1254
      %v1269 = vpack.c.b16 %v1257, %v1256
      %v1270 = vpack.c.b16 %v1259, %v1258
      %v1271 = vpack.c.b16 %v1261, %v1260
      %v1272 = vpack.c.b16 %v1263, %v1262
      %v1273 = vpack.c.b16 %v1265, %v1264
      %1282 = vmatprep.subr.bf16.mxu0 0
      %1283 = vmatpush1.bf16.msra.mxu0 %v1266
      %1284 = vmatprep.subr.bf16.mxu0 0
      %1285 = vmatpush1.bf16.msra.mxu0 %v1267
      %1286 = vmatprep.subr.bf16.mxu0 0
      %1287 = vmatpush1.bf16.msra.mxu0 %v1268
      %1288 = vmatprep.subr.bf16.mxu0 0
      %1289 = vmatpush1.bf16.msra.mxu0 %v1269
      %1290 = vmatprep.subr.bf16.mxu0 0
      %1291 = vmatpush1.bf16.msra.mxu0 %v1270
      %1292 = vmatprep.subr.bf16.mxu0 0
      %1293 = vmatpush1.bf16.msra.mxu0 %v1271
      %1294 = vmatprep.subr.bf16.mxu0 0
      %1295 = vmatpush1.bf16.msra.mxu0 %v1272
      %1296 = vmatprep.subr.bf16.mxu0 0
      %1297 = vmatpush1.bf16.msra.mxu0 %v1273
      %1298 = vmatprep.subr.bf16.mxu0 0
      %1299 = vmatpush1.bf16.msra.mxu0 0
      %1300 = vmatprep.subr.bf16.mxu0 0
      %1301 = vmatpush1.bf16.msra.mxu0 0
      %1302 = vmatprep.subr.bf16.mxu0 0
      %1303 = vmatpush1.bf16.msra.mxu0 0
      %1304 = vmatprep.subr.bf16.mxu0 0
      %1305 = vmatpush1.bf16.msra.mxu0 0
      %1306 = vmatprep.subr.bf16.mxu0 0
      %1307 = vmatpush1.bf16.msra.mxu0 0
      %1308 = vmatprep.subr.bf16.mxu0 0
      %1309 = vmatpush1.bf16.msra.mxu0 0
      %1310 = vmatprep.subr.bf16.mxu0 0
      %1311 = vmatpush1.bf16.msra.mxu0 0
      %1312 = vmatprep.subr.bf16.mxu0 0
      %1313 = vmatpush1.bf16.msra.mxu0 0
      %1314 = vmatprep.mubr.bf16.mxu0 0
      %1315 = vmatmul.mubr.bf16.gmra.mrb[0].mxu0 %v1230
      %v1316 = vpop.f32.mrb[0].mxu0
      %v1317 = vadd.f32 0.0, %v1316
      %v1318 = vpop.f32.mrb[0].mxu0
      %v1319 = vpop.f32.mrb[0].mxu0
      %v1320 = vadd.f32 0.0, %v1319
      %v1321 = vpop.f32.mrb[0].mxu0
      %1322 = vmatprep.mubr.bf16.mxu0 0
      %1323 = vmatmul.mubr.bf16.gmra.mrb[0].mxu0 %v1231
      %v1324 = vpop.f32.mrb[0].mxu0
      %v1325 = vadd.f32 0.0, %v1324
      %v1326 = vpop.f32.mrb[0].mxu0
      %v1327 = vpop.f32.mrb[0].mxu0
      %v1328 = vpop.f32.mrb[0].mxu0
      %1329 = vdwg.mxu0
      %v1330 = vadd.f32 %v1204, %v1317
      %v1331 = vadd.f32 %v1205, %v1320
      %v1332 = vadd.f32 %v1206, %v1325
      %1333 = vst [vmem:[#allocation2] sm:$0xff] %v1330
      %1334 = vst [vmem:[#allocation2 + $0x8] sm:$0xff] %v1331
      %1335 = vst [vmem:[#allocation2 + $0x10] sm:$0xff] %v1332
      %v1336 = vld [vmem:[%s283 + $0x4] sm:$0xf]
      %v1337 = vld [vmem:[%s283 + $0x8] sm:$0xf]
      %v1338 = vld [vmem:[%s283 + $0xc] sm:$0xf]
      %v1339 = vld [vmem:[%s283 + $0x10] sm:$0x1]
      %v1340 = vld [vmem:[#allocation2] sm:$0xff]
      %v1341 = vld [vmem:[#allocation2 + $0x8] sm:$0xff]
      %v1342 = vld [vmem:[#allocation2 + $0x10] sm:$0xff]
      %s1343 = scalar_lea.vmem %s287, 448
      %v1344 = vld [vmem:[%s1343] sm:$0xf]
      %v1345 = vld [vmem:[%s1343 + $0x4] sm:$0xf]
      %v1346 = vld [vmem:[%s1343 + $0x8] sm:$0xf]
      %v1347 = vld [vmem:[%s1343 + $0xc] sm:$0xf]
      %v1348 = vld [vmem:[%s1343 + $0x10] sm:$0xf]
      %v1349 = vld [vmem:[%s1343 + $0x14] sm:$0xf]
      %v1350 = vld [vmem:[%s1343 + $0x18] sm:$0xf]
      %v1351 = vld [vmem:[%s1343 + $0x1c] sm:$0xf]
      %v1352 = vld [vmem:[%s1343 + $0x20] sm:$0xf]
      %v1353 = vld [vmem:[%s1343 + $0x24] sm:$0xf]
      %v1354 = vld [vmem:[%s1343 + $0x28] sm:$0xf]
      %v1355 = vld [vmem:[%s1343 + $0x2c] sm:$0xf]
      %v1356 = vld [vmem:[%s1343 + $0x30] sm:$0xf]
      %v1357 = vld [vmem:[%s1343 + $0x34] sm:$0xf]
      %v1358 = vld [vmem:[%s1343 + $0x38] sm:$0xf]
      %v1359 = vld [vmem:[%s1343 + $0x3c] sm:$0xf]
      %v1364 = vunpack.c.l.b16 %v1336
      %v1365 = vunpack.c.l.b16 %v1337
      %v1366 = vunpack.c.l.b16 %v1338
      %v1367 = vunpack.c.l.b16 %v1339
      %v1368 = vpack.c.b16 %v1365, %v1364
      %v1369 = vpack.c.b16 %v1367, %v1366
      %v1371 = vshrl.u32 %v1368, 16
      %v1373 = vshll.u32 %v1368, 16
      %v1375 = vrot.slane %v1373, 1
      %v1376 = vor.u32 %v1371, %v1375
      %v1378 = vshll.u32 %v1369, 16
      %v1380 = vrot.slane %v1378, 1
      %v1381 = vsel %vm485, %v1376, %v1380
      %v1382 = vshrl.u32 %v1369, 16
      %v1384 = vor.u32 %v1382, %v1380
      %v1403 = vunpack.c.l.b16 %v1344
      %v1404 = vunpack.c.l.b16 %v1345
      %v1405 = vunpack.c.l.b16 %v1346
      %v1406 = vunpack.c.l.b16 %v1347
      %v1407 = vunpack.c.l.b16 %v1348
      %v1408 = vunpack.c.l.b16 %v1349
      %v1409 = vunpack.c.l.b16 %v1350
      %v1410 = vunpack.c.l.b16 %v1351
      %v1411 = vunpack.c.l.b16 %v1352
      %v1412 = vunpack.c.l.b16 %v1353
      %v1413 = vunpack.c.l.b16 %v1354
      %v1414 = vunpack.c.l.b16 %v1355
      %v1415 = vunpack.c.l.b16 %v1356
      %v1416 = vunpack.c.l.b16 %v1357
      %v1417 = vunpack.c.l.b16 %v1358
      %v1418 = vunpack.c.l.b16 %v1359
      %v1419 = vpack.c.b16 %v1404, %v1403
      %v1420 = vpack.c.b16 %v1406, %v1405
      %v1421 = vpack.c.b16 %v1408, %v1407
      %v1422 = vpack.c.b16 %v1410, %v1409
      %v1423 = vpack.c.b16 %v1412, %v1411
      %v1424 = vpack.c.b16 %v1414, %v1413
      %v1425 = vpack.c.b16 %v1416, %v1415
      %v1426 = vpack.c.b16 %v1418, %v1417
      %1435 = vmatprep.subr.bf16.mxu0 0
      %1436 = vmatpush1.bf16.msra.mxu0 %v1419
      %1437 = vmatprep.subr.bf16.mxu0 0
      %1438 = vmatpush1.bf16.msra.mxu0 %v1420
      %1439 = vmatprep.subr.bf16.mxu0 0
      %1440 = vmatpush1.bf16.msra.mxu0 %v1421
      %1441 = vmatprep.subr.bf16.mxu0 0
      %1442 = vmatpush1.bf16.msra.mxu0 %v1422
      %1443 = vmatprep.subr.bf16.mxu0 0
      %1444 = vmatpush1.bf16.msra.mxu0 %v1423
      %1445 = vmatprep.subr.bf16.mxu0 0
      %1446 = vmatpush1.bf16.msra.mxu0 %v1424
      %1447 = vmatprep.subr.bf16.mxu0 0
      %1448 = vmatpush1.bf16.msra.mxu0 %v1425
      %1449 = vmatprep.subr.bf16.mxu0 0
      %1450 = vmatpush1.bf16.msra.mxu0 %v1426
      %1451 = vmatprep.subr.bf16.mxu0 0
      %1452 = vmatpush1.bf16.msra.mxu0 0
      %1453 = vmatprep.subr.bf16.mxu0 0
      %1454 = vmatpush1.bf16.msra.mxu0 0
      %1455 = vmatprep.subr.bf16.mxu0 0
      %1456 = vmatpush1.bf16.msra.mxu0 0
      %1457 = vmatprep.subr.bf16.mxu0 0
      %1458 = vmatpush1.bf16.msra.mxu0 0
      %1459 = vmatprep.subr.bf16.mxu0 0
      %1460 = vmatpush1.bf16.msra.mxu0 0
      %1461 = vmatprep.subr.bf16.mxu0 0
      %1462 = vmatpush1.bf16.msra.mxu0 0
      %1463 = vmatprep.subr.bf16.mxu0 0
      %1464 = vmatpush1.bf16.msra.mxu0 0
      %1465 = vmatprep.subr.bf16.mxu0 0
      %1466 = vmatpush1.bf16.msra.mxu0 0
      %1467 = vmatprep.mubr.bf16.mxu0 0
      %1468 = vmatmul.mubr.bf16.gmra.mrb[0].mxu0 %v1381
      %v1469 = vpop.f32.mrb[0].mxu0
      %v1470 = vadd.f32 0.0, %v1469
      %v1471 = vpop.f32.mrb[0].mxu0
      %v1472 = vpop.f32.mrb[0].mxu0
      %v1473 = vadd.f32 0.0, %v1472
      %v1474 = vpop.f32.mrb[0].mxu0
      %1475 = vmatprep.mubr.bf16.mxu0 0
      %1476 = vmatmul.mubr.bf16.gmra.mrb[0].mxu0 %v1384
      %v1477 = vpop.f32.mrb[0].mxu0
      %v1478 = vadd.f32 0.0, %v1477
      %v1479 = vpop.f32.mrb[0].mxu0
      %v1480 = vpop.f32.mrb[0].mxu0
      %v1481 = vpop.f32.mrb[0].mxu0
      %1482 = vdwg.mxu0
      %v1483 = vadd.f32 %v1340, %v1470
      %v1484 = vadd.f32 %v1341, %v1473
      %v1485 = vadd.f32 %v1342, %v1478
      %1486 = vst [vmem:[#allocation2] sm:$0xff] %v1483
      %1487 = vst [vmem:[#allocation2 + $0x8] sm:$0xff] %v1484
      %1488 = vst [vmem:[#allocation2 + $0x10] sm:$0xff] %v1485
      %v1489 = vld [vmem:[%s283 + $0x4] sm:$0xc]
      %v1490 = vld [vmem:[%s283 + $0x8] sm:$0xf]
      %v1491 = vld [vmem:[%s283 + $0xc] sm:$0xf]
      %v1492 = vld [vmem:[%s283 + $0x10] sm:$0x3]
      %v1493 = vld [vmem:[#allocation2] sm:$0xff]
      %v1494 = vld [vmem:[#allocation2 + $0x8] sm:$0xff]
      %v1495 = vld [vmem:[#allocation2 + $0x10] sm:$0xff]
      %s1496 = scalar_lea.vmem %s287, 512
      %v1497 = vld [vmem:[%s1496] sm:$0xf]
      %v1498 = vld [vmem:[%s1496 + $0x4] sm:$0xf]
      %v1499 = vld [vmem:[%s1496 + $0x8] sm:$0xf]
      %v1500 = vld [vmem:[%s1496 + $0xc] sm:$0xf]
      %v1501 = vld [vmem:[%s1496 + $0x10] sm:$0xf]
      %v1502 = vld [vmem:[%s1496 + $0x14] sm:$0xf]
      %v1503 = vld [vmem:[%s1496 + $0x18] sm:$0xf]
      %v1504 = vld [vmem:[%s1496 + $0x1c] sm:$0xf]
      %v1505 = vld [vmem:[%s1496 + $0x20] sm:$0xf]
      %v1506 = vld [vmem:[%s1496 + $0x24] sm:$0xf]
      %v1507 = vld [vmem:[%s1496 + $0x28] sm:$0xf]
      %v1508 = vld [vmem:[%s1496 + $0x2c] sm:$0xf]
      %v1509 = vld [vmem:[%s1496 + $0x30] sm:$0xf]
      %v1510 = vld [vmem:[%s1496 + $0x34] sm:$0xf]
      %v1511 = vld [vmem:[%s1496 + $0x38] sm:$0xf]
      %v1512 = vld [vmem:[%s1496 + $0x3c] sm:$0xf]
      %v1517 = vunpack.c.l.b16 %v1489
      %v1518 = vunpack.c.l.b16 %v1490
      %v1519 = vunpack.c.l.b16 %v1491
      %v1520 = vunpack.c.l.b16 %v1492
      %v1521 = vpack.c.b16 %v1518, %v1517
      %v1522 = vpack.c.b16 %v1520, %v1519
      %vm1523 = vcmask 1045504
      %v1524 = vrot.slane %v1521, 2
      %v1525 = vrot.slane %v1522, 2
      %v1526 = vsel %vm1523, %v1524, %v1525
      %v1545 = vunpack.c.l.b16 %v1497
      %v1546 = vunpack.c.l.b16 %v1498
      %v1547 = vunpack.c.l.b16 %v1499
      %v1548 = vunpack.c.l.b16 %v1500
      %v1549 = vunpack.c.l.b16 %v1501
      %v1550 = vunpack.c.l.b16 %v1502
      %v1551 = vunpack.c.l.b16 %v1503
      %v1552 = vunpack.c.l.b16 %v1504
      %v1553 = vunpack.c.l.b16 %v1505
      %v1554 = vunpack.c.l.b16 %v1506
      %v1555 = vunpack.c.l.b16 %v1507
      %v1556 = vunpack.c.l.b16 %v1508
      %v1557 = vunpack.c.l.b16 %v1509
      %v1558 = vunpack.c.l.b16 %v1510
      %v1559 = vunpack.c.l.b16 %v1511
      %v1560 = vunpack.c.l.b16 %v1512
      %v1561 = vpack.c.b16 %v1546, %v1545
      %v1562 = vpack.c.b16 %v1548, %v1547
      %v1563 = vpack.c.b16 %v1550, %v1549
      %v1564 = vpack.c.b16 %v1552, %v1551
      %v1565 = vpack.c.b16 %v1554, %v1553
      %v1566 = vpack.c.b16 %v1556, %v1555
      %v1567 = vpack.c.b16 %v1558, %v1557
      %v1568 = vpack.c.b16 %v1560, %v1559
      %1577 = vmatprep.subr.bf16.mxu0 0
      %1578 = vmatpush1.bf16.msra.mxu0 %v1561
      %1579 = vmatprep.subr.bf16.mxu0 0
      %1580 = vmatpush1.bf16.msra.mxu0 %v1562
      %1581 = vmatprep.subr.bf16.mxu0 0
      %1582 = vmatpush1.bf16.msra.mxu0 %v1563
      %1583 = vmatprep.subr.bf16.mxu0 0
      %1584 = vmatpush1.bf16.msra.mxu0 %v1564
      %1585 = vmatprep.subr.bf16.mxu0 0
      %1586 = vmatpush1.bf16.msra.mxu0 %v1565
      %1587 = vmatprep.subr.bf16.mxu0 0
      %1588 = vmatpush1.bf16.msra.mxu0 %v1566
      %1589 = vmatprep.subr.bf16.mxu0 0
      %1590 = vmatpush1.bf16.msra.mxu0 %v1567
      %1591 = vmatprep.subr.bf16.mxu0 0
      %1592 = vmatpush1.bf16.msra.mxu0 %v1568
      %1593 = vmatprep.subr.bf16.mxu0 0
      %1594 = vmatpush1.bf16.msra.mxu0 0
      %1595 = vmatprep.subr.bf16.mxu0 0
      %1596 = vmatpush1.bf16.msra.mxu0 0
      %1597 = vmatprep.subr.bf16.mxu0 0
      %1598 = vmatpush1.bf16.msra.mxu0 0
      %1599 = vmatprep.subr.bf16.mxu0 0
      %1600 = vmatpush1.bf16.msra.mxu0 0
      %1601 = vmatprep.subr.bf16.mxu0 0
      %1602 = vmatpush1.bf16.msra.mxu0 0
      %1603 = vmatprep.subr.bf16.mxu0 0
      %1604 = vmatpush1.bf16.msra.mxu0 0
      %1605 = vmatprep.subr.bf16.mxu0 0
      %1606 = vmatpush1.bf16.msra.mxu0 0
      %1607 = vmatprep.subr.bf16.mxu0 0
      %1608 = vmatpush1.bf16.msra.mxu0 0
      %1609 = vmatprep.mubr.bf16.mxu0 0
      %1610 = vmatmul.mubr.bf16.gmra.mrb[0].mxu0 %v1526
      %v1611 = vpop.f32.mrb[0].mxu0
      %v1612 = vadd.f32 0.0, %v1611
      %v1613 = vpop.f32.mrb[0].mxu0
      %v1614 = vpop.f32.mrb[0].mxu0
      %v1615 = vadd.f32 0.0, %v1614
      %v1616 = vpop.f32.mrb[0].mxu0
      %1617 = vmatprep.mubr.bf16.mxu0 0
      %1618 = vmatmul.mubr.bf16.gmra.mrb[0].mxu0 %v1525
      %v1619 = vpop.f32.mrb[0].mxu0
      %v1620 = vadd.f32 0.0, %v1619
      %v1621 = vpop.f32.mrb[0].mxu0
      %v1622 = vpop.f32.mrb[0].mxu0
      %v1623 = vpop.f32.mrb[0].mxu0
      %1624 = vdwg.mxu0
      %v1625 = vadd.f32 %v1493, %v1612
      %v1626 = vadd.f32 %v1494, %v1615
      %v1627 = vadd.f32 %v1495, %v1620
      %1628 = vst [vmem:[#allocation2] sm:$0xff] %v1625
      %1629 = vst [vmem:[#allocation2 + $0x8] sm:$0xff] %v1626
      %1630 = vst [vmem:[#allocation2 + $0x10] sm:$0xff] %v1627
      %v1631 = vld [vmem:[%s283 + $0x4] sm:$0xc]
      %v1632 = vld [vmem:[%s283 + $0x8] sm:$0xf]
      %v1633 = vld [vmem:[%s283 + $0xc] sm:$0xf]
      %v1634 = vld [vmem:[%s283 + $0x10] sm:$0x7]
      %v1635 = vld [vmem:[#allocation2] sm:$0xff]
      %v1636 = vld [vmem:[#allocation2 + $0x8] sm:$0xff]
      %v1637 = vld [vmem:[#allocation2 + $0x10] sm:$0xff]
      %s1638 = scalar_lea.vmem %s287, 576
      %v1639 = vld [vmem:[%s1638] sm:$0xf]
      %v1640 = vld [vmem:[%s1638 + $0x4] sm:$0xf]
      %v1641 = vld [vmem:[%s1638 + $0x8] sm:$0xf]
      %v1642 = vld [vmem:[%s1638 + $0xc] sm:$0xf]
      %v1643 = vld [vmem:[%s1638 + $0x10] sm:$0xf]
      %v1644 = vld [vmem:[%s1638 + $0x14] sm:$0xf]
      %v1645 = vld [vmem:[%s1638 + $0x18] sm:$0xf]
      %v1646 = vld [vmem:[%s1638 + $0x1c] sm:$0xf]
      %v1647 = vld [vmem:[%s1638 + $0x20] sm:$0xf]
      %v1648 = vld [vmem:[%s1638 + $0x24] sm:$0xf]
      %v1649 = vld [vmem:[%s1638 + $0x28] sm:$0xf]
      %v1650 = vld [vmem:[%s1638 + $0x2c] sm:$0xf]
      %v1651 = vld [vmem:[%s1638 + $0x30] sm:$0xf]
      %v1652 = vld [vmem:[%s1638 + $0x34] sm:$0xf]
      %v1653 = vld [vmem:[%s1638 + $0x38] sm:$0xf]
      %v1654 = vld [vmem:[%s1638 + $0x3c] sm:$0xf]
      %v1659 = vunpack.c.l.b16 %v1631
      %v1660 = vunpack.c.l.b16 %v1632
      %v1661 = vunpack.c.l.b16 %v1633
      %v1662 = vunpack.c.l.b16 %v1634
      %v1663 = vpack.c.b16 %v1660, %v1659
      %v1664 = vpack.c.b16 %v1662, %v1661
      %vm1665 = vsmask.f32 5376
      %v1667 = vshrl.u32 %v1663, 16
      %v1669 = vrot.slane %v1667, 2
      %v1670 = vshll.u32 %v1663, 16
      %v1672 = vrot.slane %v1670, 3
      %v1673 = vor.u32 %v1669, %v1672
      %v1675 = vshrl.u32 %v1664, 16
      %v1677 = vrot.slane %v1675, 2
      %v1678 = vshll.u32 %v1664, 16
      %v1680 = vrot.slane %v1678, 3
      %v1681 = vor.u32 %v1677, %v1680
      %v1682 = vsel %vm1665, %v1673, %v1681
      %v1701 = vunpack.c.l.b16 %v1639
      %v1702 = vunpack.c.l.b16 %v1640
      %v1703 = vunpack.c.l.b16 %v1641
      %v1704 = vunpack.c.l.b16 %v1642
      %v1705 = vunpack.c.l.b16 %v1643
      %v1706 = vunpack.c.l.b16 %v1644
      %v1707 = vunpack.c.l.b16 %v1645
      %v1708 = vunpack.c.l.b16 %v1646
      %v1709 = vunpack.c.l.b16 %v1647
      %v1710 = vunpack.c.l.b16 %v1648
      %v1711 = vunpack.c.l.b16 %v1649
      %v1712 = vunpack.c.l.b16 %v1650
      %v1713 = vunpack.c.l.b16 %v1651
      %v1714 = vunpack.c.l.b16 %v1652
      %v1715 = vunpack.c.l.b16 %v1653
      %v1716 = vunpack.c.l.b16 %v1654
      %v1717 = vpack.c.b16 %v1702, %v1701
      %v1718 = vpack.c.b16 %v1704, %v1703
      %v1719 = vpack.c.b16 %v1706, %v1705
      %v1720 = vpack.c.b16 %v1708, %v1707
      %v1721 = vpack.c.b16 %v1710, %v1709
      %v1722 = vpack.c.b16 %v1712, %v1711
      %v1723 = vpack.c.b16 %v1714, %v1713
      %v1724 = vpack.c.b16 %v1716, %v1715
      %1733 = vmatprep.subr.bf16.mxu0 0
      %1734 = vmatpush1.bf16.msra.mxu0 %v1717
      %1735 = vmatprep.subr.bf16.mxu0 0
      %1736 = vmatpush1.bf16.msra.mxu0 %v1718
      %1737 = vmatprep.subr.bf16.mxu0 0
      %1738 = vmatpush1.bf16.msra.mxu0 %v1719
      %1739 = vmatprep.subr.bf16.mxu0 0
      %1740 = vmatpush1.bf16.msra.mxu0 %v1720
      %1741 = vmatprep.subr.bf16.mxu0 0
      %1742 = vmatpush1.bf16.msra.mxu0 %v1721
      %1743 = vmatprep.subr.bf16.mxu0 0
      %1744 = vmatpush1.bf16.msra.mxu0 %v1722
      %1745 = vmatprep.subr.bf16.mxu0 0
      %1746 = vmatpush1.bf16.msra.mxu0 %v1723
      %1747 = vmatprep.subr.bf16.mxu0 0
      %1748 = vmatpush1.bf16.msra.mxu0 %v1724
      %1749 = vmatprep.subr.bf16.mxu0 0
      %1750 = vmatpush1.bf16.msra.mxu0 0
      %1751 = vmatprep.subr.bf16.mxu0 0
      %1752 = vmatpush1.bf16.msra.mxu0 0
      %1753 = vmatprep.subr.bf16.mxu0 0
      %1754 = vmatpush1.bf16.msra.mxu0 0
      %1755 = vmatprep.subr.bf16.mxu0 0
      %1756 = vmatpush1.bf16.msra.mxu0 0
      %1757 = vmatprep.subr.bf16.mxu0 0
      %1758 = vmatpush1.bf16.msra.mxu0 0
      %1759 = vmatprep.subr.bf16.mxu0 0
      %1760 = vmatpush1.bf16.msra.mxu0 0
      %1761 = vmatprep.subr.bf16.mxu0 0
      %1762 = vmatpush1.bf16.msra.mxu0 0
      %1763 = vmatprep.subr.bf16.mxu0 0
      %1764 = vmatpush1.bf16.msra.mxu0 0
      %1765 = vmatprep.mubr.bf16.mxu0 0
      %1766 = vmatmul.mubr.bf16.gmra.mrb[0].mxu0 %v1682
      %v1767 = vpop.f32.mrb[0].mxu0
      %v1768 = vadd.f32 0.0, %v1767
      %v1769 = vpop.f32.mrb[0].mxu0
      %v1770 = vpop.f32.mrb[0].mxu0
      %v1771 = vadd.f32 0.0, %v1770
      %v1772 = vpop.f32.mrb[0].mxu0
      %1773 = vmatprep.mubr.bf16.mxu0 0
      %1774 = vmatmul.mubr.bf16.gmra.mrb[0].mxu0 %v1681
      %v1775 = vpop.f32.mrb[0].mxu0
      %v1776 = vadd.f32 0.0, %v1775
      %v1777 = vpop.f32.mrb[0].mxu0
      %v1778 = vpop.f32.mrb[0].mxu0
      %v1779 = vpop.f32.mrb[0].mxu0
      %1780 = vdwg.mxu0
      %v1781 = vadd.f32 %v1635, %v1768
      %v1782 = vadd.f32 %v1636, %v1771
      %v1783 = vadd.f32 %v1637, %v1776
      %1784 = vst [vmem:[#allocation2] sm:$0xff] %v1781
      %1785 = vst [vmem:[#allocation2 + $0x8] sm:$0xff] %v1782
      %1786 = vst [vmem:[#allocation2 + $0x10] sm:$0xff] %v1783
      %v1787 = vld [vmem:[%s283 + $0x4] sm:$0x8]
      %v1788 = vld [vmem:[%s283 + $0x8] sm:$0xf]
      %v1789 = vld [vmem:[%s283 + $0xc] sm:$0xf]
      %v1790 = vld [vmem:[%s283 + $0x10] sm:$0x7]
      %v1791 = vld [vmem:[#allocation2] sm:$0xff]
      %v1792 = vld [vmem:[#allocation2 + $0x8] sm:$0xff]
      %v1793 = vld [vmem:[#allocation2 + $0x10] sm:$0xff]
      %s1794 = scalar_lea.vmem %s287, 640
      %v1795 = vld [vmem:[%s1794] sm:$0xf]
      %v1796 = vld [vmem:[%s1794 + $0x4] sm:$0xf]
      %v1797 = vld [vmem:[%s1794 + $0x8] sm:$0xf]
      %v1798 = vld [vmem:[%s1794 + $0xc] sm:$0xf]
      %v1799 = vld [vmem:[%s1794 + $0x10] sm:$0xf]
      %v1800 = vld [vmem:[%s1794 + $0x14] sm:$0xf]
      %v1801 = vld [vmem:[%s1794 + $0x18] sm:$0xf]
      %v1802 = vld [vmem:[%s1794 + $0x1c] sm:$0xf]
      %v1803 = vld [vmem:[%s1794 + $0x20] sm:$0xf]
      %v1804 = vld [vmem:[%s1794 + $0x24] sm:$0xf]
      %v1805 = vld [vmem:[%s1794 + $0x28] sm:$0xf]
      %v1806 = vld [vmem:[%s1794 + $0x2c] sm:$0xf]
      %v1807 = vld [vmem:[%s1794 + $0x30] sm:$0xf]
      %v1808 = vld [vmem:[%s1794 + $0x34] sm:$0xf]
      %v1809 = vld [vmem:[%s1794 + $0x38] sm:$0xf]
      %v1810 = vld [vmem:[%s1794 + $0x3c] sm:$0xf]
      %v1815 = vunpack.c.l.b16 %v1787
      %v1816 = vunpack.c.l.b16 %v1788
      %v1817 = vunpack.c.l.b16 %v1789
      %v1818 = vunpack.c.l.b16 %v1790
      %v1819 = vpack.c.b16 %v1816, %v1815
      %v1820 = vpack.c.b16 %v1818, %v1817
      %v1821 = vrot.slane %v1819, 3
      %v1822 = vrot.slane %v1820, 3
      %v1823 = vsel %vm937, %v1821, %v1822
      %v1842 = vunpack.c.l.b16 %v1795
      %v1843 = vunpack.c.l.b16 %v1796
      %v1844 = vunpack.c.l.b16 %v1797
      %v1845 = vunpack.c.l.b16 %v1798
      %v1846 = vunpack.c.l.b16 %v1799
      %v1847 = vunpack.c.l.b16 %v1800
      %v1848 = vunpack.c.l.b16 %v1801
      %v1849 = vunpack.c.l.b16 %v1802
      %v1850 = vunpack.c.l.b16 %v1803
      %v1851 = vunpack.c.l.b16 %v1804
      %v1852 = vunpack.c.l.b16 %v1805
      %v1853 = vunpack.c.l.b16 %v1806
      %v1854 = vunpack.c.l.b16 %v1807
      %v1855 = vunpack.c.l.b16 %v1808
      %v1856 = vunpack.c.l.b16 %v1809
      %v1857 = vunpack.c.l.b16 %v1810
      %v1858 = vpack.c.b16 %v1843, %v1842
      %v1859 = vpack.c.b16 %v1845, %v1844
      %v1860 = vpack.c.b16 %v1847, %v1846
      %v1861 = vpack.c.b16 %v1849, %v1848
      %v1862 = vpack.c.b16 %v1851, %v1850
      %v1863 = vpack.c.b16 %v1853, %v1852
      %v1864 = vpack.c.b16 %v1855, %v1854
      %v1865 = vpack.c.b16 %v1857, %v1856
      %1874 = vmatprep.subr.bf16.mxu0 0
      %1875 = vmatpush1.bf16.msra.mxu0 %v1858
      %1876 = vmatprep.subr.bf16.mxu0 0
      %1877 = vmatpush1.bf16.msra.mxu0 %v1859
      %1878 = vmatprep.subr.bf16.mxu0 0
      %1879 = vmatpush1.bf16.msra.mxu0 %v1860
      %1880 = vmatprep.subr.bf16.mxu0 0
      %1881 = vmatpush1.bf16.msra.mxu0 %v1861
      %1882 = vmatprep.subr.bf16.mxu0 0
      %1883 = vmatpush1.bf16.msra.mxu0 %v1862
      %1884 = vmatprep.subr.bf16.mxu0 0
      %1885 = vmatpush1.bf16.msra.mxu0 %v1863
      %1886 = vmatprep.subr.bf16.mxu0 0
      %1887 = vmatpush1.bf16.msra.mxu0 %v1864
      %1888 = vmatprep.subr.bf16.mxu0 0
      %1889 = vmatpush1.bf16.msra.mxu0 %v1865
      %1890 = vmatprep.subr.bf16.mxu0 0
      %1891 = vmatpush1.bf16.msra.mxu0 0
      %1892 = vmatprep.subr.bf16.mxu0 0
      %1893 = vmatpush1.bf16.msra.mxu0 0
      %1894 = vmatprep.subr.bf16.mxu0 0
      %1895 = vmatpush1.bf16.msra.mxu0 0
      %1896 = vmatprep.subr.bf16.mxu0 0
      %1897 = vmatpush1.bf16.msra.mxu0 0
      %1898 = vmatprep.subr.bf16.mxu0 0
      %1899 = vmatpush1.bf16.msra.mxu0 0
      %1900 = vmatprep.subr.bf16.mxu0 0
      %1901 = vmatpush1.bf16.msra.mxu0 0
      %1902 = vmatprep.subr.bf16.mxu0 0
      %1903 = vmatpush1.bf16.msra.mxu0 0
      %1904 = vmatprep.subr.bf16.mxu0 0
      %1905 = vmatpush1.bf16.msra.mxu0 0
      %1906 = vmatprep.mubr.bf16.mxu0 0
      %1907 = vmatmul.mubr.bf16.gmra.mrb[0].mxu0 %v1823
      %v1908 = vpop.f32.mrb[0].mxu0
      %v1909 = vadd.f32 0.0, %v1908
      %v1910 = vpop.f32.mrb[0].mxu0
      %v1911 = vpop.f32.mrb[0].mxu0
      %v1912 = vadd.f32 0.0, %v1911
      %v1913 = vpop.f32.mrb[0].mxu0
      %1914 = vmatprep.mubr.bf16.mxu0 0
      %1915 = vmatmul.mubr.bf16.gmra.mrb[0].mxu0 %v1822
      %v1916 = vpop.f32.mrb[0].mxu0
      %v1917 = vadd.f32 0.0, %v1916
      %v1918 = vpop.f32.mrb[0].mxu0
      %v1919 = vpop.f32.mrb[0].mxu0
      %v1920 = vpop.f32.mrb[0].mxu0
      %1921 = vdwg.mxu0
      %v1922 = vadd.f32 %v1791, %v1909
      %v1923 = vadd.f32 %v1792, %v1912
      %v1924 = vadd.f32 %v1793, %v1917
      %1925 = vst [vmem:[#allocation2] sm:$0xff] %v1922
      %1926 = vst [vmem:[#allocation2 + $0x8] sm:$0xff] %v1923
      %1927 = vst [vmem:[#allocation2 + $0x10] sm:$0xff] %v1924
      %v1928 = vld [vmem:[%s283 + $0x4] sm:$0x8]
      %v1929 = vld [vmem:[%s283 + $0x8] sm:$0xf]
      %v1930 = vld [vmem:[%s283 + $0xc] sm:$0xf]
      %v1931 = vld [vmem:[%s283 + $0x10] sm:$0xf]
      %v1932 = vld [vmem:[#allocation2] sm:$0xff]
      %v1933 = vld [vmem:[#allocation2 + $0x8] sm:$0xff]
      %v1934 = vld [vmem:[#allocation2 + $0x10] sm:$0xff]
      %s1935 = scalar_lea.vmem %s287, 704
      %v1936 = vld [vmem:[%s1935] sm:$0xf]
      %v1937 = vld [vmem:[%s1935 + $0x4] sm:$0xf]
      %v1938 = vld [vmem:[%s1935 + $0x8] sm:$0xf]
      %v1939 = vld [vmem:[%s1935 + $0xc] sm:$0xf]
      %v1940 = vld [vmem:[%s1935 + $0x10] sm:$0xf]
      %v1941 = vld [vmem:[%s1935 + $0x14] sm:$0xf]
      %v1942 = vld [vmem:[%s1935 + $0x18] sm:$0xf]
      %v1943 = vld [vmem:[%s1935 + $0x1c] sm:$0xf]
      %v1944 = vld [vmem:[%s1935 + $0x20] sm:$0xf]
      %v1945 = vld [vmem:[%s1935 + $0x24] sm:$0xf]
      %v1946 = vld [vmem:[%s1935 + $0x28] sm:$0xf]
      %v1947 = vld [vmem:[%s1935 + $0x2c] sm:$0xf]
      %v1948 = vld [vmem:[%s1935 + $0x30] sm:$0xf]
      %v1949 = vld [vmem:[%s1935 + $0x34] sm:$0xf]
      %v1950 = vld [vmem:[%s1935 + $0x38] sm:$0xf]
      %v1951 = vld [vmem:[%s1935 + $0x3c] sm:$0xf]
      %v1956 = vunpack.c.l.b16 %v1928
      %v1957 = vunpack.c.l.b16 %v1929
      %v1958 = vunpack.c.l.b16 %v1930
      %v1959 = vunpack.c.l.b16 %v1931
      %v1960 = vpack.c.b16 %v1957, %v1956
      %v1961 = vpack.c.b16 %v1959, %v1958
      %v1963 = vshrl.u32 %v1960, 16
      %v1965 = vrot.slane %v1963, 3
      %v1966 = vshll.u32 %v1960, 16
      %v1968 = vrot.slane %v1966, 4
      %v1969 = vor.u32 %v1965, %v1968
      %v1971 = vshrl.u32 %v1961, 16
      %v1973 = vrot.slane %v1971, 3
      %v1974 = vshll.u32 %v1961, 16
      %v1976 = vrot.slane %v1974, 4
      %v1977 = vor.u32 %v1973, %v1976
      %v1978 = vsel %vm1079, %v1969, %v1977
      %v1997 = vunpack.c.l.b16 %v1936
      %v1998 = vunpack.c.l.b16 %v1937
      %v1999 = vunpack.c.l.b16 %v1938
      %v2000 = vunpack.c.l.b16 %v1939
      %v2001 = vunpack.c.l.b16 %v1940
      %v2002 = vunpack.c.l.b16 %v1941
      %v2003 = vunpack.c.l.b16 %v1942
      %v2004 = vunpack.c.l.b16 %v1943
      %v2005 = vunpack.c.l.b16 %v1944
      %v2006 = vunpack.c.l.b16 %v1945
      %v2007 = vunpack.c.l.b16 %v1946
      %v2008 = vunpack.c.l.b16 %v1947
      %v2009 = vunpack.c.l.b16 %v1948
      %v2010 = vunpack.c.l.b16 %v1949
      %v2011 = vunpack.c.l.b16 %v1950
      %v2012 = vunpack.c.l.b16 %v1951
      %v2013 = vpack.c.b16 %v1998, %v1997
      %v2014 = vpack.c.b16 %v2000, %v1999
      %v2015 = vpack.c.b16 %v2002, %v2001
      %v2016 = vpack.c.b16 %v2004, %v2003
      %v2017 = vpack.c.b16 %v2006, %v2005
      %v2018 = vpack.c.b16 %v2008, %v2007
      %v2019 = vpack.c.b16 %v2010, %v2009
      %v2020 = vpack.c.b16 %v2012, %v2011
      %2029 = vmatprep.subr.bf16.mxu0 0
      %2030 = vmatpush1.bf16.msra.mxu0 %v2013
      %2031 = vmatprep.subr.bf16.mxu0 0
      %2032 = vmatpush1.bf16.msra.mxu0 %v2014
      %2033 = vmatprep.subr.bf16.mxu0 0
      %2034 = vmatpush1.bf16.msra.mxu0 %v2015
      %2035 = vmatprep.subr.bf16.mxu0 0
      %2036 = vmatpush1.bf16.msra.mxu0 %v2016
      %2037 = vmatprep.subr.bf16.mxu0 0
      %2038 = vmatpush1.bf16.msra.mxu0 %v2017
      %2039 = vmatprep.subr.bf16.mxu0 0
      %2040 = vmatpush1.bf16.msra.mxu0 %v2018
      %2041 = vmatprep.subr.bf16.mxu0 0
      %2042 = vmatpush1.bf16.msra.mxu0 %v2019
      %2043 = vmatprep.subr.bf16.mxu0 0
      %2044 = vmatpush1.bf16.msra.mxu0 %v2020
      %2045 = vmatprep.subr.bf16.mxu0 0
      %2046 = vmatpush1.bf16.msra.mxu0 0
      %2047 = vmatprep.subr.bf16.mxu0 0
      %2048 = vmatpush1.bf16.msra.mxu0 0
      %2049 = vmatprep.subr.bf16.mxu0 0
      %2050 = vmatpush1.bf16.msra.mxu0 0
      %2051 = vmatprep.subr.bf16.mxu0 0
      %2052 = vmatpush1.bf16.msra.mxu0 0
      %2053 = vmatprep.subr.bf16.mxu0 0
      %2054 = vmatpush1.bf16.msra.mxu0 0
      %2055 = vmatprep.subr.bf16.mxu0 0
      %2056 = vmatpush1.bf16.msra.mxu0 0
      %2057 = vmatprep.subr.bf16.mxu0 0
      %2058 = vmatpush1.bf16.msra.mxu0 0
      %2059 = vmatprep.subr.bf16.mxu0 0
      %2060 = vmatpush1.bf16.msra.mxu0 0
      %2061 = vmatprep.mubr.bf16.mxu0 0
      %2062 = vmatmul.mubr.bf16.gmra.mrb[0].mxu0 %v1978
      %v2063 = vpop.f32.mrb[0].mxu0
      %v2064 = vadd.f32 0.0, %v2063
      %v2065 = vpop.f32.mrb[0].mxu0
      %v2066 = vpop.f32.mrb[0].mxu0
      %v2067 = vadd.f32 0.0, %v2066
      %v2068 = vpop.f32.mrb[0].mxu0
      %2069 = vmatprep.mubr.bf16.mxu0 0
      %2070 = vmatmul.mubr.bf16.gmra.mrb[0].mxu0 %v1977
      %v2071 = vpop.f32.mrb[0].mxu0
      %v2072 = vadd.f32 0.0, %v2071
      %v2073 = vpop.f32.mrb[0].mxu0
      %v2074 = vpop.f32.mrb[0].mxu0
      %v2075 = vpop.f32.mrb[0].mxu0
      %2076 = vdwg.mxu0
      %v2077 = vadd.f32 %v1932, %v2064
      %v2078 = vadd.f32 %v1933, %v2067
      %v2079 = vadd.f32 %v1934, %v2072
      %2080 = vst [vmem:[#allocation2] sm:$0xff] %v2077
      %2081 = vst [vmem:[#allocation2 + $0x8] sm:$0xff] %v2078
      %2082 = vst [vmem:[#allocation2 + $0x10] sm:$0xff] %v2079
      %v2083 = vld [vmem:[%s283 + $0x8] sm:$0xe]
      %v2084 = vld [vmem:[%s283 + $0xc] sm:$0xf]
      %v2085 = vld [vmem:[%s283 + $0x10] sm:$0xf]
      %v2086 = vld [vmem:[%s283 + $0x14] sm:$0x1]
      %v2087 = vld [vmem:[#allocation2] sm:$0xff]
      %v2088 = vld [vmem:[#allocation2 + $0x8] sm:$0xff]
      %v2089 = vld [vmem:[#allocation2 + $0x10] sm:$0xff]
      %s2090 = scalar_lea.vmem %s287, 768
      %v2091 = vld [vmem:[%s2090] sm:$0xf]
      %v2092 = vld [vmem:[%s2090 + $0x4] sm:$0xf]
      %v2093 = vld [vmem:[%s2090 + $0x8] sm:$0xf]
      %v2094 = vld [vmem:[%s2090 + $0xc] sm:$0xf]
      %v2095 = vld [vmem:[%s2090 + $0x10] sm:$0xf]
      %v2096 = vld [vmem:[%s2090 + $0x14] sm:$0xf]
      %v2097 = vld [vmem:[%s2090 + $0x18] sm:$0xf]
      %v2098 = vld [vmem:[%s2090 + $0x1c] sm:$0xf]
      %v2099 = vld [vmem:[%s2090 + $0x20] sm:$0xf]
      %v2100 = vld [vmem:[%s2090 + $0x24] sm:$0xf]
      %v2101 = vld [vmem:[%s2090 + $0x28] sm:$0xf]
      %v2102 = vld [vmem:[%s2090 + $0x2c] sm:$0xf]
      %v2103 = vld [vmem:[%s2090 + $0x30] sm:$0xf]
      %v2104 = vld [vmem:[%s2090 + $0x34] sm:$0xf]
      %v2105 = vld [vmem:[%s2090 + $0x38] sm:$0xf]
      %v2106 = vld [vmem:[%s2090 + $0x3c] sm:$0xf]
      %v2111 = vunpack.c.l.b16 %v2083
      %v2112 = vunpack.c.l.b16 %v2084
      %v2113 = vunpack.c.l.b16 %v2085
      %v2114 = vunpack.c.l.b16 %v2086
      %v2115 = vpack.c.b16 %v2112, %v2111
      %v2116 = vpack.c.b16 %v2114, %v2113
      %v2117 = vrot.slane %v2115, 1
      %v2118 = vrot.slane %v2116, 1
      %v2119 = vsel %vm639, %v2117, %v2118
      %v2138 = vunpack.c.l.b16 %v2091
      %v2139 = vunpack.c.l.b16 %v2092
      %v2140 = vunpack.c.l.b16 %v2093
      %v2141 = vunpack.c.l.b16 %v2094
      %v2142 = vunpack.c.l.b16 %v2095
      %v2143 = vunpack.c.l.b16 %v2096
      %v2144 = vunpack.c.l.b16 %v2097
      %v2145 = vunpack.c.l.b16 %v2098
      %v2146 = vunpack.c.l.b16 %v2099
      %v2147 = vunpack.c.l.b16 %v2100
      %v2148 = vunpack.c.l.b16 %v2101
      %v2149 = vunpack.c.l.b16 %v2102
      %v2150 = vunpack.c.l.b16 %v2103
      %v2151 = vunpack.c.l.b16 %v2104
      %v2152 = vunpack.c.l.b16 %v2105
      %v2153 = vunpack.c.l.b16 %v2106
      %v2154 = vpack.c.b16 %v2139, %v2138
      %v2155 = vpack.c.b16 %v2141, %v2140
      %v2156 = vpack.c.b16 %v2143, %v2142
      %v2157 = vpack.c.b16 %v2145, %v2144
      %v2158 = vpack.c.b16 %v2147, %v2146
      %v2159 = vpack.c.b16 %v2149, %v2148
      %v2160 = vpack.c.b16 %v2151, %v2150
      %v2161 = vpack.c.b16 %v2153, %v2152
      %2170 = vmatprep.subr.bf16.mxu0 0
      %2171 = vmatpush1.bf16.msra.mxu0 %v2154
      %2172 = vmatprep.subr.bf16.mxu0 0
      %2173 = vmatpush1.bf16.msra.mxu0 %v2155
      %2174 = vmatprep.subr.bf16.mxu0 0
      %2175 = vmatpush1.bf16.msra.mxu0 %v2156
      %2176 = vmatprep.subr.bf16.mxu0 0
      %2177 = vmatpush1.bf16.msra.mxu0 %v2157
      %2178 = vmatprep.subr.bf16.mxu0 0
      %2179 = vmatpush1.bf16.msra.mxu0 %v2158
      %2180 = vmatprep.subr.bf16.mxu0 0
      %2181 = vmatpush1.bf16.msra.mxu0 %v2159
      %2182 = vmatprep.subr.bf16.mxu0 0
      %2183 = vmatpush1.bf16.msra.mxu0 %v2160
      %2184 = vmatprep.subr.bf16.mxu0 0
      %2185 = vmatpush1.bf16.msra.mxu0 %v2161
      %2186 = vmatprep.subr.bf16.mxu0 0
      %2187 = vmatpush1.bf16.msra.mxu0 0
      %2188 = vmatprep.subr.bf16.mxu0 0
      %2189 = vmatpush1.bf16.msra.mxu0 0
      %2190 = vmatprep.subr.bf16.mxu0 0
      %2191 = vmatpush1.bf16.msra.mxu0 0
      %2192 = vmatprep.subr.bf16.mxu0 0
      %2193 = vmatpush1.bf16.msra.mxu0 0
      %2194 = vmatprep.subr.bf16.mxu0 0
      %2195 = vmatpush1.bf16.msra.mxu0 0
      %2196 = vmatprep.subr.bf16.mxu0 0
      %2197 = vmatpush1.bf16.msra.mxu0 0
      %2198 = vmatprep.subr.bf16.mxu0 0
      %2199 = vmatpush1.bf16.msra.mxu0 0
      %2200 = vmatprep.subr.bf16.mxu0 0
      %2201 = vmatpush1.bf16.msra.mxu0 0
      %2202 = vmatprep.mubr.bf16.mxu0 0
      %2203 = vmatmul.mubr.bf16.gmra.mrb[0].mxu0 %v2119
      %v2204 = vpop.f32.mrb[0].mxu0
      %v2205 = vadd.f32 0.0, %v2204
      %v2206 = vpop.f32.mrb[0].mxu0
      %v2207 = vpop.f32.mrb[0].mxu0
      %v2208 = vadd.f32 0.0, %v2207
      %v2209 = vpop.f32.mrb[0].mxu0
      %2210 = vmatprep.mubr.bf16.mxu0 0
      %2211 = vmatmul.mubr.bf16.gmra.mrb[0].mxu0 %v2118
      %v2212 = vpop.f32.mrb[0].mxu0
      %v2213 = vadd.f32 0.0, %v2212
      %v2214 = vpop.f32.mrb[0].mxu0
      %v2215 = vpop.f32.mrb[0].mxu0
      %v2216 = vpop.f32.mrb[0].mxu0
      %2217 = vdwg.mxu0
      %v2218 = vadd.f32 %v2087, %v2205
      %v2219 = vadd.f32 %v2088, %v2208
      %v2220 = vadd.f32 %v2089, %v2213
      %2221 = vst [vmem:[#allocation2] sm:$0xff] %v2218
      %2222 = vst [vmem:[#allocation2 + $0x8] sm:$0xff] %v2219
      %2223 = vst [vmem:[#allocation2 + $0x10] sm:$0xff] %v2220
      %v2224 = vld [vmem:[%s283 + $0x8] sm:$0xe]
      %v2225 = vld [vmem:[%s283 + $0xc] sm:$0xf]
      %v2226 = vld [vmem:[%s283 + $0x10] sm:$0xf]
      %v2227 = vld [vmem:[%s283 + $0x14] sm:$0x3]
      %v2228 = vld [vmem:[#allocation2] sm:$0xff]
      %v2229 = vld [vmem:[#allocation2 + $0x8] sm:$0xff]
      %v2230 = vld [vmem:[#allocation2 + $0x10] sm:$0xff]
      %s2231 = scalar_lea.vmem %s287, 832
      %v2232 = vld [vmem:[%s2231] sm:$0xf]
      %v2233 = vld [vmem:[%s2231 + $0x4] sm:$0xf]
      %v2234 = vld [vmem:[%s2231 + $0x8] sm:$0xf]
      %v2235 = vld [vmem:[%s2231 + $0xc] sm:$0xf]
      %v2236 = vld [vmem:[%s2231 + $0x10] sm:$0xf]
      %v2237 = vld [vmem:[%s2231 + $0x14] sm:$0xf]
      %v2238 = vld [vmem:[%s2231 + $0x18] sm:$0xf]
      %v2239 = vld [vmem:[%s2231 + $0x1c] sm:$0xf]
      %v2240 = vld [vmem:[%s2231 + $0x20] sm:$0xf]
      %v2241 = vld [vmem:[%s2231 + $0x24] sm:$0xf]
      %v2242 = vld [vmem:[%s2231 + $0x28] sm:$0xf]
      %v2243 = vld [vmem:[%s2231 + $0x2c] sm:$0xf]
      %v2244 = vld [vmem:[%s2231 + $0x30] sm:$0xf]
      %v2245 = vld [vmem:[%s2231 + $0x34] sm:$0xf]
      %v2246 = vld [vmem:[%s2231 + $0x38] sm:$0xf]
      %v2247 = vld [vmem:[%s2231 + $0x3c] sm:$0xf]
      %v2252 = vunpack.c.l.b16 %v2224
      %v2253 = vunpack.c.l.b16 %v2225
      %v2254 = vunpack.c.l.b16 %v2226
      %v2255 = vunpack.c.l.b16 %v2227
      %v2256 = vpack.c.b16 %v2253, %v2252
      %v2257 = vpack.c.b16 %v2255, %v2254
      %v2259 = vshrl.u32 %v2256, 16
      %v2261 = vrot.slane %v2259, 1
      %v2262 = vshll.u32 %v2256, 16
      %v2264 = vrot.slane %v2262, 2
      %v2265 = vor.u32 %v2261, %v2264
      %v2267 = vshrl.u32 %v2257, 16
      %v2269 = vrot.slane %v2267, 1
      %v2270 = vshll.u32 %v2257, 16
      %v2272 = vrot.slane %v2270, 2
      %v2273 = vor.u32 %v2269, %v2272
      %v2274 = vsel %vm781, %v2265, %v2273
      %v2293 = vunpack.c.l.b16 %v2232
      %v2294 = vunpack.c.l.b16 %v2233
      %v2295 = vunpack.c.l.b16 %v2234
      %v2296 = vunpack.c.l.b16 %v2235
      %v2297 = vunpack.c.l.b16 %v2236
      %v2298 = vunpack.c.l.b16 %v2237
      %v2299 = vunpack.c.l.b16 %v2238
      %v2300 = vunpack.c.l.b16 %v2239
      %v2301 = vunpack.c.l.b16 %v2240
      %v2302 = vunpack.c.l.b16 %v2241
      %v2303 = vunpack.c.l.b16 %v2242
      %v2304 = vunpack.c.l.b16 %v2243
      %v2305 = vunpack.c.l.b16 %v2244
      %v2306 = vunpack.c.l.b16 %v2245
      %v2307 = vunpack.c.l.b16 %v2246
      %v2308 = vunpack.c.l.b16 %v2247
      %v2309 = vpack.c.b16 %v2294, %v2293
      %v2310 = vpack.c.b16 %v2296, %v2295
      %v2311 = vpack.c.b16 %v2298, %v2297
      %v2312 = vpack.c.b16 %v2300, %v2299
      %v2313 = vpack.c.b16 %v2302, %v2301
      %v2314 = vpack.c.b16 %v2304, %v2303
      %v2315 = vpack.c.b16 %v2306, %v2305
      %v2316 = vpack.c.b16 %v2308, %v2307
      %2325 = vmatprep.subr.bf16.mxu0 0
      %2326 = vmatpush1.bf16.msra.mxu0 %v2309
      %2327 = vmatprep.subr.bf16.mxu0 0
      %2328 = vmatpush1.bf16.msra.mxu0 %v2310
      %2329 = vmatprep.subr.bf16.mxu0 0
      %2330 = vmatpush1.bf16.msra.mxu0 %v2311
      %2331 = vmatprep.subr.bf16.mxu0 0
      %2332 = vmatpush1.bf16.msra.mxu0 %v2312
      %2333 = vmatprep.subr.bf16.mxu0 0
      %2334 = vmatpush1.bf16.msra.mxu0 %v2313
      %2335 = vmatprep.subr.bf16.mxu0 0
      %2336 = vmatpush1.bf16.msra.mxu0 %v2314
      %2337 = vmatprep.subr.bf16.mxu0 0
      %2338 = vmatpush1.bf16.msra.mxu0 %v2315
      %2339 = vmatprep.subr.bf16.mxu0 0
      %2340 = vmatpush1.bf16.msra.mxu0 %v2316
      %2341 = vmatprep.subr.bf16.mxu0 0
      %2342 = vmatpush1.bf16.msra.mxu0 0
      %2343 = vmatprep.subr.bf16.mxu0 0
      %2344 = vmatpush1.bf16.msra.mxu0 0
      %2345 = vmatprep.subr.bf16.mxu0 0
      %2346 = vmatpush1.bf16.msra.mxu0 0
      %2347 = vmatprep.subr.bf16.mxu0 0
      %2348 = vmatpush1.bf16.msra.mxu0 0
      %2349 = vmatprep.subr.bf16.mxu0 0
      %2350 = vmatpush1.bf16.msra.mxu0 0
      %2351 = vmatprep.subr.bf16.mxu0 0
      %2352 = vmatpush1.bf16.msra.mxu0 0
      %2353 = vmatprep.subr.bf16.mxu0 0
      %2354 = vmatpush1.bf16.msra.mxu0 0
      %2355 = vmatprep.subr.bf16.mxu0 0
      %2356 = vmatpush1.bf16.msra.mxu0 0
      %2357 = vmatprep.mubr.bf16.mxu0 0
      %2358 = vmatmul.mubr.bf16.gmra.mrb[0].mxu0 %v2274
      %v2359 = vpop.f32.mrb[0].mxu0
      %v2360 = vadd.f32 0.0, %v2359
      %v2361 = vpop.f32.mrb[0].mxu0
      %v2362 = vpop.f32.mrb[0].mxu0
      %v2363 = vadd.f32 0.0, %v2362
      %v2364 = vpop.f32.mrb[0].mxu0
      %2365 = vmatprep.mubr.bf16.mxu0 0
      %2366 = vmatmul.mubr.bf16.gmra.mrb[0].mxu0 %v2273
      %v2367 = vpop.f32.mrb[0].mxu0
      %v2368 = vadd.f32 0.0, %v2367
      %v2369 = vpop.f32.mrb[0].mxu0
      %v2370 = vpop.f32.mrb[0].mxu0
      %v2371 = vpop.f32.mrb[0].mxu0
      %2372 = vdwg.mxu0
      %v2373 = vadd.f32 %v2228, %v2360
      %v2374 = vadd.f32 %v2229, %v2363
      %v2375 = vadd.f32 %v2230, %v2368
      %2376 = vst [vmem:[#allocation2] sm:$0xff] %v2373
      %2377 = vst [vmem:[#allocation2 + $0x8] sm:$0xff] %v2374
      %2378 = vst [vmem:[#allocation2 + $0x10] sm:$0xff] %v2375
      %v2379 = vld [vmem:[%s283 + $0x8] sm:$0xc]
      %v2380 = vld [vmem:[%s283 + $0xc] sm:$0xf]
      %v2381 = vld [vmem:[%s283 + $0x10] sm:$0xf]
      %v2382 = vld [vmem:[%s283 + $0x14] sm:$0x3]
      %v2383 = vld [vmem:[#allocation2] sm:$0xff]
      %v2384 = vld [vmem:[#allocation2 + $0x8] sm:$0xff]
      %v2385 = vld [vmem:[#allocation2 + $0x10] sm:$0xff]
      %s2386 = scalar_lea.vmem %s287, 896
      %v2387 = vld [vmem:[%s2386] sm:$0xf]
      %v2388 = vld [vmem:[%s2386 + $0x4] sm:$0xf]
      %v2389 = vld [vmem:[%s2386 + $0x8] sm:$0xf]
      %v2390 = vld [vmem:[%s2386 + $0xc] sm:$0xf]
      %v2391 = vld [vmem:[%s2386 + $0x10] sm:$0xf]
      %v2392 = vld [vmem:[%s2386 + $0x14] sm:$0xf]
      %v2393 = vld [vmem:[%s2386 + $0x18] sm:$0xf]
      %v2394 = vld [vmem:[%s2386 + $0x1c] sm:$0xf]
      %v2395 = vld [vmem:[%s2386 + $0x20] sm:$0xf]
      %v2396 = vld [vmem:[%s2386 + $0x24] sm:$0xf]
      %v2397 = vld [vmem:[%s2386 + $0x28] sm:$0xf]
      %v2398 = vld [vmem:[%s2386 + $0x2c] sm:$0xf]
      %v2399 = vld [vmem:[%s2386 + $0x30] sm:$0xf]
      %v2400 = vld [vmem:[%s2386 + $0x34] sm:$0xf]
      %v2401 = vld [vmem:[%s2386 + $0x38] sm:$0xf]
      %v2402 = vld [vmem:[%s2386 + $0x3c] sm:$0xf]
      %v2407 = vunpack.c.l.b16 %v2379
      %v2408 = vunpack.c.l.b16 %v2380
      %v2409 = vunpack.c.l.b16 %v2381
      %v2410 = vunpack.c.l.b16 %v2382
      %v2411 = vpack.c.b16 %v2408, %v2407
      %v2412 = vpack.c.b16 %v2410, %v2409
      %v2413 = vrot.slane %v2411, 2
      %v2414 = vrot.slane %v2412, 2
      %v2415 = vsel %vm1523, %v2413, %v2414
      %v2434 = vunpack.c.l.b16 %v2387
      %v2435 = vunpack.c.l.b16 %v2388
      %v2436 = vunpack.c.l.b16 %v2389
      %v2437 = vunpack.c.l.b16 %v2390
      %v2438 = vunpack.c.l.b16 %v2391
      %v2439 = vunpack.c.l.b16 %v2392
      %v2440 = vunpack.c.l.b16 %v2393
      %v2441 = vunpack.c.l.b16 %v2394
      %v2442 = vunpack.c.l.b16 %v2395
      %v2443 = vunpack.c.l.b16 %v2396
      %v2444 = vunpack.c.l.b16 %v2397
      %v2445 = vunpack.c.l.b16 %v2398
      %v2446 = vunpack.c.l.b16 %v2399
      %v2447 = vunpack.c.l.b16 %v2400
      %v2448 = vunpack.c.l.b16 %v2401
      %v2449 = vunpack.c.l.b16 %v2402
      %v2450 = vpack.c.b16 %v2435, %v2434
      %v2451 = vpack.c.b16 %v2437, %v2436
      %v2452 = vpack.c.b16 %v2439, %v2438
      %v2453 = vpack.c.b16 %v2441, %v2440
      %v2454 = vpack.c.b16 %v2443, %v2442
      %v2455 = vpack.c.b16 %v2445, %v2444
      %v2456 = vpack.c.b16 %v2447, %v2446
      %v2457 = vpack.c.b16 %v2449, %v2448
      %2466 = vmatprep.subr.bf16.mxu0 0
      %2467 = vmatpush1.bf16.msra.mxu0 %v2450
      %2468 = vmatprep.subr.bf16.mxu0 0
      %2469 = vmatpush1.bf16.msra.mxu0 %v2451
      %2470 = vmatprep.subr.bf16.mxu0 0
      %2471 = vmatpush1.bf16.msra.mxu0 %v2452
      %2472 = vmatprep.subr.bf16.mxu0 0
      %2473 = vmatpush1.bf16.msra.mxu0 %v2453
      %2474 = vmatprep.subr.bf16.mxu0 0
      %2475 = vmatpush1.bf16.msra.mxu0 %v2454
      %2476 = vmatprep.subr.bf16.mxu0 0
      %2477 = vmatpush1.bf16.msra.mxu0 %v2455
      %2478 = vmatprep.subr.bf16.mxu0 0
      %2479 = vmatpush1.bf16.msra.mxu0 %v2456
      %2480 = vmatprep.subr.bf16.mxu0 0
      %2481 = vmatpush1.bf16.msra.mxu0 %v2457
      %2482 = vmatprep.subr.bf16.mxu0 0
      %2483 = vmatpush1.bf16.msra.mxu0 0
      %2484 = vmatprep.subr.bf16.mxu0 0
      %2485 = vmatpush1.bf16.msra.mxu0 0
      %2486 = vmatprep.subr.bf16.mxu0 0
      %2487 = vmatpush1.bf16.msra.mxu0 0
      %2488 = vmatprep.subr.bf16.mxu0 0
      %2489 = vmatpush1.bf16.msra.mxu0 0
      %2490 = vmatprep.subr.bf16.mxu0 0
      %2491 = vmatpush1.bf16.msra.mxu0 0
      %2492 = vmatprep.subr.bf16.mxu0 0
      %2493 = vmatpush1.bf16.msra.mxu0 0
      %2494 = vmatprep.subr.bf16.mxu0 0
      %2495 = vmatpush1.bf16.msra.mxu0 0
      %2496 = vmatprep.subr.bf16.mxu0 0
      %2497 = vmatpush1.bf16.msra.mxu0 0
      %2498 = vmatprep.mubr.bf16.mxu0 0
      %2499 = vmatmul.mubr.bf16.gmra.mrb[0].mxu0 %v2415
      %v2500 = vpop.f32.mrb[0].mxu0
      %v2501 = vadd.f32 0.0, %v2500
      %v2502 = vpop.f32.mrb[0].mxu0
      %v2503 = vpop.f32.mrb[0].mxu0
      %v2504 = vadd.f32 0.0, %v2503
      %v2505 = vpop.f32.mrb[0].mxu0
      %2506 = vmatprep.mubr.bf16.mxu0 0
      %2507 = vmatmul.mubr.bf16.gmra.mrb[0].mxu0 %v2414
      %v2508 = vpop.f32.mrb[0].mxu0
      %v2509 = vadd.f32 0.0, %v2508
      %v2510 = vpop.f32.mrb[0].mxu0
      %v2511 = vpop.f32.mrb[0].mxu0
      %v2512 = vpop.f32.mrb[0].mxu0
      %2513 = vdwg.mxu0
      %v2514 = vadd.f32 %v2383, %v2501
      %v2515 = vadd.f32 %v2384, %v2504
      %v2516 = vadd.f32 %v2385, %v2509
      %2517 = vst [vmem:[#allocation2] sm:$0xff] %v2514
      %2518 = vst [vmem:[#allocation2 + $0x8] sm:$0xff] %v2515
      %2519 = vst [vmem:[#allocation2 + $0x10] sm:$0xff] %v2516
      %v2520 = vld [vmem:[%s283 + $0x8] sm:$0xc]
      %v2521 = vld [vmem:[%s283 + $0xc] sm:$0xf]
      %v2522 = vld [vmem:[%s283 + $0x10] sm:$0xf]
      %v2523 = vld [vmem:[%s283 + $0x14] sm:$0x7]
      %v2524 = vld [vmem:[#allocation2] sm:$0xff]
      %v2525 = vld [vmem:[#allocation2 + $0x8] sm:$0xff]
      %v2526 = vld [vmem:[#allocation2 + $0x10] sm:$0xff]
      %s2527 = scalar_lea.vmem %s287, 960
      %v2528 = vld [vmem:[%s2527] sm:$0xf]
      %v2529 = vld [vmem:[%s2527 + $0x4] sm:$0xf]
      %v2530 = vld [vmem:[%s2527 + $0x8] sm:$0xf]
      %v2531 = vld [vmem:[%s2527 + $0xc] sm:$0xf]
      %v2532 = vld [vmem:[%s2527 + $0x10] sm:$0xf]
      %v2533 = vld [vmem:[%s2527 + $0x14] sm:$0xf]
      %v2534 = vld [vmem:[%s2527 + $0x18] sm:$0xf]
      %v2535 = vld [vmem:[%s2527 + $0x1c] sm:$0xf]
      %v2536 = vld [vmem:[%s2527 + $0x20] sm:$0xf]
      %v2537 = vld [vmem:[%s2527 + $0x24] sm:$0xf]
      %v2538 = vld [vmem:[%s2527 + $0x28] sm:$0xf]
      %v2539 = vld [vmem:[%s2527 + $0x2c] sm:$0xf]
      %v2540 = vld [vmem:[%s2527 + $0x30] sm:$0xf]
      %v2541 = vld [vmem:[%s2527 + $0x34] sm:$0xf]
      %v2542 = vld [vmem:[%s2527 + $0x38] sm:$0xf]
      %v2543 = vld [vmem:[%s2527 + $0x3c] sm:$0xf]
      %v2548 = vunpack.c.l.b16 %v2520
      %v2549 = vunpack.c.l.b16 %v2521
      %v2550 = vunpack.c.l.b16 %v2522
      %v2551 = vunpack.c.l.b16 %v2523
      %v2552 = vpack.c.b16 %v2549, %v2548
      %v2553 = vpack.c.b16 %v2551, %v2550
      %v2555 = vshrl.u32 %v2552, 16
      %v2557 = vrot.slane %v2555, 2
      %v2558 = vshll.u32 %v2552, 16
      %v2560 = vrot.slane %v2558, 3
      %v2561 = vor.u32 %v2557, %v2560
      %v2563 = vshrl.u32 %v2553, 16
      %v2565 = vrot.slane %v2563, 2
      %v2566 = vshll.u32 %v2553, 16
      %v2568 = vrot.slane %v2566, 3
      %v2569 = vor.u32 %v2565, %v2568
      %v2570 = vsel %vm1665, %v2561, %v2569
      %v2589 = vunpack.c.l.b16 %v2528
      %v2590 = vunpack.c.l.b16 %v2529
      %v2591 = vunpack.c.l.b16 %v2530
      %v2592 = vunpack.c.l.b16 %v2531
      %v2593 = vunpack.c.l.b16 %v2532
      %v2594 = vunpack.c.l.b16 %v2533
      %v2595 = vunpack.c.l.b16 %v2534
      %v2596 = vunpack.c.l.b16 %v2535
      %v2597 = vunpack.c.l.b16 %v2536
      %v2598 = vunpack.c.l.b16 %v2537
      %v2599 = vunpack.c.l.b16 %v2538
      %v2600 = vunpack.c.l.b16 %v2539
      %v2601 = vunpack.c.l.b16 %v2540
      %v2602 = vunpack.c.l.b16 %v2541
      %v2603 = vunpack.c.l.b16 %v2542
      %v2604 = vunpack.c.l.b16 %v2543
      %v2605 = vpack.c.b16 %v2590, %v2589
      %v2606 = vpack.c.b16 %v2592, %v2591
      %v2607 = vpack.c.b16 %v2594, %v2593
      %v2608 = vpack.c.b16 %v2596, %v2595
      %v2609 = vpack.c.b16 %v2598, %v2597
      %v2610 = vpack.c.b16 %v2600, %v2599
      %v2611 = vpack.c.b16 %v2602, %v2601
      %v2612 = vpack.c.b16 %v2604, %v2603
      %2621 = vmatprep.subr.bf16.mxu0 0
      %2622 = vmatpush1.bf16.msra.mxu0 %v2605
      %2623 = vmatprep.subr.bf16.mxu0 0
      %2624 = vmatpush1.bf16.msra.mxu0 %v2606
      %2625 = vmatprep.subr.bf16.mxu0 0
      %2626 = vmatpush1.bf16.msra.mxu0 %v2607
      %2627 = vmatprep.subr.bf16.mxu0 0
      %2628 = vmatpush1.bf16.msra.mxu0 %v2608
      %2629 = vmatprep.subr.bf16.mxu0 0
      %2630 = vmatpush1.bf16.msra.mxu0 %v2609
      %2631 = vmatprep.subr.bf16.mxu0 0
      %2632 = vmatpush1.bf16.msra.mxu0 %v2610
      %2633 = vmatprep.subr.bf16.mxu0 0
      %2634 = vmatpush1.bf16.msra.mxu0 %v2611
      %2635 = vmatprep.subr.bf16.mxu0 0
      %2636 = vmatpush1.bf16.msra.mxu0 %v2612
      %2637 = vmatprep.subr.bf16.mxu0 0
      %2638 = vmatpush1.bf16.msra.mxu0 0
      %2639 = vmatprep.subr.bf16.mxu0 0
      %2640 = vmatpush1.bf16.msra.mxu0 0
      %2641 = vmatprep.subr.bf16.mxu0 0
      %2642 = vmatpush1.bf16.msra.mxu0 0
      %2643 = vmatprep.subr.bf16.mxu0 0
      %2644 = vmatpush1.bf16.msra.mxu0 0
      %2645 = vmatprep.subr.bf16.mxu0 0
      %2646 = vmatpush1.bf16.msra.mxu0 0
      %2647 = vmatprep.subr.bf16.mxu0 0
      %2648 = vmatpush1.bf16.msra.mxu0 0
      %2649 = vmatprep.subr.bf16.mxu0 0
      %2650 = vmatpush1.bf16.msra.mxu0 0
      %2651 = vmatprep.subr.bf16.mxu0 0
      %2652 = vmatpush1.bf16.msra.mxu0 0
      %2653 = vmatprep.mubr.bf16.mxu0 0
      %2654 = vmatmul.mubr.bf16.gmra.mrb[0].mxu0 %v2570
      %v2655 = vpop.f32.mrb[0].mxu0
      %v2656 = vadd.f32 0.0, %v2655
      %v2657 = vpop.f32.mrb[0].mxu0
      %v2658 = vpop.f32.mrb[0].mxu0
      %v2659 = vadd.f32 0.0, %v2658
      %v2660 = vpop.f32.mrb[0].mxu0
      %2661 = vmatprep.mubr.bf16.mxu0 0
      %2662 = vmatmul.mubr.bf16.gmra.mrb[0].mxu0 %v2569
      %v2663 = vpop.f32.mrb[0].mxu0
      %v2664 = vadd.f32 0.0, %v2663
      %v2665 = vpop.f32.mrb[0].mxu0
      %v2666 = vpop.f32.mrb[0].mxu0
      %v2667 = vpop.f32.mrb[0].mxu0
      %2668 = vdwg.mxu0
      %v2669 = vadd.f32 %v2524, %v2656
      %v2670 = vadd.f32 %v2525, %v2659
      %v2671 = vadd.f32 %v2526, %v2664
      %2672 = vst [vmem:[#allocation2] sm:$0xff] %v2669
      %2673 = vst [vmem:[#allocation2 + $0x8] sm:$0xff] %v2670
      %2674 = vst [vmem:[#allocation2 + $0x10] sm:$0xff] %v2671
      %v2675 = vld [vmem:[#allocation2] sm:$0xff]
      %v2676 = vld [vmem:[#allocation2 + $0x8] sm:$0xff]
      %v2677 = vld [vmem:[#allocation2 + $0x10] sm:$0xff]
      %v2678 = vld [vmem:[%s290] sm:$0x1]
      %v2680 = vlaneseq
      %v2681 = vshrl.u32 %v2680, 7
      %v2682 = vsub.s32 0, %v2681
      %v2683 = vrot.slane %v2678, %v2682
      %v2685 = vadd.f32 %v2675, %v2683
      %v2686 = vadd.f32 %v2676, %v2683
      %v2687 = vadd.f32 %v2677, %v2683
      %v2688 = vpack.c.bf16 %v2686, %v2685
      %v2689 = vpack.c.bf16 %v2687, %v2687
      %v2692 = vunpack.c.l.b16 %v2688
      %v2693 = vunpack.c.h.b16 %v2688
      %v2694 = vunpack.c.l.b16 %v2689
      %v2695 = vpack.c.b16 %v2692, %v2692
      %v2696 = vpack.c.b16 %v2693, %v2693
      %v2697 = vpack.c.b16 %v2694, %v2694
      %2701 = vst [vmem:[%s298] sm:$0xf] %v2695
      %2702 = vst [vmem:[%s298 + $0x4] sm:$0xf] %v2696
      %2703 = vst [vmem:[%s298 + $0x8] sm:$0xf] %v2697
      %v2704 = vlaneseq
      %v2705 = vshrl.u32 %v2704, 7
      %v2706 = vadd.s32 %v2705, 8
      %v2707 = vadd.s32 %v2705, 16
      %vm2708 = vcmp.lt.s32.totalorder %v2705, 0
      %v2709 = vsub.s32 0, %v2705
      %v2710 = vsel %vm2708, %v2709, %v2705
      %v2711 = vmul.u32.u64.compose %v2710, 2863311531
      %v2712 = vextract.low.u32 %v2711
      %v2713 = vextract.high.u32 %v2711
      %v2714 = vshrl.u32 %v2713, 2
      %v2715 = vmul.u32 %v2714, 6
      %v2716 = vsub.s32 %v2710, %v2715
      %v2717 = vsub.s32 0, %v2716
      %v2718 = vsel %vm2708, %v2717, %v2716
      %vm2719 = vcmp.lt.s32.totalorder %v2706, 0
      %v2720 = vsub.s32 0, %v2706
      %v2721 = vsel %vm2719, %v2720, %v2706
      %v2722 = vmul.u32.u64.compose %v2721, 2863311531
      %v2723 = vextract.low.u32 %v2722
      %v2724 = vextract.high.u32 %v2722
      %v2725 = vshrl.u32 %v2724, 2
      %v2726 = vmul.u32 %v2725, 6
      %v2727 = vsub.s32 %v2721, %v2726
      %v2728 = vsub.s32 0, %v2727
      %v2729 = vsel %vm2719, %v2728, %v2727
      %vm2730 = vcmp.lt.s32.totalorder %v2707, 0
      %v2731 = vsub.s32 0, %v2707
      %v2732 = vsel %vm2730, %v2731, %v2707
      %v2733 = vmul.u32.u64.compose %v2732, 2863311531
      %v2734 = vextract.low.u32 %v2733
      %v2735 = vextract.high.u32 %v2733
      %v2736 = vshrl.u32 %v2735, 2
      %v2737 = vmul.u32 %v2736, 6
      %v2738 = vsub.s32 %v2732, %v2737
      %v2739 = vsub.s32 0, %v2738
      %v2740 = vsel %vm2730, %v2739, %v2738
      %vm2741 = vcmp.ne.s32.totalorder %v2718, 0
      %vm2742 = vcmp.ne.s32.totalorder %v2729, 0
      %vm2743 = vcmp.ne.s32.totalorder %v2740, 0
      %vm2744 = vcmp.lt.s32.totalorder %v2718, 0
      %vm2745 = vcmp.lt.s32.totalorder %v2729, 0
      %vm2746 = vcmp.lt.s32.totalorder %v2740, 0
      %vm2747 = vmand %vm2744, %vm2741
      %vm2748 = vmand %vm2745, %vm2742
      %vm2749 = vmand %vm2746, %vm2743
      %v2750 = vadd.s32 %v2718, 6
      %v2751 = vadd.s32 %v2729, 6
      %v2752 = vadd.s32 %v2740, 6
      %v2753 = vsel %vm2747, %v2750, %v2718
      %v2754 = vsel %vm2748, %v2751, %v2729
      %v2755 = vsel %vm2749, %v2752, %v2740
      %vm2756 = vcmp.lt.s32.totalorder %v2753, 3
      %vm2757 = vcmp.lt.s32.totalorder %v2754, 3
      %vm2758 = vcmp.lt.s32.totalorder %v2755, 3
      %vm2759 = vcmp.lt.s32.totalorder %v2705, 18
      %vm2760 = vcmp.lt.s32.totalorder %v2706, 18
      %vm2761 = vcmp.lt.s32.totalorder %v2707, 18
      %vm2762 = vmand %vm2756, %vm2759
      %vm2763 = vmand %vm2757, %vm2760
      %vm2764 = vmand %vm2758, %vm2761
      %v2765 = vsel %vm2762, %v2675, 0.0
      %v2766 = vsel %vm2763, %v2676, 0.0
      %v2767 = vsel %vm2764, %v2677, 0.0
      %v2768 = vadd.f32 %v2765, %v2766
      %v2769 = vadd.f32 %v2768, %v2767
      %v2770 = vrot.slane %v2769, 4
      %v2771 = vadd.f32 %v2769, %v2770
      %v2772 = vrot.slane %v2771, 2
      %v2773 = vadd.f32 %v2771, %v2772
      %v2774 = vrot.slane %v2773, 1
      %v2775 = vadd.f32 %v2773, %v2774
      %v2776 = vmul.f32 %v2765, %v2765
      %v2777 = vmul.f32 %v2766, %v2766
      %v2778 = vmul.f32 %v2767, %v2767
      %v2779 = vadd.f32 %v2776, %v2777
      %v2780 = vadd.f32 %v2779, %v2778
      %v2781 = vrot.slane %v2780, 4
      %v2782 = vadd.f32 %v2780, %v2781
      %v2783 = vrot.slane %v2782, 2
      %v2784 = vadd.f32 %v2782, %v2783
      %v2785 = vrot.slane %v2784, 1
      %v2786 = vadd.f32 %v2784, %v2785
      %2787 = vst [vmem:[%s305] sm:$0xff] %v2775
      %2788 = vst [vmem:[%s312] sm:$0xff] %v2786
      %p2789 = scmp.lt.s32.totalorder %s21, 1
      %s2790 = scalar_select %p2789, %s21, 1
      %p2791 = scmp.lt.s32.totalorder %s22, 0
      %s2792 = scalar_select %p2791, %s22, 0
      %s2793 = smul.addr %s2790, 3
      %s2794 = sadd.s32 %s2792, %s2793
      %s2795 = smul.addr %s2794, 4
      %s2796 = scalar_lea.vmem %s3, %s2795
      %p2797 = scmp.lt.s32.totalorder %s21, 1
      %s2798 = scalar_select %p2797, %s21, 1
      %p2799 = scmp.lt.s32.totalorder %s22, 0
      %s2800 = scalar_select %p2799, %s22, 0
      %s2801 = sadd.s32 %s2800, %s2798
      %s2802 = smul.addr %s2801, 8
      %s2803 = scalar_lea.vmem %s4, %s2802
      %p2804 = scmp.lt.s32.totalorder %s21, 1
      %s2805 = scalar_select %p2804, %s21, 1
      %p2806 = scmp.lt.s32.totalorder %s22, 0
      %s2807 = scalar_select %p2806, %s22, 0
      %s2808 = sadd.s32 %s2807, %s2805
      %s2809 = smul.addr %s2808, 8
      %s2810 = scalar_lea.vmem %s5, %s2809
      // Predicated region
      $region33: #{discriminator_forward.8} parent=31 // pred_check
        %p2811 = pneg %p127
      $region34: #{discriminator_forward.8} parent=31 // pred_check_branch
        %2813 = sbr.rel (%p2811) target = $region36
      $region35: #{discriminator_forward.8} parent=31 // pred_region
        _
      $region36: #{discriminator_forward.8} parent=31 // pred_fallthru
        _
      // Predicated region
      $region37: #{discriminator_forward.8} parent=31 // pred_check
        %p2814 = pneg %p155
      $region38: #{discriminator_forward.8} parent=31 // pred_check_branch
        %2816 = sbr.rel (%p2814) target = $region40
      $region39: #{discriminator_forward.8} parent=31 // pred_region
        _
      $region40: #{discriminator_forward.8} parent=31 // pred_fallthru
        _
      // Predicated region
      $region41: #{discriminator_forward.8} parent=31 // pred_check
        %p2817 = pneg %p183
      $region42: #{discriminator_forward.8} parent=31 // pred_check_branch
        %2819 = sbr.rel (%p2817) target = $region44
      $region43: #{discriminator_forward.8} parent=31 // pred_region
        _
      $region44: #{discriminator_forward.8} parent=31 // pred_fallthru
        _
    $region32: #{discriminator_forward.8} parent=5 // pred_fallthru
      _
    %p2820 = scmp.le.s32.totalorder 2, %s12
    // Predicated region
    $region45: #{discriminator_forward.8} parent=5 // pred_check
      %p2821 = pneg %p2820
    $region46: #{discriminator_forward.8} parent=5 // pred_check_branch
      %2823 = sbr.rel (%p2821) target = $region48
    $region47: #{discriminator_forward.8} parent=5 // pred_region
      %s2824 = ssub.s32 %s12, 2
      // Predicated region
      $region49: #{discriminator_forward.8} parent=47 // pred_check
        %p2825 = pneg %p133
      $region50: #{discriminator_forward.8} parent=47 // pred_check_branch
        %2827 = sbr.rel (%p2825) target = $region52
      $region51: #{discriminator_forward.8} parent=47 // pred_region
        %p2828 = scmp.lt.s32.totalorder %s23, 1
        %s2829 = scalar_select %p2828, %s23, 1
        %p2830 = scmp.lt.s32.totalorder %s24, 0
        %s2831 = scalar_select %p2830, %s24, 0
        %s2832 = smul.addr %s2829, 3
        %s2833 = sadd.s32 %s2831, %s2832
        %s2834 = smul.addr %s2833, 4
        %s2835 = scalar_lea.vmem %s3, %s2834
      $region52: #{discriminator_forward.8} parent=47 // pred_fallthru
        _
      // Predicated region
      $region53: #{discriminator_forward.8} parent=47 // pred_check
        %p2836 = pneg %p161
      $region54: #{discriminator_forward.8} parent=47 // pred_check_branch
        %2838 = sbr.rel (%p2836) target = $region56
      $region55: #{discriminator_forward.8} parent=47 // pred_region
        %p2839 = scmp.lt.s32.totalorder %s23, 1
        %s2840 = scalar_select %p2839, %s23, 1
        %p2841 = scmp.lt.s32.totalorder %s24, 0
        %s2842 = scalar_select %p2841, %s24, 0
        %s2843 = sadd.s32 %s2842, %s2840
        %s2844 = smul.addr %s2843, 8
        %s2845 = scalar_lea.vmem %s4, %s2844
      $region56: #{discriminator_forward.8} parent=47 // pred_fallthru
        _
      // Predicated region
      $region57: #{discriminator_forward.8} parent=47 // pred_check
        %p2846 = pneg %p189
      $region58: #{discriminator_forward.8} parent=47 // pred_check_branch
        %2848 = sbr.rel (%p2846) target = $region60
      $region59: #{discriminator_forward.8} parent=47 // pred_region
        %p2849 = scmp.lt.s32.totalorder %s23, 1
        %s2850 = scalar_select %p2849, %s23, 1
        %p2851 = scmp.lt.s32.totalorder %s24, 0
        %s2852 = scalar_select %p2851, %s24, 0
        %s2853 = sadd.s32 %s2852, %s2850
        %s2854 = smul.addr %s2853, 8
        %s2855 = scalar_lea.vmem %s5, %s2854
      $region60: #{discriminator_forward.8} parent=47 // pred_fallthru
        _
    $region48: #{discriminator_forward.8} parent=5 // pred_fallthru
      _
  $region6: #{discriminator_forward.8} parent=0 // loop_footer
    %s16 = sadd.s32 1, %s12
  $region7: #{discriminator_forward.8} parent=0 // loop_footer_branch
    %11 = sbr.rel target = $region3
  $region8: #{discriminator_forward.8} parent=0 // loop_exit
    _

// kernel: discriminator_forward.9
$region0: #{discriminator_forward.9}
  #allocation0 [shape = 'u32[]', space=smem, size = 0x4, offset = 0x4, fixed_abs, tag = 'smem constant byte address 0x4 - core index']
  #allocation1 [shape = 'u32[144,128]{1,0:T(1,128)}', space=vmem, size = 0x12000, scoped, tag = 'internal scratch']
  #allocation2 [shape = 'f32[16,128]{1,0:T(8,128)}', space=vmem, size = 0x2000, scoped, tag = 'scratch operand']
  %s0 = inlined_call_operand.vmem [shape: bf16[2,40,128], index: 0, kind: input, shape index: {}]
  %s1 = inlined_call_operand.vmem [shape: bf16[16,128,128], index: 1, kind: input, shape index: {}]
  %s2 = inlined_call_operand.vmem [shape: f32[1,128], index: 2, kind: input, shape index: {}]
  %s3 = inlined_call_operand.vmem [shape: f32[2,16,128], index: 3, kind: output, shape index: {}]
  %s4 = sld [smem:[#allocation0]]
  $region45: #{discriminator_forward.9} parent=0
    _
  %s6 = ssub.s32 1, %s4
  %s7 = scalar_select 0, %s6, %s4
  loop: start=0, step=1, limit=4
  $region2: #{discriminator_forward.9} parent=0 // loop_pre_header
    _
  $region3: #{discriminator_forward.9} parent=0 // loop_header
    %s9 = sphi 0, %s13
    %p10 = scmp.ge.s32.totalorder %s9, 4
    %s16 = sphi 0, %s28
    %s17 = sphi 0, %s24
    %s18 = sphi 0, %s16
    %s19 = sphi 0, %s17
    %s20 = sphi 0, %s18
    %s21 = sphi 0, %s19
    %s31 = sphi 0, %s33
    %s34 = sphi 0, %s31
    %s35 = sphi 0, %s34
    %s51 = sphi 0, %s35
    %s57 = sphi 0, %s59
    %s60 = sphi 0, %s57
    %s61 = sphi 0, %s60
    %s77 = sphi 0, %s61
    %s83 = sphi 0, %s85
    %s86 = sphi 0, %s83
    %s87 = sphi 0, %s86
    %s103 = sphi 0, %s87
    %s111 = sphi 0, %s113
    %s114 = sphi 0, %s111
    %s115 = sphi 0, %s114
    %s131 = sphi 0, %s115
  $region4: #{discriminator_forward.9} parent=0 // loop_header_branch
    %12 = sbr.rel (%p10) target = $region8
  $region5: #{discriminator_forward.9} parent=0 // loop_body
    %s14 = ssub.s32 %s9, 1
    %s15 = ssub.s32 %s9, 2
    %s22 = sadd.s32 1, %s17
    %p23 = scmp.ge.s32.totalorder %s22, 1
    %s24 = scalar_select %p23, 0, %s22
    %s25 = sadd.s32 1, %s16
    %s26 = scalar_select %p23, %s25, %s16
    %p27 = scmp.ge.s32.totalorder %s26, 2
    %s28 = scalar_select %p27, 0, %s26
    %s29 = ssub.s32 %s16, %s28
    %p30 = scmp.eq.s32.totalorder %s29, 0
    %s32 = sadd.s32 %s31, 1
    %s33 = scalar_select %p30, %s31, %s32
    %p36 = pneg %p30
    %p37 = scmp.eq.s32.totalorder %s9, 1
    %p38 = por %p36, %p37
    %p39 = scmp.ne.s32.totalorder %s31, %s34
    %p40 = scmp.eq.s32.totalorder %s9, 0
    %p41 = por %p39, %p40
    %p42 = scmp.ne.s32.totalorder %s31, %s34
    %p43 = scmp.eq.s32.totalorder %s14, 1
    %p44 = por %p42, %p43
    %p45 = scmp.ne.s32.totalorder %s34, %s35
    %p46 = scmp.eq.s32.totalorder %s14, 0
    %p47 = por %p45, %p46
    %p48 = scmp.ne.s32.totalorder %s34, %s35
    %p49 = scmp.eq.s32.totalorder %s15, 1
    %p50 = por %p48, %p49
    %p52 = scmp.ne.s32.totalorder %s35, %s51
    %p53 = scmp.eq.s32.totalorder %s15, 0
    %p54 = por %p52, %p53
    %s55 = ssub.s32 %s17, %s24
    %p56 = scmp.eq.s32.totalorder %s55, 0
    %s58 = sadd.s32 %s57, 1
    %s59 = scalar_select %p56, %s57, %s58
    %p62 = pneg %p56
    %p63 = scmp.eq.s32.totalorder %s9, 1
    %p64 = por %p62, %p63
    %p65 = scmp.ne.s32.totalorder %s57, %s60
    %p66 = scmp.eq.s32.totalorder %s9, 0
    %p67 = por %p65, %p66
    %p68 = scmp.ne.s32.totalorder %s57, %s60
    %p69 = scmp.eq.s32.totalorder %s14, 1
    %p70 = por %p68, %p69
    %p71 = scmp.ne.s32.totalorder %s60, %s61
    %p72 = scmp.eq.s32.totalorder %s14, 0
    %p73 = por %p71, %p72
    %p74 = scmp.ne.s32.totalorder %s60, %s61
    %p75 = scmp.eq.s32.totalorder %s15, 1
    %p76 = por %p74, %p75
    %p78 = scmp.ne.s32.totalorder %s61, %s77
    %p79 = scmp.eq.s32.totalorder %s15, 0
    %p80 = por %p78, %p79
    %s81 = ssub.s32 %s17, %s24
    %p82 = scmp.eq.s32.totalorder %s81, 0
    %s84 = sadd.s32 %s83, 1
    %s85 = scalar_select %p82, %s83, %s84
    %p88 = pneg %p82
    %p89 = scmp.eq.s32.totalorder %s9, 1
    %p90 = por %p88, %p89
    %p91 = scmp.ne.s32.totalorder %s83, %s86
    %p92 = scmp.eq.s32.totalorder %s9, 0
    %p93 = por %p91, %p92
    %p94 = scmp.ne.s32.totalorder %s83, %s86
    %p95 = scmp.eq.s32.totalorder %s14, 1
    %p96 = por %p94, %p95
    %p97 = scmp.ne.s32.totalorder %s86, %s87
    %p98 = scmp.eq.s32.totalorder %s14, 0
    %p99 = por %p97, %p98
    %p100 = scmp.ne.s32.totalorder %s86, %s87
    %p101 = scmp.eq.s32.totalorder %s15, 1
    %p102 = por %p100, %p101
    %p104 = scmp.ne.s32.totalorder %s87, %s103
    %p105 = scmp.eq.s32.totalorder %s15, 0
    %p106 = por %p104, %p105
    %s107 = ssub.s32 %s16, %s28
    %s108 = ssub.s32 %s17, %s24
    %s109 = sor.u32 %s107, %s108
    %p110 = scmp.eq.s32.totalorder %s109, 0
    %s112 = sadd.s32 %s111, 1
    %s113 = scalar_select %p110, %s111, %s112
    %p116 = pneg %p110
    %p117 = scmp.eq.s32.totalorder %s9, 1
    %p118 = por %p116, %p117
    %p119 = scmp.ne.s32.totalorder %s111, %s114
    %p120 = scmp.eq.s32.totalorder %s9, 0
    %p121 = por %p119, %p120
    %p122 = scmp.ne.s32.totalorder %s111, %s114
    %p123 = scmp.eq.s32.totalorder %s14, 1
    %p124 = por %p122, %p123
    %p125 = scmp.ne.s32.totalorder %s114, %s115
    %p126 = scmp.eq.s32.totalorder %s14, 0
    %p127 = por %p125, %p126
    %p128 = scmp.ne.s32.totalorder %s114, %s115
    %p129 = scmp.eq.s32.totalorder %s15, 1
    %p130 = por %p128, %p129
    %p132 = scmp.ne.s32.totalorder %s115, %s131
    %p133 = scmp.eq.s32.totalorder %s15, 0
    %p134 = por %p132, %p133
    %p135 = scmp.le.s32.totalorder 1, %s9
    %p136 = scmp.lt.s32.totalorder %s9, 3
    %p137 = pnand %p135, %p136
    %p138 = pneg %p137
    // Predicated region
    $region9: #{discriminator_forward.9} parent=5 // pred_check
      _
    $region10: #{discriminator_forward.9} parent=5 // pred_check_branch
      %140 = sbr.rel (%p137) target = $region12
    $region11: #{discriminator_forward.9} parent=5 // pred_region
      %s141 = ssub.s32 %s9, 1
      // Predicated region
      $region13: #{discriminator_forward.9} parent=11 // pred_check
        %p142 = pneg %p73
      $region14: #{discriminator_forward.9} parent=11 // pred_check_branch
        %144 = sbr.rel (%p142) target = $region16
      $region15: #{discriminator_forward.9} parent=11 // pred_region
        %p145 = scmp.lt.s32.totalorder %s19, 0
        %s146 = scalar_select %p145, %s19, 0
        %s147 = smul.addr %s146, 4
        %s148 = scalar_lea.vmem %s1, %s147
      $region16: #{discriminator_forward.9} parent=11 // pred_fallthru
        _
      // Predicated region
      $region17: #{discriminator_forward.9} parent=11 // pred_check
        %p149 = pneg %p99
      $region18: #{discriminator_forward.9} parent=11 // pred_check_branch
        %151 = sbr.rel (%p149) target = $region20
      $region19: #{discriminator_forward.9} parent=11 // pred_region
        %p152 = scmp.lt.s32.totalorder %s19, 0
        %s153 = scalar_select %p152, %s19, 0
        %s154 = scalar_lea.vmem %s2, %s153
      $region20: #{discriminator_forward.9} parent=11 // pred_fallthru
        _
    $region12: #{discriminator_forward.9} parent=5 // pred_fallthru
      _
    %p155 = scmp.lt.s32.totalorder %s9, 2
    // Predicated region
    $region21: #{discriminator_forward.9} parent=5 // pred_check
      %p156 = pneg %p155
    $region22: #{discriminator_forward.9} parent=5 // pred_check_branch
      %158 = sbr.rel (%p156) target = $region24
    $region23: #{discriminator_forward.9} parent=5 // pred_region
      // Predicated region
      $region25: #{discriminator_forward.9} parent=23 // pred_check
        %p159 = pneg %p41
      $region26: #{discriminator_forward.9} parent=23 // pred_check_branch
        %161 = sbr.rel (%p159) target = $region28
      $region27: #{discriminator_forward.9} parent=23 // pred_region
        %p162 = scmp.lt.s32.totalorder %s16, 1
        %s163 = scalar_select %p162, %s16, 1
        %s164 = smul.addr %s163, 5
        %s165 = smul.addr %s164, 4
        %s166 = scalar_lea.vmem %s0, %s165
      $region28: #{discriminator_forward.9} parent=23 // pred_fallthru
        _
    $region24: #{discriminator_forward.9} parent=5 // pred_fallthru
      _
    %p167 = scmp.le.s32.totalorder 1, %s9
    %p168 = scmp.lt.s32.totalorder %s9, 3
    %p169 = pnand %p167, %p168
    %p170 = pneg %p169
    // Predicated region
    $region29: #{discriminator_forward.9} parent=5 // pred_check
      _
    $region30: #{discriminator_forward.9} parent=5 // pred_check_branch
      %172 = sbr.rel (%p169) target = $region32
    $region31: #{discriminator_forward.9} parent=5 // pred_region
      %s173 = ssub.s32 %s9, 1
      %p174 = scmp.lt.s32.totalorder %s18, 1
      %s175 = scalar_select %p174, %s18, 1
      %s176 = smul.addr %s175, 5
      %s177 = smul.addr %s176, 4
      %s178 = scalar_lea.vmem %s0, %s177
      %p179 = pneg %p47
      %p180 = pneg %p44
      %p181 = scmp.lt.s32.totalorder %s19, 0
      %s182 = scalar_select %p181, %s19, 0
      %s183 = smul.addr %s182, 4
      %s184 = scalar_lea.vmem %s1, %s183
      %p185 = pneg %p73
      %p186 = pneg %p70
      %p187 = scmp.lt.s32.totalorder %s19, 0
      %s188 = scalar_select %p187, %s19, 0
      %s189 = scalar_lea.vmem %s2, %s188
      %p190 = pneg %p99
      %p191 = pneg %p96
      %p192 = pneg %p127
      %p193 = pneg %p124
      %p194 = scmp.lt.s32.totalorder %s18, 1
      %s195 = scalar_select %p194, %s18, 1
      %p196 = scmp.lt.s32.totalorder %s19, 0
      %s197 = scalar_select %p196, %s19, 0
      %s198 = smul.addr %s195, 2
      %s199 = sadd.s32 %s197, %s198
      %s200 = smul.addr %s199, 8
      %s201 = scalar_lea.vmem %s3, %s200
      %p202 = scmp.lt.s32.totalorder %s18, 1
      %s203 = scalar_select %p202, %s18, 1
      %s204 = smul.addr %s203, 5
      %s205 = smul.addr %s204, 4
      %s206 = scalar_lea.vmem %s0, %s205
      %p207 = scmp.lt.s32.totalorder %s19, 0
      %s208 = scalar_select %p207, %s19, 0
      %s209 = smul.addr %s208, 4
      %s210 = scalar_lea.vmem %s1, %s209
      %p211 = scmp.lt.s32.totalorder %s19, 0
      %s212 = scalar_select %p211, %s19, 0
      %s213 = scalar_lea.vmem %s2, %s212
      %p214 = scmp.lt.s32.totalorder %s18, 1
      %s215 = scalar_select %p214, %s18, 1
      %p216 = scmp.lt.s32.totalorder %s19, 0
      %s217 = scalar_select %p216, %s19, 0
      %s218 = smul.addr %s215, 2
      %s219 = sadd.s32 %s217, %s218
      %s220 = smul.addr %s219, 8
      %s221 = scalar_lea.vmem %s3, %s220
      %223 = vst [vmem:[#allocation2] sm:$0xff] 0.0
      %224 = vst [vmem:[#allocation2 + $0x8] sm:$0xff] 0.0
      %v225 = vld [vmem:[%s206] sm:$0xf]
      %v226 = vld [vmem:[%s206 + $0x4] sm:$0xf]
      %v227 = vld [vmem:[#allocation2] sm:$0xff]
      %v228 = vld [vmem:[#allocation2 + $0x8] sm:$0xff]
      %v229 = vld [vmem:[%s210] sm:$0xf]
      %v230 = vld [vmem:[%s210 + $0x4] sm:$0xf]
      %v231 = vld [vmem:[%s210 + $0x8] sm:$0xf]
      %v232 = vld [vmem:[%s210 + $0xc] sm:$0xf]
      %v233 = vld [vmem:[%s210 + $0x10] sm:$0xf]
      %v234 = vld [vmem:[%s210 + $0x14] sm:$0xf]
      %v235 = vld [vmem:[%s210 + $0x18] sm:$0xf]
      %v236 = vld [vmem:[%s210 + $0x1c] sm:$0xf]
      %v237 = vld [vmem:[%s210 + $0x20] sm:$0xf]
      %v238 = vld [vmem:[%s210 + $0x24] sm:$0xf]
      %v239 = vld [vmem:[%s210 + $0x28] sm:$0xf]
      %v240 = vld [vmem:[%s210 + $0x2c] sm:$0xf]
      %v241 = vld [vmem:[%s210 + $0x30] sm:$0xf]
      %v242 = vld [vmem:[%s210 + $0x34] sm:$0xf]
      %v243 = vld [vmem:[%s210 + $0x38] sm:$0xf]
      %v244 = vld [vmem:[%s210 + $0x3c] sm:$0xf]
      %v247 = vunpack.c.l.b16 %v225
      %v248 = vunpack.c.l.b16 %v226
      %v249 = vpack.c.b16 %v248, %v247
      %v267 = vunpack.c.l.b16 %v229
      %v268 = vunpack.c.l.b16 %v230
      %v269 = vunpack.c.l.b16 %v231
      %v270 = vunpack.c.l.b16 %v232
      %v271 = vunpack.c.l.b16 %v233
      %v272 = vunpack.c.l.b16 %v234
      %v273 = vunpack.c.l.b16 %v235
      %v274 = vunpack.c.l.b16 %v236
      %v275 = vunpack.c.l.b16 %v237
      %v276 = vunpack.c.l.b16 %v238
      %v277 = vunpack.c.l.b16 %v239
      %v278 = vunpack.c.l.b16 %v240
      %v279 = vunpack.c.l.b16 %v241
      %v280 = vunpack.c.l.b16 %v242
      %v281 = vunpack.c.l.b16 %v243
      %v282 = vunpack.c.l.b16 %v244
      %v283 = vpack.c.b16 %v268, %v267
      %v284 = vpack.c.b16 %v270, %v269
      %v285 = vpack.c.b16 %v272, %v271
      %v286 = vpack.c.b16 %v274, %v273
      %v287 = vpack.c.b16 %v276, %v275
      %v288 = vpack.c.b16 %v278, %v277
      %v289 = vpack.c.b16 %v280, %v279
      %v290 = vpack.c.b16 %v282, %v281
      %299 = vmatprep.subr.bf16.mxu0 0
      %300 = vmatpush1.bf16.msra.mxu0 %v283
      %301 = vmatprep.subr.bf16.mxu0 0
      %302 = vmatpush1.bf16.msra.mxu0 %v284
      %303 = vmatprep.subr.bf16.mxu0 0
      %304 = vmatpush1.bf16.msra.mxu0 %v285
      %305 = vmatprep.subr.bf16.mxu0 0
      %306 = vmatpush1.bf16.msra.mxu0 %v286
      %307 = vmatprep.subr.bf16.mxu0 0
      %308 = vmatpush1.bf16.msra.mxu0 %v287
      %309 = vmatprep.subr.bf16.mxu0 0
      %310 = vmatpush1.bf16.msra.mxu0 %v288
      %311 = vmatprep.subr.bf16.mxu0 0
      %312 = vmatpush1.bf16.msra.mxu0 %v289
      %313 = vmatprep.subr.bf16.mxu0 0
      %314 = vmatpush1.bf16.msra.mxu0 %v290
      %315 = vmatprep.subr.bf16.mxu0 0
      %316 = vmatpush1.bf16.msra.mxu0 0
      %317 = vmatprep.subr.bf16.mxu0 0
      %318 = vmatpush1.bf16.msra.mxu0 0
      %319 = vmatprep.subr.bf16.mxu0 0
      %320 = vmatpush1.bf16.msra.mxu0 0
      %321 = vmatprep.subr.bf16.mxu0 0
      %322 = vmatpush1.bf16.msra.mxu0 0
      %323 = vmatprep.subr.bf16.mxu0 0
      %324 = vmatpush1.bf16.msra.mxu0 0
      %325 = vmatprep.subr.bf16.mxu0 0
      %326 = vmatpush1.bf16.msra.mxu0 0
      %327 = vmatprep.subr.bf16.mxu0 0
      %328 = vmatpush1.bf16.msra.mxu0 0
      %329 = vmatprep.subr.bf16.mxu0 0
      %330 = vmatpush1.bf16.msra.mxu0 0
      %331 = vmatprep.mubr.bf16.mxu0 0
      %332 = vmatmul.mubr.bf16.gmra.mrb[0].mxu0 %v249
      %v333 = vpop.f32.mrb[0].mxu0
      %v334 = vadd.f32 0.0, %v333
      %v335 = vpop.f32.mrb[0].mxu0
      %v336 = vpop.f32.mrb[0].mxu0
      %v337 = vadd.f32 0.0, %v336
      %v338 = vpop.f32.mrb[0].mxu0
      %339 = vdwg.mxu0
      %v340 = vadd.f32 %v227, %v334
      %v341 = vadd.f32 %v228, %v337
      %342 = vst [vmem:[#allocation2] sm:$0xff] %v340
      %343 = vst [vmem:[#allocation2 + $0x8] sm:$0xff] %v341
      %v344 = vld [vmem:[%s206] sm:$0xf]
      %v345 = vld [vmem:[%s206 + $0x4] sm:$0xf]
      %v346 = vld [vmem:[%s206 + $0x8] sm:$0x1]
      %v347 = vld [vmem:[#allocation2] sm:$0xff]
      %v348 = vld [vmem:[#allocation2 + $0x8] sm:$0xff]
      %s349 = scalar_lea.vmem %s210, 64
      %v350 = vld [vmem:[%s349] sm:$0xf]
      %v351 = vld [vmem:[%s349 + $0x4] sm:$0xf]
      %v352 = vld [vmem:[%s349 + $0x8] sm:$0xf]
      %v353 = vld [vmem:[%s349 + $0xc] sm:$0xf]
      %v354 = vld [vmem:[%s349 + $0x10] sm:$0xf]
      %v355 = vld [vmem:[%s349 + $0x14] sm:$0xf]
      %v356 = vld [vmem:[%s349 + $0x18] sm:$0xf]
      %v357 = vld [vmem:[%s349 + $0x1c] sm:$0xf]
      %v358 = vld [vmem:[%s349 + $0x20] sm:$0xf]
      %v359 = vld [vmem:[%s349 + $0x24] sm:$0xf]
      %v360 = vld [vmem:[%s349 + $0x28] sm:$0xf]
      %v361 = vld [vmem:[%s349 + $0x2c] sm:$0xf]
      %v362 = vld [vmem:[%s349 + $0x30] sm:$0xf]
      %v363 = vld [vmem:[%s349 + $0x34] sm:$0xf]
      %v364 = vld [vmem:[%s349 + $0x38] sm:$0xf]
      %v365 = vld [vmem:[%s349 + $0x3c] sm:$0xf]
      %v369 = vunpack.c.l.b16 %v344
      %v370 = vunpack.c.l.b16 %v345
      %v371 = vunpack.c.l.b16 %v346
      %v372 = vpack.c.b16 %v370, %v369
      %v373 = vpack.c.b16 %v371, %v371
      %vm374 = vsmask.f32 7424
      %v376 = vshrl.u32 %v372, 16
      %v378 = vshll.u32 %v372, 16
      %v380 = vrot.slane %v378, 1
      %v381 = vor.u32 %v376, %v380
      %v383 = vshll.u32 %v373, 16
      %v385 = vrot.slane %v383, 1
      %v386 = vsel %vm374, %v381, %v385
      %v404 = vunpack.c.l.b16 %v350
      %v405 = vunpack.c.l.b16 %v351
      %v406 = vunpack.c.l.b16 %v352
      %v407 = vunpack.c.l.b16 %v353
      %v408 = vunpack.c.l.b16 %v354
      %v409 = vunpack.c.l.b16 %v355
      %v410 = vunpack.c.l.b16 %v356
      %v411 = vunpack.c.l.b16 %v357
      %v412 = vunpack.c.l.b16 %v358
      %v413 = vunpack.c.l.b16 %v359
      %v414 = vunpack.c.l.b16 %v360
      %v415 = vunpack.c.l.b16 %v361
      %v416 = vunpack.c.l.b16 %v362
      %v417 = vunpack.c.l.b16 %v363
      %v418 = vunpack.c.l.b16 %v364
      %v419 = vunpack.c.l.b16 %v365
      %v420 = vpack.c.b16 %v405, %v404
      %v421 = vpack.c.b16 %v407, %v406
      %v422 = vpack.c.b16 %v409, %v408
      %v423 = vpack.c.b16 %v411, %v410
      %v424 = vpack.c.b16 %v413, %v412
      %v425 = vpack.c.b16 %v415, %v414
      %v426 = vpack.c.b16 %v417, %v416
      %v427 = vpack.c.b16 %v419, %v418
      %436 = vmatprep.subr.bf16.mxu0 0
      %437 = vmatpush1.bf16.msra.mxu0 %v420
      %438 = vmatprep.subr.bf16.mxu0 0
      %439 = vmatpush1.bf16.msra.mxu0 %v421
      %440 = vmatprep.subr.bf16.mxu0 0
      %441 = vmatpush1.bf16.msra.mxu0 %v422
      %442 = vmatprep.subr.bf16.mxu0 0
      %443 = vmatpush1.bf16.msra.mxu0 %v423
      %444 = vmatprep.subr.bf16.mxu0 0
      %445 = vmatpush1.bf16.msra.mxu0 %v424
      %446 = vmatprep.subr.bf16.mxu0 0
      %447 = vmatpush1.bf16.msra.mxu0 %v425
      %448 = vmatprep.subr.bf16.mxu0 0
      %449 = vmatpush1.bf16.msra.mxu0 %v426
      %450 = vmatprep.subr.bf16.mxu0 0
      %451 = vmatpush1.bf16.msra.mxu0 %v427
      %452 = vmatprep.subr.bf16.mxu0 0
      %453 = vmatpush1.bf16.msra.mxu0 0
      %454 = vmatprep.subr.bf16.mxu0 0
      %455 = vmatpush1.bf16.msra.mxu0 0
      %456 = vmatprep.subr.bf16.mxu0 0
      %457 = vmatpush1.bf16.msra.mxu0 0
      %458 = vmatprep.subr.bf16.mxu0 0
      %459 = vmatpush1.bf16.msra.mxu0 0
      %460 = vmatprep.subr.bf16.mxu0 0
      %461 = vmatpush1.bf16.msra.mxu0 0
      %462 = vmatprep.subr.bf16.mxu0 0
      %463 = vmatpush1.bf16.msra.mxu0 0
      %464 = vmatprep.subr.bf16.mxu0 0
      %465 = vmatpush1.bf16.msra.mxu0 0
      %466 = vmatprep.subr.bf16.mxu0 0
      %467 = vmatpush1.bf16.msra.mxu0 0
      %468 = vmatprep.mubr.bf16.mxu0 0
      %469 = vmatmul.mubr.bf16.gmra.mrb[0].mxu0 %v386
      %v470 = vpop.f32.mrb[0].mxu0
      %v471 = vadd.f32 0.0, %v470
      %v472 = vpop.f32.mrb[0].mxu0
      %v473 = vpop.f32.mrb[0].mxu0
      %v474 = vadd.f32 0.0, %v473
      %v475 = vpop.f32.mrb[0].mxu0
      %476 = vdwg.mxu0
      %v477 = vadd.f32 %v347, %v471
      %v478 = vadd.f32 %v348, %v474
      %479 = vst [vmem:[#allocation2] sm:$0xff] %v477
      %480 = vst [vmem:[#allocation2 + $0x8] sm:$0xff] %v478
      %v481 = vld [vmem:[%s206] sm:$0xe]
      %v482 = vld [vmem:[%s206 + $0x4] sm:$0xf]
      %v483 = vld [vmem:[%s206 + $0x8] sm:$0x1]
      %v484 = vld [vmem:[#allocation2] sm:$0xff]
      %v485 = vld [vmem:[#allocation2 + $0x8] sm:$0xff]
      %s486 = scalar_lea.vmem %s210, 128
      %v487 = vld [vmem:[%s486] sm:$0xf]
      %v488 = vld [vmem:[%s486 + $0x4] sm:$0xf]
      %v489 = vld [vmem:[%s486 + $0x8] sm:$0xf]
      %v490 = vld [vmem:[%s486 + $0xc] sm:$0xf]
      %v491 = vld [vmem:[%s486 + $0x10] sm:$0xf]
      %v492 = vld [vmem:[%s486 + $0x14] sm:$0xf]
      %v493 = vld [vmem:[%s486 + $0x18] sm:$0xf]
      %v494 = vld [vmem:[%s486 + $0x1c] sm:$0xf]
      %v495 = vld [vmem:[%s486 + $0x20] sm:$0xf]
      %v496 = vld [vmem:[%s486 + $0x24] sm:$0xf]
      %v497 = vld [vmem:[%s486 + $0x28] sm:$0xf]
      %v498 = vld [vmem:[%s486 + $0x2c] sm:$0xf]
      %v499 = vld [vmem:[%s486 + $0x30] sm:$0xf]
      %v500 = vld [vmem:[%s486 + $0x34] sm:$0xf]
      %v501 = vld [vmem:[%s486 + $0x38] sm:$0xf]
      %v502 = vld [vmem:[%s486 + $0x3c] sm:$0xf]
      %v506 = vunpack.c.l.b16 %v481
      %v507 = vunpack.c.l.b16 %v482
      %v508 = vunpack.c.l.b16 %v483
      %v509 = vpack.c.b16 %v507, %v506
      %v510 = vpack.c.b16 %v508, %v508
      %vm511 = vcmask 1046528
      %v512 = vrot.slane %v509, 1
      %v513 = vrot.slane %v510, 1
      %v514 = vsel %vm511, %v512, %v513
      %v532 = vunpack.c.l.b16 %v487
      %v533 = vunpack.c.l.b16 %v488
      %v534 = vunpack.c.l.b16 %v489
      %v535 = vunpack.c.l.b16 %v490
      %v536 = vunpack.c.l.b16 %v491
      %v537 = vunpack.c.l.b16 %v492
      %v538 = vunpack.c.l.b16 %v493
      %v539 = vunpack.c.l.b16 %v494
      %v540 = vunpack.c.l.b16 %v495
      %v541 = vunpack.c.l.b16 %v496
      %v542 = vunpack.c.l.b16 %v497
      %v543 = vunpack.c.l.b16 %v498
      %v544 = vunpack.c.l.b16 %v499
      %v545 = vunpack.c.l.b16 %v500
      %v546 = vunpack.c.l.b16 %v501
      %v547 = vunpack.c.l.b16 %v502
      %v548 = vpack.c.b16 %v533, %v532
      %v549 = vpack.c.b16 %v535, %v534
      %v550 = vpack.c.b16 %v537, %v536
      %v551 = vpack.c.b16 %v539, %v538
      %v552 = vpack.c.b16 %v541, %v540
      %v553 = vpack.c.b16 %v543, %v542
      %v554 = vpack.c.b16 %v545, %v544
      %v555 = vpack.c.b16 %v547, %v546
      %564 = vmatprep.subr.bf16.mxu0 0
      %565 = vmatpush1.bf16.msra.mxu0 %v548
      %566 = vmatprep.subr.bf16.mxu0 0
      %567 = vmatpush1.bf16.msra.mxu0 %v549
      %568 = vmatprep.subr.bf16.mxu0 0
      %569 = vmatpush1.bf16.msra.mxu0 %v550
      %570 = vmatprep.subr.bf16.mxu0 0
      %571 = vmatpush1.bf16.msra.mxu0 %v551
      %572 = vmatprep.subr.bf16.mxu0 0
      %573 = vmatpush1.bf16.msra.mxu0 %v552
      %574 = vmatprep.subr.bf16.mxu0 0
      %575 = vmatpush1.bf16.msra.mxu0 %v553
      %576 = vmatprep.subr.bf16.mxu0 0
      %577 = vmatpush1.bf16.msra.mxu0 %v554
      %578 = vmatprep.subr.bf16.mxu0 0
      %579 = vmatpush1.bf16.msra.mxu0 %v555
      %580 = vmatprep.subr.bf16.mxu0 0
      %581 = vmatpush1.bf16.msra.mxu0 0
      %582 = vmatprep.subr.bf16.mxu0 0
      %583 = vmatpush1.bf16.msra.mxu0 0
      %584 = vmatprep.subr.bf16.mxu0 0
      %585 = vmatpush1.bf16.msra.mxu0 0
      %586 = vmatprep.subr.bf16.mxu0 0
      %587 = vmatpush1.bf16.msra.mxu0 0
      %588 = vmatprep.subr.bf16.mxu0 0
      %589 = vmatpush1.bf16.msra.mxu0 0
      %590 = vmatprep.subr.bf16.mxu0 0
      %591 = vmatpush1.bf16.msra.mxu0 0
      %592 = vmatprep.subr.bf16.mxu0 0
      %593 = vmatpush1.bf16.msra.mxu0 0
      %594 = vmatprep.subr.bf16.mxu0 0
      %595 = vmatpush1.bf16.msra.mxu0 0
      %596 = vmatprep.mubr.bf16.mxu0 0
      %597 = vmatmul.mubr.bf16.gmra.mrb[0].mxu0 %v514
      %v598 = vpop.f32.mrb[0].mxu0
      %v599 = vadd.f32 0.0, %v598
      %v600 = vpop.f32.mrb[0].mxu0
      %v601 = vpop.f32.mrb[0].mxu0
      %v602 = vadd.f32 0.0, %v601
      %v603 = vpop.f32.mrb[0].mxu0
      %604 = vdwg.mxu0
      %v605 = vadd.f32 %v484, %v599
      %v606 = vadd.f32 %v485, %v602
      %607 = vst [vmem:[#allocation2] sm:$0xff] %v605
      %608 = vst [vmem:[#allocation2 + $0x8] sm:$0xff] %v606
      %v609 = vld [vmem:[%s206] sm:$0xe]
      %v610 = vld [vmem:[%s206 + $0x4] sm:$0xf]
      %v611 = vld [vmem:[%s206 + $0x8] sm:$0x3]
      %v612 = vld [vmem:[#allocation2] sm:$0xff]
      %v613 = vld [vmem:[#allocation2 + $0x8] sm:$0xff]
      %s614 = scalar_lea.vmem %s210, 192
      %v615 = vld [vmem:[%s614] sm:$0xf]
      %v616 = vld [vmem:[%s614 + $0x4] sm:$0xf]
      %v617 = vld [vmem:[%s614 + $0x8] sm:$0xf]
      %v618 = vld [vmem:[%s614 + $0xc] sm:$0xf]
      %v619 = vld [vmem:[%s614 + $0x10] sm:$0xf]
      %v620 = vld [vmem:[%s614 + $0x14] sm:$0xf]
      %v621 = vld [vmem:[%s614 + $0x18] sm:$0xf]
      %v622 = vld [vmem:[%s614 + $0x1c] sm:$0xf]
      %v623 = vld [vmem:[%s614 + $0x20] sm:$0xf]
      %v624 = vld [vmem:[%s614 + $0x24] sm:$0xf]
      %v625 = vld [vmem:[%s614 + $0x28] sm:$0xf]
      %v626 = vld [vmem:[%s614 + $0x2c] sm:$0xf]
      %v627 = vld [vmem:[%s614 + $0x30] sm:$0xf]
      %v628 = vld [vmem:[%s614 + $0x34] sm:$0xf]
      %v629 = vld [vmem:[%s614 + $0x38] sm:$0xf]
      %v630 = vld [vmem:[%s614 + $0x3c] sm:$0xf]
      %v634 = vunpack.c.l.b16 %v609
      %v635 = vunpack.c.l.b16 %v610
      %v636 = vunpack.c.l.b16 %v611
      %v637 = vpack.c.b16 %v635, %v634
      %v638 = vpack.c.b16 %v636, %v636
      %vm639 = vsmask.f32 6400
      %v641 = vshrl.u32 %v637, 16
      %v643 = vrot.slane %v641, 1
      %v644 = vshll.u32 %v637, 16
      %v646 = vrot.slane %v644, 2
      %v647 = vor.u32 %v643, %v646
      %v649 = vshrl.u32 %v638, 16
      %v651 = vrot.slane %v649, 1
      %v652 = vshll.u32 %v638, 16
      %v654 = vrot.slane %v652, 2
      %v655 = vor.u32 %v651, %v654
      %v656 = vsel %vm639, %v647, %v655
      %v674 = vunpack.c.l.b16 %v615
      %v675 = vunpack.c.l.b16 %v616
      %v676 = vunpack.c.l.b16 %v617
      %v677 = vunpack.c.l.b16 %v618
      %v678 = vunpack.c.l.b16 %v619
      %v679 = vunpack.c.l.b16 %v620
      %v680 = vunpack.c.l.b16 %v621
      %v681 = vunpack.c.l.b16 %v622
      %v682 = vunpack.c.l.b16 %v623
      %v683 = vunpack.c.l.b16 %v624
      %v684 = vunpack.c.l.b16 %v625
      %v685 = vunpack.c.l.b16 %v626
      %v686 = vunpack.c.l.b16 %v627
      %v687 = vunpack.c.l.b16 %v628
      %v688 = vunpack.c.l.b16 %v629
      %v689 = vunpack.c.l.b16 %v630
      %v690 = vpack.c.b16 %v675, %v674
      %v691 = vpack.c.b16 %v677, %v676
      %v692 = vpack.c.b16 %v679, %v678
      %v693 = vpack.c.b16 %v681, %v680
      %v694 = vpack.c.b16 %v683, %v682
      %v695 = vpack.c.b16 %v685, %v684
      %v696 = vpack.c.b16 %v687, %v686
      %v697 = vpack.c.b16 %v689, %v688
      %706 = vmatprep.subr.bf16.mxu0 0
      %707 = vmatpush1.bf16.msra.mxu0 %v690
      %708 = vmatprep.subr.bf16.mxu0 0
      %709 = vmatpush1.bf16.msra.mxu0 %v691
      %710 = vmatprep.subr.bf16.mxu0 0
      %711 = vmatpush1.bf16.msra.mxu0 %v692
      %712 = vmatprep.subr.bf16.mxu0 0
      %713 = vmatpush1.bf16.msra.mxu0 %v693
      %714 = vmatprep.subr.bf16.mxu0 0
      %715 = vmatpush1.bf16.msra.mxu0 %v694
      %716 = vmatprep.subr.bf16.mxu0 0
      %717 = vmatpush1.bf16.msra.mxu0 %v695
      %718 = vmatprep.subr.bf16.mxu0 0
      %719 = vmatpush1.bf16.msra.mxu0 %v696
      %720 = vmatprep.subr.bf16.mxu0 0
      %721 = vmatpush1.bf16.msra.mxu0 %v697
      %722 = vmatprep.subr.bf16.mxu0 0
      %723 = vmatpush1.bf16.msra.mxu0 0
      %724 = vmatprep.subr.bf16.mxu0 0
      %725 = vmatpush1.bf16.msra.mxu0 0
      %726 = vmatprep.subr.bf16.mxu0 0
      %727 = vmatpush1.bf16.msra.mxu0 0
      %728 = vmatprep.subr.bf16.mxu0 0
      %729 = vmatpush1.bf16.msra.mxu0 0
      %730 = vmatprep.subr.bf16.mxu0 0
      %731 = vmatpush1.bf16.msra.mxu0 0
      %732 = vmatprep.subr.bf16.mxu0 0
      %733 = vmatpush1.bf16.msra.mxu0 0
      %734 = vmatprep.subr.bf16.mxu0 0
      %735 = vmatpush1.bf16.msra.mxu0 0
      %736 = vmatprep.subr.bf16.mxu0 0
      %737 = vmatpush1.bf16.msra.mxu0 0
      %738 = vmatprep.mubr.bf16.mxu0 0
      %739 = vmatmul.mubr.bf16.gmra.mrb[0].mxu0 %v656
      %v740 = vpop.f32.mrb[0].mxu0
      %v741 = vadd.f32 0.0, %v740
      %v742 = vpop.f32.mrb[0].mxu0
      %v743 = vpop.f32.mrb[0].mxu0
      %v744 = vadd.f32 0.0, %v743
      %v745 = vpop.f32.mrb[0].mxu0
      %746 = vdwg.mxu0
      %v747 = vadd.f32 %v612, %v741
      %v748 = vadd.f32 %v613, %v744
      %749 = vst [vmem:[#allocation2] sm:$0xff] %v747
      %750 = vst [vmem:[#allocation2 + $0x8] sm:$0xff] %v748
      %v751 = vld [vmem:[%s206] sm:$0xc]
      %v752 = vld [vmem:[%s206 + $0x4] sm:$0xf]
      %v753 = vld [vmem:[%s206 + $0x8] sm:$0x7]
      %v754 = vld [vmem:[#allocation2] sm:$0xff]
      %v755 = vld [vmem:[#allocation2 + $0x8] sm:$0xff]
      %s756 = scalar_lea.vmem %s210, 256
      %v757 = vld [vmem:[%s756] sm:$0xf]
      %v758 = vld [vmem:[%s756 + $0x4] sm:$0xf]
      %v759 = vld [vmem:[%s756 + $0x8] sm:$0xf]
      %v760 = vld [vmem:[%s756 + $0xc] sm:$0xf]
      %v761 = vld [vmem:[%s756 + $0x10] sm:$0xf]
      %v762 = vld [vmem:[%s756 + $0x14] sm:$0xf]
      %v763 = vld [vmem:[%s756 + $0x18] sm:$0xf]
      %v764 = vld [vmem:[%s756 + $0x1c] sm:$0xf]
      %v765 = vld [vmem:[%s756 + $0x20] sm:$0xf]
      %v766 = vld [vmem:[%s756 + $0x24] sm:$0xf]
      %v767 = vld [vmem:[%s756 + $0x28] sm:$0xf]
      %v768 = vld [vmem:[%s756 + $0x2c] sm:$0xf]
      %v769 = vld [vmem:[%s756 + $0x30] sm:$0xf]
      %v770 = vld [vmem:[%s756 + $0x34] sm:$0xf]
      %v771 = vld [vmem:[%s756 + $0x38] sm:$0xf]
      %v772 = vld [vmem:[%s756 + $0x3c] sm:$0xf]
      %v776 = vunpack.c.l.b16 %v751
      %v777 = vunpack.c.l.b16 %v752
      %v778 = vunpack.c.l.b16 %v753
      %v779 = vpack.c.b16 %v777, %v776
      %v780 = vpack.c.b16 %v778, %v778
      %vm781 = vsmask.f32 5376
      %v783 = vshrl.u32 %v779, 16
      %v785 = vrot.slane %v783, 2
      %v786 = vshll.u32 %v779, 16
      %v788 = vrot.slane %v786, 3
      %v789 = vor.u32 %v785, %v788
      %v791 = vshrl.u32 %v780, 16
      %v793 = vrot.slane %v791, 2
      %v794 = vshll.u32 %v780, 16
      %v796 = vrot.slane %v794, 3
      %v797 = vor.u32 %v793, %v796
      %v798 = vsel %vm781, %v789, %v797
      %v816 = vunpack.c.l.b16 %v757
      %v817 = vunpack.c.l.b16 %v758
      %v818 = vunpack.c.l.b16 %v759
      %v819 = vunpack.c.l.b16 %v760
      %v820 = vunpack.c.l.b16 %v761
      %v821 = vunpack.c.l.b16 %v762
      %v822 = vunpack.c.l.b16 %v763
      %v823 = vunpack.c.l.b16 %v764
      %v824 = vunpack.c.l.b16 %v765
      %v825 = vunpack.c.l.b16 %v766
      %v826 = vunpack.c.l.b16 %v767
      %v827 = vunpack.c.l.b16 %v768
      %v828 = vunpack.c.l.b16 %v769
      %v829 = vunpack.c.l.b16 %v770
      %v830 = vunpack.c.l.b16 %v771
      %v831 = vunpack.c.l.b16 %v772
      %v832 = vpack.c.b16 %v817, %v816
      %v833 = vpack.c.b16 %v819, %v818
      %v834 = vpack.c.b16 %v821, %v820
      %v835 = vpack.c.b16 %v823, %v822
      %v836 = vpack.c.b16 %v825, %v824
      %v837 = vpack.c.b16 %v827, %v826
      %v838 = vpack.c.b16 %v829, %v828
      %v839 = vpack.c.b16 %v831, %v830
      %848 = vmatprep.subr.bf16.mxu0 0
      %849 = vmatpush1.bf16.msra.mxu0 %v832
      %850 = vmatprep.subr.bf16.mxu0 0
      %851 = vmatpush1.bf16.msra.mxu0 %v833
      %852 = vmatprep.subr.bf16.mxu0 0
      %853 = vmatpush1.bf16.msra.mxu0 %v834
      %854 = vmatprep.subr.bf16.mxu0 0
      %855 = vmatpush1.bf16.msra.mxu0 %v835
      %856 = vmatprep.subr.bf16.mxu0 0
      %857 = vmatpush1.bf16.msra.mxu0 %v836
      %858 = vmatprep.subr.bf16.mxu0 0
      %859 = vmatpush1.bf16.msra.mxu0 %v837
      %860 = vmatprep.subr.bf16.mxu0 0
      %861 = vmatpush1.bf16.msra.mxu0 %v838
      %862 = vmatprep.subr.bf16.mxu0 0
      %863 = vmatpush1.bf16.msra.mxu0 %v839
      %864 = vmatprep.subr.bf16.mxu0 0
      %865 = vmatpush1.bf16.msra.mxu0 0
      %866 = vmatprep.subr.bf16.mxu0 0
      %867 = vmatpush1.bf16.msra.mxu0 0
      %868 = vmatprep.subr.bf16.mxu0 0
      %869 = vmatpush1.bf16.msra.mxu0 0
      %870 = vmatprep.subr.bf16.mxu0 0
      %871 = vmatpush1.bf16.msra.mxu0 0
      %872 = vmatprep.subr.bf16.mxu0 0
      %873 = vmatpush1.bf16.msra.mxu0 0
      %874 = vmatprep.subr.bf16.mxu0 0
      %875 = vmatpush1.bf16.msra.mxu0 0
      %876 = vmatprep.subr.bf16.mxu0 0
      %877 = vmatpush1.bf16.msra.mxu0 0
      %878 = vmatprep.subr.bf16.mxu0 0
      %879 = vmatpush1.bf16.msra.mxu0 0
      %880 = vmatprep.mubr.bf16.mxu0 0
      %881 = vmatmul.mubr.bf16.gmra.mrb[0].mxu0 %v798
      %v882 = vpop.f32.mrb[0].mxu0
      %v883 = vadd.f32 0.0, %v882
      %v884 = vpop.f32.mrb[0].mxu0
      %v885 = vpop.f32.mrb[0].mxu0
      %v886 = vadd.f32 0.0, %v885
      %v887 = vpop.f32.mrb[0].mxu0
      %888 = vdwg.mxu0
      %v889 = vadd.f32 %v754, %v883
      %v890 = vadd.f32 %v755, %v886
      %891 = vst [vmem:[#allocation2] sm:$0xff] %v889
      %892 = vst [vmem:[#allocation2 + $0x8] sm:$0xff] %v890
      %v893 = vld [vmem:[%s206] sm:$0x8]
      %v894 = vld [vmem:[%s206 + $0x4] sm:$0xf]
      %v895 = vld [vmem:[%s206 + $0x8] sm:$0x7]
      %v896 = vld [vmem:[#allocation2] sm:$0xff]
      %v897 = vld [vmem:[#allocation2 + $0x8] sm:$0xff]
      %s898 = scalar_lea.vmem %s210, 320
      %v899 = vld [vmem:[%s898] sm:$0xf]
      %v900 = vld [vmem:[%s898 + $0x4] sm:$0xf]
      %v901 = vld [vmem:[%s898 + $0x8] sm:$0xf]
      %v902 = vld [vmem:[%s898 + $0xc] sm:$0xf]
      %v903 = vld [vmem:[%s898 + $0x10] sm:$0xf]
      %v904 = vld [vmem:[%s898 + $0x14] sm:$0xf]
      %v905 = vld [vmem:[%s898 + $0x18] sm:$0xf]
      %v906 = vld [vmem:[%s898 + $0x1c] sm:$0xf]
      %v907 = vld [vmem:[%s898 + $0x20] sm:$0xf]
      %v908 = vld [vmem:[%s898 + $0x24] sm:$0xf]
      %v909 = vld [vmem:[%s898 + $0x28] sm:$0xf]
      %v910 = vld [vmem:[%s898 + $0x2c] sm:$0xf]
      %v911 = vld [vmem:[%s898 + $0x30] sm:$0xf]
      %v912 = vld [vmem:[%s898 + $0x34] sm:$0xf]
      %v913 = vld [vmem:[%s898 + $0x38] sm:$0xf]
      %v914 = vld [vmem:[%s898 + $0x3c] sm:$0xf]
      %v918 = vunpack.c.l.b16 %v893
      %v919 = vunpack.c.l.b16 %v894
      %v920 = vunpack.c.l.b16 %v895
      %v921 = vpack.c.b16 %v919, %v918
      %v922 = vpack.c.b16 %v920, %v920
      %vm923 = vcmask 1044480
      %v924 = vrot.slane %v921, 3
      %v925 = vrot.slane %v922, 3
      %v926 = vsel %vm923, %v924, %v925
      %v944 = vunpack.c.l.b16 %v899
      %v945 = vunpack.c.l.b16 %v900
      %v946 = vunpack.c.l.b16 %v901
      %v947 = vunpack.c.l.b16 %v902
      %v948 = vunpack.c.l.b16 %v903
      %v949 = vunpack.c.l.b16 %v904
      %v950 = vunpack.c.l.b16 %v905
      %v951 = vunpack.c.l.b16 %v906
      %v952 = vunpack.c.l.b16 %v907
      %v953 = vunpack.c.l.b16 %v908
      %v954 = vunpack.c.l.b16 %v909
      %v955 = vunpack.c.l.b16 %v910
      %v956 = vunpack.c.l.b16 %v911
      %v957 = vunpack.c.l.b16 %v912
      %v958 = vunpack.c.l.b16 %v913
      %v959 = vunpack.c.l.b16 %v914
      %v960 = vpack.c.b16 %v945, %v944
      %v961 = vpack.c.b16 %v947, %v946
      %v962 = vpack.c.b16 %v949, %v948
      %v963 = vpack.c.b16 %v951, %v950
      %v964 = vpack.c.b16 %v953, %v952
      %v965 = vpack.c.b16 %v955, %v954
      %v966 = vpack.c.b16 %v957, %v956
      %v967 = vpack.c.b16 %v959, %v958
      %976 = vmatprep.subr.bf16.mxu0 0
      %977 = vmatpush1.bf16.msra.mxu0 %v960
      %978 = vmatprep.subr.bf16.mxu0 0
      %979 = vmatpush1.bf16.msra.mxu0 %v961
      %980 = vmatprep.subr.bf16.mxu0 0
      %981 = vmatpush1.bf16.msra.mxu0 %v962
      %982 = vmatprep.subr.bf16.mxu0 0
      %983 = vmatpush1.bf16.msra.mxu0 %v963
      %984 = vmatprep.subr.bf16.mxu0 0
      %985 = vmatpush1.bf16.msra.mxu0 %v964
      %986 = vmatprep.subr.bf16.mxu0 0
      %987 = vmatpush1.bf16.msra.mxu0 %v965
      %988 = vmatprep.subr.bf16.mxu0 0
      %989 = vmatpush1.bf16.msra.mxu0 %v966
      %990 = vmatprep.subr.bf16.mxu0 0
      %991 = vmatpush1.bf16.msra.mxu0 %v967
      %992 = vmatprep.subr.bf16.mxu0 0
      %993 = vmatpush1.bf16.msra.mxu0 0
      %994 = vmatprep.subr.bf16.mxu0 0
      %995 = vmatpush1.bf16.msra.mxu0 0
      %996 = vmatprep.subr.bf16.mxu0 0
      %997 = vmatpush1.bf16.msra.mxu0 0
      %998 = vmatprep.subr.bf16.mxu0 0
      %999 = vmatpush1.bf16.msra.mxu0 0
      %1000 = vmatprep.subr.bf16.mxu0 0
      %1001 = vmatpush1.bf16.msra.mxu0 0
      %1002 = vmatprep.subr.bf16.mxu0 0
      %1003 = vmatpush1.bf16.msra.mxu0 0
      %1004 = vmatprep.subr.bf16.mxu0 0
      %1005 = vmatpush1.bf16.msra.mxu0 0
      %1006 = vmatprep.subr.bf16.mxu0 0
      %1007 = vmatpush1.bf16.msra.mxu0 0
      %1008 = vmatprep.mubr.bf16.mxu0 0
      %1009 = vmatmul.mubr.bf16.gmra.mrb[0].mxu0 %v926
      %v1010 = vpop.f32.mrb[0].mxu0
      %v1011 = vadd.f32 0.0, %v1010
      %v1012 = vpop.f32.mrb[0].mxu0
      %v1013 = vpop.f32.mrb[0].mxu0
      %v1014 = vadd.f32 0.0, %v1013
      %v1015 = vpop.f32.mrb[0].mxu0
      %1016 = vdwg.mxu0
      %v1017 = vadd.f32 %v896, %v1011
      %v1018 = vadd.f32 %v897, %v1014
      %1019 = vst [vmem:[#allocation2] sm:$0xff] %v1017
      %1020 = vst [vmem:[#allocation2 + $0x8] sm:$0xff] %v1018
      %v1021 = vld [vmem:[%s206] sm:$0x8]
      %v1022 = vld [vmem:[%s206 + $0x4] sm:$0xf]
      %v1023 = vld [vmem:[%s206 + $0x8] sm:$0xf]
      %v1024 = vld [vmem:[#allocation2] sm:$0xff]
      %v1025 = vld [vmem:[#allocation2 + $0x8] sm:$0xff]
      %s1026 = scalar_lea.vmem %s210, 384
      %v1027 = vld [vmem:[%s1026] sm:$0xf]
      %v1028 = vld [vmem:[%s1026 + $0x4] sm:$0xf]
      %v1029 = vld [vmem:[%s1026 + $0x8] sm:$0xf]
      %v1030 = vld [vmem:[%s1026 + $0xc] sm:$0xf]
      %v1031 = vld [vmem:[%s1026 + $0x10] sm:$0xf]
      %v1032 = vld [vmem:[%s1026 + $0x14] sm:$0xf]
      %v1033 = vld [vmem:[%s1026 + $0x18] sm:$0xf]
      %v1034 = vld [vmem:[%s1026 + $0x1c] sm:$0xf]
      %v1035 = vld [vmem:[%s1026 + $0x20] sm:$0xf]
      %v1036 = vld [vmem:[%s1026 + $0x24] sm:$0xf]
      %v1037 = vld [vmem:[%s1026 + $0x28] sm:$0xf]
      %v1038 = vld [vmem:[%s1026 + $0x2c] sm:$0xf]
      %v1039 = vld [vmem:[%s1026 + $0x30] sm:$0xf]
      %v1040 = vld [vmem:[%s1026 + $0x34] sm:$0xf]
      %v1041 = vld [vmem:[%s1026 + $0x38] sm:$0xf]
      %v1042 = vld [vmem:[%s1026 + $0x3c] sm:$0xf]
      %v1046 = vunpack.c.l.b16 %v1021
      %v1047 = vunpack.c.l.b16 %v1022
      %v1048 = vunpack.c.l.b16 %v1023
      %v1049 = vpack.c.b16 %v1047, %v1046
      %v1050 = vpack.c.b16 %v1048, %v1048
      %vm1051 = vsmask.f32 4352
      %v1053 = vshrl.u32 %v1049, 16
      %v1055 = vrot.slane %v1053, 3
      %v1056 = vshll.u32 %v1049, 16
      %v1058 = vrot.slane %v1056, 4
      %v1059 = vor.u32 %v1055, %v1058
      %v1061 = vshrl.u32 %v1050, 16
      %v1063 = vrot.slane %v1061, 3
      %v1064 = vshll.u32 %v1050, 16
      %v1066 = vrot.slane %v1064, 4
      %v1067 = vor.u32 %v1063, %v1066
      %v1068 = vsel %vm1051, %v1059, %v1067
      %v1086 = vunpack.c.l.b16 %v1027
      %v1087 = vunpack.c.l.b16 %v1028
      %v1088 = vunpack.c.l.b16 %v1029
      %v1089 = vunpack.c.l.b16 %v1030
      %v1090 = vunpack.c.l.b16 %v1031
      %v1091 = vunpack.c.l.b16 %v1032
      %v1092 = vunpack.c.l.b16 %v1033
      %v1093 = vunpack.c.l.b16 %v1034
      %v1094 = vunpack.c.l.b16 %v1035
      %v1095 = vunpack.c.l.b16 %v1036
      %v1096 = vunpack.c.l.b16 %v1037
      %v1097 = vunpack.c.l.b16 %v1038
      %v1098 = vunpack.c.l.b16 %v1039
      %v1099 = vunpack.c.l.b16 %v1040
      %v1100 = vunpack.c.l.b16 %v1041
      %v1101 = vunpack.c.l.b16 %v1042
      %v1102 = vpack.c.b16 %v1087, %v1086
      %v1103 = vpack.c.b16 %v1089, %v1088
      %v1104 = vpack.c.b16 %v1091, %v1090
      %v1105 = vpack.c.b16 %v1093, %v1092
      %v1106 = vpack.c.b16 %v1095, %v1094
      %v1107 = vpack.c.b16 %v1097, %v1096
      %v1108 = vpack.c.b16 %v1099, %v1098
      %v1109 = vpack.c.b16 %v1101, %v1100
      %1118 = vmatprep.subr.bf16.mxu0 0
      %1119 = vmatpush1.bf16.msra.mxu0 %v1102
      %1120 = vmatprep.subr.bf16.mxu0 0
      %1121 = vmatpush1.bf16.msra.mxu0 %v1103
      %1122 = vmatprep.subr.bf16.mxu0 0
      %1123 = vmatpush1.bf16.msra.mxu0 %v1104
      %1124 = vmatprep.subr.bf16.mxu0 0
      %1125 = vmatpush1.bf16.msra.mxu0 %v1105
      %1126 = vmatprep.subr.bf16.mxu0 0
      %1127 = vmatpush1.bf16.msra.mxu0 %v1106
      %1128 = vmatprep.subr.bf16.mxu0 0
      %1129 = vmatpush1.bf16.msra.mxu0 %v1107
      %1130 = vmatprep.subr.bf16.mxu0 0
      %1131 = vmatpush1.bf16.msra.mxu0 %v1108
      %1132 = vmatprep.subr.bf16.mxu0 0
      %1133 = vmatpush1.bf16.msra.mxu0 %v1109
      %1134 = vmatprep.subr.bf16.mxu0 0
      %1135 = vmatpush1.bf16.msra.mxu0 0
      %1136 = vmatprep.subr.bf16.mxu0 0
      %1137 = vmatpush1.bf16.msra.mxu0 0
      %1138 = vmatprep.subr.bf16.mxu0 0
      %1139 = vmatpush1.bf16.msra.mxu0 0
      %1140 = vmatprep.subr.bf16.mxu0 0
      %1141 = vmatpush1.bf16.msra.mxu0 0
      %1142 = vmatprep.subr.bf16.mxu0 0
      %1143 = vmatpush1.bf16.msra.mxu0 0
      %1144 = vmatprep.subr.bf16.mxu0 0
      %1145 = vmatpush1.bf16.msra.mxu0 0
      %1146 = vmatprep.subr.bf16.mxu0 0
      %1147 = vmatpush1.bf16.msra.mxu0 0
      %1148 = vmatprep.subr.bf16.mxu0 0
      %1149 = vmatpush1.bf16.msra.mxu0 0
      %1150 = vmatprep.mubr.bf16.mxu0 0
      %1151 = vmatmul.mubr.bf16.gmra.mrb[0].mxu0 %v1068
      %v1152 = vpop.f32.mrb[0].mxu0
      %v1153 = vadd.f32 0.0, %v1152
      %v1154 = vpop.f32.mrb[0].mxu0
      %v1155 = vpop.f32.mrb[0].mxu0
      %v1156 = vadd.f32 0.0, %v1155
      %v1157 = vpop.f32.mrb[0].mxu0
      %1158 = vdwg.mxu0
      %v1159 = vadd.f32 %v1024, %v1153
      %v1160 = vadd.f32 %v1025, %v1156
      %1161 = vst [vmem:[#allocation2] sm:$0xff] %v1159
      %1162 = vst [vmem:[#allocation2 + $0x8] sm:$0xff] %v1160
      %v1163 = vld [vmem:[%s206 + $0x4] sm:$0xf]
      %v1164 = vld [vmem:[%s206 + $0x8] sm:$0xf]
      %v1165 = vld [vmem:[#allocation2] sm:$0xff]
      %v1166 = vld [vmem:[#allocation2 + $0x8] sm:$0xff]
      %s1167 = scalar_lea.vmem %s210, 448
      %v1168 = vld [vmem:[%s1167] sm:$0xf]
      %v1169 = vld [vmem:[%s1167 + $0x4] sm:$0xf]
      %v1170 = vld [vmem:[%s1167 + $0x8] sm:$0xf]
      %v1171 = vld [vmem:[%s1167 + $0xc] sm:$0xf]
      %v1172 = vld [vmem:[%s1167 + $0x10] sm:$0xf]
      %v1173 = vld [vmem:[%s1167 + $0x14] sm:$0xf]
      %v1174 = vld [vmem:[%s1167 + $0x18] sm:$0xf]
      %v1175 = vld [vmem:[%s1167 + $0x1c] sm:$0xf]
      %v1176 = vld [vmem:[%s1167 + $0x20] sm:$0xf]
      %v1177 = vld [vmem:[%s1167 + $0x24] sm:$0xf]
      %v1178 = vld [vmem:[%s1167 + $0x28] sm:$0xf]
      %v1179 = vld [vmem:[%s1167 + $0x2c] sm:$0xf]
      %v1180 = vld [vmem:[%s1167 + $0x30] sm:$0xf]
      %v1181 = vld [vmem:[%s1167 + $0x34] sm:$0xf]
      %v1182 = vld [vmem:[%s1167 + $0x38] sm:$0xf]
      %v1183 = vld [vmem:[%s1167 + $0x3c] sm:$0xf]
      %v1186 = vunpack.c.l.b16 %v1163
      %v1187 = vunpack.c.l.b16 %v1164
      %v1188 = vpack.c.b16 %v1187, %v1186
      %v1206 = vunpack.c.l.b16 %v1168
      %v1207 = vunpack.c.l.b16 %v1169
      %v1208 = vunpack.c.l.b16 %v1170
      %v1209 = vunpack.c.l.b16 %v1171
      %v1210 = vunpack.c.l.b16 %v1172
      %v1211 = vunpack.c.l.b16 %v1173
      %v1212 = vunpack.c.l.b16 %v1174
      %v1213 = vunpack.c.l.b16 %v1175
      %v1214 = vunpack.c.l.b16 %v1176
      %v1215 = vunpack.c.l.b16 %v1177
      %v1216 = vunpack.c.l.b16 %v1178
      %v1217 = vunpack.c.l.b16 %v1179
      %v1218 = vunpack.c.l.b16 %v1180
      %v1219 = vunpack.c.l.b16 %v1181
      %v1220 = vunpack.c.l.b16 %v1182
      %v1221 = vunpack.c.l.b16 %v1183
      %v1222 = vpack.c.b16 %v1207, %v1206
      %v1223 = vpack.c.b16 %v1209, %v1208
      %v1224 = vpack.c.b16 %v1211, %v1210
      %v1225 = vpack.c.b16 %v1213, %v1212
      %v1226 = vpack.c.b16 %v1215, %v1214
      %v1227 = vpack.c.b16 %v1217, %v1216
      %v1228 = vpack.c.b16 %v1219, %v1218
      %v1229 = vpack.c.b16 %v1221, %v1220
      %1238 = vmatprep.subr.bf16.mxu0 0
      %1239 = vmatpush1.bf16.msra.mxu0 %v1222
      %1240 = vmatprep.subr.bf16.mxu0 0
      %1241 = vmatpush1.bf16.msra.mxu0 %v1223
      %1242 = vmatprep.subr.bf16.mxu0 0
      %1243 = vmatpush1.bf16.msra.mxu0 %v1224
      %1244 = vmatprep.subr.bf16.mxu0 0
      %1245 = vmatpush1.bf16.msra.mxu0 %v1225
      %1246 = vmatprep.subr.bf16.mxu0 0
      %1247 = vmatpush1.bf16.msra.mxu0 %v1226
      %1248 = vmatprep.subr.bf16.mxu0 0
      %1249 = vmatpush1.bf16.msra.mxu0 %v1227
      %1250 = vmatprep.subr.bf16.mxu0 0
      %1251 = vmatpush1.bf16.msra.mxu0 %v1228
      %1252 = vmatprep.subr.bf16.mxu0 0
      %1253 = vmatpush1.bf16.msra.mxu0 %v1229
      %1254 = vmatprep.subr.bf16.mxu0 0
      %1255 = vmatpush1.bf16.msra.mxu0 0
      %1256 = vmatprep.subr.bf16.mxu0 0
      %1257 = vmatpush1.bf16.msra.mxu0 0
      %1258 = vmatprep.subr.bf16.mxu0 0
      %1259 = vmatpush1.bf16.msra.mxu0 0
      %1260 = vmatprep.subr.bf16.mxu0 0
      %1261 = vmatpush1.bf16.msra.mxu0 0
      %1262 = vmatprep.subr.bf16.mxu0 0
      %1263 = vmatpush1.bf16.msra.mxu0 0
      %1264 = vmatprep.subr.bf16.mxu0 0
      %1265 = vmatpush1.bf16.msra.mxu0 0
      %1266 = vmatprep.subr.bf16.mxu0 0
      %1267 = vmatpush1.bf16.msra.mxu0 0
      %1268 = vmatprep.subr.bf16.mxu0 0
      %1269 = vmatpush1.bf16.msra.mxu0 0
      %1270 = vmatprep.mubr.bf16.mxu0 0
      %1271 = vmatmul.mubr.bf16.gmra.mrb[0].mxu0 %v1188
      %v1272 = vpop.f32.mrb[0].mxu0
      %v1273 = vadd.f32 0.0, %v1272
      %v1274 = vpop.f32.mrb[0].mxu0
      %v1275 = vpop.f32.mrb[0].mxu0
      %v1276 = vadd.f32 0.0, %v1275
      %v1277 = vpop.f32.mrb[0].mxu0
      %1278 = vdwg.mxu0
      %v1279 = vadd.f32 %v1165, %v1273
      %v1280 = vadd.f32 %v1166, %v1276
      %1281 = vst [vmem:[#allocation2] sm:$0xff] %v1279
      %1282 = vst [vmem:[#allocation2 + $0x8] sm:$0xff] %v1280
      %v1283 = vld [vmem:[%s206 + $0x4] sm:$0xe]
      %v1284 = vld [vmem:[%s206 + $0x8] sm:$0xf]
      %v1285 = vld [vmem:[%s206 + $0xc] sm:$0x1]
      %v1286 = vld [vmem:[#allocation2] sm:$0xff]
      %v1287 = vld [vmem:[#allocation2 + $0x8] sm:$0xff]
      %s1288 = scalar_lea.vmem %s210, 512
      %v1289 = vld [vmem:[%s1288] sm:$0xf]
      %v1290 = vld [vmem:[%s1288 + $0x4] sm:$0xf]
      %v1291 = vld [vmem:[%s1288 + $0x8] sm:$0xf]
      %v1292 = vld [vmem:[%s1288 + $0xc] sm:$0xf]
      %v1293 = vld [vmem:[%s1288 + $0x10] sm:$0xf]
      %v1294 = vld [vmem:[%s1288 + $0x14] sm:$0xf]
      %v1295 = vld [vmem:[%s1288 + $0x18] sm:$0xf]
      %v1296 = vld [vmem:[%s1288 + $0x1c] sm:$0xf]
      %v1297 = vld [vmem:[%s1288 + $0x20] sm:$0xf]
      %v1298 = vld [vmem:[%s1288 + $0x24] sm:$0xf]
      %v1299 = vld [vmem:[%s1288 + $0x28] sm:$0xf]
      %v1300 = vld [vmem:[%s1288 + $0x2c] sm:$0xf]
      %v1301 = vld [vmem:[%s1288 + $0x30] sm:$0xf]
      %v1302 = vld [vmem:[%s1288 + $0x34] sm:$0xf]
      %v1303 = vld [vmem:[%s1288 + $0x38] sm:$0xf]
      %v1304 = vld [vmem:[%s1288 + $0x3c] sm:$0xf]
      %v1308 = vunpack.c.l.b16 %v1283
      %v1309 = vunpack.c.l.b16 %v1284
      %v1310 = vunpack.c.l.b16 %v1285
      %v1311 = vpack.c.b16 %v1309, %v1308
      %v1312 = vpack.c.b16 %v1310, %v1310
      %v1313 = vrot.slane %v1311, 1
      %v1314 = vrot.slane %v1312, 1
      %v1315 = vsel %vm511, %v1313, %v1314
      %v1333 = vunpack.c.l.b16 %v1289
      %v1334 = vunpack.c.l.b16 %v1290
      %v1335 = vunpack.c.l.b16 %v1291
      %v1336 = vunpack.c.l.b16 %v1292
      %v1337 = vunpack.c.l.b16 %v1293
      %v1338 = vunpack.c.l.b16 %v1294
      %v1339 = vunpack.c.l.b16 %v1295
      %v1340 = vunpack.c.l.b16 %v1296
      %v1341 = vunpack.c.l.b16 %v1297
      %v1342 = vunpack.c.l.b16 %v1298
      %v1343 = vunpack.c.l.b16 %v1299
      %v1344 = vunpack.c.l.b16 %v1300
      %v1345 = vunpack.c.l.b16 %v1301
      %v1346 = vunpack.c.l.b16 %v1302
      %v1347 = vunpack.c.l.b16 %v1303
      %v1348 = vunpack.c.l.b16 %v1304
      %v1349 = vpack.c.b16 %v1334, %v1333
      %v1350 = vpack.c.b16 %v1336, %v1335
      %v1351 = vpack.c.b16 %v1338, %v1337
      %v1352 = vpack.c.b16 %v1340, %v1339
      %v1353 = vpack.c.b16 %v1342, %v1341
      %v1354 = vpack.c.b16 %v1344, %v1343
      %v1355 = vpack.c.b16 %v1346, %v1345
      %v1356 = vpack.c.b16 %v1348, %v1347
      %1365 = vmatprep.subr.bf16.mxu0 0
      %1366 = vmatpush1.bf16.msra.mxu0 %v1349
      %1367 = vmatprep.subr.bf16.mxu0 0
      %1368 = vmatpush1.bf16.msra.mxu0 %v1350
      %1369 = vmatprep.subr.bf16.mxu0 0
      %1370 = vmatpush1.bf16.msra.mxu0 %v1351
      %1371 = vmatprep.subr.bf16.mxu0 0
      %1372 = vmatpush1.bf16.msra.mxu0 %v1352
      %1373 = vmatprep.subr.bf16.mxu0 0
      %1374 = vmatpush1.bf16.msra.mxu0 %v1353
      %1375 = vmatprep.subr.bf16.mxu0 0
      %1376 = vmatpush1.bf16.msra.mxu0 %v1354
      %1377 = vmatprep.subr.bf16.mxu0 0
      %1378 = vmatpush1.bf16.msra.mxu0 %v1355
      %1379 = vmatprep.subr.bf16.mxu0 0
      %1380 = vmatpush1.bf16.msra.mxu0 %v1356
      %1381 = vmatprep.subr.bf16.mxu0 0
      %1382 = vmatpush1.bf16.msra.mxu0 0
      %1383 = vmatprep.subr.bf16.mxu0 0
      %1384 = vmatpush1.bf16.msra.mxu0 0
      %1385 = vmatprep.subr.bf16.mxu0 0
      %1386 = vmatpush1.bf16.msra.mxu0 0
      %1387 = vmatprep.subr.bf16.mxu0 0
      %1388 = vmatpush1.bf16.msra.mxu0 0
      %1389 = vmatprep.subr.bf16.mxu0 0
      %1390 = vmatpush1.bf16.msra.mxu0 0
      %1391 = vmatprep.subr.bf16.mxu0 0
      %1392 = vmatpush1.bf16.msra.mxu0 0
      %1393 = vmatprep.subr.bf16.mxu0 0
      %1394 = vmatpush1.bf16.msra.mxu0 0
      %1395 = vmatprep.subr.bf16.mxu0 0
      %1396 = vmatpush1.bf16.msra.mxu0 0
      %1397 = vmatprep.mubr.bf16.mxu0 0
      %1398 = vmatmul.mubr.bf16.gmra.mrb[0].mxu0 %v1315
      %v1399 = vpop.f32.mrb[0].mxu0
      %v1400 = vadd.f32 0.0, %v1399
      %v1401 = vpop.f32.mrb[0].mxu0
      %v1402 = vpop.f32.mrb[0].mxu0
      %v1403 = vadd.f32 0.0, %v1402
      %v1404 = vpop.f32.mrb[0].mxu0
      %1405 = vdwg.mxu0
      %v1406 = vadd.f32 %v1286, %v1400
      %v1407 = vadd.f32 %v1287, %v1403
      %1408 = vst [vmem:[#allocation2] sm:$0xff] %v1406
      %1409 = vst [vmem:[#allocation2 + $0x8] sm:$0xff] %v1407
      %v1410 = vld [vmem:[%s206 + $0x4] sm:$0xe]
      %v1411 = vld [vmem:[%s206 + $0x8] sm:$0xf]
      %v1412 = vld [vmem:[%s206 + $0xc] sm:$0x3]
      %v1413 = vld [vmem:[#allocation2] sm:$0xff]
      %v1414 = vld [vmem:[#allocation2 + $0x8] sm:$0xff]
      %s1415 = scalar_lea.vmem %s210, 576
      %v1416 = vld [vmem:[%s1415] sm:$0xf]
      %v1417 = vld [vmem:[%s1415 + $0x4] sm:$0xf]
      %v1418 = vld [vmem:[%s1415 + $0x8] sm:$0xf]
      %v1419 = vld [vmem:[%s1415 + $0xc] sm:$0xf]
      %v1420 = vld [vmem:[%s1415 + $0x10] sm:$0xf]
      %v1421 = vld [vmem:[%s1415 + $0x14] sm:$0xf]
      %v1422 = vld [vmem:[%s1415 + $0x18] sm:$0xf]
      %v1423 = vld [vmem:[%s1415 + $0x1c] sm:$0xf]
      %v1424 = vld [vmem:[%s1415 + $0x20] sm:$0xf]
      %v1425 = vld [vmem:[%s1415 + $0x24] sm:$0xf]
      %v1426 = vld [vmem:[%s1415 + $0x28] sm:$0xf]
      %v1427 = vld [vmem:[%s1415 + $0x2c] sm:$0xf]
      %v1428 = vld [vmem:[%s1415 + $0x30] sm:$0xf]
      %v1429 = vld [vmem:[%s1415 + $0x34] sm:$0xf]
      %v1430 = vld [vmem:[%s1415 + $0x38] sm:$0xf]
      %v1431 = vld [vmem:[%s1415 + $0x3c] sm:$0xf]
      %v1435 = vunpack.c.l.b16 %v1410
      %v1436 = vunpack.c.l.b16 %v1411
      %v1437 = vunpack.c.l.b16 %v1412
      %v1438 = vpack.c.b16 %v1436, %v1435
      %v1439 = vpack.c.b16 %v1437, %v1437
      %v1441 = vshrl.u32 %v1438, 16
      %v1443 = vrot.slane %v1441, 1
      %v1444 = vshll.u32 %v1438, 16
      %v1446 = vrot.slane %v1444, 2
      %v1447 = vor.u32 %v1443, %v1446
      %v1449 = vshrl.u32 %v1439, 16
      %v1451 = vrot.slane %v1449, 1
      %v1452 = vshll.u32 %v1439, 16
      %v1454 = vrot.slane %v1452, 2
      %v1455 = vor.u32 %v1451, %v1454
      %v1456 = vsel %vm639, %v1447, %v1455
      %v1474 = vunpack.c.l.b16 %v1416
      %v1475 = vunpack.c.l.b16 %v1417
      %v1476 = vunpack.c.l.b16 %v1418
      %v1477 = vunpack.c.l.b16 %v1419
      %v1478 = vunpack.c.l.b16 %v1420
      %v1479 = vunpack.c.l.b16 %v1421
      %v1480 = vunpack.c.l.b16 %v1422
      %v1481 = vunpack.c.l.b16 %v1423
      %v1482 = vunpack.c.l.b16 %v1424
      %v1483 = vunpack.c.l.b16 %v1425
      %v1484 = vunpack.c.l.b16 %v1426
      %v1485 = vunpack.c.l.b16 %v1427
      %v1486 = vunpack.c.l.b16 %v1428
      %v1487 = vunpack.c.l.b16 %v1429
      %v1488 = vunpack.c.l.b16 %v1430
      %v1489 = vunpack.c.l.b16 %v1431
      %v1490 = vpack.c.b16 %v1475, %v1474
      %v1491 = vpack.c.b16 %v1477, %v1476
      %v1492 = vpack.c.b16 %v1479, %v1478
      %v1493 = vpack.c.b16 %v1481, %v1480
      %v1494 = vpack.c.b16 %v1483, %v1482
      %v1495 = vpack.c.b16 %v1485, %v1484
      %v1496 = vpack.c.b16 %v1487, %v1486
      %v1497 = vpack.c.b16 %v1489, %v1488
      %1506 = vmatprep.subr.bf16.mxu0 0
      %1507 = vmatpush1.bf16.msra.mxu0 %v1490
      %1508 = vmatprep.subr.bf16.mxu0 0
      %1509 = vmatpush1.bf16.msra.mxu0 %v1491
      %1510 = vmatprep.subr.bf16.mxu0 0
      %1511 = vmatpush1.bf16.msra.mxu0 %v1492
      %1512 = vmatprep.subr.bf16.mxu0 0
      %1513 = vmatpush1.bf16.msra.mxu0 %v1493
      %1514 = vmatprep.subr.bf16.mxu0 0
      %1515 = vmatpush1.bf16.msra.mxu0 %v1494
      %1516 = vmatprep.subr.bf16.mxu0 0
      %1517 = vmatpush1.bf16.msra.mxu0 %v1495
      %1518 = vmatprep.subr.bf16.mxu0 0
      %1519 = vmatpush1.bf16.msra.mxu0 %v1496
      %1520 = vmatprep.subr.bf16.mxu0 0
      %1521 = vmatpush1.bf16.msra.mxu0 %v1497
      %1522 = vmatprep.subr.bf16.mxu0 0
      %1523 = vmatpush1.bf16.msra.mxu0 0
      %1524 = vmatprep.subr.bf16.mxu0 0
      %1525 = vmatpush1.bf16.msra.mxu0 0
      %1526 = vmatprep.subr.bf16.mxu0 0
      %1527 = vmatpush1.bf16.msra.mxu0 0
      %1528 = vmatprep.subr.bf16.mxu0 0
      %1529 = vmatpush1.bf16.msra.mxu0 0
      %1530 = vmatprep.subr.bf16.mxu0 0
      %1531 = vmatpush1.bf16.msra.mxu0 0
      %1532 = vmatprep.subr.bf16.mxu0 0
      %1533 = vmatpush1.bf16.msra.mxu0 0
      %1534 = vmatprep.subr.bf16.mxu0 0
      %1535 = vmatpush1.bf16.msra.mxu0 0
      %1536 = vmatprep.subr.bf16.mxu0 0
      %1537 = vmatpush1.bf16.msra.mxu0 0
      %1538 = vmatprep.mubr.bf16.mxu0 0
      %1539 = vmatmul.mubr.bf16.gmra.mrb[0].mxu0 %v1456
      %v1540 = vpop.f32.mrb[0].mxu0
      %v1541 = vadd.f32 0.0, %v1540
      %v1542 = vpop.f32.mrb[0].mxu0
      %v1543 = vpop.f32.mrb[0].mxu0
      %v1544 = vadd.f32 0.0, %v1543
      %v1545 = vpop.f32.mrb[0].mxu0
      %1546 = vdwg.mxu0
      %v1547 = vadd.f32 %v1413, %v1541
      %v1548 = vadd.f32 %v1414, %v1544
      %1549 = vst [vmem:[#allocation2] sm:$0xff] %v1547
      %1550 = vst [vmem:[#allocation2 + $0x8] sm:$0xff] %v1548
      %v1551 = vld [vmem:[%s206 + $0x4] sm:$0xc]
      %v1552 = vld [vmem:[%s206 + $0x8] sm:$0xf]
      %v1553 = vld [vmem:[%s206 + $0xc] sm:$0x3]
      %v1554 = vld [vmem:[#allocation2] sm:$0xff]
      %v1555 = vld [vmem:[#allocation2 + $0x8] sm:$0xff]
      %s1556 = scalar_lea.vmem %s210, 640
      %v1557 = vld [vmem:[%s1556] sm:$0xf]
      %v1558 = vld [vmem:[%s1556 + $0x4] sm:$0xf]
      %v1559 = vld [vmem:[%s1556 + $0x8] sm:$0xf]
      %v1560 = vld [vmem:[%s1556 + $0xc] sm:$0xf]
      %v1561 = vld [vmem:[%s1556 + $0x10] sm:$0xf]
      %v1562 = vld [vmem:[%s1556 + $0x14] sm:$0xf]
      %v1563 = vld [vmem:[%s1556 + $0x18] sm:$0xf]
      %v1564 = vld [vmem:[%s1556 + $0x1c] sm:$0xf]
      %v1565 = vld [vmem:[%s1556 + $0x20] sm:$0xf]
      %v1566 = vld [vmem:[%s1556 + $0x24] sm:$0xf]
      %v1567 = vld [vmem:[%s1556 + $0x28] sm:$0xf]
      %v1568 = vld [vmem:[%s1556 + $0x2c] sm:$0xf]
      %v1569 = vld [vmem:[%s1556 + $0x30] sm:$0xf]
      %v1570 = vld [vmem:[%s1556 + $0x34] sm:$0xf]
      %v1571 = vld [vmem:[%s1556 + $0x38] sm:$0xf]
      %v1572 = vld [vmem:[%s1556 + $0x3c] sm:$0xf]
      %v1576 = vunpack.c.l.b16 %v1551
      %v1577 = vunpack.c.l.b16 %v1552
      %v1578 = vunpack.c.l.b16 %v1553
      %v1579 = vpack.c.b16 %v1577, %v1576
      %v1580 = vpack.c.b16 %v1578, %v1578
      %vm1581 = vcmask 1045504
      %v1582 = vrot.slane %v1579, 2
      %v1583 = vrot.slane %v1580, 2
      %v1584 = vsel %vm1581, %v1582, %v1583
      %v1602 = vunpack.c.l.b16 %v1557
      %v1603 = vunpack.c.l.b16 %v1558
      %v1604 = vunpack.c.l.b16 %v1559
      %v1605 = vunpack.c.l.b16 %v1560
      %v1606 = vunpack.c.l.b16 %v1561
      %v1607 = vunpack.c.l.b16 %v1562
      %v1608 = vunpack.c.l.b16 %v1563
      %v1609 = vunpack.c.l.b16 %v1564
      %v1610 = vunpack.c.l.b16 %v1565
      %v1611 = vunpack.c.l.b16 %v1566
      %v1612 = vunpack.c.l.b16 %v1567
      %v1613 = vunpack.c.l.b16 %v1568
      %v1614 = vunpack.c.l.b16 %v1569
      %v1615 = vunpack.c.l.b16 %v1570
      %v1616 = vunpack.c.l.b16 %v1571
      %v1617 = vunpack.c.l.b16 %v1572
      %v1618 = vpack.c.b16 %v1603, %v1602
      %v1619 = vpack.c.b16 %v1605, %v1604
      %v1620 = vpack.c.b16 %v1607, %v1606
      %v1621 = vpack.c.b16 %v1609, %v1608
      %v1622 = vpack.c.b16 %v1611, %v1610
      %v1623 = vpack.c.b16 %v1613, %v1612
      %v1624 = vpack.c.b16 %v1615, %v1614
      %v1625 = vpack.c.b16 %v1617, %v1616
      %1634 = vmatprep.subr.bf16.mxu0 0
      %1635 = vmatpush1.bf16.msra.mxu0 %v1618
      %1636 = vmatprep.subr.bf16.mxu0 0
      %1637 = vmatpush1.bf16.msra.mxu0 %v1619
      %1638 = vmatprep.subr.bf16.mxu0 0
      %1639 = vmatpush1.bf16.msra.mxu0 %v1620
      %1640 = vmatprep.subr.bf16.mxu0 0
      %1641 = vmatpush1.bf16.msra.mxu0 %v1621
      %1642 = vmatprep.subr.bf16.mxu0 0
      %1643 = vmatpush1.bf16.msra.mxu0 %v1622
      %1644 = vmatprep.subr.bf16.mxu0 0
      %1645 = vmatpush1.bf16.msra.mxu0 %v1623
      %1646 = vmatprep.subr.bf16.mxu0 0
      %1647 = vmatpush1.bf16.msra.mxu0 %v1624
      %1648 = vmatprep.subr.bf16.mxu0 0
      %1649 = vmatpush1.bf16.msra.mxu0 %v1625
      %1650 = vmatprep.subr.bf16.mxu0 0
      %1651 = vmatpush1.bf16.msra.mxu0 0
      %1652 = vmatprep.subr.bf16.mxu0 0
      %1653 = vmatpush1.bf16.msra.mxu0 0
      %1654 = vmatprep.subr.bf16.mxu0 0
      %1655 = vmatpush1.bf16.msra.mxu0 0
      %1656 = vmatprep.subr.bf16.mxu0 0
      %1657 = vmatpush1.bf16.msra.mxu0 0
      %1658 = vmatprep.subr.bf16.mxu0 0
      %1659 = vmatpush1.bf16.msra.mxu0 0
      %1660 = vmatprep.subr.bf16.mxu0 0
      %1661 = vmatpush1.bf16.msra.mxu0 0
      %1662 = vmatprep.subr.bf16.mxu0 0
      %1663 = vmatpush1.bf16.msra.mxu0 0
      %1664 = vmatprep.subr.bf16.mxu0 0
      %1665 = vmatpush1.bf16.msra.mxu0 0
      %1666 = vmatprep.mubr.bf16.mxu0 0
      %1667 = vmatmul.mubr.bf16.gmra.mrb[0].mxu0 %v1584
      %v1668 = vpop.f32.mrb[0].mxu0
      %v1669 = vadd.f32 0.0, %v1668
      %v1670 = vpop.f32.mrb[0].mxu0
      %v1671 = vpop.f32.mrb[0].mxu0
      %v1672 = vadd.f32 0.0, %v1671
      %v1673 = vpop.f32.mrb[0].mxu0
      %1674 = vdwg.mxu0
      %v1675 = vadd.f32 %v1554, %v1669
      %v1676 = vadd.f32 %v1555, %v1672
      %1677 = vst [vmem:[#allocation2] sm:$0xff] %v1675
      %1678 = vst [vmem:[#allocation2 + $0x8] sm:$0xff] %v1676
      %v1679 = vld [vmem:[%s206 + $0x4] sm:$0xc]
      %v1680 = vld [vmem:[%s206 + $0x8] sm:$0xf]
      %v1681 = vld [vmem:[%s206 + $0xc] sm:$0x7]
      %v1682 = vld [vmem:[#allocation2] sm:$0xff]
      %v1683 = vld [vmem:[#allocation2 + $0x8] sm:$0xff]
      %s1684 = scalar_lea.vmem %s210, 704
      %v1685 = vld [vmem:[%s1684] sm:$0xf]
      %v1686 = vld [vmem:[%s1684 + $0x4] sm:$0xf]
      %v1687 = vld [vmem:[%s1684 + $0x8] sm:$0xf]
      %v1688 = vld [vmem:[%s1684 + $0xc] sm:$0xf]
      %v1689 = vld [vmem:[%s1684 + $0x10] sm:$0xf]
      %v1690 = vld [vmem:[%s1684 + $0x14] sm:$0xf]
      %v1691 = vld [vmem:[%s1684 + $0x18] sm:$0xf]
      %v1692 = vld [vmem:[%s1684 + $0x1c] sm:$0xf]
      %v1693 = vld [vmem:[%s1684 + $0x20] sm:$0xf]
      %v1694 = vld [vmem:[%s1684 + $0x24] sm:$0xf]
      %v1695 = vld [vmem:[%s1684 + $0x28] sm:$0xf]
      %v1696 = vld [vmem:[%s1684 + $0x2c] sm:$0xf]
      %v1697 = vld [vmem:[%s1684 + $0x30] sm:$0xf]
      %v1698 = vld [vmem:[%s1684 + $0x34] sm:$0xf]
      %v1699 = vld [vmem:[%s1684 + $0x38] sm:$0xf]
      %v1700 = vld [vmem:[%s1684 + $0x3c] sm:$0xf]
      %v1704 = vunpack.c.l.b16 %v1679
      %v1705 = vunpack.c.l.b16 %v1680
      %v1706 = vunpack.c.l.b16 %v1681
      %v1707 = vpack.c.b16 %v1705, %v1704
      %v1708 = vpack.c.b16 %v1706, %v1706
      %v1710 = vshrl.u32 %v1707, 16
      %v1712 = vrot.slane %v1710, 2
      %v1713 = vshll.u32 %v1707, 16
      %v1715 = vrot.slane %v1713, 3
      %v1716 = vor.u32 %v1712, %v1715
      %v1718 = vshrl.u32 %v1708, 16
      %v1720 = vrot.slane %v1718, 2
      %v1721 = vshll.u32 %v1708, 16
      %v1723 = vrot.slane %v1721, 3
      %v1724 = vor.u32 %v1720, %v1723
      %v1725 = vsel %vm781, %v1716, %v1724
      %v1743 = vunpack.c.l.b16 %v1685
      %v1744 = vunpack.c.l.b16 %v1686
      %v1745 = vunpack.c.l.b16 %v1687
      %v1746 = vunpack.c.l.b16 %v1688
      %v1747 = vunpack.c.l.b16 %v1689
      %v1748 = vunpack.c.l.b16 %v1690
      %v1749 = vunpack.c.l.b16 %v1691
      %v1750 = vunpack.c.l.b16 %v1692
      %v1751 = vunpack.c.l.b16 %v1693
      %v1752 = vunpack.c.l.b16 %v1694
      %v1753 = vunpack.c.l.b16 %v1695
      %v1754 = vunpack.c.l.b16 %v1696
      %v1755 = vunpack.c.l.b16 %v1697
      %v1756 = vunpack.c.l.b16 %v1698
      %v1757 = vunpack.c.l.b16 %v1699
      %v1758 = vunpack.c.l.b16 %v1700
      %v1759 = vpack.c.b16 %v1744, %v1743
      %v1760 = vpack.c.b16 %v1746, %v1745
      %v1761 = vpack.c.b16 %v1748, %v1747
      %v1762 = vpack.c.b16 %v1750, %v1749
      %v1763 = vpack.c.b16 %v1752, %v1751
      %v1764 = vpack.c.b16 %v1754, %v1753
      %v1765 = vpack.c.b16 %v1756, %v1755
      %v1766 = vpack.c.b16 %v1758, %v1757
      %1775 = vmatprep.subr.bf16.mxu0 0
      %1776 = vmatpush1.bf16.msra.mxu0 %v1759
      %1777 = vmatprep.subr.bf16.mxu0 0
      %1778 = vmatpush1.bf16.msra.mxu0 %v1760
      %1779 = vmatprep.subr.bf16.mxu0 0
      %1780 = vmatpush1.bf16.msra.mxu0 %v1761
      %1781 = vmatprep.subr.bf16.mxu0 0
      %1782 = vmatpush1.bf16.msra.mxu0 %v1762
      %1783 = vmatprep.subr.bf16.mxu0 0
      %1784 = vmatpush1.bf16.msra.mxu0 %v1763
      %1785 = vmatprep.subr.bf16.mxu0 0
      %1786 = vmatpush1.bf16.msra.mxu0 %v1764
      %1787 = vmatprep.subr.bf16.mxu0 0
      %1788 = vmatpush1.bf16.msra.mxu0 %v1765
      %1789 = vmatprep.subr.bf16.mxu0 0
      %1790 = vmatpush1.bf16.msra.mxu0 %v1766
      %1791 = vmatprep.subr.bf16.mxu0 0
      %1792 = vmatpush1.bf16.msra.mxu0 0
      %1793 = vmatprep.subr.bf16.mxu0 0
      %1794 = vmatpush1.bf16.msra.mxu0 0
      %1795 = vmatprep.subr.bf16.mxu0 0
      %1796 = vmatpush1.bf16.msra.mxu0 0
      %1797 = vmatprep.subr.bf16.mxu0 0
      %1798 = vmatpush1.bf16.msra.mxu0 0
      %1799 = vmatprep.subr.bf16.mxu0 0
      %1800 = vmatpush1.bf16.msra.mxu0 0
      %1801 = vmatprep.subr.bf16.mxu0 0
      %1802 = vmatpush1.bf16.msra.mxu0 0
      %1803 = vmatprep.subr.bf16.mxu0 0
      %1804 = vmatpush1.bf16.msra.mxu0 0
      %1805 = vmatprep.subr.bf16.mxu0 0
      %1806 = vmatpush1.bf16.msra.mxu0 0
      %1807 = vmatprep.mubr.bf16.mxu0 0
      %1808 = vmatmul.mubr.bf16.gmra.mrb[0].mxu0 %v1725
      %v1809 = vpop.f32.mrb[0].mxu0
      %v1810 = vadd.f32 0.0, %v1809
      %v1811 = vpop.f32.mrb[0].mxu0
      %v1812 = vpop.f32.mrb[0].mxu0
      %v1813 = vadd.f32 0.0, %v1812
      %v1814 = vpop.f32.mrb[0].mxu0
      %1815 = vdwg.mxu0
      %v1816 = vadd.f32 %v1682, %v1810
      %v1817 = vadd.f32 %v1683, %v1813
      %1818 = vst [vmem:[#allocation2] sm:$0xff] %v1816
      %1819 = vst [vmem:[#allocation2 + $0x8] sm:$0xff] %v1817
      %v1820 = vld [vmem:[%s206 + $0x4] sm:$0x8]
      %v1821 = vld [vmem:[%s206 + $0x8] sm:$0xf]
      %v1822 = vld [vmem:[%s206 + $0xc] sm:$0xf]
      %v1823 = vld [vmem:[#allocation2] sm:$0xff]
      %v1824 = vld [vmem:[#allocation2 + $0x8] sm:$0xff]
      %s1825 = scalar_lea.vmem %s210, 768
      %v1826 = vld [vmem:[%s1825] sm:$0xf]
      %v1827 = vld [vmem:[%s1825 + $0x4] sm:$0xf]
      %v1828 = vld [vmem:[%s1825 + $0x8] sm:$0xf]
      %v1829 = vld [vmem:[%s1825 + $0xc] sm:$0xf]
      %v1830 = vld [vmem:[%s1825 + $0x10] sm:$0xf]
      %v1831 = vld [vmem:[%s1825 + $0x14] sm:$0xf]
      %v1832 = vld [vmem:[%s1825 + $0x18] sm:$0xf]
      %v1833 = vld [vmem:[%s1825 + $0x1c] sm:$0xf]
      %v1834 = vld [vmem:[%s1825 + $0x20] sm:$0xf]
      %v1835 = vld [vmem:[%s1825 + $0x24] sm:$0xf]
      %v1836 = vld [vmem:[%s1825 + $0x28] sm:$0xf]
      %v1837 = vld [vmem:[%s1825 + $0x2c] sm:$0xf]
      %v1838 = vld [vmem:[%s1825 + $0x30] sm:$0xf]
      %v1839 = vld [vmem:[%s1825 + $0x34] sm:$0xf]
      %v1840 = vld [vmem:[%s1825 + $0x38] sm:$0xf]
      %v1841 = vld [vmem:[%s1825 + $0x3c] sm:$0xf]
      %v1845 = vunpack.c.l.b16 %v1820
      %v1846 = vunpack.c.l.b16 %v1821
      %v1847 = vunpack.c.l.b16 %v1822
      %v1848 = vpack.c.b16 %v1846, %v1845
      %v1849 = vpack.c.b16 %v1847, %v1847
      %v1851 = vshrl.u32 %v1848, 16
      %v1853 = vrot.slane %v1851, 3
      %v1854 = vshll.u32 %v1848, 16
      %v1856 = vrot.slane %v1854, 4
      %v1857 = vor.u32 %v1853, %v1856
      %v1859 = vshrl.u32 %v1849, 16
      %v1861 = vrot.slane %v1859, 3
      %v1862 = vshll.u32 %v1849, 16
      %v1864 = vrot.slane %v1862, 4
      %v1865 = vor.u32 %v1861, %v1864
      %v1866 = vsel %vm1051, %v1857, %v1865
      %v1884 = vunpack.c.l.b16 %v1826
      %v1885 = vunpack.c.l.b16 %v1827
      %v1886 = vunpack.c.l.b16 %v1828
      %v1887 = vunpack.c.l.b16 %v1829
      %v1888 = vunpack.c.l.b16 %v1830
      %v1889 = vunpack.c.l.b16 %v1831
      %v1890 = vunpack.c.l.b16 %v1832
      %v1891 = vunpack.c.l.b16 %v1833
      %v1892 = vunpack.c.l.b16 %v1834
      %v1893 = vunpack.c.l.b16 %v1835
      %v1894 = vunpack.c.l.b16 %v1836
      %v1895 = vunpack.c.l.b16 %v1837
      %v1896 = vunpack.c.l.b16 %v1838
      %v1897 = vunpack.c.l.b16 %v1839
      %v1898 = vunpack.c.l.b16 %v1840
      %v1899 = vunpack.c.l.b16 %v1841
      %v1900 = vpack.c.b16 %v1885, %v1884
      %v1901 = vpack.c.b16 %v1887, %v1886
      %v1902 = vpack.c.b16 %v1889, %v1888
      %v1903 = vpack.c.b16 %v1891, %v1890
      %v1904 = vpack.c.b16 %v1893, %v1892
      %v1905 = vpack.c.b16 %v1895, %v1894
      %v1906 = vpack.c.b16 %v1897, %v1896
      %v1907 = vpack.c.b16 %v1899, %v1898
      %1916 = vmatprep.subr.bf16.mxu0 0
      %1917 = vmatpush1.bf16.msra.mxu0 %v1900
      %1918 = vmatprep.subr.bf16.mxu0 0
      %1919 = vmatpush1.bf16.msra.mxu0 %v1901
      %1920 = vmatprep.subr.bf16.mxu0 0
      %1921 = vmatpush1.bf16.msra.mxu0 %v1902
      %1922 = vmatprep.subr.bf16.mxu0 0
      %1923 = vmatpush1.bf16.msra.mxu0 %v1903
      %1924 = vmatprep.subr.bf16.mxu0 0
      %1925 = vmatpush1.bf16.msra.mxu0 %v1904
      %1926 = vmatprep.subr.bf16.mxu0 0
      %1927 = vmatpush1.bf16.msra.mxu0 %v1905
      %1928 = vmatprep.subr.bf16.mxu0 0
      %1929 = vmatpush1.bf16.msra.mxu0 %v1906
      %1930 = vmatprep.subr.bf16.mxu0 0
      %1931 = vmatpush1.bf16.msra.mxu0 %v1907
      %1932 = vmatprep.subr.bf16.mxu0 0
      %1933 = vmatpush1.bf16.msra.mxu0 0
      %1934 = vmatprep.subr.bf16.mxu0 0
      %1935 = vmatpush1.bf16.msra.mxu0 0
      %1936 = vmatprep.subr.bf16.mxu0 0
      %1937 = vmatpush1.bf16.msra.mxu0 0
      %1938 = vmatprep.subr.bf16.mxu0 0
      %1939 = vmatpush1.bf16.msra.mxu0 0
      %1940 = vmatprep.subr.bf16.mxu0 0
      %1941 = vmatpush1.bf16.msra.mxu0 0
      %1942 = vmatprep.subr.bf16.mxu0 0
      %1943 = vmatpush1.bf16.msra.mxu0 0
      %1944 = vmatprep.subr.bf16.mxu0 0
      %1945 = vmatpush1.bf16.msra.mxu0 0
      %1946 = vmatprep.subr.bf16.mxu0 0
      %1947 = vmatpush1.bf16.msra.mxu0 0
      %1948 = vmatprep.mubr.bf16.mxu0 0
      %1949 = vmatmul.mubr.bf16.gmra.mrb[0].mxu0 %v1866
      %v1950 = vpop.f32.mrb[0].mxu0
      %v1951 = vadd.f32 0.0, %v1950
      %v1952 = vpop.f32.mrb[0].mxu0
      %v1953 = vpop.f32.mrb[0].mxu0
      %v1954 = vadd.f32 0.0, %v1953
      %v1955 = vpop.f32.mrb[0].mxu0
      %1956 = vdwg.mxu0
      %v1957 = vadd.f32 %v1823, %v1951
      %v1958 = vadd.f32 %v1824, %v1954
      %1959 = vst [vmem:[#allocation2] sm:$0xff] %v1957
      %1960 = vst [vmem:[#allocation2 + $0x8] sm:$0xff] %v1958
      %v1961 = vld [vmem:[%s206 + $0x8] sm:$0xf]
      %v1962 = vld [vmem:[%s206 + $0xc] sm:$0xf]
      %v1963 = vld [vmem:[#allocation2] sm:$0xff]
      %v1964 = vld [vmem:[#allocation2 + $0x8] sm:$0xff]
      %s1965 = scalar_lea.vmem %s210, 832
      %v1966 = vld [vmem:[%s1965] sm:$0xf]
      %v1967 = vld [vmem:[%s1965 + $0x4] sm:$0xf]
      %v1968 = vld [vmem:[%s1965 + $0x8] sm:$0xf]
      %v1969 = vld [vmem:[%s1965 + $0xc] sm:$0xf]
      %v1970 = vld [vmem:[%s1965 + $0x10] sm:$0xf]
      %v1971 = vld [vmem:[%s1965 + $0x14] sm:$0xf]
      %v1972 = vld [vmem:[%s1965 + $0x18] sm:$0xf]
      %v1973 = vld [vmem:[%s1965 + $0x1c] sm:$0xf]
      %v1974 = vld [vmem:[%s1965 + $0x20] sm:$0xf]
      %v1975 = vld [vmem:[%s1965 + $0x24] sm:$0xf]
      %v1976 = vld [vmem:[%s1965 + $0x28] sm:$0xf]
      %v1977 = vld [vmem:[%s1965 + $0x2c] sm:$0xf]
      %v1978 = vld [vmem:[%s1965 + $0x30] sm:$0xf]
      %v1979 = vld [vmem:[%s1965 + $0x34] sm:$0xf]
      %v1980 = vld [vmem:[%s1965 + $0x38] sm:$0xf]
      %v1981 = vld [vmem:[%s1965 + $0x3c] sm:$0xf]
      %v1984 = vunpack.c.l.b16 %v1961
      %v1985 = vunpack.c.l.b16 %v1962
      %v1986 = vpack.c.b16 %v1985, %v1984
      %v2004 = vunpack.c.l.b16 %v1966
      %v2005 = vunpack.c.l.b16 %v1967
      %v2006 = vunpack.c.l.b16 %v1968
      %v2007 = vunpack.c.l.b16 %v1969
      %v2008 = vunpack.c.l.b16 %v1970
      %v2009 = vunpack.c.l.b16 %v1971
      %v2010 = vunpack.c.l.b16 %v1972
      %v2011 = vunpack.c.l.b16 %v1973
      %v2012 = vunpack.c.l.b16 %v1974
      %v2013 = vunpack.c.l.b16 %v1975
      %v2014 = vunpack.c.l.b16 %v1976
      %v2015 = vunpack.c.l.b16 %v1977
      %v2016 = vunpack.c.l.b16 %v1978
      %v2017 = vunpack.c.l.b16 %v1979
      %v2018 = vunpack.c.l.b16 %v1980
      %v2019 = vunpack.c.l.b16 %v1981
      %v2020 = vpack.c.b16 %v2005, %v2004
      %v2021 = vpack.c.b16 %v2007, %v2006
      %v2022 = vpack.c.b16 %v2009, %v2008
      %v2023 = vpack.c.b16 %v2011, %v2010
      %v2024 = vpack.c.b16 %v2013, %v2012
      %v2025 = vpack.c.b16 %v2015, %v2014
      %v2026 = vpack.c.b16 %v2017, %v2016
      %v2027 = vpack.c.b16 %v2019, %v2018
      %2036 = vmatprep.subr.bf16.mxu0 0
      %2037 = vmatpush1.bf16.msra.mxu0 %v2020
      %2038 = vmatprep.subr.bf16.mxu0 0
      %2039 = vmatpush1.bf16.msra.mxu0 %v2021
      %2040 = vmatprep.subr.bf16.mxu0 0
      %2041 = vmatpush1.bf16.msra.mxu0 %v2022
      %2042 = vmatprep.subr.bf16.mxu0 0
      %2043 = vmatpush1.bf16.msra.mxu0 %v2023
      %2044 = vmatprep.subr.bf16.mxu0 0
      %2045 = vmatpush1.bf16.msra.mxu0 %v2024
      %2046 = vmatprep.subr.bf16.mxu0 0
      %2047 = vmatpush1.bf16.msra.mxu0 %v2025
      %2048 = vmatprep.subr.bf16.mxu0 0
      %2049 = vmatpush1.bf16.msra.mxu0 %v2026
      %2050 = vmatprep.subr.bf16.mxu0 0
      %2051 = vmatpush1.bf16.msra.mxu0 %v2027
      %2052 = vmatprep.subr.bf16.mxu0 0
      %2053 = vmatpush1.bf16.msra.mxu0 0
      %2054 = vmatprep.subr.bf16.mxu0 0
      %2055 = vmatpush1.bf16.msra.mxu0 0
      %2056 = vmatprep.subr.bf16.mxu0 0
      %2057 = vmatpush1.bf16.msra.mxu0 0
      %2058 = vmatprep.subr.bf16.mxu0 0
      %2059 = vmatpush1.bf16.msra.mxu0 0
      %2060 = vmatprep.subr.bf16.mxu0 0
      %2061 = vmatpush1.bf16.msra.mxu0 0
      %2062 = vmatprep.subr.bf16.mxu0 0
      %2063 = vmatpush1.bf16.msra.mxu0 0
      %2064 = vmatprep.subr.bf16.mxu0 0
      %2065 = vmatpush1.bf16.msra.mxu0 0
      %2066 = vmatprep.subr.bf16.mxu0 0
      %2067 = vmatpush1.bf16.msra.mxu0 0
      %2068 = vmatprep.mubr.bf16.mxu0 0
      %2069 = vmatmul.mubr.bf16.gmra.mrb[0].mxu0 %v1986
      %v2070 = vpop.f32.mrb[0].mxu0
      %v2071 = vadd.f32 0.0, %v2070
      %v2072 = vpop.f32.mrb[0].mxu0
      %v2073 = vpop.f32.mrb[0].mxu0
      %v2074 = vadd.f32 0.0, %v2073
      %v2075 = vpop.f32.mrb[0].mxu0
      %2076 = vdwg.mxu0
      %v2077 = vadd.f32 %v1963, %v2071
      %v2078 = vadd.f32 %v1964, %v2074
      %2079 = vst [vmem:[#allocation2] sm:$0xff] %v2077
      %2080 = vst [vmem:[#allocation2 + $0x8] sm:$0xff] %v2078
      %v2081 = vld [vmem:[%s206 + $0x8] sm:$0xf]
      %v2082 = vld [vmem:[%s206 + $0xc] sm:$0xf]
      %v2083 = vld [vmem:[%s206 + $0x10] sm:$0x1]
      %v2084 = vld [vmem:[#allocation2] sm:$0xff]
      %v2085 = vld [vmem:[#allocation2 + $0x8] sm:$0xff]
      %s2086 = scalar_lea.vmem %s210, 896
      %v2087 = vld [vmem:[%s2086] sm:$0xf]
      %v2088 = vld [vmem:[%s2086 + $0x4] sm:$0xf]
      %v2089 = vld [vmem:[%s2086 + $0x8] sm:$0xf]
      %v2090 = vld [vmem:[%s2086 + $0xc] sm:$0xf]
      %v2091 = vld [vmem:[%s2086 + $0x10] sm:$0xf]
      %v2092 = vld [vmem:[%s2086 + $0x14] sm:$0xf]
      %v2093 = vld [vmem:[%s2086 + $0x18] sm:$0xf]
      %v2094 = vld [vmem:[%s2086 + $0x1c] sm:$0xf]
      %v2095 = vld [vmem:[%s2086 + $0x20] sm:$0xf]
      %v2096 = vld [vmem:[%s2086 + $0x24] sm:$0xf]
      %v2097 = vld [vmem:[%s2086 + $0x28] sm:$0xf]
      %v2098 = vld [vmem:[%s2086 + $0x2c] sm:$0xf]
      %v2099 = vld [vmem:[%s2086 + $0x30] sm:$0xf]
      %v2100 = vld [vmem:[%s2086 + $0x34] sm:$0xf]
      %v2101 = vld [vmem:[%s2086 + $0x38] sm:$0xf]
      %v2102 = vld [vmem:[%s2086 + $0x3c] sm:$0xf]
      %v2106 = vunpack.c.l.b16 %v2081
      %v2107 = vunpack.c.l.b16 %v2082
      %v2108 = vunpack.c.l.b16 %v2083
      %v2109 = vpack.c.b16 %v2107, %v2106
      %v2110 = vpack.c.b16 %v2108, %v2108
      %v2112 = vshrl.u32 %v2109, 16
      %v2114 = vshll.u32 %v2109, 16
      %v2116 = vrot.slane %v2114, 1
      %v2117 = vor.u32 %v2112, %v2116
      %v2119 = vshll.u32 %v2110, 16
      %v2121 = vrot.slane %v2119, 1
      %v2122 = vsel %vm374, %v2117, %v2121
      %v2140 = vunpack.c.l.b16 %v2087
      %v2141 = vunpack.c.l.b16 %v2088
      %v2142 = vunpack.c.l.b16 %v2089
      %v2143 = vunpack.c.l.b16 %v2090
      %v2144 = vunpack.c.l.b16 %v2091
      %v2145 = vunpack.c.l.b16 %v2092
      %v2146 = vunpack.c.l.b16 %v2093
      %v2147 = vunpack.c.l.b16 %v2094
      %v2148 = vunpack.c.l.b16 %v2095
      %v2149 = vunpack.c.l.b16 %v2096
      %v2150 = vunpack.c.l.b16 %v2097
      %v2151 = vunpack.c.l.b16 %v2098
      %v2152 = vunpack.c.l.b16 %v2099
      %v2153 = vunpack.c.l.b16 %v2100
      %v2154 = vunpack.c.l.b16 %v2101
      %v2155 = vunpack.c.l.b16 %v2102
      %v2156 = vpack.c.b16 %v2141, %v2140
      %v2157 = vpack.c.b16 %v2143, %v2142
      %v2158 = vpack.c.b16 %v2145, %v2144
      %v2159 = vpack.c.b16 %v2147, %v2146
      %v2160 = vpack.c.b16 %v2149, %v2148
      %v2161 = vpack.c.b16 %v2151, %v2150
      %v2162 = vpack.c.b16 %v2153, %v2152
      %v2163 = vpack.c.b16 %v2155, %v2154
      %2172 = vmatprep.subr.bf16.mxu0 0
      %2173 = vmatpush1.bf16.msra.mxu0 %v2156
      %2174 = vmatprep.subr.bf16.mxu0 0
      %2175 = vmatpush1.bf16.msra.mxu0 %v2157
      %2176 = vmatprep.subr.bf16.mxu0 0
      %2177 = vmatpush1.bf16.msra.mxu0 %v2158
      %2178 = vmatprep.subr.bf16.mxu0 0
      %2179 = vmatpush1.bf16.msra.mxu0 %v2159
      %2180 = vmatprep.subr.bf16.mxu0 0
      %2181 = vmatpush1.bf16.msra.mxu0 %v2160
      %2182 = vmatprep.subr.bf16.mxu0 0
      %2183 = vmatpush1.bf16.msra.mxu0 %v2161
      %2184 = vmatprep.subr.bf16.mxu0 0
      %2185 = vmatpush1.bf16.msra.mxu0 %v2162
      %2186 = vmatprep.subr.bf16.mxu0 0
      %2187 = vmatpush1.bf16.msra.mxu0 %v2163
      %2188 = vmatprep.subr.bf16.mxu0 0
      %2189 = vmatpush1.bf16.msra.mxu0 0
      %2190 = vmatprep.subr.bf16.mxu0 0
      %2191 = vmatpush1.bf16.msra.mxu0 0
      %2192 = vmatprep.subr.bf16.mxu0 0
      %2193 = vmatpush1.bf16.msra.mxu0 0
      %2194 = vmatprep.subr.bf16.mxu0 0
      %2195 = vmatpush1.bf16.msra.mxu0 0
      %2196 = vmatprep.subr.bf16.mxu0 0
      %2197 = vmatpush1.bf16.msra.mxu0 0
      %2198 = vmatprep.subr.bf16.mxu0 0
      %2199 = vmatpush1.bf16.msra.mxu0 0
      %2200 = vmatprep.subr.bf16.mxu0 0
      %2201 = vmatpush1.bf16.msra.mxu0 0
      %2202 = vmatprep.subr.bf16.mxu0 0
      %2203 = vmatpush1.bf16.msra.mxu0 0
      %2204 = vmatprep.mubr.bf16.mxu0 0
      %2205 = vmatmul.mubr.bf16.gmra.mrb[0].mxu0 %v2122
      %v2206 = vpop.f32.mrb[0].mxu0
      %v2207 = vadd.f32 0.0, %v2206
      %v2208 = vpop.f32.mrb[0].mxu0
      %v2209 = vpop.f32.mrb[0].mxu0
      %v2210 = vadd.f32 0.0, %v2209
      %v2211 = vpop.f32.mrb[0].mxu0
      %2212 = vdwg.mxu0
      %v2213 = vadd.f32 %v2084, %v2207
      %v2214 = vadd.f32 %v2085, %v2210
      %2215 = vst [vmem:[#allocation2] sm:$0xff] %v2213
      %2216 = vst [vmem:[#allocation2 + $0x8] sm:$0xff] %v2214
      %v2217 = vld [vmem:[%s206 + $0x8] sm:$0xe]
      %v2218 = vld [vmem:[%s206 + $0xc] sm:$0xf]
      %v2219 = vld [vmem:[%s206 + $0x10] sm:$0x1]
      %v2220 = vld [vmem:[#allocation2] sm:$0xff]
      %v2221 = vld [vmem:[#allocation2 + $0x8] sm:$0xff]
      %s2222 = scalar_lea.vmem %s210, 960
      %v2223 = vld [vmem:[%s2222] sm:$0xf]
      %v2224 = vld [vmem:[%s2222 + $0x4] sm:$0xf]
      %v2225 = vld [vmem:[%s2222 + $0x8] sm:$0xf]
      %v2226 = vld [vmem:[%s2222 + $0xc] sm:$0xf]
      %v2227 = vld [vmem:[%s2222 + $0x10] sm:$0xf]
      %v2228 = vld [vmem:[%s2222 + $0x14] sm:$0xf]
      %v2229 = vld [vmem:[%s2222 + $0x18] sm:$0xf]
      %v2230 = vld [vmem:[%s2222 + $0x1c] sm:$0xf]
      %v2231 = vld [vmem:[%s2222 + $0x20] sm:$0xf]
      %v2232 = vld [vmem:[%s2222 + $0x24] sm:$0xf]
      %v2233 = vld [vmem:[%s2222 + $0x28] sm:$0xf]
      %v2234 = vld [vmem:[%s2222 + $0x2c] sm:$0xf]
      %v2235 = vld [vmem:[%s2222 + $0x30] sm:$0xf]
      %v2236 = vld [vmem:[%s2222 + $0x34] sm:$0xf]
      %v2237 = vld [vmem:[%s2222 + $0x38] sm:$0xf]
      %v2238 = vld [vmem:[%s2222 + $0x3c] sm:$0xf]
      %v2242 = vunpack.c.l.b16 %v2217
      %v2243 = vunpack.c.l.b16 %v2218
      %v2244 = vunpack.c.l.b16 %v2219
      %v2245 = vpack.c.b16 %v2243, %v2242
      %v2246 = vpack.c.b16 %v2244, %v2244
      %v2247 = vrot.slane %v2245, 1
      %v2248 = vrot.slane %v2246, 1
      %v2249 = vsel %vm511, %v2247, %v2248
      %v2267 = vunpack.c.l.b16 %v2223
      %v2268 = vunpack.c.l.b16 %v2224
      %v2269 = vunpack.c.l.b16 %v2225
      %v2270 = vunpack.c.l.b16 %v2226
      %v2271 = vunpack.c.l.b16 %v2227
      %v2272 = vunpack.c.l.b16 %v2228
      %v2273 = vunpack.c.l.b16 %v2229
      %v2274 = vunpack.c.l.b16 %v2230
      %v2275 = vunpack.c.l.b16 %v2231
      %v2276 = vunpack.c.l.b16 %v2232
      %v2277 = vunpack.c.l.b16 %v2233
      %v2278 = vunpack.c.l.b16 %v2234
      %v2279 = vunpack.c.l.b16 %v2235
      %v2280 = vunpack.c.l.b16 %v2236
      %v2281 = vunpack.c.l.b16 %v2237
      %v2282 = vunpack.c.l.b16 %v2238
      %v2283 = vpack.c.b16 %v2268, %v2267
      %v2284 = vpack.c.b16 %v2270, %v2269
      %v2285 = vpack.c.b16 %v2272, %v2271
      %v2286 = vpack.c.b16 %v2274, %v2273
      %v2287 = vpack.c.b16 %v2276, %v2275
      %v2288 = vpack.c.b16 %v2278, %v2277
      %v2289 = vpack.c.b16 %v2280, %v2279
      %v2290 = vpack.c.b16 %v2282, %v2281
      %2299 = vmatprep.subr.bf16.mxu0 0
      %2300 = vmatpush1.bf16.msra.mxu0 %v2283
      %2301 = vmatprep.subr.bf16.mxu0 0
      %2302 = vmatpush1.bf16.msra.mxu0 %v2284
      %2303 = vmatprep.subr.bf16.mxu0 0
      %2304 = vmatpush1.bf16.msra.mxu0 %v2285
      %2305 = vmatprep.subr.bf16.mxu0 0
      %2306 = vmatpush1.bf16.msra.mxu0 %v2286
      %2307 = vmatprep.subr.bf16.mxu0 0
      %2308 = vmatpush1.bf16.msra.mxu0 %v2287
      %2309 = vmatprep.subr.bf16.mxu0 0
      %2310 = vmatpush1.bf16.msra.mxu0 %v2288
      %2311 = vmatprep.subr.bf16.mxu0 0
      %2312 = vmatpush1.bf16.msra.mxu0 %v2289
      %2313 = vmatprep.subr.bf16.mxu0 0
      %2314 = vmatpush1.bf16.msra.mxu0 %v2290
      %2315 = vmatprep.subr.bf16.mxu0 0
      %2316 = vmatpush1.bf16.msra.mxu0 0
      %2317 = vmatprep.subr.bf16.mxu0 0
      %2318 = vmatpush1.bf16.msra.mxu0 0
      %2319 = vmatprep.subr.bf16.mxu0 0
      %2320 = vmatpush1.bf16.msra.mxu0 0
      %2321 = vmatprep.subr.bf16.mxu0 0
      %2322 = vmatpush1.bf16.msra.mxu0 0
      %2323 = vmatprep.subr.bf16.mxu0 0
      %2324 = vmatpush1.bf16.msra.mxu0 0
      %2325 = vmatprep.subr.bf16.mxu0 0
      %2326 = vmatpush1.bf16.msra.mxu0 0
      %2327 = vmatprep.subr.bf16.mxu0 0
      %2328 = vmatpush1.bf16.msra.mxu0 0
      %2329 = vmatprep.subr.bf16.mxu0 0
      %2330 = vmatpush1.bf16.msra.mxu0 0
      %2331 = vmatprep.mubr.bf16.mxu0 0
      %2332 = vmatmul.mubr.bf16.gmra.mrb[0].mxu0 %v2249
      %v2333 = vpop.f32.mrb[0].mxu0
      %v2334 = vadd.f32 0.0, %v2333
      %v2335 = vpop.f32.mrb[0].mxu0
      %v2336 = vpop.f32.mrb[0].mxu0
      %v2337 = vadd.f32 0.0, %v2336
      %v2338 = vpop.f32.mrb[0].mxu0
      %2339 = vdwg.mxu0
      %v2340 = vadd.f32 %v2220, %v2334
      %v2341 = vadd.f32 %v2221, %v2337
      %2342 = vst [vmem:[#allocation2] sm:$0xff] %v2340
      %2343 = vst [vmem:[#allocation2 + $0x8] sm:$0xff] %v2341
      %v2344 = vld [vmem:[#allocation2] sm:$0xff]
      %v2345 = vld [vmem:[#allocation2 + $0x8] sm:$0xff]
      %v2346 = vld [vmem:[%s213] sm:$0x1]
      %v2348 = vlaneseq
      %v2349 = vshrl.u32 %v2348, 7
      %v2350 = vsub.s32 0, %v2349
      %v2351 = vrot.slane %v2346, %v2350
      %v2353 = vadd.f32 %v2344, %v2351
      %v2354 = vadd.f32 %v2345, %v2351
      %2355 = vst [vmem:[%s221] sm:$0xff] %v2353
      %2356 = vst [vmem:[%s221 + $0x8] sm:$0xff] %v2354
      %p2357 = scmp.lt.s32.totalorder %s18, 1
      %s2358 = scalar_select %p2357, %s18, 1
      %p2359 = scmp.lt.s32.totalorder %s19, 0
      %s2360 = scalar_select %p2359, %s19, 0
      %s2361 = smul.addr %s2358, 2
      %s2362 = sadd.s32 %s2360, %s2361
      %s2363 = smul.addr %s2362, 8
      %s2364 = scalar_lea.vmem %s3, %s2363
      // Predicated region
      $region33: #{discriminator_forward.9} parent=31 // pred_check
        %p2365 = pneg %p124
      $region34: #{discriminator_forward.9} parent=31 // pred_check_branch
        %2367 = sbr.rel (%p2365) target = $region36
      $region35: #{discriminator_forward.9} parent=31 // pred_region
        _
      $region36: #{discriminator_forward.9} parent=31 // pred_fallthru
        _
    $region32: #{discriminator_forward.9} parent=5 // pred_fallthru
      _
    %p2368 = scmp.le.s32.totalorder 2, %s9
    // Predicated region
    $region37: #{discriminator_forward.9} parent=5 // pred_check
      %p2369 = pneg %p2368
    $region38: #{discriminator_forward.9} parent=5 // pred_check_branch
      %2371 = sbr.rel (%p2369) target = $region40
    $region39: #{discriminator_forward.9} parent=5 // pred_region
      %s2372 = ssub.s32 %s9, 2
      // Predicated region
      $region41: #{discriminator_forward.9} parent=39 // pred_check
        %p2373 = pneg %p130
      $region42: #{discriminator_forward.9} parent=39 // pred_check_branch
        %2375 = sbr.rel (%p2373) target = $region44
      $region43: #{discriminator_forward.9} parent=39 // pred_region
        %p2376 = scmp.lt.s32.totalorder %s20, 1
        %s2377 = scalar_select %p2376, %s20, 1
        %p2378 = scmp.lt.s32.totalorder %s21, 0
        %s2379 = scalar_select %p2378, %s21, 0
        %s2380 = smul.addr %s2377, 2
        %s2381 = sadd.s32 %s2379, %s2380
        %s2382 = smul.addr %s2381, 8
        %s2383 = scalar_lea.vmem %s3, %s2382
      $region44: #{discriminator_forward.9} parent=39 // pred_fallthru
        _
    $region40: #{discriminator_forward.9} parent=5 // pred_fallthru
      _
  $region6: #{discriminator_forward.9} parent=0 // loop_footer
    %s13 = sadd.s32 1, %s9
  $region7: #{discriminator_forward.9} parent=0 // loop_footer_branch
    %8 = sbr.rel target = $region3
  $region8: #{discriminator_forward.9} parent=0 // loop_exit
    _

</llo_original>
